<compile_context>
chip_gen: v5e
topology: v5e:2x2
jax: 0.10.0
libtpu: 0.0.40
codegen_flags: <defaults>
</compile_context>

<pallas_src>
import jax
import jax.numpy as jnp
from jax.experimental import pallas as pl
from jax.experimental.pallas import tpu as pltpu


_VMEM_LIMIT = 48 * 1024 * 1024        # fits v5e/v6e (128 MiB) and v7x (64 MiB)
_TILE_VMEM_BUDGET = 8 * 1024 * 1024   # per-pallas_call working-set target
_FC_TK = 640                          # fc1 K-stream tile (multiple of 128)

_CONV_COUT = {"conv1": 16, "conv2": 32, "conv3": 64}
_NUM_CLASSES = 3


def _round_up(v, m):
    return ((v + m - 1) // m) * m


# -----------------------------------------------------------------------------
# Pallas kernel #1: fused conv(+folded BN)+ReLU+2x2 max-pool
#   out = relu( max_{4 pool phases}(A_phase @ W) + shift )
# (relu/max/shift commute, and the BN scale is pre-folded into W, so the
#  epilogue is one add + one max chain; pool lands on idle VPU slots.)
# -----------------------------------------------------------------------------
def _conv_pool_kernel(a00_ref, a01_ref, a10_ref, a11_ref, w_ref, s_ref, o_ref):
    w = w_ref[...]
    y = jnp.dot(a00_ref[...], w, preferred_element_type=jnp.float32)
    y = jnp.maximum(y, jnp.dot(a01_ref[...], w, preferred_element_type=jnp.float32))
    y = jnp.maximum(y, jnp.dot(a10_ref[...], w, preferred_element_type=jnp.float32))
    y = jnp.maximum(y, jnp.dot(a11_ref[...], w, preferred_element_type=jnp.float32))
    y = jnp.maximum(y + s_ref[...], 0.0)
    o_ref[...] = y.astype(o_ref.dtype)


def _conv_tile_rows(mp, k, cout, out_bytes):
    """Pick the M-tile: >= 2 grid steps (megacore/pipeline) within a VMEM budget.

    Counts: 4 phase-activation blocks + 1 output block (scale with tm) and the
    weight + shift blocks, all at the default 2-deep buffering, using the real
    output dtype width.
    """
    fixed = 2 * (k * cout * 2 + cout * 4)             # weight(bf16) + shift(f32), x2
    per_row = 2 * (4 * k * 2 + cout * out_bytes)      # 4 bf16 act streams + out, x2
    cap = max(8, ((_TILE_VMEM_BUDGET - fixed) // per_row) // 8 * 8)
    tm = min(cap, _round_up(pl.cdiv(mp, 2), 8))       # at least 2 grid steps
    return max(tm, 8)


def conv_bn_relu_pool(x_nhwc, wmat, shift, cout):
    """3x3 'same' conv + folded BN + ReLU + 2x2/2 max-pool in ONE pallas_call.

    The pool is fused by building one im2col matrix per pool phase (wrapper-side
    stride-2 slices) and maxing the four matmuls in-kernel; only the pooled,
    unpadded (B*H/2*W/2, Cout) tensor leaves the kernel.
    """
    B, H, W, C = x_nhwc.shape
    assert H % 2 == 0 and W % 2 == 0, "fused 2x2 max-pool requires even H, W"
    K = 9 * C

    # im2col: (B, H, W, 9*C) patches in (kh, kw, c_in) order, bf16.
    xp = jnp.pad(x_nhwc.astype(jnp.bfloat16), ((0, 0), (1, 1), (1, 1), (0, 0)))
    a = jnp.concatenate([xp[:, dy:dy + H, dx:dx + W, :]
                         for dy in range(3) for dx in range(3)], axis=-1)

    # Pool-phase split: phase (p, q) holds the conv input for output pixel
    # (2*ph+p, 2*pw+q), i.e. the 4 members of each 2x2 pool window.
    Hp, Wp = H // 2, W // 2
    Mp = B * Hp * Wp
    phases = [a[:, p::2, q::2, :].reshape(Mp, K)
              for p in range(2) for q in range(2)]

    tm = _conv_tile_rows(Mp, K, cout, out_bytes=2)
    grid = pl.cdiv(Mp, tm)
    Mp_pad = grid * tm
    if Mp_pad != Mp:
        phases = [jnp.pad(ph, ((0, Mp_pad - Mp), (0, 0))) for ph in phases]

    act_spec = pl.BlockSpec((tm, K), lambda i: (i, 0))
    out = pl.pallas_call(
        _conv_pool_kernel,
        out_shape=jax.ShapeDtypeStruct((Mp_pad, cout), jnp.bfloat16),
        grid_spec=pltpu.PrefetchScalarGridSpec(
            num_scalar_prefetch=0,
            grid=(grid,),
            in_specs=[act_spec, act_spec, act_spec, act_spec,
                      pl.BlockSpec((K, cout), lambda i: (0, 0)),   # scale-folded W
                      pl.BlockSpec((1, cout), lambda i: (0, 0))],  # folded BN shift
            out_specs=pl.BlockSpec((tm, cout), lambda i: (i, 0)),
        ),
        compiler_params=pltpu.CompilerParams(
            dimension_semantics=("parallel",),
            vmem_limit_bytes=_VMEM_LIMIT,
        ),
    )(*phases, wmat, shift)
    return out[:Mp].reshape(B, Hp, Wp, cout)
# TODO(synk): collapse the three conv+pool stages into a single pallas_call with
# activations resident in VMEM scratch; the in-kernel 3x3 tap gather and the
# stride-2 pool gather need relayout-free strided reads, so the im2col /
# phase-split stays as thin wrapper-side XLA slicing for now.


# -----------------------------------------------------------------------------
# Pallas kernel #2: fused FC head with the fc1 weight streamed over K
#   acc += x[:, k] @ W1[k]          (per grid step; W1 DMA overlaps MXU work)
#   last step:  h = relu(acc + s1);  out = h @ W2 + s2
# -----------------------------------------------------------------------------
def _fc_head_kernel(x_ref, w1_ref, s1_ref, w2_ref, s2_ref, o_ref, acc_ref):
    k = pl.program_id(0)

    @pl.when(k == 0)
    def _():
        acc_ref[...] = jnp.zeros_like(acc_ref)

    acc_ref[...] += jnp.dot(x_ref[...], w1_ref[...],
                            preferred_element_type=jnp.float32)

    @pl.when(k == pl.num_programs(0) - 1)
    def _():
        h = jnp.maximum(acc_ref[...] + s1_ref[...], 0.0)   # fc1 + BN1d + ReLU
        o_ref[...] = jnp.dot(h.astype(jnp.bfloat16), w2_ref[...],
                             preferred_element_type=jnp.float32) + s2_ref[...]


def fused_fc_head(x, w1, s1, w2, s2, *, tk=_FC_TK):
    """relu(x @ W1 + s1) @ W2 + s2; the 1024-wide intermediate never leaves VMEM.

    K is a reduction grid axis so the fc1 weight streams in (tk, 1024) bf16
    chunks that overlap with compute (the head is weight-DMA bound at batch 2).
    """
    M, K1 = x.shape
    K1w, N1 = w1.shape
    N1w, N2 = w2.shape
    assert K1 == K1w and N1 == N1w
    assert K1 % tk == 0 and tk % 128 == 0 and N2 % 128 == 0

    a = x.astype(jnp.bfloat16)
    M_pad = _round_up(M, 8)
    if M_pad != M:
        a = jnp.pad(a, ((0, M_pad - M), (0, 0)))

    nk = K1 // tk
    # NB: the constant-index operands (s1, w2, s2) are small; pl.Buffered(1)
    # would drop their duplicate buffer but is left off for lowering safety.
    out = pl.pallas_call(
        _fc_head_kernel,
        out_shape=jax.ShapeDtypeStruct((M_pad, N2), jnp.float32),
        grid_spec=pltpu.PrefetchScalarGridSpec(
            num_scalar_prefetch=0,
            grid=(nk,),
            in_specs=[
                pl.BlockSpec((M_pad, tk), lambda k: (0, k)),   # activation K-slice
                pl.BlockSpec((tk, N1), lambda k: (k, 0)),      # streamed fc1 weight
                pl.BlockSpec((1, N1), lambda k: (0, 0)),       # folded BN1d shift
                pl.BlockSpec((N1, N2), lambda k: (0, 0)),      # fc2 weight
                pl.BlockSpec((1, N2), lambda k: (0, 0)),       # fc2 bias
            ],
            out_specs=pl.BlockSpec((M_pad, N2), lambda k: (0, 0)),
            scratch_shapes=[pltpu.VMEM((M_pad, N1), jnp.float32)],
        ),
        compiler_params=pltpu.CompilerParams(
            dimension_semantics=("arbitrary",),
            vmem_limit_bytes=_VMEM_LIMIT,
        ),
    )(a, w1, s1, w2, s2)
    return out[:M]
# TODO(synk): optional int8 (v5e/v6e) / fp8 (v7x) quantization of the streamed
# fc1 weight would halve the dominant DMA; skipped here to keep bf16 accuracy.


# -----------------------------------------------------------------------------
# JAX glue (layout plumbing around the Pallas hot path)
# -----------------------------------------------------------------------------
def adaptive_avg_pool_nhwc(x_nhwc, out_h, out_w):
    """PyTorch AdaptiveAvgPool2d semantics; identity short-circuit when 7x7."""
    B, H, W, C = x_nhwc.shape
    if (H, W) == (out_h, out_w):
        return x_nhwc
    rows = []
    for i in range(out_h):
        h0, h1 = (i * H) // out_h, -((-(i + 1) * H) // out_h)
        cols = []
        for j in range(out_w):
            w0, w1 = (j * W) // out_w, -((-(j + 1) * W) // out_w)
            cols.append(jnp.mean(
                x_nhwc[:, h0:h1, w0:w1, :].astype(jnp.float32), axis=(1, 2)))
        rows.append(jnp.stack(cols, axis=1))
    return jnp.stack(rows, axis=1).astype(x_nhwc.dtype)


# -----------------------------------------------------------------------------
# Parameters: synthetic init (mirrors nn.Module shapes) + one-time preparation
# -----------------------------------------------------------------------------
def init_params(key):
    def nrm(k, shape, s=0.05):
        return s * jax.random.normal(k, shape, dtype=jnp.float32)

    ks = jax.random.split(key, 32)
    p = {}
    specs = [("conv1", 3, 16), ("conv2", 16, 32), ("conv3", 32, 64)]
    i = 0
    for name, cin, cout in specs:
        p[name] = {
            "w": nrm(ks[i], (cout, cin, 3, 3)), "b": nrm(ks[i + 1], (cout,)),
            "gamma": 1.0 + nrm(ks[i + 2], (cout,)),
            "beta": nrm(ks[i + 3], (cout,)),
            "mean": nrm(ks[i + 4], (cout,)),
            "var": 0.5 + jax.random.uniform(ks[i + 5], (cout,), dtype=jnp.float32),
        }
        i += 6
    p["fc1"] = {"w": nrm(ks[i], (1024, 7 * 7 * 64), 0.02),
                "b": nrm(ks[i + 1], (1024,)),
                "gamma": 1.0 + nrm(ks[i + 2], (1024,)),
                "beta": nrm(ks[i + 3], (1024,)),
                "mean": nrm(ks[i + 4], (1024,)),
                "var": 0.5 + jax.random.uniform(ks[i + 5], (1024,),
                                                dtype=jnp.float32)}
    i += 6
    p["fc2"] = {"w": nrm(ks[i], (3, 1024), 0.02), "b": nrm(ks[i + 1], (3,))}
    return p


def _bn_fold(bias, gamma, beta, mean, var, eps=1e-5):
    scale = gamma / jnp.sqrt(var + eps)
    shift = (bias - mean) * scale + beta
    return scale, shift


def prepare_params(p):
    """One-time: fold BN + the NCHW-flatten permutation into weights, cast bf16."""
    prep = {}
    for name in ("conv1", "conv2", "conv3"):
        c = p[name]
        cout = c["w"].shape[0]
        scale, shift = _bn_fold(c["b"], c["gamma"], c["beta"], c["mean"], c["var"])
        # (Cout, Cin, 3, 3) -> (9*Cin, Cout), matching (kh, kw, c_in) patch order.
        wmat = jnp.transpose(c["w"], (2, 3, 1, 0)).reshape(-1, cout)
        prep[name] = {
            "w": (wmat * scale[None, :]).astype(jnp.bfloat16),
            "shift": shift.reshape(1, cout).astype(jnp.float32),
        }

    f1 = p["fc1"]
    scale, shift = _bn_fold(f1["b"], f1["gamma"], f1["beta"], f1["mean"], f1["var"])
    # Fold PyTorch's NCHW .view() flatten into W1's rows so the kernel consumes
    # the NHWC-flattened (B, 7*7*64) activation directly from the conv3 output:
    # row (h*7 + w)*64 + c  <-  PyTorch input column c*49 + h*7 + w.
    w1 = f1["w"].reshape(1024, 64, 7, 7)                       # (n, c, h, w)
    w1 = jnp.transpose(w1, (2, 3, 1, 0)).reshape(7 * 7 * 64, 1024)
    w1 = w1 * scale[None, :]
    k_pad = _round_up(w1.shape[0], _FC_TK) - w1.shape[0]       # 3136 -> 3200
    prep["fc1"] = {
        "w": jnp.pad(w1, ((0, k_pad), (0, 0))).astype(jnp.bfloat16),
        "shift": shift.reshape(1, -1).astype(jnp.float32),
    }

    f2 = p["fc2"]
    n_out = f2["w"].shape[0]
    n_pad = _round_up(n_out, 128)
    prep["fc2"] = {
        "w": jnp.pad(f2["w"].T, ((0, 0), (0, n_pad - n_out))).astype(jnp.bfloat16),
        "shift": jnp.pad(f2["b"], (0, n_pad - n_out))
                    .reshape(1, n_pad).astype(jnp.float32),
    }
    return prep


# -----------------------------------------------------------------------------
# Full forward pass (inference mode: dropout == identity)
# -----------------------------------------------------------------------------
def net_forward(x_nchw, prep):
    x = jnp.transpose(x_nchw, (0, 2, 3, 1)).astype(jnp.bfloat16)   # NCHW -> NHWC

    for name in ("conv1", "conv2", "conv3"):
        x = conv_bn_relu_pool(x, prep[name]["w"], prep[name]["shift"],
                              _CONV_COUT[name])

    x = adaptive_avg_pool_nhwc(x, 7, 7)                 # identity for 56x56 inputs

    # NHWC flatten; the NCHW .view() permutation is pre-folded into fc1's rows.
    B = x.shape[0]
    x = x.reshape(B, 7 * 7 * 64)
    k1 = prep["fc1"]["w"].shape[0]
    if k1 != x.shape[1]:                                # zero-pad to the K-tile grid
        x = jnp.pad(x, ((0, 0), (0, k1 - x.shape[1])))

    # dropout == identity in eval mode; fc1+BN1d+ReLU and fc2 fused, W1 streamed.
    out = fused_fc_head(x, prep["fc1"]["w"], prep["fc1"]["shift"],
                        prep["fc2"]["w"], prep["fc2"]["shift"])
    return out[:, :_NUM_CLASSES]


if __name__ == "__main__":
    key = jax.random.PRNGKey(0)
    k_params, k_x = jax.random.split(key)
    raw_params = init_params(k_params)
    prep = prepare_params(raw_params)   # one-time folding / permute / bf16

    # Input: batch=2, 3 channels, 56x56 spatial (56 -> 28 -> 14 -> 7 after pools).
    x = jax.random.normal(k_x, (2, 3, 56, 56), dtype=jnp.float32)

    out = jax.jit(net_forward)(x, prep)
    out = jax.block_until_ready(out)
    assert out.shape == (2, 3) and out.dtype == jnp.float32
    print("KERNEL_OK")
</pallas_src>

<mosaic_0001>
module attributes {stable_mosaic.version = 11 : i64} {
  func.func @_conv_pool_kernel(%arg0: i32, %arg1: memref<784x27xbf16, #tpu.memory_space<vmem>>, %arg2: memref<784x27xbf16, #tpu.memory_space<vmem>>, %arg3: memref<784x27xbf16, #tpu.memory_space<vmem>>, %arg4: memref<784x27xbf16, #tpu.memory_space<vmem>>, %arg5: memref<27x16xbf16, #tpu.memory_space<vmem>>, %arg6: memref<1x16xf32, #tpu.memory_space<vmem>>, %arg7: memref<784x16xbf16, #tpu.memory_space<vmem>>) attributes {dimension_semantics = [#tpu.dimension_semantics<parallel>], iteration_bounds = array<i64: 2>, scalar_prefetch = 0 : i64, scratch_operands = 0 : i64, tpu.core_type = #tpu.core_type<tc>, window_params = [{transform_indices = @transform_0, window_bounds = array<i64: 784, 27>}, {transform_indices = @transform_1, window_bounds = array<i64: 784, 27>}, {transform_indices = @transform_2, window_bounds = array<i64: 784, 27>}, {transform_indices = @transform_3, window_bounds = array<i64: 784, 27>}, {pipeline_mode = #tpu.pipeline_mode<synchronous>, transform_indices = @transform_4, window_bounds = array<i64: 27, 16>}, {pipeline_mode = #tpu.pipeline_mode<synchronous>, transform_indices = @transform_5, window_bounds = array<i64: 1, 16>}, {transform_indices = @transform_6, window_bounds = array<i64: 784, 16>}]} {
    %c0 = arith.constant 0 : index
    %c0_0 = arith.constant 0 : index
    %0 = vector.load %arg5[%c0, %c0_0] : memref<27x16xbf16, #tpu.memory_space<vmem>>, vector<27x16xbf16>
    %c0_1 = arith.constant 0 : index
    %c0_2 = arith.constant 0 : index
    %1 = vector.load %arg1[%c0_1, %c0_2] : memref<784x27xbf16, #tpu.memory_space<vmem>>, vector<784x27xbf16>
    %cst = arith.constant dense<0.000000e+00> : vector<784x16xf32>
    %2 = tpu.matmul %1, %0, %cst {dimension_numbers = #tpu.dot_dimension_numbers<[1], [0], [0], [1], [0, 0, 1, 1], [], []>} : vector<784x27xbf16>, vector<27x16xbf16>, vector<784x16xf32> -> vector<784x16xf32>
    %c0_3 = arith.constant 0 : index
    %c0_4 = arith.constant 0 : index
    %3 = vector.load %arg2[%c0_3, %c0_4] : memref<784x27xbf16, #tpu.memory_space<vmem>>, vector<784x27xbf16>
    %cst_5 = arith.constant dense<0.000000e+00> : vector<784x16xf32>
    %4 = tpu.matmul %3, %0, %cst_5 {dimension_numbers = #tpu.dot_dimension_numbers<[1], [0], [0], [1], [0, 0, 1, 1], [], []>} : vector<784x27xbf16>, vector<27x16xbf16>, vector<784x16xf32> -> vector<784x16xf32>
    %5 = arith.maximumf %2, %4 : vector<784x16xf32>
    %c0_6 = arith.constant 0 : index
    %c0_7 = arith.constant 0 : index
    %6 = vector.load %arg3[%c0_6, %c0_7] : memref<784x27xbf16, #tpu.memory_space<vmem>>, vector<784x27xbf16>
    %cst_8 = arith.constant dense<0.000000e+00> : vector<784x16xf32>
    %7 = tpu.matmul %6, %0, %cst_8 {dimension_numbers = #tpu.dot_dimension_numbers<[1], [0], [0], [1], [0, 0, 1, 1], [], []>} : vector<784x27xbf16>, vector<27x16xbf16>, vector<784x16xf32> -> vector<784x16xf32>
    %8 = arith.maximumf %5, %7 : vector<784x16xf32>
    %c0_9 = arith.constant 0 : index
    %c0_10 = arith.constant 0 : index
    %9 = vector.load %arg4[%c0_9, %c0_10] : memref<784x27xbf16, #tpu.memory_space<vmem>>, vector<784x27xbf16>
    %cst_11 = arith.constant dense<0.000000e+00> : vector<784x16xf32>
    %10 = tpu.matmul %9, %0, %cst_11 {dimension_numbers = #tpu.dot_dimension_numbers<[1], [0], [0], [1], [0, 0, 1, 1], [], []>} : vector<784x27xbf16>, vector<27x16xbf16>, vector<784x16xf32> -> vector<784x16xf32>
    %11 = arith.maximumf %8, %10 : vector<784x16xf32>
    %c0_12 = arith.constant 0 : index
    %c0_13 = arith.constant 0 : index
    %12 = vector.load %arg6[%c0_12, %c0_13] : memref<1x16xf32, #tpu.memory_space<vmem>>, vector<1x16xf32>
    %13 = vector.broadcast %12 : vector<1x16xf32> to vector<784x16xf32>
    %14 = arith.addf %11, %13 : vector<784x16xf32>
    %cst_14 = arith.constant 0.000000e+00 : f32
    %15 = vector.broadcast %cst_14 : f32 to vector<784x16xf32>
    %16 = arith.maximumf %14, %15 : vector<784x16xf32>
    %17 = arith.truncf %16 : vector<784x16xf32> to vector<784x16xbf16>
    %c0_15 = arith.constant 0 : index
    %c0_16 = arith.constant 0 : index
    %18 = vector.load %arg7[%c0_15, %c0_16] : memref<784x16xbf16, #tpu.memory_space<vmem>>, vector<784x16xbf16>
    tpu.vector_store %arg7[%c0_15, %c0_16], %17 {strides = array<i32>} : memref<784x16xbf16, #tpu.memory_space<vmem>>, vector<784x16xbf16>,
    return
  }
  func.func @transform_0(%arg0: i32) -> (i32, i32) {
    %c0_i32 = arith.constant 0 : i32
    %c0_i32_0 = arith.constant 0 : i32
    return %arg0, %c0_i32 : i32, i32
  }
  func.func @transform_1(%arg0: i32) -> (i32, i32) {
    %c0_i32 = arith.constant 0 : i32
    %c0_i32_0 = arith.constant 0 : i32
    return %arg0, %c0_i32 : i32, i32
  }
  func.func @transform_2(%arg0: i32) -> (i32, i32) {
    %c0_i32 = arith.constant 0 : i32
    %c0_i32_0 = arith.constant 0 : i32
    return %arg0, %c0_i32 : i32, i32
  }
  func.func @transform_3(%arg0: i32) -> (i32, i32) {
    %c0_i32 = arith.constant 0 : i32
    %c0_i32_0 = arith.constant 0 : i32
    return %arg0, %c0_i32 : i32, i32
  }
  func.func @transform_4(%arg0: i32) -> (i32, i32) {
    %c0_i32 = arith.constant 0 : i32
    %c0_i32_0 = arith.constant 0 : i32
    %c0_i32_1 = arith.constant 0 : i32
    return %c0_i32, %c0_i32_0 : i32, i32
  }
  func.func @transform_5(%arg0: i32) -> (i32, i32) {
    %c0_i32 = arith.constant 0 : i32
    %c0_i32_0 = arith.constant 0 : i32
    %c0_i32_1 = arith.constant 0 : i32
    return %c0_i32, %c0_i32_0 : i32, i32
  }
  func.func @transform_6(%arg0: i32) -> (i32, i32) {
    %c0_i32 = arith.constant 0 : i32
    %c0_i32_0 = arith.constant 0 : i32
    return %arg0, %c0_i32 : i32, i32
  }
}

module attributes {stable_mosaic.version = 11 : i64} {
  func.func @_conv_pool_kernel(%arg0: i32, %arg1: memref<200x144xbf16, #tpu.memory_space<vmem>>, %arg2: memref<200x144xbf16, #tpu.memory_space<vmem>>, %arg3: memref<200x144xbf16, #tpu.memory_space<vmem>>, %arg4: memref<200x144xbf16, #tpu.memory_space<vmem>>, %arg5: memref<144x32xbf16, #tpu.memory_space<vmem>>, %arg6: memref<1x32xf32, #tpu.memory_space<vmem>>, %arg7: memref<200x32xbf16, #tpu.memory_space<vmem>>) attributes {dimension_semantics = [#tpu.dimension_semantics<parallel>], iteration_bounds = array<i64: 2>, scalar_prefetch = 0 : i64, scratch_operands = 0 : i64, tpu.core_type = #tpu.core_type<tc>, window_params = [{transform_indices = @transform_0, window_bounds = array<i64: 200, 144>}, {transform_indices = @transform_1, window_bounds = array<i64: 200, 144>}, {transform_indices = @transform_2, window_bounds = array<i64: 200, 144>}, {transform_indices = @transform_3, window_bounds = array<i64: 200, 144>}, {pipeline_mode = #tpu.pipeline_mode<synchronous>, transform_indices = @transform_4, window_bounds = array<i64: 144, 32>}, {pipeline_mode = #tpu.pipeline_mode<synchronous>, transform_indices = @transform_5, window_bounds = array<i64: 1, 32>}, {transform_indices = @transform_6, window_bounds = array<i64: 200, 32>}]} {
    %c0 = arith.constant 0 : index
    %c0_0 = arith.constant 0 : index
    %0 = vector.load %arg5[%c0, %c0_0] : memref<144x32xbf16, #tpu.memory_space<vmem>>, vector<144x32xbf16>
    %c0_1 = arith.constant 0 : index
    %c0_2 = arith.constant 0 : index
    %1 = vector.load %arg1[%c0_1, %c0_2] : memref<200x144xbf16, #tpu.memory_space<vmem>>, vector<200x144xbf16>
    %cst = arith.constant dense<0.000000e+00> : vector<200x32xf32>
    %2 = tpu.matmul %1, %0, %cst {dimension_numbers = #tpu.dot_dimension_numbers<[1], [0], [0], [1], [0, 0, 1, 1], [], []>} : vector<200x144xbf16>, vector<144x32xbf16>, vector<200x32xf32> -> vector<200x32xf32>
    %c0_3 = arith.constant 0 : index
    %c0_4 = arith.constant 0 : index
    %3 = vector.load %arg2[%c0_3, %c0_4] : memref<200x144xbf16, #tpu.memory_space<vmem>>, vector<200x144xbf16>
    %cst_5 = arith.constant dense<0.000000e+00> : vector<200x32xf32>
    %4 = tpu.matmul %3, %0, %cst_5 {dimension_numbers = #tpu.dot_dimension_numbers<[1], [0], [0], [1], [0, 0, 1, 1], [], []>} : vector<200x144xbf16>, vector<144x32xbf16>, vector<200x32xf32> -> vector<200x32xf32>
    %5 = arith.maximumf %2, %4 : vector<200x32xf32>
    %c0_6 = arith.constant 0 : index
    %c0_7 = arith.constant 0 : index
    %6 = vector.load %arg3[%c0_6, %c0_7] : memref<200x144xbf16, #tpu.memory_space<vmem>>, vector<200x144xbf16>
    %cst_8 = arith.constant dense<0.000000e+00> : vector<200x32xf32>
    %7 = tpu.matmul %6, %0, %cst_8 {dimension_numbers = #tpu.dot_dimension_numbers<[1], [0], [0], [1], [0, 0, 1, 1], [], []>} : vector<200x144xbf16>, vector<144x32xbf16>, vector<200x32xf32> -> vector<200x32xf32>
    %8 = arith.maximumf %5, %7 : vector<200x32xf32>
    %c0_9 = arith.constant 0 : index
    %c0_10 = arith.constant 0 : index
    %9 = vector.load %arg4[%c0_9, %c0_10] : memref<200x144xbf16, #tpu.memory_space<vmem>>, vector<200x144xbf16>
    %cst_11 = arith.constant dense<0.000000e+00> : vector<200x32xf32>
    %10 = tpu.matmul %9, %0, %cst_11 {dimension_numbers = #tpu.dot_dimension_numbers<[1], [0], [0], [1], [0, 0, 1, 1], [], []>} : vector<200x144xbf16>, vector<144x32xbf16>, vector<200x32xf32> -> vector<200x32xf32>
    %11 = arith.maximumf %8, %10 : vector<200x32xf32>
    %c0_12 = arith.constant 0 : index
    %c0_13 = arith.constant 0 : index
    %12 = vector.load %arg6[%c0_12, %c0_13] : memref<1x32xf32, #tpu.memory_space<vmem>>, vector<1x32xf32>
    %13 = vector.broadcast %12 : vector<1x32xf32> to vector<200x32xf32>
    %14 = arith.addf %11, %13 : vector<200x32xf32>
    %cst_14 = arith.constant 0.000000e+00 : f32
    %15 = vector.broadcast %cst_14 : f32 to vector<200x32xf32>
    %16 = arith.maximumf %14, %15 : vector<200x32xf32>
    %17 = arith.truncf %16 : vector<200x32xf32> to vector<200x32xbf16>
    %c0_15 = arith.constant 0 : index
    %c0_16 = arith.constant 0 : index
    %18 = vector.load %arg7[%c0_15, %c0_16] : memref<200x32xbf16, #tpu.memory_space<vmem>>, vector<200x32xbf16>
    tpu.vector_store %arg7[%c0_15, %c0_16], %17 {strides = array<i32>} : memref<200x32xbf16, #tpu.memory_space<vmem>>, vector<200x32xbf16>,
    return
  }
  func.func @transform_0(%arg0: i32) -> (i32, i32) {
    %c0_i32 = arith.constant 0 : i32
    %c0_i32_0 = arith.constant 0 : i32
    return %arg0, %c0_i32 : i32, i32
  }
  func.func @transform_1(%arg0: i32) -> (i32, i32) {
    %c0_i32 = arith.constant 0 : i32
    %c0_i32_0 = arith.constant 0 : i32
    return %arg0, %c0_i32 : i32, i32
  }
  func.func @transform_2(%arg0: i32) -> (i32, i32) {
    %c0_i32 = arith.constant 0 : i32
    %c0_i32_0 = arith.constant 0 : i32
    return %arg0, %c0_i32 : i32, i32
  }
  func.func @transform_3(%arg0: i32) -> (i32, i32) {
    %c0_i32 = arith.constant 0 : i32
    %c0_i32_0 = arith.constant 0 : i32
    return %arg0, %c0_i32 : i32, i32
  }
  func.func @transform_4(%arg0: i32) -> (i32, i32) {
    %c0_i32 = arith.constant 0 : i32
    %c0_i32_0 = arith.constant 0 : i32
    %c0_i32_1 = arith.constant 0 : i32
    return %c0_i32, %c0_i32_0 : i32, i32
  }
  func.func @transform_5(%arg0: i32) -> (i32, i32) {
    %c0_i32 = arith.constant 0 : i32
    %c0_i32_0 = arith.constant 0 : i32
    %c0_i32_1 = arith.constant 0 : i32
    return %c0_i32, %c0_i32_0 : i32, i32
  }
  func.func @transform_6(%arg0: i32) -> (i32, i32) {
    %c0_i32 = arith.constant 0 : i32
    %c0_i32_0 = arith.constant 0 : i32
    return %arg0, %c0_i32 : i32, i32
  }
}

module attributes {stable_mosaic.version = 11 : i64} {
  func.func @_conv_pool_kernel(%arg0: i32, %arg1: memref<56x288xbf16, #tpu.memory_space<vmem>>, %arg2: memref<56x288xbf16, #tpu.memory_space<vmem>>, %arg3: memref<56x288xbf16, #tpu.memory_space<vmem>>, %arg4: memref<56x288xbf16, #tpu.memory_space<vmem>>, %arg5: memref<288x64xbf16, #tpu.memory_space<vmem>>, %arg6: memref<1x64xf32, #tpu.memory_space<vmem>>, %arg7: memref<56x64xbf16, #tpu.memory_space<vmem>>) attributes {dimension_semantics = [#tpu.dimension_semantics<parallel>], iteration_bounds = array<i64: 2>, scalar_prefetch = 0 : i64, scratch_operands = 0 : i64, tpu.core_type = #tpu.core_type<tc>, window_params = [{transform_indices = @transform_0, window_bounds = array<i64: 56, 288>}, {transform_indices = @transform_1, window_bounds = array<i64: 56, 288>}, {transform_indices = @transform_2, window_bounds = array<i64: 56, 288>}, {transform_indices = @transform_3, window_bounds = array<i64: 56, 288>}, {pipeline_mode = #tpu.pipeline_mode<synchronous>, transform_indices = @transform_4, window_bounds = array<i64: 288, 64>}, {pipeline_mode = #tpu.pipeline_mode<synchronous>, transform_indices = @transform_5, window_bounds = array<i64: 1, 64>}, {transform_indices = @transform_6, window_bounds = array<i64: 56, 64>}]} {
    %c0 = arith.constant 0 : index
    %c0_0 = arith.constant 0 : index
    %0 = vector.load %arg5[%c0, %c0_0] : memref<288x64xbf16, #tpu.memory_space<vmem>>, vector<288x64xbf16>
    %c0_1 = arith.constant 0 : index
    %c0_2 = arith.constant 0 : index
    %1 = vector.load %arg1[%c0_1, %c0_2] : memref<56x288xbf16, #tpu.memory_space<vmem>>, vector<56x288xbf16>
    %cst = arith.constant dense<0.000000e+00> : vector<56x64xf32>
    %2 = tpu.matmul %1, %0, %cst {dimension_numbers = #tpu.dot_dimension_numbers<[1], [0], [0], [1], [0, 0, 1, 1], [], []>} : vector<56x288xbf16>, vector<288x64xbf16>, vector<56x64xf32> -> vector<56x64xf32>
    %c0_3 = arith.constant 0 : index
    %c0_4 = arith.constant 0 : index
    %3 = vector.load %arg2[%c0_3, %c0_4] : memref<56x288xbf16, #tpu.memory_space<vmem>>, vector<56x288xbf16>
    %cst_5 = arith.constant dense<0.000000e+00> : vector<56x64xf32>
    %4 = tpu.matmul %3, %0, %cst_5 {dimension_numbers = #tpu.dot_dimension_numbers<[1], [0], [0], [1], [0, 0, 1, 1], [], []>} : vector<56x288xbf16>, vector<288x64xbf16>, vector<56x64xf32> -> vector<56x64xf32>
    %5 = arith.maximumf %2, %4 : vector<56x64xf32>
    %c0_6 = arith.constant 0 : index
    %c0_7 = arith.constant 0 : index
    %6 = vector.load %arg3[%c0_6, %c0_7] : memref<56x288xbf16, #tpu.memory_space<vmem>>, vector<56x288xbf16>
    %cst_8 = arith.constant dense<0.000000e+00> : vector<56x64xf32>
    %7 = tpu.matmul %6, %0, %cst_8 {dimension_numbers = #tpu.dot_dimension_numbers<[1], [0], [0], [1], [0, 0, 1, 1], [], []>} : vector<56x288xbf16>, vector<288x64xbf16>, vector<56x64xf32> -> vector<56x64xf32>
    %8 = arith.maximumf %5, %7 : vector<56x64xf32>
    %c0_9 = arith.constant 0 : index
    %c0_10 = arith.constant 0 : index
    %9 = vector.load %arg4[%c0_9, %c0_10] : memref<56x288xbf16, #tpu.memory_space<vmem>>, vector<56x288xbf16>
    %cst_11 = arith.constant dense<0.000000e+00> : vector<56x64xf32>
    %10 = tpu.matmul %9, %0, %cst_11 {dimension_numbers = #tpu.dot_dimension_numbers<[1], [0], [0], [1], [0, 0, 1, 1], [], []>} : vector<56x288xbf16>, vector<288x64xbf16>, vector<56x64xf32> -> vector<56x64xf32>
    %11 = arith.maximumf %8, %10 : vector<56x64xf32>
    %c0_12 = arith.constant 0 : index
    %c0_13 = arith.constant 0 : index
    %12 = vector.load %arg6[%c0_12, %c0_13] : memref<1x64xf32, #tpu.memory_space<vmem>>, vector<1x64xf32>
    %13 = vector.broadcast %12 : vector<1x64xf32> to vector<56x64xf32>
    %14 = arith.addf %11, %13 : vector<56x64xf32>
    %cst_14 = arith.constant 0.000000e+00 : f32
    %15 = vector.broadcast %cst_14 : f32 to vector<56x64xf32>
    %16 = arith.maximumf %14, %15 : vector<56x64xf32>
    %17 = arith.truncf %16 : vector<56x64xf32> to vector<56x64xbf16>
    %c0_15 = arith.constant 0 : index
    %c0_16 = arith.constant 0 : index
    %18 = vector.load %arg7[%c0_15, %c0_16] : memref<56x64xbf16, #tpu.memory_space<vmem>>, vector<56x64xbf16>
    tpu.vector_store %arg7[%c0_15, %c0_16], %17 {strides = array<i32>} : memref<56x64xbf16, #tpu.memory_space<vmem>>, vector<56x64xbf16>,
    return
  }
  func.func @transform_0(%arg0: i32) -> (i32, i32) {
    %c0_i32 = arith.constant 0 : i32
    %c0_i32_0 = arith.constant 0 : i32
    return %arg0, %c0_i32 : i32, i32
  }
  func.func @transform_1(%arg0: i32) -> (i32, i32) {
    %c0_i32 = arith.constant 0 : i32
    %c0_i32_0 = arith.constant 0 : i32
    return %arg0, %c0_i32 : i32, i32
  }
  func.func @transform_2(%arg0: i32) -> (i32, i32) {
    %c0_i32 = arith.constant 0 : i32
    %c0_i32_0 = arith.constant 0 : i32
    return %arg0, %c0_i32 : i32, i32
  }
  func.func @transform_3(%arg0: i32) -> (i32, i32) {
    %c0_i32 = arith.constant 0 : i32
    %c0_i32_0 = arith.constant 0 : i32
    return %arg0, %c0_i32 : i32, i32
  }
  func.func @transform_4(%arg0: i32) -> (i32, i32) {
    %c0_i32 = arith.constant 0 : i32
    %c0_i32_0 = arith.constant 0 : i32
    %c0_i32_1 = arith.constant 0 : i32
    return %c0_i32, %c0_i32_0 : i32, i32
  }
  func.func @transform_5(%arg0: i32) -> (i32, i32) {
    %c0_i32 = arith.constant 0 : i32
    %c0_i32_0 = arith.constant 0 : i32
    %c0_i32_1 = arith.constant 0 : i32
    return %c0_i32, %c0_i32_0 : i32, i32
  }
  func.func @transform_6(%arg0: i32) -> (i32, i32) {
    %c0_i32 = arith.constant 0 : i32
    %c0_i32_0 = arith.constant 0 : i32
    return %arg0, %c0_i32 : i32, i32
  }
}

module attributes {stable_mosaic.version = 11 : i64} {
  func.func @_fc_head_kernel(%arg0: i32, %arg1: memref<8x640xbf16, #tpu.memory_space<vmem>>, %arg2: memref<640x1024xbf16, #tpu.memory_space<vmem>>, %arg3: memref<1x1024xf32, #tpu.memory_space<vmem>>, %arg4: memref<1024x128xbf16, #tpu.memory_space<vmem>>, %arg5: memref<1x128xf32, #tpu.memory_space<vmem>>, %arg6: memref<8x128xf32, #tpu.memory_space<vmem>>, %arg7: memref<8x1024xf32, #tpu.memory_space<vmem>>) attributes {dimension_semantics = [#tpu.dimension_semantics<arbitrary>], iteration_bounds = array<i64: 5>, scalar_prefetch = 0 : i64, scratch_operands = 1 : i64, tpu.core_type = #tpu.core_type<tc>, window_params = [{transform_indices = @transform_0, window_bounds = array<i64: 8, 640>}, {transform_indices = @transform_1, window_bounds = array<i64: 640, 1024>}, {pipeline_mode = #tpu.pipeline_mode<synchronous>, transform_indices = @transform_2, window_bounds = array<i64: 1, 1024>}, {pipeline_mode = #tpu.pipeline_mode<synchronous>, transform_indices = @transform_3, window_bounds = array<i64: 1024, 128>}, {pipeline_mode = #tpu.pipeline_mode<synchronous>, transform_indices = @transform_4, window_bounds = array<i64: 1, 128>}, {pipeline_mode = #tpu.pipeline_mode<synchronous>, transform_indices = @transform_5, window_bounds = array<i64: 8, 128>}]} {
    %c0_i32 = arith.constant 0 : i32
    %0 = arith.cmpi eq, %arg0, %c0_i32 : i32
    %1 = arith.extui %0 : i1 to i32
    %c0_i32_0 = arith.constant 0 : i32
    %2 = arith.cmpi ne, %1, %c0_i32_0 : i32
    scf.if %2 {
      %cst_9 = arith.constant 0.000000e+00 : f32
      %12 = vector.broadcast %cst_9 : f32 to vector<8x1024xf32>
      %c0_10 = arith.constant 0 : index
      %c0_11 = arith.constant 0 : index
      %13 = vector.load %arg7[%c0_10, %c0_11] : memref<8x1024xf32, #tpu.memory_space<vmem>>, vector<8x1024xf32>
      tpu.vector_store %arg7[%c0_10, %c0_11], %12 {strides = array<i32>} : memref<8x1024xf32, #tpu.memory_space<vmem>>, vector<8x1024xf32>,
    } else {
    }
    %c0 = arith.constant 0 : index
    %c0_1 = arith.constant 0 : index
    %3 = vector.load %arg7[%c0, %c0_1] : memref<8x1024xf32, #tpu.memory_space<vmem>>, vector<8x1024xf32>
    %c0_2 = arith.constant 0 : index
    %c0_3 = arith.constant 0 : index
    %4 = vector.load %arg1[%c0_2, %c0_3] : memref<8x640xbf16, #tpu.memory_space<vmem>>, vector<8x640xbf16>
    %c0_4 = arith.constant 0 : index
    %c0_5 = arith.constant 0 : index
    %5 = vector.load %arg2[%c0_4, %c0_5] : memref<640x1024xbf16, #tpu.memory_space<vmem>>, vector<640x1024xbf16>
    %cst = arith.constant dense<0.000000e+00> : vector<8x1024xf32>
    %6 = tpu.matmul %4, %5, %cst {dimension_numbers = #tpu.dot_dimension_numbers<[1], [0], [0], [1], [0, 0, 1, 1], [], []>} : vector<8x640xbf16>, vector<640x1024xbf16>, vector<8x1024xf32> -> vector<8x1024xf32>
    %7 = arith.addf %3, %6 : vector<8x1024xf32>
    %c0_6 = arith.constant 0 : index
    %c0_7 = arith.constant 0 : index
    %8 = vector.load %arg7[%c0_6, %c0_7] : memref<8x1024xf32, #tpu.memory_space<vmem>>, vector<8x1024xf32>
    tpu.vector_store %arg7[%c0_6, %c0_7], %7 {strides = array<i32>} : memref<8x1024xf32, #tpu.memory_space<vmem>>, vector<8x1024xf32>,
    %c4_i32 = arith.constant 4 : i32
    %9 = arith.cmpi eq, %arg0, %c4_i32 : i32
    %10 = arith.extui %9 : i1 to i32
    %c0_i32_8 = arith.constant 0 : i32
    %11 = arith.cmpi ne, %10, %c0_i32_8 : i32
    scf.if %11 {
      %c0_9 = arith.constant 0 : index
      %c0_10 = arith.constant 0 : index
      %12 = vector.load %arg7[%c0_9, %c0_10] : memref<8x1024xf32, #tpu.memory_space<vmem>>, vector<8x1024xf32>
      %c0_11 = arith.constant 0 : index
      %c0_12 = arith.constant 0 : index
      %13 = vector.load %arg3[%c0_11, %c0_12] : memref<1x1024xf32, #tpu.memory_space<vmem>>, vector<1x1024xf32>
      %14 = vector.broadcast %13 : vector<1x1024xf32> to vector<8x1024xf32>
      %15 = arith.addf %12, %14 : vector<8x1024xf32>
      %cst_13 = arith.constant 0.000000e+00 : f32
      %16 = vector.broadcast %cst_13 : f32 to vector<8x1024xf32>
      %17 = arith.maximumf %15, %16 : vector<8x1024xf32>
      %18 = arith.truncf %17 : vector<8x1024xf32> to vector<8x1024xbf16>
      %c0_14 = arith.constant 0 : index
      %c0_15 = arith.constant 0 : index
      %19 = vector.load %arg4[%c0_14, %c0_15] : memref<1024x128xbf16, #tpu.memory_space<vmem>>, vector<1024x128xbf16>
      %cst_16 = arith.constant dense<0.000000e+00> : vector<8x128xf32>
      %20 = tpu.matmul %18, %19, %cst_16 {dimension_numbers = #tpu.dot_dimension_numbers<[1], [0], [0], [1], [0, 0, 1, 1], [], []>} : vector<8x1024xbf16>, vector<1024x128xbf16>, vector<8x128xf32> -> vector<8x128xf32>
      %c0_17 = arith.constant 0 : index
      %c0_18 = arith.constant 0 : index
      %21 = vector.load %arg5[%c0_17, %c0_18] : memref<1x128xf32, #tpu.memory_space<vmem>>, vector<1x128xf32>
      %22 = vector.broadcast %21 : vector<1x128xf32> to vector<8x128xf32>
      %23 = arith.addf %20, %22 : vector<8x128xf32>
      %c0_19 = arith.constant 0 : index
      %c0_20 = arith.constant 0 : index
      %24 = vector.load %arg6[%c0_19, %c0_20] : memref<8x128xf32, #tpu.memory_space<vmem>>, vector<8x128xf32>
      tpu.vector_store %arg6[%c0_19, %c0_20], %23 {strides = array<i32>} : memref<8x128xf32, #tpu.memory_space<vmem>>, vector<8x128xf32>,
    } else {
    }
    return
  }
  func.func @transform_0(%arg0: i32) -> (i32, i32) {
    %c0_i32 = arith.constant 0 : i32
    %c0_i32_0 = arith.constant 0 : i32
    return %c0_i32, %arg0 : i32, i32
  }
  func.func @transform_1(%arg0: i32) -> (i32, i32) {
    %c0_i32 = arith.constant 0 : i32
    %c0_i32_0 = arith.constant 0 : i32
    return %arg0, %c0_i32 : i32, i32
  }
  func.func @transform_2(%arg0: i32) -> (i32, i32) {
    %c0_i32 = arith.constant 0 : i32
    %c0_i32_0 = arith.constant 0 : i32
    %c0_i32_1 = arith.constant 0 : i32
    return %c0_i32, %c0_i32_0 : i32, i32
  }
  func.func @transform_3(%arg0: i32) -> (i32, i32) {
    %c0_i32 = arith.constant 0 : i32
    %c0_i32_0 = arith.constant 0 : i32
    %c0_i32_1 = arith.constant 0 : i32
    return %c0_i32, %c0_i32_0 : i32, i32
  }
  func.func @transform_4(%arg0: i32) -> (i32, i32) {
    %c0_i32 = arith.constant 0 : i32
    %c0_i32_0 = arith.constant 0 : i32
    %c0_i32_1 = arith.constant 0 : i32
    return %c0_i32, %c0_i32_0 : i32, i32
  }
  func.func @transform_5(%arg0: i32) -> (i32, i32) {
    %c0_i32 = arith.constant 0 : i32
    %c0_i32_0 = arith.constant 0 : i32
    %c0_i32_1 = arith.constant 0 : i32
    return %c0_i32, %c0_i32_0 : i32, i32
  }
}

</mosaic_0001>

<llo_original>
// kernel: net_forward.4
$region0: #{net_forward.4}
  #allocation0 [shape = 'u32[]', space=smem, size = 0x4, offset = 0x4, fixed_abs, tag = 'smem constant byte address 0x4 - core index']
  #allocation1 [shape = 'u32[72,128]{1,0:T(1,128)}', space=vmem, size = 0x9000, scoped, tag = 'internal scratch']
  %s0 = inlined_call_operand.vmem [shape: bf16[1568,27], index: 0, kind: input, shape index: {}]
  %s1 = inlined_call_operand.vmem [shape: bf16[1568,27], index: 1, kind: input, shape index: {}]
  %s2 = inlined_call_operand.vmem [shape: bf16[1568,27], index: 2, kind: input, shape index: {}]
  %s3 = inlined_call_operand.vmem [shape: bf16[1568,27], index: 3, kind: input, shape index: {}]
  %s4 = inlined_call_operand.vmem [shape: bf16[27,16], index: 4, kind: input, shape index: {}]
  %s5 = inlined_call_operand.vmem [shape: f32[1,16], index: 5, kind: input, shape index: {}]
  %s6 = inlined_call_operand.vmem [shape: bf16[1568,16], index: 6, kind: output, shape index: {}]
  %s7 = sld [smem:[#allocation0]]
  $region57: #{net_forward.4} parent=0
    _
  %s9 = ssub.s32 1, %s7
  %s10 = scalar_select 0, %s9, %s7
  loop: start=0, step=1, limit=4
  $region2: #{net_forward.4} parent=0 // loop_pre_header
    _
  $region3: #{net_forward.4} parent=0 // loop_header
    %s12 = sphi 0, %s16
    %p13 = scmp.ge.s32.totalorder %s12, 4
    %s22 = sphi 0, %s24
    %s25 = sphi 0, %s22
    %s26 = sphi 0, %s25
    %s42 = sphi 0, %s26
    %s48 = sphi 0, %s50
    %s51 = sphi 0, %s48
    %s52 = sphi 0, %s51
    %s68 = sphi 0, %s52
    %s74 = sphi 0, %s76
    %s77 = sphi 0, %s74
    %s78 = sphi 0, %s77
    %s94 = sphi 0, %s78
    %s100 = sphi 0, %s102
    %s103 = sphi 0, %s100
    %s104 = sphi 0, %s103
    %s120 = sphi 0, %s104
    %s124 = sphi 0, %s124
    %s126 = sphi 0, %s124
    %s127 = sphi 0, %s126
    %s141 = sphi 0, %s127
    %s145 = sphi 0, %s145
    %s147 = sphi 0, %s145
    %s148 = sphi 0, %s147
    %s162 = sphi 0, %s148
    %s168 = sphi 0, %s170
    %s171 = sphi 0, %s168
    %s172 = sphi 0, %s171
    %s188 = sphi 0, %s172
  $region4: #{net_forward.4} parent=0 // loop_header_branch
    %15 = sbr.rel (%p13) target = $region8
  $region5: #{net_forward.4} parent=0 // loop_body
    %s17 = ssub.s32 %s12, 1
    %s18 = ssub.s32 %s12, 2
    %s19 = sadd.s32 %s12, 1
    %s20 = ssub.s32 %s12, %s19
    %p21 = scmp.eq.s32.totalorder %s20, 0
    %s23 = sadd.s32 %s22, 1
    %s24 = scalar_select %p21, %s22, %s23
    %p27 = pneg %p21
    %p28 = scmp.eq.s32.totalorder %s12, 1
    %p29 = por %p27, %p28
    %p30 = scmp.ne.s32.totalorder %s22, %s25
    %p31 = scmp.eq.s32.totalorder %s12, 0
    %p32 = por %p30, %p31
    %p33 = scmp.ne.s32.totalorder %s22, %s25
    %p34 = scmp.eq.s32.totalorder %s17, 1
    %p35 = por %p33, %p34
    %p36 = scmp.ne.s32.totalorder %s25, %s26
    %p37 = scmp.eq.s32.totalorder %s17, 0
    %p38 = por %p36, %p37
    %p39 = scmp.ne.s32.totalorder %s25, %s26
    %p40 = scmp.eq.s32.totalorder %s18, 1
    %p41 = por %p39, %p40
    %p43 = scmp.ne.s32.totalorder %s26, %s42
    %p44 = scmp.eq.s32.totalorder %s18, 0
    %p45 = por %p43, %p44
    %s46 = ssub.s32 %s12, %s19
    %p47 = scmp.eq.s32.totalorder %s46, 0
    %s49 = sadd.s32 %s48, 1
    %s50 = scalar_select %p47, %s48, %s49
    %p53 = pneg %p47
    %p54 = scmp.eq.s32.totalorder %s12, 1
    %p55 = por %p53, %p54
    %p56 = scmp.ne.s32.totalorder %s48, %s51
    %p57 = scmp.eq.s32.totalorder %s12, 0
    %p58 = por %p56, %p57
    %p59 = scmp.ne.s32.totalorder %s48, %s51
    %p60 = scmp.eq.s32.totalorder %s17, 1
    %p61 = por %p59, %p60
    %p62 = scmp.ne.s32.totalorder %s51, %s52
    %p63 = scmp.eq.s32.totalorder %s17, 0
    %p64 = por %p62, %p63
    %p65 = scmp.ne.s32.totalorder %s51, %s52
    %p66 = scmp.eq.s32.totalorder %s18, 1
    %p67 = por %p65, %p66
    %p69 = scmp.ne.s32.totalorder %s52, %s68
    %p70 = scmp.eq.s32.totalorder %s18, 0
    %p71 = por %p69, %p70
    %s72 = ssub.s32 %s12, %s19
    %p73 = scmp.eq.s32.totalorder %s72, 0
    %s75 = sadd.s32 %s74, 1
    %s76 = scalar_select %p73, %s74, %s75
    %p79 = pneg %p73
    %p80 = scmp.eq.s32.totalorder %s12, 1
    %p81 = por %p79, %p80
    %p82 = scmp.ne.s32.totalorder %s74, %s77
    %p83 = scmp.eq.s32.totalorder %s12, 0
    %p84 = por %p82, %p83
    %p85 = scmp.ne.s32.totalorder %s74, %s77
    %p86 = scmp.eq.s32.totalorder %s17, 1
    %p87 = por %p85, %p86
    %p88 = scmp.ne.s32.totalorder %s77, %s78
    %p89 = scmp.eq.s32.totalorder %s17, 0
    %p90 = por %p88, %p89
    %p91 = scmp.ne.s32.totalorder %s77, %s78
    %p92 = scmp.eq.s32.totalorder %s18, 1
    %p93 = por %p91, %p92
    %p95 = scmp.ne.s32.totalorder %s78, %s94
    %p96 = scmp.eq.s32.totalorder %s18, 0
    %p97 = por %p95, %p96
    %s98 = ssub.s32 %s12, %s19
    %p99 = scmp.eq.s32.totalorder %s98, 0
    %s101 = sadd.s32 %s100, 1
    %s102 = scalar_select %p99, %s100, %s101
    %p105 = pneg %p99
    %p106 = scmp.eq.s32.totalorder %s12, 1
    %p107 = por %p105, %p106
    %p108 = scmp.ne.s32.totalorder %s100, %s103
    %p109 = scmp.eq.s32.totalorder %s12, 0
    %p110 = por %p108, %p109
    %p111 = scmp.ne.s32.totalorder %s100, %s103
    %p112 = scmp.eq.s32.totalorder %s17, 1
    %p113 = por %p111, %p112
    %p114 = scmp.ne.s32.totalorder %s103, %s104
    %p115 = scmp.eq.s32.totalorder %s17, 0
    %p116 = por %p114, %p115
    %p117 = scmp.ne.s32.totalorder %s103, %s104
    %p118 = scmp.eq.s32.totalorder %s18, 1
    %p119 = por %p117, %p118
    %p121 = scmp.ne.s32.totalorder %s104, %s120
    %p122 = scmp.eq.s32.totalorder %s18, 0
    %p123 = por %p121, %p122
    %s125 = sadd.s32 %s124, 1
    %p128 = scmp.eq.s32.totalorder %s12, 1
    %p129 = scmp.ne.s32.totalorder %s124, %s126
    %p130 = scmp.eq.s32.totalorder %s12, 0
    %p131 = por %p129, %p130
    %p132 = scmp.ne.s32.totalorder %s124, %s126
    %p133 = scmp.eq.s32.totalorder %s17, 1
    %p134 = por %p132, %p133
    %p135 = scmp.ne.s32.totalorder %s126, %s127
    %p136 = scmp.eq.s32.totalorder %s17, 0
    %p137 = por %p135, %p136
    %p138 = scmp.ne.s32.totalorder %s126, %s127
    %p139 = scmp.eq.s32.totalorder %s18, 1
    %p140 = por %p138, %p139
    %p142 = scmp.ne.s32.totalorder %s127, %s141
    %p143 = scmp.eq.s32.totalorder %s18, 0
    %p144 = por %p142, %p143
    %s146 = sadd.s32 %s145, 1
    %p149 = scmp.eq.s32.totalorder %s12, 1
    %p150 = scmp.ne.s32.totalorder %s145, %s147
    %p151 = scmp.eq.s32.totalorder %s12, 0
    %p152 = por %p150, %p151
    %p153 = scmp.ne.s32.totalorder %s145, %s147
    %p154 = scmp.eq.s32.totalorder %s17, 1
    %p155 = por %p153, %p154
    %p156 = scmp.ne.s32.totalorder %s147, %s148
    %p157 = scmp.eq.s32.totalorder %s17, 0
    %p158 = por %p156, %p157
    %p159 = scmp.ne.s32.totalorder %s147, %s148
    %p160 = scmp.eq.s32.totalorder %s18, 1
    %p161 = por %p159, %p160
    %p163 = scmp.ne.s32.totalorder %s148, %s162
    %p164 = scmp.eq.s32.totalorder %s18, 0
    %p165 = por %p163, %p164
    %s166 = ssub.s32 %s12, %s19
    %p167 = scmp.eq.s32.totalorder %s166, 0
    %s169 = sadd.s32 %s168, 1
    %s170 = scalar_select %p167, %s168, %s169
    %p173 = pneg %p167
    %p174 = scmp.eq.s32.totalorder %s12, 1
    %p175 = por %p173, %p174
    %p176 = scmp.ne.s32.totalorder %s168, %s171
    %p177 = scmp.eq.s32.totalorder %s12, 0
    %p178 = por %p176, %p177
    %p179 = scmp.ne.s32.totalorder %s168, %s171
    %p180 = scmp.eq.s32.totalorder %s17, 1
    %p181 = por %p179, %p180
    %p182 = scmp.ne.s32.totalorder %s171, %s172
    %p183 = scmp.eq.s32.totalorder %s17, 0
    %p184 = por %p182, %p183
    %p185 = scmp.ne.s32.totalorder %s171, %s172
    %p186 = scmp.eq.s32.totalorder %s18, 1
    %p187 = por %p185, %p186
    %p189 = scmp.ne.s32.totalorder %s172, %s188
    %p190 = scmp.eq.s32.totalorder %s18, 0
    %p191 = por %p189, %p190
    %p192 = scmp.le.s32.totalorder 1, %s12
    %p193 = scmp.lt.s32.totalorder %s12, 3
    %p194 = pnand %p192, %p193
    %p195 = pneg %p194
    // Predicated region
    $region9: #{net_forward.4} parent=5 // pred_check
      _
    $region10: #{net_forward.4} parent=5 // pred_check_branch
      %197 = sbr.rel (%p194) target = $region12
    $region11: #{net_forward.4} parent=5 // pred_region
      %s198 = ssub.s32 %s12, 1
      // Predicated region
      $region13: #{net_forward.4} parent=11 // pred_check
        %p199 = pneg %p137
      $region14: #{net_forward.4} parent=11 // pred_check_branch
        %201 = sbr.rel (%p199) target = $region16
      $region15: #{net_forward.4} parent=11 // pred_region
        _
      $region16: #{net_forward.4} parent=11 // pred_fallthru
        _
      // Predicated region
      $region17: #{net_forward.4} parent=11 // pred_check
        %p202 = pneg %p158
      $region18: #{net_forward.4} parent=11 // pred_check_branch
        %204 = sbr.rel (%p202) target = $region20
      $region19: #{net_forward.4} parent=11 // pred_region
        _
      $region20: #{net_forward.4} parent=11 // pred_fallthru
        _
    $region12: #{net_forward.4} parent=5 // pred_fallthru
      _
    %p205 = scmp.lt.s32.totalorder %s12, 2
    // Predicated region
    $region21: #{net_forward.4} parent=5 // pred_check
      %p206 = pneg %p205
    $region22: #{net_forward.4} parent=5 // pred_check_branch
      %208 = sbr.rel (%p206) target = $region24
    $region23: #{net_forward.4} parent=5 // pred_region
      // Predicated region
      $region25: #{net_forward.4} parent=23 // pred_check
        %p209 = pneg %p32
      $region26: #{net_forward.4} parent=23 // pred_check_branch
        %211 = sbr.rel (%p209) target = $region28
      $region27: #{net_forward.4} parent=23 // pred_region
        %s212 = smul.u32 98, %s12
        %p213 = scmp.lt.s32.totalorder %s212, 195
        %s214 = scalar_select %p213, %s212, 195
        %s215 = smul.addr %s214, 4
        %s216 = scalar_lea.vmem %s0, %s215
        %s217 = smul.u32 98, %s12
      $region28: #{net_forward.4} parent=23 // pred_fallthru
        _
      // Predicated region
      $region29: #{net_forward.4} parent=23 // pred_check
        %p218 = pneg %p58
      $region30: #{net_forward.4} parent=23 // pred_check_branch
        %220 = sbr.rel (%p218) target = $region32
      $region31: #{net_forward.4} parent=23 // pred_region
        %s221 = smul.u32 98, %s12
        %p222 = scmp.lt.s32.totalorder %s221, 195
        %s223 = scalar_select %p222, %s221, 195
        %s224 = smul.addr %s223, 4
        %s225 = scalar_lea.vmem %s1, %s224
        %s226 = smul.u32 98, %s12
      $region32: #{net_forward.4} parent=23 // pred_fallthru
        _
      // Predicated region
      $region33: #{net_forward.4} parent=23 // pred_check
        %p227 = pneg %p84
      $region34: #{net_forward.4} parent=23 // pred_check_branch
        %229 = sbr.rel (%p227) target = $region36
      $region35: #{net_forward.4} parent=23 // pred_region
        %s230 = smul.u32 98, %s12
        %p231 = scmp.lt.s32.totalorder %s230, 195
        %s232 = scalar_select %p231, %s230, 195
        %s233 = smul.addr %s232, 4
        %s234 = scalar_lea.vmem %s2, %s233
        %s235 = smul.u32 98, %s12
      $region36: #{net_forward.4} parent=23 // pred_fallthru
        _
      // Predicated region
      $region37: #{net_forward.4} parent=23 // pred_check
        %p236 = pneg %p110
      $region38: #{net_forward.4} parent=23 // pred_check_branch
        %238 = sbr.rel (%p236) target = $region40
      $region39: #{net_forward.4} parent=23 // pred_region
        %s239 = smul.u32 98, %s12
        %p240 = scmp.lt.s32.totalorder %s239, 195
        %s241 = scalar_select %p240, %s239, 195
        %s242 = smul.addr %s241, 4
        %s243 = scalar_lea.vmem %s3, %s242
        %s244 = smul.u32 98, %s12
      $region40: #{net_forward.4} parent=23 // pred_fallthru
        _
    $region24: #{net_forward.4} parent=5 // pred_fallthru
      _
    %p245 = scmp.le.s32.totalorder 1, %s12
    %p246 = scmp.lt.s32.totalorder %s12, 3
    %p247 = pnand %p245, %p246
    %p248 = pneg %p247
    // Predicated region
    $region41: #{net_forward.4} parent=5 // pred_check
      _
    $region42: #{net_forward.4} parent=5 // pred_check_branch
      %250 = sbr.rel (%p247) target = $region44
    $region43: #{net_forward.4} parent=5 // pred_region
      %s251 = ssub.s32 %s12, 1
      %s252 = smul.u32 98, %s17
      %p253 = scmp.lt.s32.totalorder %s252, 195
      %s254 = scalar_select %p253, %s252, 195
      %s255 = smul.addr %s254, 4
      %s256 = scalar_lea.vmem %s0, %s255
      %p257 = pneg %p38
      %p258 = pneg %p35
      %s259 = smul.u32 98, %s17
      %p260 = scmp.lt.s32.totalorder %s259, 195
      %s261 = scalar_select %p260, %s259, 195
      %s262 = smul.addr %s261, 4
      %s263 = scalar_lea.vmem %s1, %s262
      %p264 = pneg %p64
      %p265 = pneg %p61
      %s266 = smul.u32 98, %s17
      %p267 = scmp.lt.s32.totalorder %s266, 195
      %s268 = scalar_select %p267, %s266, 195
      %s269 = smul.addr %s268, 4
      %s270 = scalar_lea.vmem %s2, %s269
      %p271 = pneg %p90
      %p272 = pneg %p87
      %s273 = smul.u32 98, %s17
      %p274 = scmp.lt.s32.totalorder %s273, 195
      %s275 = scalar_select %p274, %s273, 195
      %s276 = smul.addr %s275, 4
      %s277 = scalar_lea.vmem %s3, %s276
      %p278 = pneg %p116
      %p279 = pneg %p113
      %p280 = pneg %p137
      %p281 = pneg %p134
      %p282 = pneg %p158
      %p283 = pneg %p155
      %p284 = pneg %p184
      %p285 = pneg %p181
      %s286 = smul.u32 98, %s17
      %p287 = scmp.lt.s32.totalorder %s286, 195
      %s288 = scalar_select %p287, %s286, 195
      %s289 = smul.addr %s288, 4
      %s290 = scalar_lea.vmem %s6, %s289
      %s291 = smul.u32 98, %s17
      %p292 = scmp.lt.s32.totalorder %s291, 195
      %s293 = scalar_select %p292, %s291, 195
      %s294 = smul.addr %s293, 4
      %s295 = scalar_lea.vmem %s0, %s294
      %s296 = smul.u32 98, %s17
      %s297 = smul.u32 98, %s17
      %p298 = scmp.lt.s32.totalorder %s297, 195
      %s299 = scalar_select %p298, %s297, 195
      %s300 = smul.addr %s299, 4
      %s301 = scalar_lea.vmem %s1, %s300
      %s302 = smul.u32 98, %s17
      %s303 = smul.u32 98, %s17
      %p304 = scmp.lt.s32.totalorder %s303, 195
      %s305 = scalar_select %p304, %s303, 195
      %s306 = smul.addr %s305, 4
      %s307 = scalar_lea.vmem %s2, %s306
      %s308 = smul.u32 98, %s17
      %s309 = smul.u32 98, %s17
      %p310 = scmp.lt.s32.totalorder %s309, 195
      %s311 = scalar_select %p310, %s309, 195
      %s312 = smul.addr %s311, 4
      %s313 = scalar_lea.vmem %s3, %s312
      %s314 = smul.u32 98, %s17
      %s315 = smul.u32 98, %s17
      %p316 = scmp.lt.s32.totalorder %s315, 195
      %s317 = scalar_select %p316, %s315, 195
      %s318 = smul.addr %s317, 4
      %s319 = scalar_lea.vmem %s6, %s318
      %s320 = smul.u32 98, %s17
      %v322 = vld [vmem:[%s4] sm:$0xf]
      %v323 = vld [vmem:[%s4 + $0x4] sm:$0xf]
      %v324 = vld [vmem:[%s4 + $0x8] sm:$0xf]
      %v325 = vld [vmem:[%s4 + $0xc] sm:$0x3]
      %v326 = vld [vmem:[%s295] sm:$0xf]
      %v327 = vld [vmem:[%s295 + $0x4] sm:$0xf]
      %v328 = vld [vmem:[%s295 + $0x8] sm:$0xf]
      %v329 = vld [vmem:[%s295 + $0xc] sm:$0xf]
      %v330 = vld [vmem:[%s295 + $0x10] sm:$0xf]
      %v331 = vld [vmem:[%s295 + $0x14] sm:$0xf]
      %v332 = vld [vmem:[%s295 + $0x18] sm:$0xf]
      %v333 = vld [vmem:[%s295 + $0x1c] sm:$0xf]
      %v334 = vld [vmem:[%s295 + $0x20] sm:$0xf]
      %v335 = vld [vmem:[%s295 + $0x24] sm:$0xf]
      %v336 = vld [vmem:[%s295 + $0x28] sm:$0xf]
      %v337 = vld [vmem:[%s295 + $0x2c] sm:$0xf]
      %v338 = vld [vmem:[%s295 + $0x30] sm:$0xf]
      %v339 = vld [vmem:[%s295 + $0x34] sm:$0xf]
      %v340 = vld [vmem:[%s295 + $0x38] sm:$0xf]
      %v341 = vld [vmem:[%s295 + $0x3c] sm:$0xf]
      %v342 = vld [vmem:[%s295 + $0x40] sm:$0xf]
      %v343 = vld [vmem:[%s295 + $0x44] sm:$0xf]
      %v344 = vld [vmem:[%s295 + $0x48] sm:$0xf]
      %v345 = vld [vmem:[%s295 + $0x4c] sm:$0xf]
      %v346 = vld [vmem:[%s295 + $0x50] sm:$0xf]
      %v347 = vld [vmem:[%s295 + $0x54] sm:$0xf]
      %v348 = vld [vmem:[%s295 + $0x58] sm:$0xf]
      %v349 = vld [vmem:[%s295 + $0x5c] sm:$0xf]
      %v350 = vld [vmem:[%s295 + $0x60] sm:$0xf]
      %v351 = vld [vmem:[%s295 + $0x64] sm:$0xf]
      %v352 = vld [vmem:[%s295 + $0x68] sm:$0xf]
      %v353 = vld [vmem:[%s295 + $0x6c] sm:$0xf]
      %v354 = vld [vmem:[%s295 + $0x70] sm:$0xf]
      %v355 = vld [vmem:[%s295 + $0x74] sm:$0xf]
      %v356 = vld [vmem:[%s295 + $0x78] sm:$0xf]
      %v357 = vld [vmem:[%s295 + $0x7c] sm:$0xf]
      %v358 = vld [vmem:[%s295 + $0x80] sm:$0xf]
      %v359 = vld [vmem:[%s295 + $0x84] sm:$0xf]
      %v360 = vld [vmem:[%s295 + $0x88] sm:$0xf]
      %v361 = vld [vmem:[%s295 + $0x8c] sm:$0xf]
      %v362 = vld [vmem:[%s295 + $0x90] sm:$0xf]
      %v363 = vld [vmem:[%s295 + $0x94] sm:$0xf]
      %v364 = vld [vmem:[%s295 + $0x98] sm:$0xf]
      %v365 = vld [vmem:[%s295 + $0x9c] sm:$0xf]
      %v366 = vld [vmem:[%s295 + $0xa0] sm:$0xf]
      %v367 = vld [vmem:[%s295 + $0xa4] sm:$0xf]
      %v368 = vld [vmem:[%s295 + $0xa8] sm:$0xf]
      %v369 = vld [vmem:[%s295 + $0xac] sm:$0xf]
      %v370 = vld [vmem:[%s295 + $0xb0] sm:$0xf]
      %v371 = vld [vmem:[%s295 + $0xb4] sm:$0xf]
      %v372 = vld [vmem:[%s295 + $0xb8] sm:$0xf]
      %v373 = vld [vmem:[%s295 + $0xbc] sm:$0xf]
      %v374 = vld [vmem:[%s295 + $0xc0] sm:$0xf]
      %v375 = vld [vmem:[%s295 + $0xc4] sm:$0xf]
      %v376 = vld [vmem:[%s295 + $0xc8] sm:$0xf]
      %v377 = vld [vmem:[%s295 + $0xcc] sm:$0xf]
      %v378 = vld [vmem:[%s295 + $0xd0] sm:$0xf]
      %v379 = vld [vmem:[%s295 + $0xd4] sm:$0xf]
      %v380 = vld [vmem:[%s295 + $0xd8] sm:$0xf]
      %v381 = vld [vmem:[%s295 + $0xdc] sm:$0xf]
      %v382 = vld [vmem:[%s295 + $0xe0] sm:$0xf]
      %v383 = vld [vmem:[%s295 + $0xe4] sm:$0xf]
      %v384 = vld [vmem:[%s295 + $0xe8] sm:$0xf]
      %v385 = vld [vmem:[%s295 + $0xec] sm:$0xf]
      %v386 = vld [vmem:[%s295 + $0xf0] sm:$0xf]
      %v387 = vld [vmem:[%s295 + $0xf4] sm:$0xf]
      %v388 = vld [vmem:[%s295 + $0xf8] sm:$0xf]
      %v389 = vld [vmem:[%s295 + $0xfc] sm:$0xf]
      %v390 = vld [vmem:[%s295 + $0x100] sm:$0xf]
      %v391 = vld [vmem:[%s295 + $0x104] sm:$0xf]
      %v392 = vld [vmem:[%s295 + $0x108] sm:$0xf]
      %v393 = vld [vmem:[%s295 + $0x10c] sm:$0xf]
      %v394 = vld [vmem:[%s295 + $0x110] sm:$0xf]
      %v395 = vld [vmem:[%s295 + $0x114] sm:$0xf]
      %v396 = vld [vmem:[%s295 + $0x118] sm:$0xf]
      %v397 = vld [vmem:[%s295 + $0x11c] sm:$0xf]
      %v398 = vld [vmem:[%s295 + $0x120] sm:$0xf]
      %v399 = vld [vmem:[%s295 + $0x124] sm:$0xf]
      %v400 = vld [vmem:[%s295 + $0x128] sm:$0xf]
      %v401 = vld [vmem:[%s295 + $0x12c] sm:$0xf]
      %v402 = vld [vmem:[%s295 + $0x130] sm:$0xf]
      %v403 = vld [vmem:[%s295 + $0x134] sm:$0xf]
      %v404 = vld [vmem:[%s295 + $0x138] sm:$0xf]
      %v405 = vld [vmem:[%s295 + $0x13c] sm:$0xf]
      %v406 = vld [vmem:[%s295 + $0x140] sm:$0xf]
      %v407 = vld [vmem:[%s295 + $0x144] sm:$0xf]
      %v408 = vld [vmem:[%s295 + $0x148] sm:$0xf]
      %v409 = vld [vmem:[%s295 + $0x14c] sm:$0xf]
      %v410 = vld [vmem:[%s295 + $0x150] sm:$0xf]
      %v411 = vld [vmem:[%s295 + $0x154] sm:$0xf]
      %v412 = vld [vmem:[%s295 + $0x158] sm:$0xf]
      %v413 = vld [vmem:[%s295 + $0x15c] sm:$0xf]
      %v414 = vld [vmem:[%s295 + $0x160] sm:$0xf]
      %v415 = vld [vmem:[%s295 + $0x164] sm:$0xf]
      %v416 = vld [vmem:[%s295 + $0x168] sm:$0xf]
      %v417 = vld [vmem:[%s295 + $0x16c] sm:$0xf]
      %v418 = vld [vmem:[%s295 + $0x170] sm:$0xf]
      %v419 = vld [vmem:[%s295 + $0x174] sm:$0xf]
      %v420 = vld [vmem:[%s295 + $0x178] sm:$0xf]
      %v421 = vld [vmem:[%s295 + $0x17c] sm:$0xf]
      %v422 = vld [vmem:[%s295 + $0x180] sm:$0xf]
      %v423 = vld [vmem:[%s295 + $0x184] sm:$0xf]
      %v522 = vunpack.c.l.b16 %v326
      %v523 = vunpack.c.l.b16 %v327
      %v524 = vunpack.c.l.b16 %v328
      %v525 = vunpack.c.l.b16 %v329
      %v526 = vunpack.c.l.b16 %v330
      %v527 = vunpack.c.l.b16 %v331
      %v528 = vunpack.c.l.b16 %v332
      %v529 = vunpack.c.l.b16 %v333
      %v530 = vunpack.c.l.b16 %v334
      %v531 = vunpack.c.l.b16 %v335
      %v532 = vunpack.c.l.b16 %v336
      %v533 = vunpack.c.l.b16 %v337
      %v534 = vunpack.c.l.b16 %v338
      %v535 = vunpack.c.l.b16 %v339
      %v536 = vunpack.c.l.b16 %v340
      %v537 = vunpack.c.l.b16 %v341
      %v538 = vunpack.c.l.b16 %v342
      %v539 = vunpack.c.l.b16 %v343
      %v540 = vunpack.c.l.b16 %v344
      %v541 = vunpack.c.l.b16 %v345
      %v542 = vunpack.c.l.b16 %v346
      %v543 = vunpack.c.l.b16 %v347
      %v544 = vunpack.c.l.b16 %v348
      %v545 = vunpack.c.l.b16 %v349
      %v546 = vunpack.c.l.b16 %v350
      %v547 = vunpack.c.l.b16 %v351
      %v548 = vunpack.c.l.b16 %v352
      %v549 = vunpack.c.l.b16 %v353
      %v550 = vunpack.c.l.b16 %v354
      %v551 = vunpack.c.l.b16 %v355
      %v552 = vunpack.c.l.b16 %v356
      %v553 = vunpack.c.l.b16 %v357
      %v554 = vunpack.c.l.b16 %v358
      %v555 = vunpack.c.l.b16 %v359
      %v556 = vunpack.c.l.b16 %v360
      %v557 = vunpack.c.l.b16 %v361
      %v558 = vunpack.c.l.b16 %v362
      %v559 = vunpack.c.l.b16 %v363
      %v560 = vunpack.c.l.b16 %v364
      %v561 = vunpack.c.l.b16 %v365
      %v562 = vunpack.c.l.b16 %v366
      %v563 = vunpack.c.l.b16 %v367
      %v564 = vunpack.c.l.b16 %v368
      %v565 = vunpack.c.l.b16 %v369
      %v566 = vunpack.c.l.b16 %v370
      %v567 = vunpack.c.l.b16 %v371
      %v568 = vunpack.c.l.b16 %v372
      %v569 = vunpack.c.l.b16 %v373
      %v570 = vunpack.c.l.b16 %v374
      %v571 = vunpack.c.l.b16 %v375
      %v572 = vunpack.c.l.b16 %v376
      %v573 = vunpack.c.l.b16 %v377
      %v574 = vunpack.c.l.b16 %v378
      %v575 = vunpack.c.l.b16 %v379
      %v576 = vunpack.c.l.b16 %v380
      %v577 = vunpack.c.l.b16 %v381
      %v578 = vunpack.c.l.b16 %v382
      %v579 = vunpack.c.l.b16 %v383
      %v580 = vunpack.c.l.b16 %v384
      %v581 = vunpack.c.l.b16 %v385
      %v582 = vunpack.c.l.b16 %v386
      %v583 = vunpack.c.l.b16 %v387
      %v584 = vunpack.c.l.b16 %v388
      %v585 = vunpack.c.l.b16 %v389
      %v586 = vunpack.c.l.b16 %v390
      %v587 = vunpack.c.l.b16 %v391
      %v588 = vunpack.c.l.b16 %v392
      %v589 = vunpack.c.l.b16 %v393
      %v590 = vunpack.c.l.b16 %v394
      %v591 = vunpack.c.l.b16 %v395
      %v592 = vunpack.c.l.b16 %v396
      %v593 = vunpack.c.l.b16 %v397
      %v594 = vunpack.c.l.b16 %v398
      %v595 = vunpack.c.l.b16 %v399
      %v596 = vunpack.c.l.b16 %v400
      %v597 = vunpack.c.l.b16 %v401
      %v598 = vunpack.c.l.b16 %v402
      %v599 = vunpack.c.l.b16 %v403
      %v600 = vunpack.c.l.b16 %v404
      %v601 = vunpack.c.l.b16 %v405
      %v602 = vunpack.c.l.b16 %v406
      %v603 = vunpack.c.l.b16 %v407
      %v604 = vunpack.c.l.b16 %v408
      %v605 = vunpack.c.l.b16 %v409
      %v606 = vunpack.c.l.b16 %v410
      %v607 = vunpack.c.l.b16 %v411
      %v608 = vunpack.c.l.b16 %v412
      %v609 = vunpack.c.l.b16 %v413
      %v610 = vunpack.c.l.b16 %v414
      %v611 = vunpack.c.l.b16 %v415
      %v612 = vunpack.c.l.b16 %v416
      %v613 = vunpack.c.l.b16 %v417
      %v614 = vunpack.c.l.b16 %v418
      %v615 = vunpack.c.l.b16 %v419
      %v616 = vunpack.c.l.b16 %v420
      %v617 = vunpack.c.l.b16 %v421
      %v618 = vunpack.c.l.b16 %v422
      %v619 = vunpack.c.l.b16 %v423
      %v620 = vpack.c.b16 %v523, %v522
      %v621 = vpack.c.b16 %v525, %v524
      %v622 = vpack.c.b16 %v527, %v526
      %v623 = vpack.c.b16 %v529, %v528
      %v624 = vpack.c.b16 %v531, %v530
      %v625 = vpack.c.b16 %v533, %v532
      %v626 = vpack.c.b16 %v535, %v534
      %v627 = vpack.c.b16 %v537, %v536
      %v628 = vpack.c.b16 %v539, %v538
      %v629 = vpack.c.b16 %v541, %v540
      %v630 = vpack.c.b16 %v543, %v542
      %v631 = vpack.c.b16 %v545, %v544
      %v632 = vpack.c.b16 %v547, %v546
      %v633 = vpack.c.b16 %v549, %v548
      %v634 = vpack.c.b16 %v551, %v550
      %v635 = vpack.c.b16 %v553, %v552
      %v636 = vpack.c.b16 %v555, %v554
      %v637 = vpack.c.b16 %v557, %v556
      %v638 = vpack.c.b16 %v559, %v558
      %v639 = vpack.c.b16 %v561, %v560
      %v640 = vpack.c.b16 %v563, %v562
      %v641 = vpack.c.b16 %v565, %v564
      %v642 = vpack.c.b16 %v567, %v566
      %v643 = vpack.c.b16 %v569, %v568
      %v644 = vpack.c.b16 %v571, %v570
      %v645 = vpack.c.b16 %v573, %v572
      %v646 = vpack.c.b16 %v575, %v574
      %v647 = vpack.c.b16 %v577, %v576
      %v648 = vpack.c.b16 %v579, %v578
      %v649 = vpack.c.b16 %v581, %v580
      %v650 = vpack.c.b16 %v583, %v582
      %v651 = vpack.c.b16 %v585, %v584
      %v652 = vpack.c.b16 %v587, %v586
      %v653 = vpack.c.b16 %v589, %v588
      %v654 = vpack.c.b16 %v591, %v590
      %v655 = vpack.c.b16 %v593, %v592
      %v656 = vpack.c.b16 %v595, %v594
      %v657 = vpack.c.b16 %v597, %v596
      %v658 = vpack.c.b16 %v599, %v598
      %v659 = vpack.c.b16 %v601, %v600
      %v660 = vpack.c.b16 %v603, %v602
      %v661 = vpack.c.b16 %v605, %v604
      %v662 = vpack.c.b16 %v607, %v606
      %v663 = vpack.c.b16 %v609, %v608
      %v664 = vpack.c.b16 %v611, %v610
      %v665 = vpack.c.b16 %v613, %v612
      %v666 = vpack.c.b16 %v615, %v614
      %v667 = vpack.c.b16 %v617, %v616
      %v668 = vpack.c.b16 %v619, %v618
      %v673 = vunpack.c.l.b16 %v322
      %v674 = vunpack.c.l.b16 %v323
      %v675 = vunpack.c.l.b16 %v324
      %v676 = vunpack.c.l.b16 %v325
      %v677 = vpack.c.b16 %v674, %v673
      %v678 = vpack.c.b16 %v676, %v675
      %vm680 = vcmask 220160
      %v682 = vsel %vm680, %v620, 0
      %v685 = vsel %vm680, %v621, 0
      %v688 = vsel %vm680, %v622, 0
      %v691 = vsel %vm680, %v623, 0
      %v694 = vsel %vm680, %v624, 0
      %v697 = vsel %vm680, %v625, 0
      %v700 = vsel %vm680, %v626, 0
      %v703 = vsel %vm680, %v627, 0
      %v706 = vsel %vm680, %v628, 0
      %v709 = vsel %vm680, %v629, 0
      %v712 = vsel %vm680, %v630, 0
      %v715 = vsel %vm680, %v631, 0
      %v718 = vsel %vm680, %v632, 0
      %v721 = vsel %vm680, %v633, 0
      %v724 = vsel %vm680, %v634, 0
      %v727 = vsel %vm680, %v635, 0
      %v730 = vsel %vm680, %v636, 0
      %v733 = vsel %vm680, %v637, 0
      %v736 = vsel %vm680, %v638, 0
      %v739 = vsel %vm680, %v639, 0
      %v742 = vsel %vm680, %v640, 0
      %v745 = vsel %vm680, %v641, 0
      %v748 = vsel %vm680, %v642, 0
      %v751 = vsel %vm680, %v643, 0
      %v754 = vsel %vm680, %v644, 0
      %v757 = vsel %vm680, %v645, 0
      %v760 = vsel %vm680, %v646, 0
      %v763 = vsel %vm680, %v647, 0
      %v766 = vsel %vm680, %v648, 0
      %v769 = vsel %vm680, %v649, 0
      %v772 = vsel %vm680, %v650, 0
      %v775 = vsel %vm680, %v651, 0
      %v778 = vsel %vm680, %v652, 0
      %v781 = vsel %vm680, %v653, 0
      %v784 = vsel %vm680, %v654, 0
      %v787 = vsel %vm680, %v655, 0
      %v790 = vsel %vm680, %v656, 0
      %v793 = vsel %vm680, %v657, 0
      %v796 = vsel %vm680, %v658, 0
      %v799 = vsel %vm680, %v659, 0
      %v802 = vsel %vm680, %v660, 0
      %v805 = vsel %vm680, %v661, 0
      %v808 = vsel %vm680, %v662, 0
      %v811 = vsel %vm680, %v663, 0
      %v814 = vsel %vm680, %v664, 0
      %v817 = vsel %vm680, %v665, 0
      %v820 = vsel %vm680, %v666, 0
      %v823 = vsel %vm680, %v667, 0
      %v826 = vsel %vm680, %v668, 0
      %vm828 = vcmask 1044480
      %vm829 = vcmask 1045504
      %v830 = vsel %vm828, 4294967295, 65535
      %v831 = vsel %vm829, %v830, 0
      %v833 = vand.u32 %v678, %v831
      %835 = vmatpush.bf16.msra.mxu0 0
      %836 = vmatpush.bf16.msra.mxu0 0
      %837 = vmatpush.bf16.msra.mxu0 0
      %838 = vmatpush.bf16.msra.mxu0 0
      %839 = vmatpush.bf16.msra.mxu0 0
      %840 = vmatpush.bf16.msra.mxu0 0
      %841 = vmatpush.bf16.msra.mxu0 %v833
      %842 = vmatpush.bf16.msra.mxu0 %v677
      %843 = vmatmul.bf16.gmra.mxu0 %v682
      %v844 = vpop.f32.mrf.mxu0
      %v845 = vadd.f32 0.0, %v844
      %v846 = vpop.f32.mrf.mxu0
      %v847 = vadd.f32 0.0, %v846
      %848 = vmatmul.bf16.gmra.mxu0 %v685
      %v849 = vpop.f32.mrf.mxu0
      %v850 = vadd.f32 0.0, %v849
      %v851 = vpop.f32.mrf.mxu0
      %v852 = vadd.f32 0.0, %v851
      %853 = vmatmul.bf16.gmra.mxu0 %v688
      %v854 = vpop.f32.mrf.mxu0
      %v855 = vadd.f32 0.0, %v854
      %v856 = vpop.f32.mrf.mxu0
      %v857 = vadd.f32 0.0, %v856
      %858 = vmatmul.bf16.gmra.mxu0 %v691
      %v859 = vpop.f32.mrf.mxu0
      %v860 = vadd.f32 0.0, %v859
      %v861 = vpop.f32.mrf.mxu0
      %v862 = vadd.f32 0.0, %v861
      %863 = vmatmul.bf16.gmra.mxu0 %v694
      %v864 = vpop.f32.mrf.mxu0
      %v865 = vadd.f32 0.0, %v864
      %v866 = vpop.f32.mrf.mxu0
      %v867 = vadd.f32 0.0, %v866
      %868 = vmatmul.bf16.gmra.mxu0 %v697
      %v869 = vpop.f32.mrf.mxu0
      %v870 = vadd.f32 0.0, %v869
      %v871 = vpop.f32.mrf.mxu0
      %v872 = vadd.f32 0.0, %v871
      %873 = vmatmul.bf16.gmra.mxu0 %v700
      %v874 = vpop.f32.mrf.mxu0
      %v875 = vadd.f32 0.0, %v874
      %v876 = vpop.f32.mrf.mxu0
      %v877 = vadd.f32 0.0, %v876
      %878 = vmatmul.bf16.gmra.mxu0 %v703
      %v879 = vpop.f32.mrf.mxu0
      %v880 = vadd.f32 0.0, %v879
      %v881 = vpop.f32.mrf.mxu0
      %v882 = vadd.f32 0.0, %v881
      %883 = vmatmul.bf16.gmra.mxu0 %v706
      %v884 = vpop.f32.mrf.mxu0
      %v885 = vadd.f32 0.0, %v884
      %v886 = vpop.f32.mrf.mxu0
      %v887 = vadd.f32 0.0, %v886
      %888 = vmatmul.bf16.gmra.mxu0 %v709
      %v889 = vpop.f32.mrf.mxu0
      %v890 = vadd.f32 0.0, %v889
      %v891 = vpop.f32.mrf.mxu0
      %v892 = vadd.f32 0.0, %v891
      %893 = vmatmul.bf16.gmra.mxu0 %v712
      %v894 = vpop.f32.mrf.mxu0
      %v895 = vadd.f32 0.0, %v894
      %v896 = vpop.f32.mrf.mxu0
      %v897 = vadd.f32 0.0, %v896
      %898 = vmatmul.bf16.gmra.mxu0 %v715
      %v899 = vpop.f32.mrf.mxu0
      %v900 = vadd.f32 0.0, %v899
      %v901 = vpop.f32.mrf.mxu0
      %v902 = vadd.f32 0.0, %v901
      %903 = vmatmul.bf16.gmra.mxu0 %v718
      %v904 = vpop.f32.mrf.mxu0
      %v905 = vadd.f32 0.0, %v904
      %v906 = vpop.f32.mrf.mxu0
      %v907 = vadd.f32 0.0, %v906
      %908 = vmatmul.bf16.gmra.mxu0 %v721
      %v909 = vpop.f32.mrf.mxu0
      %v910 = vadd.f32 0.0, %v909
      %v911 = vpop.f32.mrf.mxu0
      %v912 = vadd.f32 0.0, %v911
      %913 = vmatmul.bf16.gmra.mxu0 %v724
      %v914 = vpop.f32.mrf.mxu0
      %v915 = vadd.f32 0.0, %v914
      %v916 = vpop.f32.mrf.mxu0
      %v917 = vadd.f32 0.0, %v916
      %918 = vmatmul.bf16.gmra.mxu0 %v727
      %v919 = vpop.f32.mrf.mxu0
      %v920 = vadd.f32 0.0, %v919
      %v921 = vpop.f32.mrf.mxu0
      %v922 = vadd.f32 0.0, %v921
      %923 = vmatmul.bf16.gmra.mxu0 %v730
      %v924 = vpop.f32.mrf.mxu0
      %v925 = vadd.f32 0.0, %v924
      %v926 = vpop.f32.mrf.mxu0
      %v927 = vadd.f32 0.0, %v926
      %928 = vmatmul.bf16.gmra.mxu0 %v733
      %v929 = vpop.f32.mrf.mxu0
      %v930 = vadd.f32 0.0, %v929
      %v931 = vpop.f32.mrf.mxu0
      %v932 = vadd.f32 0.0, %v931
      %933 = vmatmul.bf16.gmra.mxu0 %v736
      %v934 = vpop.f32.mrf.mxu0
      %v935 = vadd.f32 0.0, %v934
      %v936 = vpop.f32.mrf.mxu0
      %v937 = vadd.f32 0.0, %v936
      %938 = vmatmul.bf16.gmra.mxu0 %v739
      %v939 = vpop.f32.mrf.mxu0
      %v940 = vadd.f32 0.0, %v939
      %v941 = vpop.f32.mrf.mxu0
      %v942 = vadd.f32 0.0, %v941
      %943 = vmatmul.bf16.gmra.mxu0 %v742
      %v944 = vpop.f32.mrf.mxu0
      %v945 = vadd.f32 0.0, %v944
      %v946 = vpop.f32.mrf.mxu0
      %v947 = vadd.f32 0.0, %v946
      %948 = vmatmul.bf16.gmra.mxu0 %v745
      %v949 = vpop.f32.mrf.mxu0
      %v950 = vadd.f32 0.0, %v949
      %v951 = vpop.f32.mrf.mxu0
      %v952 = vadd.f32 0.0, %v951
      %953 = vmatmul.bf16.gmra.mxu0 %v748
      %v954 = vpop.f32.mrf.mxu0
      %v955 = vadd.f32 0.0, %v954
      %v956 = vpop.f32.mrf.mxu0
      %v957 = vadd.f32 0.0, %v956
      %958 = vmatmul.bf16.gmra.mxu0 %v751
      %v959 = vpop.f32.mrf.mxu0
      %v960 = vadd.f32 0.0, %v959
      %v961 = vpop.f32.mrf.mxu0
      %v962 = vadd.f32 0.0, %v961
      %963 = vmatmul.bf16.gmra.mxu0 %v754
      %v964 = vpop.f32.mrf.mxu0
      %v965 = vadd.f32 0.0, %v964
      %v966 = vpop.f32.mrf.mxu0
      %v967 = vadd.f32 0.0, %v966
      %968 = vmatmul.bf16.gmra.mxu0 %v757
      %v969 = vpop.f32.mrf.mxu0
      %v970 = vadd.f32 0.0, %v969
      %v971 = vpop.f32.mrf.mxu0
      %v972 = vadd.f32 0.0, %v971
      %973 = vmatmul.bf16.gmra.mxu0 %v760
      %v974 = vpop.f32.mrf.mxu0
      %v975 = vadd.f32 0.0, %v974
      %v976 = vpop.f32.mrf.mxu0
      %v977 = vadd.f32 0.0, %v976
      %978 = vmatmul.bf16.gmra.mxu0 %v763
      %v979 = vpop.f32.mrf.mxu0
      %v980 = vadd.f32 0.0, %v979
      %v981 = vpop.f32.mrf.mxu0
      %v982 = vadd.f32 0.0, %v981
      %983 = vmatmul.bf16.gmra.mxu0 %v766
      %v984 = vpop.f32.mrf.mxu0
      %v985 = vadd.f32 0.0, %v984
      %v986 = vpop.f32.mrf.mxu0
      %v987 = vadd.f32 0.0, %v986
      %988 = vmatmul.bf16.gmra.mxu0 %v769
      %v989 = vpop.f32.mrf.mxu0
      %v990 = vadd.f32 0.0, %v989
      %v991 = vpop.f32.mrf.mxu0
      %v992 = vadd.f32 0.0, %v991
      %993 = vmatmul.bf16.gmra.mxu0 %v772
      %v994 = vpop.f32.mrf.mxu0
      %v995 = vadd.f32 0.0, %v994
      %v996 = vpop.f32.mrf.mxu0
      %v997 = vadd.f32 0.0, %v996
      %998 = vmatmul.bf16.gmra.mxu0 %v775
      %v999 = vpop.f32.mrf.mxu0
      %v1000 = vadd.f32 0.0, %v999
      %v1001 = vpop.f32.mrf.mxu0
      %v1002 = vadd.f32 0.0, %v1001
      %1003 = vmatmul.bf16.gmra.mxu0 %v778
      %v1004 = vpop.f32.mrf.mxu0
      %v1005 = vadd.f32 0.0, %v1004
      %v1006 = vpop.f32.mrf.mxu0
      %v1007 = vadd.f32 0.0, %v1006
      %1008 = vmatmul.bf16.gmra.mxu0 %v781
      %v1009 = vpop.f32.mrf.mxu0
      %v1010 = vadd.f32 0.0, %v1009
      %v1011 = vpop.f32.mrf.mxu0
      %v1012 = vadd.f32 0.0, %v1011
      %1013 = vmatmul.bf16.gmra.mxu0 %v784
      %v1014 = vpop.f32.mrf.mxu0
      %v1015 = vadd.f32 0.0, %v1014
      %v1016 = vpop.f32.mrf.mxu0
      %v1017 = vadd.f32 0.0, %v1016
      %1018 = vmatmul.bf16.gmra.mxu0 %v787
      %v1019 = vpop.f32.mrf.mxu0
      %v1020 = vadd.f32 0.0, %v1019
      %v1021 = vpop.f32.mrf.mxu0
      %v1022 = vadd.f32 0.0, %v1021
      %1023 = vmatmul.bf16.gmra.mxu0 %v790
      %v1024 = vpop.f32.mrf.mxu0
      %v1025 = vadd.f32 0.0, %v1024
      %v1026 = vpop.f32.mrf.mxu0
      %v1027 = vadd.f32 0.0, %v1026
      %1028 = vmatmul.bf16.gmra.mxu0 %v793
      %v1029 = vpop.f32.mrf.mxu0
      %v1030 = vadd.f32 0.0, %v1029
      %v1031 = vpop.f32.mrf.mxu0
      %v1032 = vadd.f32 0.0, %v1031
      %1033 = vmatmul.bf16.gmra.mxu0 %v796
      %v1034 = vpop.f32.mrf.mxu0
      %v1035 = vadd.f32 0.0, %v1034
      %v1036 = vpop.f32.mrf.mxu0
      %v1037 = vadd.f32 0.0, %v1036
      %1038 = vmatmul.bf16.gmra.mxu0 %v799
      %v1039 = vpop.f32.mrf.mxu0
      %v1040 = vadd.f32 0.0, %v1039
      %v1041 = vpop.f32.mrf.mxu0
      %v1042 = vadd.f32 0.0, %v1041
      %1043 = vmatmul.bf16.gmra.mxu0 %v802
      %v1044 = vpop.f32.mrf.mxu0
      %v1045 = vadd.f32 0.0, %v1044
      %v1046 = vpop.f32.mrf.mxu0
      %v1047 = vadd.f32 0.0, %v1046
      %1048 = vmatmul.bf16.gmra.mxu0 %v805
      %v1049 = vpop.f32.mrf.mxu0
      %v1050 = vadd.f32 0.0, %v1049
      %v1051 = vpop.f32.mrf.mxu0
      %v1052 = vadd.f32 0.0, %v1051
      %1053 = vmatmul.bf16.gmra.mxu0 %v808
      %v1054 = vpop.f32.mrf.mxu0
      %v1055 = vadd.f32 0.0, %v1054
      %v1056 = vpop.f32.mrf.mxu0
      %v1057 = vadd.f32 0.0, %v1056
      %1058 = vmatmul.bf16.gmra.mxu0 %v811
      %v1059 = vpop.f32.mrf.mxu0
      %v1060 = vadd.f32 0.0, %v1059
      %v1061 = vpop.f32.mrf.mxu0
      %v1062 = vadd.f32 0.0, %v1061
      %1063 = vmatmul.bf16.gmra.mxu0 %v814
      %v1064 = vpop.f32.mrf.mxu0
      %v1065 = vadd.f32 0.0, %v1064
      %v1066 = vpop.f32.mrf.mxu0
      %v1067 = vadd.f32 0.0, %v1066
      %1068 = vmatmul.bf16.gmra.mxu0 %v817
      %v1069 = vpop.f32.mrf.mxu0
      %v1070 = vadd.f32 0.0, %v1069
      %v1071 = vpop.f32.mrf.mxu0
      %v1072 = vadd.f32 0.0, %v1071
      %1073 = vmatmul.bf16.gmra.mxu0 %v820
      %v1074 = vpop.f32.mrf.mxu0
      %v1075 = vadd.f32 0.0, %v1074
      %v1076 = vpop.f32.mrf.mxu0
      %v1077 = vadd.f32 0.0, %v1076
      %1078 = vmatmul.bf16.gmra.mxu0 %v823
      %v1079 = vpop.f32.mrf.mxu0
      %v1080 = vadd.f32 0.0, %v1079
      %v1081 = vpop.f32.mrf.mxu0
      %v1082 = vadd.f32 0.0, %v1081
      %1083 = vmatmul.bf16.gmra.mxu0 %v826
      %v1084 = vpop.f32.mrf.mxu0
      %v1085 = vadd.f32 0.0, %v1084
      %v1086 = vpop.f32.mrf.mxu0
      %v1087 = vadd.f32 0.0, %v1086
      %1088 = vdwg.mxu0
      %v1089 = vld [vmem:[%s301] sm:$0xf]
      %v1090 = vld [vmem:[%s301 + $0x4] sm:$0xf]
      %v1091 = vld [vmem:[%s301 + $0x8] sm:$0xf]
      %v1092 = vld [vmem:[%s301 + $0xc] sm:$0xf]
      %v1093 = vld [vmem:[%s301 + $0x10] sm:$0xf]
      %v1094 = vld [vmem:[%s301 + $0x14] sm:$0xf]
      %v1095 = vld [vmem:[%s301 + $0x18] sm:$0xf]
      %v1096 = vld [vmem:[%s301 + $0x1c] sm:$0xf]
      %v1097 = vld [vmem:[%s301 + $0x20] sm:$0xf]
      %v1098 = vld [vmem:[%s301 + $0x24] sm:$0xf]
      %v1099 = vld [vmem:[%s301 + $0x28] sm:$0xf]
      %v1100 = vld [vmem:[%s301 + $0x2c] sm:$0xf]
      %v1101 = vld [vmem:[%s301 + $0x30] sm:$0xf]
      %v1102 = vld [vmem:[%s301 + $0x34] sm:$0xf]
      %v1103 = vld [vmem:[%s301 + $0x38] sm:$0xf]
      %v1104 = vld [vmem:[%s301 + $0x3c] sm:$0xf]
      %v1105 = vld [vmem:[%s301 + $0x40] sm:$0xf]
      %v1106 = vld [vmem:[%s301 + $0x44] sm:$0xf]
      %v1107 = vld [vmem:[%s301 + $0x48] sm:$0xf]
      %v1108 = vld [vmem:[%s301 + $0x4c] sm:$0xf]
      %v1109 = vld [vmem:[%s301 + $0x50] sm:$0xf]
      %v1110 = vld [vmem:[%s301 + $0x54] sm:$0xf]
      %v1111 = vld [vmem:[%s301 + $0x58] sm:$0xf]
      %v1112 = vld [vmem:[%s301 + $0x5c] sm:$0xf]
      %v1113 = vld [vmem:[%s301 + $0x60] sm:$0xf]
      %v1114 = vld [vmem:[%s301 + $0x64] sm:$0xf]
      %v1115 = vld [vmem:[%s301 + $0x68] sm:$0xf]
      %v1116 = vld [vmem:[%s301 + $0x6c] sm:$0xf]
      %v1117 = vld [vmem:[%s301 + $0x70] sm:$0xf]
      %v1118 = vld [vmem:[%s301 + $0x74] sm:$0xf]
      %v1119 = vld [vmem:[%s301 + $0x78] sm:$0xf]
      %v1120 = vld [vmem:[%s301 + $0x7c] sm:$0xf]
      %v1121 = vld [vmem:[%s301 + $0x80] sm:$0xf]
      %v1122 = vld [vmem:[%s301 + $0x84] sm:$0xf]
      %v1123 = vld [vmem:[%s301 + $0x88] sm:$0xf]
      %v1124 = vld [vmem:[%s301 + $0x8c] sm:$0xf]
      %v1125 = vld [vmem:[%s301 + $0x90] sm:$0xf]
      %v1126 = vld [vmem:[%s301 + $0x94] sm:$0xf]
      %v1127 = vld [vmem:[%s301 + $0x98] sm:$0xf]
      %v1128 = vld [vmem:[%s301 + $0x9c] sm:$0xf]
      %v1129 = vld [vmem:[%s301 + $0xa0] sm:$0xf]
      %v1130 = vld [vmem:[%s301 + $0xa4] sm:$0xf]
      %v1131 = vld [vmem:[%s301 + $0xa8] sm:$0xf]
      %v1132 = vld [vmem:[%s301 + $0xac] sm:$0xf]
      %v1133 = vld [vmem:[%s301 + $0xb0] sm:$0xf]
      %v1134 = vld [vmem:[%s301 + $0xb4] sm:$0xf]
      %v1135 = vld [vmem:[%s301 + $0xb8] sm:$0xf]
      %v1136 = vld [vmem:[%s301 + $0xbc] sm:$0xf]
      %v1137 = vld [vmem:[%s301 + $0xc0] sm:$0xf]
      %v1138 = vld [vmem:[%s301 + $0xc4] sm:$0xf]
      %v1139 = vld [vmem:[%s301 + $0xc8] sm:$0xf]
      %v1140 = vld [vmem:[%s301 + $0xcc] sm:$0xf]
      %v1141 = vld [vmem:[%s301 + $0xd0] sm:$0xf]
      %v1142 = vld [vmem:[%s301 + $0xd4] sm:$0xf]
      %v1143 = vld [vmem:[%s301 + $0xd8] sm:$0xf]
      %v1144 = vld [vmem:[%s301 + $0xdc] sm:$0xf]
      %v1145 = vld [vmem:[%s301 + $0xe0] sm:$0xf]
      %v1146 = vld [vmem:[%s301 + $0xe4] sm:$0xf]
      %v1147 = vld [vmem:[%s301 + $0xe8] sm:$0xf]
      %v1148 = vld [vmem:[%s301 + $0xec] sm:$0xf]
      %v1149 = vld [vmem:[%s301 + $0xf0] sm:$0xf]
      %v1150 = vld [vmem:[%s301 + $0xf4] sm:$0xf]
      %v1151 = vld [vmem:[%s301 + $0xf8] sm:$0xf]
      %v1152 = vld [vmem:[%s301 + $0xfc] sm:$0xf]
      %v1153 = vld [vmem:[%s301 + $0x100] sm:$0xf]
      %v1154 = vld [vmem:[%s301 + $0x104] sm:$0xf]
      %v1155 = vld [vmem:[%s301 + $0x108] sm:$0xf]
      %v1156 = vld [vmem:[%s301 + $0x10c] sm:$0xf]
      %v1157 = vld [vmem:[%s301 + $0x110] sm:$0xf]
      %v1158 = vld [vmem:[%s301 + $0x114] sm:$0xf]
      %v1159 = vld [vmem:[%s301 + $0x118] sm:$0xf]
      %v1160 = vld [vmem:[%s301 + $0x11c] sm:$0xf]
      %v1161 = vld [vmem:[%s301 + $0x120] sm:$0xf]
      %v1162 = vld [vmem:[%s301 + $0x124] sm:$0xf]
      %v1163 = vld [vmem:[%s301 + $0x128] sm:$0xf]
      %v1164 = vld [vmem:[%s301 + $0x12c] sm:$0xf]
      %v1165 = vld [vmem:[%s301 + $0x130] sm:$0xf]
      %v1166 = vld [vmem:[%s301 + $0x134] sm:$0xf]
      %v1167 = vld [vmem:[%s301 + $0x138] sm:$0xf]
      %v1168 = vld [vmem:[%s301 + $0x13c] sm:$0xf]
      %v1169 = vld [vmem:[%s301 + $0x140] sm:$0xf]
      %v1170 = vld [vmem:[%s301 + $0x144] sm:$0xf]
      %v1171 = vld [vmem:[%s301 + $0x148] sm:$0xf]
      %v1172 = vld [vmem:[%s301 + $0x14c] sm:$0xf]
      %v1173 = vld [vmem:[%s301 + $0x150] sm:$0xf]
      %v1174 = vld [vmem:[%s301 + $0x154] sm:$0xf]
      %v1175 = vld [vmem:[%s301 + $0x158] sm:$0xf]
      %v1176 = vld [vmem:[%s301 + $0x15c] sm:$0xf]
      %v1177 = vld [vmem:[%s301 + $0x160] sm:$0xf]
      %v1178 = vld [vmem:[%s301 + $0x164] sm:$0xf]
      %v1179 = vld [vmem:[%s301 + $0x168] sm:$0xf]
      %v1180 = vld [vmem:[%s301 + $0x16c] sm:$0xf]
      %v1181 = vld [vmem:[%s301 + $0x170] sm:$0xf]
      %v1182 = vld [vmem:[%s301 + $0x174] sm:$0xf]
      %v1183 = vld [vmem:[%s301 + $0x178] sm:$0xf]
      %v1184 = vld [vmem:[%s301 + $0x17c] sm:$0xf]
      %v1185 = vld [vmem:[%s301 + $0x180] sm:$0xf]
      %v1186 = vld [vmem:[%s301 + $0x184] sm:$0xf]
      %v1285 = vunpack.c.l.b16 %v1089
      %v1286 = vunpack.c.l.b16 %v1090
      %v1287 = vunpack.c.l.b16 %v1091
      %v1288 = vunpack.c.l.b16 %v1092
      %v1289 = vunpack.c.l.b16 %v1093
      %v1290 = vunpack.c.l.b16 %v1094
      %v1291 = vunpack.c.l.b16 %v1095
      %v1292 = vunpack.c.l.b16 %v1096
      %v1293 = vunpack.c.l.b16 %v1097
      %v1294 = vunpack.c.l.b16 %v1098
      %v1295 = vunpack.c.l.b16 %v1099
      %v1296 = vunpack.c.l.b16 %v1100
      %v1297 = vunpack.c.l.b16 %v1101
      %v1298 = vunpack.c.l.b16 %v1102
      %v1299 = vunpack.c.l.b16 %v1103
      %v1300 = vunpack.c.l.b16 %v1104
      %v1301 = vunpack.c.l.b16 %v1105
      %v1302 = vunpack.c.l.b16 %v1106
      %v1303 = vunpack.c.l.b16 %v1107
      %v1304 = vunpack.c.l.b16 %v1108
      %v1305 = vunpack.c.l.b16 %v1109
      %v1306 = vunpack.c.l.b16 %v1110
      %v1307 = vunpack.c.l.b16 %v1111
      %v1308 = vunpack.c.l.b16 %v1112
      %v1309 = vunpack.c.l.b16 %v1113
      %v1310 = vunpack.c.l.b16 %v1114
      %v1311 = vunpack.c.l.b16 %v1115
      %v1312 = vunpack.c.l.b16 %v1116
      %v1313 = vunpack.c.l.b16 %v1117
      %v1314 = vunpack.c.l.b16 %v1118
      %v1315 = vunpack.c.l.b16 %v1119
      %v1316 = vunpack.c.l.b16 %v1120
      %v1317 = vunpack.c.l.b16 %v1121
      %v1318 = vunpack.c.l.b16 %v1122
      %v1319 = vunpack.c.l.b16 %v1123
      %v1320 = vunpack.c.l.b16 %v1124
      %v1321 = vunpack.c.l.b16 %v1125
      %v1322 = vunpack.c.l.b16 %v1126
      %v1323 = vunpack.c.l.b16 %v1127
      %v1324 = vunpack.c.l.b16 %v1128
      %v1325 = vunpack.c.l.b16 %v1129
      %v1326 = vunpack.c.l.b16 %v1130
      %v1327 = vunpack.c.l.b16 %v1131
      %v1328 = vunpack.c.l.b16 %v1132
      %v1329 = vunpack.c.l.b16 %v1133
      %v1330 = vunpack.c.l.b16 %v1134
      %v1331 = vunpack.c.l.b16 %v1135
      %v1332 = vunpack.c.l.b16 %v1136
      %v1333 = vunpack.c.l.b16 %v1137
      %v1334 = vunpack.c.l.b16 %v1138
      %v1335 = vunpack.c.l.b16 %v1139
      %v1336 = vunpack.c.l.b16 %v1140
      %v1337 = vunpack.c.l.b16 %v1141
      %v1338 = vunpack.c.l.b16 %v1142
      %v1339 = vunpack.c.l.b16 %v1143
      %v1340 = vunpack.c.l.b16 %v1144
      %v1341 = vunpack.c.l.b16 %v1145
      %v1342 = vunpack.c.l.b16 %v1146
      %v1343 = vunpack.c.l.b16 %v1147
      %v1344 = vunpack.c.l.b16 %v1148
      %v1345 = vunpack.c.l.b16 %v1149
      %v1346 = vunpack.c.l.b16 %v1150
      %v1347 = vunpack.c.l.b16 %v1151
      %v1348 = vunpack.c.l.b16 %v1152
      %v1349 = vunpack.c.l.b16 %v1153
      %v1350 = vunpack.c.l.b16 %v1154
      %v1351 = vunpack.c.l.b16 %v1155
      %v1352 = vunpack.c.l.b16 %v1156
      %v1353 = vunpack.c.l.b16 %v1157
      %v1354 = vunpack.c.l.b16 %v1158
      %v1355 = vunpack.c.l.b16 %v1159
      %v1356 = vunpack.c.l.b16 %v1160
      %v1357 = vunpack.c.l.b16 %v1161
      %v1358 = vunpack.c.l.b16 %v1162
      %v1359 = vunpack.c.l.b16 %v1163
      %v1360 = vunpack.c.l.b16 %v1164
      %v1361 = vunpack.c.l.b16 %v1165
      %v1362 = vunpack.c.l.b16 %v1166
      %v1363 = vunpack.c.l.b16 %v1167
      %v1364 = vunpack.c.l.b16 %v1168
      %v1365 = vunpack.c.l.b16 %v1169
      %v1366 = vunpack.c.l.b16 %v1170
      %v1367 = vunpack.c.l.b16 %v1171
      %v1368 = vunpack.c.l.b16 %v1172
      %v1369 = vunpack.c.l.b16 %v1173
      %v1370 = vunpack.c.l.b16 %v1174
      %v1371 = vunpack.c.l.b16 %v1175
      %v1372 = vunpack.c.l.b16 %v1176
      %v1373 = vunpack.c.l.b16 %v1177
      %v1374 = vunpack.c.l.b16 %v1178
      %v1375 = vunpack.c.l.b16 %v1179
      %v1376 = vunpack.c.l.b16 %v1180
      %v1377 = vunpack.c.l.b16 %v1181
      %v1378 = vunpack.c.l.b16 %v1182
      %v1379 = vunpack.c.l.b16 %v1183
      %v1380 = vunpack.c.l.b16 %v1184
      %v1381 = vunpack.c.l.b16 %v1185
      %v1382 = vunpack.c.l.b16 %v1186
      %v1383 = vpack.c.b16 %v1286, %v1285
      %v1384 = vpack.c.b16 %v1288, %v1287
      %v1385 = vpack.c.b16 %v1290, %v1289
      %v1386 = vpack.c.b16 %v1292, %v1291
      %v1387 = vpack.c.b16 %v1294, %v1293
      %v1388 = vpack.c.b16 %v1296, %v1295
      %v1389 = vpack.c.b16 %v1298, %v1297
      %v1390 = vpack.c.b16 %v1300, %v1299
      %v1391 = vpack.c.b16 %v1302, %v1301
      %v1392 = vpack.c.b16 %v1304, %v1303
      %v1393 = vpack.c.b16 %v1306, %v1305
      %v1394 = vpack.c.b16 %v1308, %v1307
      %v1395 = vpack.c.b16 %v1310, %v1309
      %v1396 = vpack.c.b16 %v1312, %v1311
      %v1397 = vpack.c.b16 %v1314, %v1313
      %v1398 = vpack.c.b16 %v1316, %v1315
      %v1399 = vpack.c.b16 %v1318, %v1317
      %v1400 = vpack.c.b16 %v1320, %v1319
      %v1401 = vpack.c.b16 %v1322, %v1321
      %v1402 = vpack.c.b16 %v1324, %v1323
      %v1403 = vpack.c.b16 %v1326, %v1325
      %v1404 = vpack.c.b16 %v1328, %v1327
      %v1405 = vpack.c.b16 %v1330, %v1329
      %v1406 = vpack.c.b16 %v1332, %v1331
      %v1407 = vpack.c.b16 %v1334, %v1333
      %v1408 = vpack.c.b16 %v1336, %v1335
      %v1409 = vpack.c.b16 %v1338, %v1337
      %v1410 = vpack.c.b16 %v1340, %v1339
      %v1411 = vpack.c.b16 %v1342, %v1341
      %v1412 = vpack.c.b16 %v1344, %v1343
      %v1413 = vpack.c.b16 %v1346, %v1345
      %v1414 = vpack.c.b16 %v1348, %v1347
      %v1415 = vpack.c.b16 %v1350, %v1349
      %v1416 = vpack.c.b16 %v1352, %v1351
      %v1417 = vpack.c.b16 %v1354, %v1353
      %v1418 = vpack.c.b16 %v1356, %v1355
      %v1419 = vpack.c.b16 %v1358, %v1357
      %v1420 = vpack.c.b16 %v1360, %v1359
      %v1421 = vpack.c.b16 %v1362, %v1361
      %v1422 = vpack.c.b16 %v1364, %v1363
      %v1423 = vpack.c.b16 %v1366, %v1365
      %v1424 = vpack.c.b16 %v1368, %v1367
      %v1425 = vpack.c.b16 %v1370, %v1369
      %v1426 = vpack.c.b16 %v1372, %v1371
      %v1427 = vpack.c.b16 %v1374, %v1373
      %v1428 = vpack.c.b16 %v1376, %v1375
      %v1429 = vpack.c.b16 %v1378, %v1377
      %v1430 = vpack.c.b16 %v1380, %v1379
      %v1431 = vpack.c.b16 %v1382, %v1381
      %v1433 = vsel %vm680, %v1383, 0
      %v1436 = vsel %vm680, %v1384, 0
      %v1439 = vsel %vm680, %v1385, 0
      %v1442 = vsel %vm680, %v1386, 0
      %v1445 = vsel %vm680, %v1387, 0
      %v1448 = vsel %vm680, %v1388, 0
      %v1451 = vsel %vm680, %v1389, 0
      %v1454 = vsel %vm680, %v1390, 0
      %v1457 = vsel %vm680, %v1391, 0
      %v1460 = vsel %vm680, %v1392, 0
      %v1463 = vsel %vm680, %v1393, 0
      %v1466 = vsel %vm680, %v1394, 0
      %v1469 = vsel %vm680, %v1395, 0
      %v1472 = vsel %vm680, %v1396, 0
      %v1475 = vsel %vm680, %v1397, 0
      %v1478 = vsel %vm680, %v1398, 0
      %v1481 = vsel %vm680, %v1399, 0
      %v1484 = vsel %vm680, %v1400, 0
      %v1487 = vsel %vm680, %v1401, 0
      %v1490 = vsel %vm680, %v1402, 0
      %v1493 = vsel %vm680, %v1403, 0
      %v1496 = vsel %vm680, %v1404, 0
      %v1499 = vsel %vm680, %v1405, 0
      %v1502 = vsel %vm680, %v1406, 0
      %v1505 = vsel %vm680, %v1407, 0
      %v1508 = vsel %vm680, %v1408, 0
      %v1511 = vsel %vm680, %v1409, 0
      %v1514 = vsel %vm680, %v1410, 0
      %v1517 = vsel %vm680, %v1411, 0
      %v1520 = vsel %vm680, %v1412, 0
      %v1523 = vsel %vm680, %v1413, 0
      %v1526 = vsel %vm680, %v1414, 0
      %v1529 = vsel %vm680, %v1415, 0
      %v1532 = vsel %vm680, %v1416, 0
      %v1535 = vsel %vm680, %v1417, 0
      %v1538 = vsel %vm680, %v1418, 0
      %v1541 = vsel %vm680, %v1419, 0
      %v1544 = vsel %vm680, %v1420, 0
      %v1547 = vsel %vm680, %v1421, 0
      %v1550 = vsel %vm680, %v1422, 0
      %v1553 = vsel %vm680, %v1423, 0
      %v1556 = vsel %vm680, %v1424, 0
      %v1559 = vsel %vm680, %v1425, 0
      %v1562 = vsel %vm680, %v1426, 0
      %v1565 = vsel %vm680, %v1427, 0
      %v1568 = vsel %vm680, %v1428, 0
      %v1571 = vsel %vm680, %v1429, 0
      %v1574 = vsel %vm680, %v1430, 0
      %v1577 = vsel %vm680, %v1431, 0
      %1579 = vmatpush.bf16.msra.mxu0 0
      %1580 = vmatpush.bf16.msra.mxu0 0
      %1581 = vmatpush.bf16.msra.mxu0 0
      %1582 = vmatpush.bf16.msra.mxu0 0
      %1583 = vmatpush.bf16.msra.mxu0 0
      %1584 = vmatpush.bf16.msra.mxu0 0
      %1585 = vmatpush.bf16.msra.mxu0 %v833
      %1586 = vmatpush.bf16.msra.mxu0 %v677
      %1587 = vmatmul.bf16.gmra.mxu0 %v1433
      %v1588 = vpop.f32.mrf.mxu0
      %v1589 = vadd.f32 0.0, %v1588
      %v1590 = vpop.f32.mrf.mxu0
      %v1591 = vadd.f32 0.0, %v1590
      %1592 = vmatmul.bf16.gmra.mxu0 %v1436
      %v1593 = vpop.f32.mrf.mxu0
      %v1594 = vadd.f32 0.0, %v1593
      %v1595 = vpop.f32.mrf.mxu0
      %v1596 = vadd.f32 0.0, %v1595
      %1597 = vmatmul.bf16.gmra.mxu0 %v1439
      %v1598 = vpop.f32.mrf.mxu0
      %v1599 = vadd.f32 0.0, %v1598
      %v1600 = vpop.f32.mrf.mxu0
      %v1601 = vadd.f32 0.0, %v1600
      %1602 = vmatmul.bf16.gmra.mxu0 %v1442
      %v1603 = vpop.f32.mrf.mxu0
      %v1604 = vadd.f32 0.0, %v1603
      %v1605 = vpop.f32.mrf.mxu0
      %v1606 = vadd.f32 0.0, %v1605
      %1607 = vmatmul.bf16.gmra.mxu0 %v1445
      %v1608 = vpop.f32.mrf.mxu0
      %v1609 = vadd.f32 0.0, %v1608
      %v1610 = vpop.f32.mrf.mxu0
      %v1611 = vadd.f32 0.0, %v1610
      %1612 = vmatmul.bf16.gmra.mxu0 %v1448
      %v1613 = vpop.f32.mrf.mxu0
      %v1614 = vadd.f32 0.0, %v1613
      %v1615 = vpop.f32.mrf.mxu0
      %v1616 = vadd.f32 0.0, %v1615
      %1617 = vmatmul.bf16.gmra.mxu0 %v1451
      %v1618 = vpop.f32.mrf.mxu0
      %v1619 = vadd.f32 0.0, %v1618
      %v1620 = vpop.f32.mrf.mxu0
      %v1621 = vadd.f32 0.0, %v1620
      %1622 = vmatmul.bf16.gmra.mxu0 %v1454
      %v1623 = vpop.f32.mrf.mxu0
      %v1624 = vadd.f32 0.0, %v1623
      %v1625 = vpop.f32.mrf.mxu0
      %v1626 = vadd.f32 0.0, %v1625
      %1627 = vmatmul.bf16.gmra.mxu0 %v1457
      %v1628 = vpop.f32.mrf.mxu0
      %v1629 = vadd.f32 0.0, %v1628
      %v1630 = vpop.f32.mrf.mxu0
      %v1631 = vadd.f32 0.0, %v1630
      %1632 = vmatmul.bf16.gmra.mxu0 %v1460
      %v1633 = vpop.f32.mrf.mxu0
      %v1634 = vadd.f32 0.0, %v1633
      %v1635 = vpop.f32.mrf.mxu0
      %v1636 = vadd.f32 0.0, %v1635
      %1637 = vmatmul.bf16.gmra.mxu0 %v1463
      %v1638 = vpop.f32.mrf.mxu0
      %v1639 = vadd.f32 0.0, %v1638
      %v1640 = vpop.f32.mrf.mxu0
      %v1641 = vadd.f32 0.0, %v1640
      %1642 = vmatmul.bf16.gmra.mxu0 %v1466
      %v1643 = vpop.f32.mrf.mxu0
      %v1644 = vadd.f32 0.0, %v1643
      %v1645 = vpop.f32.mrf.mxu0
      %v1646 = vadd.f32 0.0, %v1645
      %1647 = vmatmul.bf16.gmra.mxu0 %v1469
      %v1648 = vpop.f32.mrf.mxu0
      %v1649 = vadd.f32 0.0, %v1648
      %v1650 = vpop.f32.mrf.mxu0
      %v1651 = vadd.f32 0.0, %v1650
      %1652 = vmatmul.bf16.gmra.mxu0 %v1472
      %v1653 = vpop.f32.mrf.mxu0
      %v1654 = vadd.f32 0.0, %v1653
      %v1655 = vpop.f32.mrf.mxu0
      %v1656 = vadd.f32 0.0, %v1655
      %1657 = vmatmul.bf16.gmra.mxu0 %v1475
      %v1658 = vpop.f32.mrf.mxu0
      %v1659 = vadd.f32 0.0, %v1658
      %v1660 = vpop.f32.mrf.mxu0
      %v1661 = vadd.f32 0.0, %v1660
      %1662 = vmatmul.bf16.gmra.mxu0 %v1478
      %v1663 = vpop.f32.mrf.mxu0
      %v1664 = vadd.f32 0.0, %v1663
      %v1665 = vpop.f32.mrf.mxu0
      %v1666 = vadd.f32 0.0, %v1665
      %1667 = vmatmul.bf16.gmra.mxu0 %v1481
      %v1668 = vpop.f32.mrf.mxu0
      %v1669 = vadd.f32 0.0, %v1668
      %v1670 = vpop.f32.mrf.mxu0
      %v1671 = vadd.f32 0.0, %v1670
      %1672 = vmatmul.bf16.gmra.mxu0 %v1484
      %v1673 = vpop.f32.mrf.mxu0
      %v1674 = vadd.f32 0.0, %v1673
      %v1675 = vpop.f32.mrf.mxu0
      %v1676 = vadd.f32 0.0, %v1675
      %1677 = vmatmul.bf16.gmra.mxu0 %v1487
      %v1678 = vpop.f32.mrf.mxu0
      %v1679 = vadd.f32 0.0, %v1678
      %v1680 = vpop.f32.mrf.mxu0
      %v1681 = vadd.f32 0.0, %v1680
      %1682 = vmatmul.bf16.gmra.mxu0 %v1490
      %v1683 = vpop.f32.mrf.mxu0
      %v1684 = vadd.f32 0.0, %v1683
      %v1685 = vpop.f32.mrf.mxu0
      %v1686 = vadd.f32 0.0, %v1685
      %1687 = vmatmul.bf16.gmra.mxu0 %v1493
      %v1688 = vpop.f32.mrf.mxu0
      %v1689 = vadd.f32 0.0, %v1688
      %v1690 = vpop.f32.mrf.mxu0
      %v1691 = vadd.f32 0.0, %v1690
      %1692 = vmatmul.bf16.gmra.mxu0 %v1496
      %v1693 = vpop.f32.mrf.mxu0
      %v1694 = vadd.f32 0.0, %v1693
      %v1695 = vpop.f32.mrf.mxu0
      %v1696 = vadd.f32 0.0, %v1695
      %1697 = vmatmul.bf16.gmra.mxu0 %v1499
      %v1698 = vpop.f32.mrf.mxu0
      %v1699 = vadd.f32 0.0, %v1698
      %v1700 = vpop.f32.mrf.mxu0
      %v1701 = vadd.f32 0.0, %v1700
      %1702 = vmatmul.bf16.gmra.mxu0 %v1502
      %v1703 = vpop.f32.mrf.mxu0
      %v1704 = vadd.f32 0.0, %v1703
      %v1705 = vpop.f32.mrf.mxu0
      %v1706 = vadd.f32 0.0, %v1705
      %1707 = vmatmul.bf16.gmra.mxu0 %v1505
      %v1708 = vpop.f32.mrf.mxu0
      %v1709 = vadd.f32 0.0, %v1708
      %v1710 = vpop.f32.mrf.mxu0
      %v1711 = vadd.f32 0.0, %v1710
      %1712 = vmatmul.bf16.gmra.mxu0 %v1508
      %v1713 = vpop.f32.mrf.mxu0
      %v1714 = vadd.f32 0.0, %v1713
      %v1715 = vpop.f32.mrf.mxu0
      %v1716 = vadd.f32 0.0, %v1715
      %1717 = vmatmul.bf16.gmra.mxu0 %v1511
      %v1718 = vpop.f32.mrf.mxu0
      %v1719 = vadd.f32 0.0, %v1718
      %v1720 = vpop.f32.mrf.mxu0
      %v1721 = vadd.f32 0.0, %v1720
      %1722 = vmatmul.bf16.gmra.mxu0 %v1514
      %v1723 = vpop.f32.mrf.mxu0
      %v1724 = vadd.f32 0.0, %v1723
      %v1725 = vpop.f32.mrf.mxu0
      %v1726 = vadd.f32 0.0, %v1725
      %1727 = vmatmul.bf16.gmra.mxu0 %v1517
      %v1728 = vpop.f32.mrf.mxu0
      %v1729 = vadd.f32 0.0, %v1728
      %v1730 = vpop.f32.mrf.mxu0
      %v1731 = vadd.f32 0.0, %v1730
      %1732 = vmatmul.bf16.gmra.mxu0 %v1520
      %v1733 = vpop.f32.mrf.mxu0
      %v1734 = vadd.f32 0.0, %v1733
      %v1735 = vpop.f32.mrf.mxu0
      %v1736 = vadd.f32 0.0, %v1735
      %1737 = vmatmul.bf16.gmra.mxu0 %v1523
      %v1738 = vpop.f32.mrf.mxu0
      %v1739 = vadd.f32 0.0, %v1738
      %v1740 = vpop.f32.mrf.mxu0
      %v1741 = vadd.f32 0.0, %v1740
      %1742 = vmatmul.bf16.gmra.mxu0 %v1526
      %v1743 = vpop.f32.mrf.mxu0
      %v1744 = vadd.f32 0.0, %v1743
      %v1745 = vpop.f32.mrf.mxu0
      %v1746 = vadd.f32 0.0, %v1745
      %1747 = vmatmul.bf16.gmra.mxu0 %v1529
      %v1748 = vpop.f32.mrf.mxu0
      %v1749 = vadd.f32 0.0, %v1748
      %v1750 = vpop.f32.mrf.mxu0
      %v1751 = vadd.f32 0.0, %v1750
      %1752 = vmatmul.bf16.gmra.mxu0 %v1532
      %v1753 = vpop.f32.mrf.mxu0
      %v1754 = vadd.f32 0.0, %v1753
      %v1755 = vpop.f32.mrf.mxu0
      %v1756 = vadd.f32 0.0, %v1755
      %1757 = vmatmul.bf16.gmra.mxu0 %v1535
      %v1758 = vpop.f32.mrf.mxu0
      %v1759 = vadd.f32 0.0, %v1758
      %v1760 = vpop.f32.mrf.mxu0
      %v1761 = vadd.f32 0.0, %v1760
      %1762 = vmatmul.bf16.gmra.mxu0 %v1538
      %v1763 = vpop.f32.mrf.mxu0
      %v1764 = vadd.f32 0.0, %v1763
      %v1765 = vpop.f32.mrf.mxu0
      %v1766 = vadd.f32 0.0, %v1765
      %1767 = vmatmul.bf16.gmra.mxu0 %v1541
      %v1768 = vpop.f32.mrf.mxu0
      %v1769 = vadd.f32 0.0, %v1768
      %v1770 = vpop.f32.mrf.mxu0
      %v1771 = vadd.f32 0.0, %v1770
      %1772 = vmatmul.bf16.gmra.mxu0 %v1544
      %v1773 = vpop.f32.mrf.mxu0
      %v1774 = vadd.f32 0.0, %v1773
      %v1775 = vpop.f32.mrf.mxu0
      %v1776 = vadd.f32 0.0, %v1775
      %1777 = vmatmul.bf16.gmra.mxu0 %v1547
      %v1778 = vpop.f32.mrf.mxu0
      %v1779 = vadd.f32 0.0, %v1778
      %v1780 = vpop.f32.mrf.mxu0
      %v1781 = vadd.f32 0.0, %v1780
      %1782 = vmatmul.bf16.gmra.mxu0 %v1550
      %v1783 = vpop.f32.mrf.mxu0
      %v1784 = vadd.f32 0.0, %v1783
      %v1785 = vpop.f32.mrf.mxu0
      %v1786 = vadd.f32 0.0, %v1785
      %1787 = vmatmul.bf16.gmra.mxu0 %v1553
      %v1788 = vpop.f32.mrf.mxu0
      %v1789 = vadd.f32 0.0, %v1788
      %v1790 = vpop.f32.mrf.mxu0
      %v1791 = vadd.f32 0.0, %v1790
      %1792 = vmatmul.bf16.gmra.mxu0 %v1556
      %v1793 = vpop.f32.mrf.mxu0
      %v1794 = vadd.f32 0.0, %v1793
      %v1795 = vpop.f32.mrf.mxu0
      %v1796 = vadd.f32 0.0, %v1795
      %1797 = vmatmul.bf16.gmra.mxu0 %v1559
      %v1798 = vpop.f32.mrf.mxu0
      %v1799 = vadd.f32 0.0, %v1798
      %v1800 = vpop.f32.mrf.mxu0
      %v1801 = vadd.f32 0.0, %v1800
      %1802 = vmatmul.bf16.gmra.mxu0 %v1562
      %v1803 = vpop.f32.mrf.mxu0
      %v1804 = vadd.f32 0.0, %v1803
      %v1805 = vpop.f32.mrf.mxu0
      %v1806 = vadd.f32 0.0, %v1805
      %1807 = vmatmul.bf16.gmra.mxu0 %v1565
      %v1808 = vpop.f32.mrf.mxu0
      %v1809 = vadd.f32 0.0, %v1808
      %v1810 = vpop.f32.mrf.mxu0
      %v1811 = vadd.f32 0.0, %v1810
      %1812 = vmatmul.bf16.gmra.mxu0 %v1568
      %v1813 = vpop.f32.mrf.mxu0
      %v1814 = vadd.f32 0.0, %v1813
      %v1815 = vpop.f32.mrf.mxu0
      %v1816 = vadd.f32 0.0, %v1815
      %1817 = vmatmul.bf16.gmra.mxu0 %v1571
      %v1818 = vpop.f32.mrf.mxu0
      %v1819 = vadd.f32 0.0, %v1818
      %v1820 = vpop.f32.mrf.mxu0
      %v1821 = vadd.f32 0.0, %v1820
      %1822 = vmatmul.bf16.gmra.mxu0 %v1574
      %v1823 = vpop.f32.mrf.mxu0
      %v1824 = vadd.f32 0.0, %v1823
      %v1825 = vpop.f32.mrf.mxu0
      %v1826 = vadd.f32 0.0, %v1825
      %1827 = vmatmul.bf16.gmra.mxu0 %v1577
      %v1828 = vpop.f32.mrf.mxu0
      %v1829 = vadd.f32 0.0, %v1828
      %v1830 = vpop.f32.mrf.mxu0
      %v1831 = vadd.f32 0.0, %v1830
      %1832 = vdwg.mxu0
      %v1833 = vmax.f32 %v845, %v1589
      %v1834 = vmax.f32 %v847, %v1591
      %v1835 = vmax.f32 %v850, %v1594
      %v1836 = vmax.f32 %v852, %v1596
      %v1837 = vmax.f32 %v855, %v1599
      %v1838 = vmax.f32 %v857, %v1601
      %v1839 = vmax.f32 %v860, %v1604
      %v1840 = vmax.f32 %v862, %v1606
      %v1841 = vmax.f32 %v865, %v1609
      %v1842 = vmax.f32 %v867, %v1611
      %v1843 = vmax.f32 %v870, %v1614
      %v1844 = vmax.f32 %v872, %v1616
      %v1845 = vmax.f32 %v875, %v1619
      %v1846 = vmax.f32 %v877, %v1621
      %v1847 = vmax.f32 %v880, %v1624
      %v1848 = vmax.f32 %v882, %v1626
      %v1849 = vmax.f32 %v885, %v1629
      %v1850 = vmax.f32 %v887, %v1631
      %v1851 = vmax.f32 %v890, %v1634
      %v1852 = vmax.f32 %v892, %v1636
      %v1853 = vmax.f32 %v895, %v1639
      %v1854 = vmax.f32 %v897, %v1641
      %v1855 = vmax.f32 %v900, %v1644
      %v1856 = vmax.f32 %v902, %v1646
      %v1857 = vmax.f32 %v905, %v1649
      %v1858 = vmax.f32 %v907, %v1651
      %v1859 = vmax.f32 %v910, %v1654
      %v1860 = vmax.f32 %v912, %v1656
      %v1861 = vmax.f32 %v915, %v1659
      %v1862 = vmax.f32 %v917, %v1661
      %v1863 = vmax.f32 %v920, %v1664
      %v1864 = vmax.f32 %v922, %v1666
      %v1865 = vmax.f32 %v925, %v1669
      %v1866 = vmax.f32 %v927, %v1671
      %v1867 = vmax.f32 %v930, %v1674
      %v1868 = vmax.f32 %v932, %v1676
      %v1869 = vmax.f32 %v935, %v1679
      %v1870 = vmax.f32 %v937, %v1681
      %v1871 = vmax.f32 %v940, %v1684
      %v1872 = vmax.f32 %v942, %v1686
      %v1873 = vmax.f32 %v945, %v1689
      %v1874 = vmax.f32 %v947, %v1691
      %v1875 = vmax.f32 %v950, %v1694
      %v1876 = vmax.f32 %v952, %v1696
      %v1877 = vmax.f32 %v955, %v1699
      %v1878 = vmax.f32 %v957, %v1701
      %v1879 = vmax.f32 %v960, %v1704
      %v1880 = vmax.f32 %v962, %v1706
      %v1881 = vmax.f32 %v965, %v1709
      %v1882 = vmax.f32 %v967, %v1711
      %v1883 = vmax.f32 %v970, %v1714
      %v1884 = vmax.f32 %v972, %v1716
      %v1885 = vmax.f32 %v975, %v1719
      %v1886 = vmax.f32 %v977, %v1721
      %v1887 = vmax.f32 %v980, %v1724
      %v1888 = vmax.f32 %v982, %v1726
      %v1889 = vmax.f32 %v985, %v1729
      %v1890 = vmax.f32 %v987, %v1731
      %v1891 = vmax.f32 %v990, %v1734
      %v1892 = vmax.f32 %v992, %v1736
      %v1893 = vmax.f32 %v995, %v1739
      %v1894 = vmax.f32 %v997, %v1741
      %v1895 = vmax.f32 %v1000, %v1744
      %v1896 = vmax.f32 %v1002, %v1746
      %v1897 = vmax.f32 %v1005, %v1749
      %v1898 = vmax.f32 %v1007, %v1751
      %v1899 = vmax.f32 %v1010, %v1754
      %v1900 = vmax.f32 %v1012, %v1756
      %v1901 = vmax.f32 %v1015, %v1759
      %v1902 = vmax.f32 %v1017, %v1761
      %v1903 = vmax.f32 %v1020, %v1764
      %v1904 = vmax.f32 %v1022, %v1766
      %v1905 = vmax.f32 %v1025, %v1769
      %v1906 = vmax.f32 %v1027, %v1771
      %v1907 = vmax.f32 %v1030, %v1774
      %v1908 = vmax.f32 %v1032, %v1776
      %v1909 = vmax.f32 %v1035, %v1779
      %v1910 = vmax.f32 %v1037, %v1781
      %v1911 = vmax.f32 %v1040, %v1784
      %v1912 = vmax.f32 %v1042, %v1786
      %v1913 = vmax.f32 %v1045, %v1789
      %v1914 = vmax.f32 %v1047, %v1791
      %v1915 = vmax.f32 %v1050, %v1794
      %v1916 = vmax.f32 %v1052, %v1796
      %v1917 = vmax.f32 %v1055, %v1799
      %v1918 = vmax.f32 %v1057, %v1801
      %v1919 = vmax.f32 %v1060, %v1804
      %v1920 = vmax.f32 %v1062, %v1806
      %v1921 = vmax.f32 %v1065, %v1809
      %v1922 = vmax.f32 %v1067, %v1811
      %v1923 = vmax.f32 %v1070, %v1814
      %v1924 = vmax.f32 %v1072, %v1816
      %v1925 = vmax.f32 %v1075, %v1819
      %v1926 = vmax.f32 %v1077, %v1821
      %v1927 = vmax.f32 %v1080, %v1824
      %v1928 = vmax.f32 %v1082, %v1826
      %v1929 = vmax.f32 %v1085, %v1829
      %v1930 = vmax.f32 %v1087, %v1831
      %v1931 = vld [vmem:[%s307] sm:$0xf]
      %v1932 = vld [vmem:[%s307 + $0x4] sm:$0xf]
      %v1933 = vld [vmem:[%s307 + $0x8] sm:$0xf]
      %v1934 = vld [vmem:[%s307 + $0xc] sm:$0xf]
      %v1935 = vld [vmem:[%s307 + $0x10] sm:$0xf]
      %v1936 = vld [vmem:[%s307 + $0x14] sm:$0xf]
      %v1937 = vld [vmem:[%s307 + $0x18] sm:$0xf]
      %v1938 = vld [vmem:[%s307 + $0x1c] sm:$0xf]
      %v1939 = vld [vmem:[%s307 + $0x20] sm:$0xf]
      %v1940 = vld [vmem:[%s307 + $0x24] sm:$0xf]
      %v1941 = vld [vmem:[%s307 + $0x28] sm:$0xf]
      %v1942 = vld [vmem:[%s307 + $0x2c] sm:$0xf]
      %v1943 = vld [vmem:[%s307 + $0x30] sm:$0xf]
      %v1944 = vld [vmem:[%s307 + $0x34] sm:$0xf]
      %v1945 = vld [vmem:[%s307 + $0x38] sm:$0xf]
      %v1946 = vld [vmem:[%s307 + $0x3c] sm:$0xf]
      %v1947 = vld [vmem:[%s307 + $0x40] sm:$0xf]
      %v1948 = vld [vmem:[%s307 + $0x44] sm:$0xf]
      %v1949 = vld [vmem:[%s307 + $0x48] sm:$0xf]
      %v1950 = vld [vmem:[%s307 + $0x4c] sm:$0xf]
      %v1951 = vld [vmem:[%s307 + $0x50] sm:$0xf]
      %v1952 = vld [vmem:[%s307 + $0x54] sm:$0xf]
      %v1953 = vld [vmem:[%s307 + $0x58] sm:$0xf]
      %v1954 = vld [vmem:[%s307 + $0x5c] sm:$0xf]
      %v1955 = vld [vmem:[%s307 + $0x60] sm:$0xf]
      %v1956 = vld [vmem:[%s307 + $0x64] sm:$0xf]
      %v1957 = vld [vmem:[%s307 + $0x68] sm:$0xf]
      %v1958 = vld [vmem:[%s307 + $0x6c] sm:$0xf]
      %v1959 = vld [vmem:[%s307 + $0x70] sm:$0xf]
      %v1960 = vld [vmem:[%s307 + $0x74] sm:$0xf]
      %v1961 = vld [vmem:[%s307 + $0x78] sm:$0xf]
      %v1962 = vld [vmem:[%s307 + $0x7c] sm:$0xf]
      %v1963 = vld [vmem:[%s307 + $0x80] sm:$0xf]
      %v1964 = vld [vmem:[%s307 + $0x84] sm:$0xf]
      %v1965 = vld [vmem:[%s307 + $0x88] sm:$0xf]
      %v1966 = vld [vmem:[%s307 + $0x8c] sm:$0xf]
      %v1967 = vld [vmem:[%s307 + $0x90] sm:$0xf]
      %v1968 = vld [vmem:[%s307 + $0x94] sm:$0xf]
      %v1969 = vld [vmem:[%s307 + $0x98] sm:$0xf]
      %v1970 = vld [vmem:[%s307 + $0x9c] sm:$0xf]
      %v1971 = vld [vmem:[%s307 + $0xa0] sm:$0xf]
      %v1972 = vld [vmem:[%s307 + $0xa4] sm:$0xf]
      %v1973 = vld [vmem:[%s307 + $0xa8] sm:$0xf]
      %v1974 = vld [vmem:[%s307 + $0xac] sm:$0xf]
      %v1975 = vld [vmem:[%s307 + $0xb0] sm:$0xf]
      %v1976 = vld [vmem:[%s307 + $0xb4] sm:$0xf]
      %v1977 = vld [vmem:[%s307 + $0xb8] sm:$0xf]
      %v1978 = vld [vmem:[%s307 + $0xbc] sm:$0xf]
      %v1979 = vld [vmem:[%s307 + $0xc0] sm:$0xf]
      %v1980 = vld [vmem:[%s307 + $0xc4] sm:$0xf]
      %v1981 = vld [vmem:[%s307 + $0xc8] sm:$0xf]
      %v1982 = vld [vmem:[%s307 + $0xcc] sm:$0xf]
      %v1983 = vld [vmem:[%s307 + $0xd0] sm:$0xf]
      %v1984 = vld [vmem:[%s307 + $0xd4] sm:$0xf]
      %v1985 = vld [vmem:[%s307 + $0xd8] sm:$0xf]
      %v1986 = vld [vmem:[%s307 + $0xdc] sm:$0xf]
      %v1987 = vld [vmem:[%s307 + $0xe0] sm:$0xf]
      %v1988 = vld [vmem:[%s307 + $0xe4] sm:$0xf]
      %v1989 = vld [vmem:[%s307 + $0xe8] sm:$0xf]
      %v1990 = vld [vmem:[%s307 + $0xec] sm:$0xf]
      %v1991 = vld [vmem:[%s307 + $0xf0] sm:$0xf]
      %v1992 = vld [vmem:[%s307 + $0xf4] sm:$0xf]
      %v1993 = vld [vmem:[%s307 + $0xf8] sm:$0xf]
      %v1994 = vld [vmem:[%s307 + $0xfc] sm:$0xf]
      %v1995 = vld [vmem:[%s307 + $0x100] sm:$0xf]
      %v1996 = vld [vmem:[%s307 + $0x104] sm:$0xf]
      %v1997 = vld [vmem:[%s307 + $0x108] sm:$0xf]
      %v1998 = vld [vmem:[%s307 + $0x10c] sm:$0xf]
      %v1999 = vld [vmem:[%s307 + $0x110] sm:$0xf]
      %v2000 = vld [vmem:[%s307 + $0x114] sm:$0xf]
      %v2001 = vld [vmem:[%s307 + $0x118] sm:$0xf]
      %v2002 = vld [vmem:[%s307 + $0x11c] sm:$0xf]
      %v2003 = vld [vmem:[%s307 + $0x120] sm:$0xf]
      %v2004 = vld [vmem:[%s307 + $0x124] sm:$0xf]
      %v2005 = vld [vmem:[%s307 + $0x128] sm:$0xf]
      %v2006 = vld [vmem:[%s307 + $0x12c] sm:$0xf]
      %v2007 = vld [vmem:[%s307 + $0x130] sm:$0xf]
      %v2008 = vld [vmem:[%s307 + $0x134] sm:$0xf]
      %v2009 = vld [vmem:[%s307 + $0x138] sm:$0xf]
      %v2010 = vld [vmem:[%s307 + $0x13c] sm:$0xf]
      %v2011 = vld [vmem:[%s307 + $0x140] sm:$0xf]
      %v2012 = vld [vmem:[%s307 + $0x144] sm:$0xf]
      %v2013 = vld [vmem:[%s307 + $0x148] sm:$0xf]
      %v2014 = vld [vmem:[%s307 + $0x14c] sm:$0xf]
      %v2015 = vld [vmem:[%s307 + $0x150] sm:$0xf]
      %v2016 = vld [vmem:[%s307 + $0x154] sm:$0xf]
      %v2017 = vld [vmem:[%s307 + $0x158] sm:$0xf]
      %v2018 = vld [vmem:[%s307 + $0x15c] sm:$0xf]
      %v2019 = vld [vmem:[%s307 + $0x160] sm:$0xf]
      %v2020 = vld [vmem:[%s307 + $0x164] sm:$0xf]
      %v2021 = vld [vmem:[%s307 + $0x168] sm:$0xf]
      %v2022 = vld [vmem:[%s307 + $0x16c] sm:$0xf]
      %v2023 = vld [vmem:[%s307 + $0x170] sm:$0xf]
      %v2024 = vld [vmem:[%s307 + $0x174] sm:$0xf]
      %v2025 = vld [vmem:[%s307 + $0x178] sm:$0xf]
      %v2026 = vld [vmem:[%s307 + $0x17c] sm:$0xf]
      %v2027 = vld [vmem:[%s307 + $0x180] sm:$0xf]
      %v2028 = vld [vmem:[%s307 + $0x184] sm:$0xf]
      %v2127 = vunpack.c.l.b16 %v1931
      %v2128 = vunpack.c.l.b16 %v1932
      %v2129 = vunpack.c.l.b16 %v1933
      %v2130 = vunpack.c.l.b16 %v1934
      %v2131 = vunpack.c.l.b16 %v1935
      %v2132 = vunpack.c.l.b16 %v1936
      %v2133 = vunpack.c.l.b16 %v1937
      %v2134 = vunpack.c.l.b16 %v1938
      %v2135 = vunpack.c.l.b16 %v1939
      %v2136 = vunpack.c.l.b16 %v1940
      %v2137 = vunpack.c.l.b16 %v1941
      %v2138 = vunpack.c.l.b16 %v1942
      %v2139 = vunpack.c.l.b16 %v1943
      %v2140 = vunpack.c.l.b16 %v1944
      %v2141 = vunpack.c.l.b16 %v1945
      %v2142 = vunpack.c.l.b16 %v1946
      %v2143 = vunpack.c.l.b16 %v1947
      %v2144 = vunpack.c.l.b16 %v1948
      %v2145 = vunpack.c.l.b16 %v1949
      %v2146 = vunpack.c.l.b16 %v1950
      %v2147 = vunpack.c.l.b16 %v1951
      %v2148 = vunpack.c.l.b16 %v1952
      %v2149 = vunpack.c.l.b16 %v1953
      %v2150 = vunpack.c.l.b16 %v1954
      %v2151 = vunpack.c.l.b16 %v1955
      %v2152 = vunpack.c.l.b16 %v1956
      %v2153 = vunpack.c.l.b16 %v1957
      %v2154 = vunpack.c.l.b16 %v1958
      %v2155 = vunpack.c.l.b16 %v1959
      %v2156 = vunpack.c.l.b16 %v1960
      %v2157 = vunpack.c.l.b16 %v1961
      %v2158 = vunpack.c.l.b16 %v1962
      %v2159 = vunpack.c.l.b16 %v1963
      %v2160 = vunpack.c.l.b16 %v1964
      %v2161 = vunpack.c.l.b16 %v1965
      %v2162 = vunpack.c.l.b16 %v1966
      %v2163 = vunpack.c.l.b16 %v1967
      %v2164 = vunpack.c.l.b16 %v1968
      %v2165 = vunpack.c.l.b16 %v1969
      %v2166 = vunpack.c.l.b16 %v1970
      %v2167 = vunpack.c.l.b16 %v1971
      %v2168 = vunpack.c.l.b16 %v1972
      %v2169 = vunpack.c.l.b16 %v1973
      %v2170 = vunpack.c.l.b16 %v1974
      %v2171 = vunpack.c.l.b16 %v1975
      %v2172 = vunpack.c.l.b16 %v1976
      %v2173 = vunpack.c.l.b16 %v1977
      %v2174 = vunpack.c.l.b16 %v1978
      %v2175 = vunpack.c.l.b16 %v1979
      %v2176 = vunpack.c.l.b16 %v1980
      %v2177 = vunpack.c.l.b16 %v1981
      %v2178 = vunpack.c.l.b16 %v1982
      %v2179 = vunpack.c.l.b16 %v1983
      %v2180 = vunpack.c.l.b16 %v1984
      %v2181 = vunpack.c.l.b16 %v1985
      %v2182 = vunpack.c.l.b16 %v1986
      %v2183 = vunpack.c.l.b16 %v1987
      %v2184 = vunpack.c.l.b16 %v1988
      %v2185 = vunpack.c.l.b16 %v1989
      %v2186 = vunpack.c.l.b16 %v1990
      %v2187 = vunpack.c.l.b16 %v1991
      %v2188 = vunpack.c.l.b16 %v1992
      %v2189 = vunpack.c.l.b16 %v1993
      %v2190 = vunpack.c.l.b16 %v1994
      %v2191 = vunpack.c.l.b16 %v1995
      %v2192 = vunpack.c.l.b16 %v1996
      %v2193 = vunpack.c.l.b16 %v1997
      %v2194 = vunpack.c.l.b16 %v1998
      %v2195 = vunpack.c.l.b16 %v1999
      %v2196 = vunpack.c.l.b16 %v2000
      %v2197 = vunpack.c.l.b16 %v2001
      %v2198 = vunpack.c.l.b16 %v2002
      %v2199 = vunpack.c.l.b16 %v2003
      %v2200 = vunpack.c.l.b16 %v2004
      %v2201 = vunpack.c.l.b16 %v2005
      %v2202 = vunpack.c.l.b16 %v2006
      %v2203 = vunpack.c.l.b16 %v2007
      %v2204 = vunpack.c.l.b16 %v2008
      %v2205 = vunpack.c.l.b16 %v2009
      %v2206 = vunpack.c.l.b16 %v2010
      %v2207 = vunpack.c.l.b16 %v2011
      %v2208 = vunpack.c.l.b16 %v2012
      %v2209 = vunpack.c.l.b16 %v2013
      %v2210 = vunpack.c.l.b16 %v2014
      %v2211 = vunpack.c.l.b16 %v2015
      %v2212 = vunpack.c.l.b16 %v2016
      %v2213 = vunpack.c.l.b16 %v2017
      %v2214 = vunpack.c.l.b16 %v2018
      %v2215 = vunpack.c.l.b16 %v2019
      %v2216 = vunpack.c.l.b16 %v2020
      %v2217 = vunpack.c.l.b16 %v2021
      %v2218 = vunpack.c.l.b16 %v2022
      %v2219 = vunpack.c.l.b16 %v2023
      %v2220 = vunpack.c.l.b16 %v2024
      %v2221 = vunpack.c.l.b16 %v2025
      %v2222 = vunpack.c.l.b16 %v2026
      %v2223 = vunpack.c.l.b16 %v2027
      %v2224 = vunpack.c.l.b16 %v2028
      %v2225 = vpack.c.b16 %v2128, %v2127
      %v2226 = vpack.c.b16 %v2130, %v2129
      %v2227 = vpack.c.b16 %v2132, %v2131
      %v2228 = vpack.c.b16 %v2134, %v2133
      %v2229 = vpack.c.b16 %v2136, %v2135
      %v2230 = vpack.c.b16 %v2138, %v2137
      %v2231 = vpack.c.b16 %v2140, %v2139
      %v2232 = vpack.c.b16 %v2142, %v2141
      %v2233 = vpack.c.b16 %v2144, %v2143
      %v2234 = vpack.c.b16 %v2146, %v2145
      %v2235 = vpack.c.b16 %v2148, %v2147
      %v2236 = vpack.c.b16 %v2150, %v2149
      %v2237 = vpack.c.b16 %v2152, %v2151
      %v2238 = vpack.c.b16 %v2154, %v2153
      %v2239 = vpack.c.b16 %v2156, %v2155
      %v2240 = vpack.c.b16 %v2158, %v2157
      %v2241 = vpack.c.b16 %v2160, %v2159
      %v2242 = vpack.c.b16 %v2162, %v2161
      %v2243 = vpack.c.b16 %v2164, %v2163
      %v2244 = vpack.c.b16 %v2166, %v2165
      %v2245 = vpack.c.b16 %v2168, %v2167
      %v2246 = vpack.c.b16 %v2170, %v2169
      %v2247 = vpack.c.b16 %v2172, %v2171
      %v2248 = vpack.c.b16 %v2174, %v2173
      %v2249 = vpack.c.b16 %v2176, %v2175
      %v2250 = vpack.c.b16 %v2178, %v2177
      %v2251 = vpack.c.b16 %v2180, %v2179
      %v2252 = vpack.c.b16 %v2182, %v2181
      %v2253 = vpack.c.b16 %v2184, %v2183
      %v2254 = vpack.c.b16 %v2186, %v2185
      %v2255 = vpack.c.b16 %v2188, %v2187
      %v2256 = vpack.c.b16 %v2190, %v2189
      %v2257 = vpack.c.b16 %v2192, %v2191
      %v2258 = vpack.c.b16 %v2194, %v2193
      %v2259 = vpack.c.b16 %v2196, %v2195
      %v2260 = vpack.c.b16 %v2198, %v2197
      %v2261 = vpack.c.b16 %v2200, %v2199
      %v2262 = vpack.c.b16 %v2202, %v2201
      %v2263 = vpack.c.b16 %v2204, %v2203
      %v2264 = vpack.c.b16 %v2206, %v2205
      %v2265 = vpack.c.b16 %v2208, %v2207
      %v2266 = vpack.c.b16 %v2210, %v2209
      %v2267 = vpack.c.b16 %v2212, %v2211
      %v2268 = vpack.c.b16 %v2214, %v2213
      %v2269 = vpack.c.b16 %v2216, %v2215
      %v2270 = vpack.c.b16 %v2218, %v2217
      %v2271 = vpack.c.b16 %v2220, %v2219
      %v2272 = vpack.c.b16 %v2222, %v2221
      %v2273 = vpack.c.b16 %v2224, %v2223
      %v2275 = vsel %vm680, %v2225, 0
      %v2278 = vsel %vm680, %v2226, 0
      %v2281 = vsel %vm680, %v2227, 0
      %v2284 = vsel %vm680, %v2228, 0
      %v2287 = vsel %vm680, %v2229, 0
      %v2290 = vsel %vm680, %v2230, 0
      %v2293 = vsel %vm680, %v2231, 0
      %v2296 = vsel %vm680, %v2232, 0
      %v2299 = vsel %vm680, %v2233, 0
      %v2302 = vsel %vm680, %v2234, 0
      %v2305 = vsel %vm680, %v2235, 0
      %v2308 = vsel %vm680, %v2236, 0
      %v2311 = vsel %vm680, %v2237, 0
      %v2314 = vsel %vm680, %v2238, 0
      %v2317 = vsel %vm680, %v2239, 0
      %v2320 = vsel %vm680, %v2240, 0
      %v2323 = vsel %vm680, %v2241, 0
      %v2326 = vsel %vm680, %v2242, 0
      %v2329 = vsel %vm680, %v2243, 0
      %v2332 = vsel %vm680, %v2244, 0
      %v2335 = vsel %vm680, %v2245, 0
      %v2338 = vsel %vm680, %v2246, 0
      %v2341 = vsel %vm680, %v2247, 0
      %v2344 = vsel %vm680, %v2248, 0
      %v2347 = vsel %vm680, %v2249, 0
      %v2350 = vsel %vm680, %v2250, 0
      %v2353 = vsel %vm680, %v2251, 0
      %v2356 = vsel %vm680, %v2252, 0
      %v2359 = vsel %vm680, %v2253, 0
      %v2362 = vsel %vm680, %v2254, 0
      %v2365 = vsel %vm680, %v2255, 0
      %v2368 = vsel %vm680, %v2256, 0
      %v2371 = vsel %vm680, %v2257, 0
      %v2374 = vsel %vm680, %v2258, 0
      %v2377 = vsel %vm680, %v2259, 0
      %v2380 = vsel %vm680, %v2260, 0
      %v2383 = vsel %vm680, %v2261, 0
      %v2386 = vsel %vm680, %v2262, 0
      %v2389 = vsel %vm680, %v2263, 0
      %v2392 = vsel %vm680, %v2264, 0
      %v2395 = vsel %vm680, %v2265, 0
      %v2398 = vsel %vm680, %v2266, 0
      %v2401 = vsel %vm680, %v2267, 0
      %v2404 = vsel %vm680, %v2268, 0
      %v2407 = vsel %vm680, %v2269, 0
      %v2410 = vsel %vm680, %v2270, 0
      %v2413 = vsel %vm680, %v2271, 0
      %v2416 = vsel %vm680, %v2272, 0
      %v2419 = vsel %vm680, %v2273, 0
      %2421 = vmatpush.bf16.msra.mxu0 0
      %2422 = vmatpush.bf16.msra.mxu0 0
      %2423 = vmatpush.bf16.msra.mxu0 0
      %2424 = vmatpush.bf16.msra.mxu0 0
      %2425 = vmatpush.bf16.msra.mxu0 0
      %2426 = vmatpush.bf16.msra.mxu0 0
      %2427 = vmatpush.bf16.msra.mxu0 %v833
      %2428 = vmatpush.bf16.msra.mxu0 %v677
      %2429 = vmatmul.bf16.gmra.mxu0 %v2275
      %v2430 = vpop.f32.mrf.mxu0
      %v2431 = vadd.f32 0.0, %v2430
      %v2432 = vpop.f32.mrf.mxu0
      %v2433 = vadd.f32 0.0, %v2432
      %2434 = vmatmul.bf16.gmra.mxu0 %v2278
      %v2435 = vpop.f32.mrf.mxu0
      %v2436 = vadd.f32 0.0, %v2435
      %v2437 = vpop.f32.mrf.mxu0
      %v2438 = vadd.f32 0.0, %v2437
      %2439 = vmatmul.bf16.gmra.mxu0 %v2281
      %v2440 = vpop.f32.mrf.mxu0
      %v2441 = vadd.f32 0.0, %v2440
      %v2442 = vpop.f32.mrf.mxu0
      %v2443 = vadd.f32 0.0, %v2442
      %2444 = vmatmul.bf16.gmra.mxu0 %v2284
      %v2445 = vpop.f32.mrf.mxu0
      %v2446 = vadd.f32 0.0, %v2445
      %v2447 = vpop.f32.mrf.mxu0
      %v2448 = vadd.f32 0.0, %v2447
      %2449 = vmatmul.bf16.gmra.mxu0 %v2287
      %v2450 = vpop.f32.mrf.mxu0
      %v2451 = vadd.f32 0.0, %v2450
      %v2452 = vpop.f32.mrf.mxu0
      %v2453 = vadd.f32 0.0, %v2452
      %2454 = vmatmul.bf16.gmra.mxu0 %v2290
      %v2455 = vpop.f32.mrf.mxu0
      %v2456 = vadd.f32 0.0, %v2455
      %v2457 = vpop.f32.mrf.mxu0
      %v2458 = vadd.f32 0.0, %v2457
      %2459 = vmatmul.bf16.gmra.mxu0 %v2293
      %v2460 = vpop.f32.mrf.mxu0
      %v2461 = vadd.f32 0.0, %v2460
      %v2462 = vpop.f32.mrf.mxu0
      %v2463 = vadd.f32 0.0, %v2462
      %2464 = vmatmul.bf16.gmra.mxu0 %v2296
      %v2465 = vpop.f32.mrf.mxu0
      %v2466 = vadd.f32 0.0, %v2465
      %v2467 = vpop.f32.mrf.mxu0
      %v2468 = vadd.f32 0.0, %v2467
      %2469 = vmatmul.bf16.gmra.mxu0 %v2299
      %v2470 = vpop.f32.mrf.mxu0
      %v2471 = vadd.f32 0.0, %v2470
      %v2472 = vpop.f32.mrf.mxu0
      %v2473 = vadd.f32 0.0, %v2472
      %2474 = vmatmul.bf16.gmra.mxu0 %v2302
      %v2475 = vpop.f32.mrf.mxu0
      %v2476 = vadd.f32 0.0, %v2475
      %v2477 = vpop.f32.mrf.mxu0
      %v2478 = vadd.f32 0.0, %v2477
      %2479 = vmatmul.bf16.gmra.mxu0 %v2305
      %v2480 = vpop.f32.mrf.mxu0
      %v2481 = vadd.f32 0.0, %v2480
      %v2482 = vpop.f32.mrf.mxu0
      %v2483 = vadd.f32 0.0, %v2482
      %2484 = vmatmul.bf16.gmra.mxu0 %v2308
      %v2485 = vpop.f32.mrf.mxu0
      %v2486 = vadd.f32 0.0, %v2485
      %v2487 = vpop.f32.mrf.mxu0
      %v2488 = vadd.f32 0.0, %v2487
      %2489 = vmatmul.bf16.gmra.mxu0 %v2311
      %v2490 = vpop.f32.mrf.mxu0
      %v2491 = vadd.f32 0.0, %v2490
      %v2492 = vpop.f32.mrf.mxu0
      %v2493 = vadd.f32 0.0, %v2492
      %2494 = vmatmul.bf16.gmra.mxu0 %v2314
      %v2495 = vpop.f32.mrf.mxu0
      %v2496 = vadd.f32 0.0, %v2495
      %v2497 = vpop.f32.mrf.mxu0
      %v2498 = vadd.f32 0.0, %v2497
      %2499 = vmatmul.bf16.gmra.mxu0 %v2317
      %v2500 = vpop.f32.mrf.mxu0
      %v2501 = vadd.f32 0.0, %v2500
      %v2502 = vpop.f32.mrf.mxu0
      %v2503 = vadd.f32 0.0, %v2502
      %2504 = vmatmul.bf16.gmra.mxu0 %v2320
      %v2505 = vpop.f32.mrf.mxu0
      %v2506 = vadd.f32 0.0, %v2505
      %v2507 = vpop.f32.mrf.mxu0
      %v2508 = vadd.f32 0.0, %v2507
      %2509 = vmatmul.bf16.gmra.mxu0 %v2323
      %v2510 = vpop.f32.mrf.mxu0
      %v2511 = vadd.f32 0.0, %v2510
      %v2512 = vpop.f32.mrf.mxu0
      %v2513 = vadd.f32 0.0, %v2512
      %2514 = vmatmul.bf16.gmra.mxu0 %v2326
      %v2515 = vpop.f32.mrf.mxu0
      %v2516 = vadd.f32 0.0, %v2515
      %v2517 = vpop.f32.mrf.mxu0
      %v2518 = vadd.f32 0.0, %v2517
      %2519 = vmatmul.bf16.gmra.mxu0 %v2329
      %v2520 = vpop.f32.mrf.mxu0
      %v2521 = vadd.f32 0.0, %v2520
      %v2522 = vpop.f32.mrf.mxu0
      %v2523 = vadd.f32 0.0, %v2522
      %2524 = vmatmul.bf16.gmra.mxu0 %v2332
      %v2525 = vpop.f32.mrf.mxu0
      %v2526 = vadd.f32 0.0, %v2525
      %v2527 = vpop.f32.mrf.mxu0
      %v2528 = vadd.f32 0.0, %v2527
      %2529 = vmatmul.bf16.gmra.mxu0 %v2335
      %v2530 = vpop.f32.mrf.mxu0
      %v2531 = vadd.f32 0.0, %v2530
      %v2532 = vpop.f32.mrf.mxu0
      %v2533 = vadd.f32 0.0, %v2532
      %2534 = vmatmul.bf16.gmra.mxu0 %v2338
      %v2535 = vpop.f32.mrf.mxu0
      %v2536 = vadd.f32 0.0, %v2535
      %v2537 = vpop.f32.mrf.mxu0
      %v2538 = vadd.f32 0.0, %v2537
      %2539 = vmatmul.bf16.gmra.mxu0 %v2341
      %v2540 = vpop.f32.mrf.mxu0
      %v2541 = vadd.f32 0.0, %v2540
      %v2542 = vpop.f32.mrf.mxu0
      %v2543 = vadd.f32 0.0, %v2542
      %2544 = vmatmul.bf16.gmra.mxu0 %v2344
      %v2545 = vpop.f32.mrf.mxu0
      %v2546 = vadd.f32 0.0, %v2545
      %v2547 = vpop.f32.mrf.mxu0
      %v2548 = vadd.f32 0.0, %v2547
      %2549 = vmatmul.bf16.gmra.mxu0 %v2347
      %v2550 = vpop.f32.mrf.mxu0
      %v2551 = vadd.f32 0.0, %v2550
      %v2552 = vpop.f32.mrf.mxu0
      %v2553 = vadd.f32 0.0, %v2552
      %2554 = vmatmul.bf16.gmra.mxu0 %v2350
      %v2555 = vpop.f32.mrf.mxu0
      %v2556 = vadd.f32 0.0, %v2555
      %v2557 = vpop.f32.mrf.mxu0
      %v2558 = vadd.f32 0.0, %v2557
      %2559 = vmatmul.bf16.gmra.mxu0 %v2353
      %v2560 = vpop.f32.mrf.mxu0
      %v2561 = vadd.f32 0.0, %v2560
      %v2562 = vpop.f32.mrf.mxu0
      %v2563 = vadd.f32 0.0, %v2562
      %2564 = vmatmul.bf16.gmra.mxu0 %v2356
      %v2565 = vpop.f32.mrf.mxu0
      %v2566 = vadd.f32 0.0, %v2565
      %v2567 = vpop.f32.mrf.mxu0
      %v2568 = vadd.f32 0.0, %v2567
      %2569 = vmatmul.bf16.gmra.mxu0 %v2359
      %v2570 = vpop.f32.mrf.mxu0
      %v2571 = vadd.f32 0.0, %v2570
      %v2572 = vpop.f32.mrf.mxu0
      %v2573 = vadd.f32 0.0, %v2572
      %2574 = vmatmul.bf16.gmra.mxu0 %v2362
      %v2575 = vpop.f32.mrf.mxu0
      %v2576 = vadd.f32 0.0, %v2575
      %v2577 = vpop.f32.mrf.mxu0
      %v2578 = vadd.f32 0.0, %v2577
      %2579 = vmatmul.bf16.gmra.mxu0 %v2365
      %v2580 = vpop.f32.mrf.mxu0
      %v2581 = vadd.f32 0.0, %v2580
      %v2582 = vpop.f32.mrf.mxu0
      %v2583 = vadd.f32 0.0, %v2582
      %2584 = vmatmul.bf16.gmra.mxu0 %v2368
      %v2585 = vpop.f32.mrf.mxu0
      %v2586 = vadd.f32 0.0, %v2585
      %v2587 = vpop.f32.mrf.mxu0
      %v2588 = vadd.f32 0.0, %v2587
      %2589 = vmatmul.bf16.gmra.mxu0 %v2371
      %v2590 = vpop.f32.mrf.mxu0
      %v2591 = vadd.f32 0.0, %v2590
      %v2592 = vpop.f32.mrf.mxu0
      %v2593 = vadd.f32 0.0, %v2592
      %2594 = vmatmul.bf16.gmra.mxu0 %v2374
      %v2595 = vpop.f32.mrf.mxu0
      %v2596 = vadd.f32 0.0, %v2595
      %v2597 = vpop.f32.mrf.mxu0
      %v2598 = vadd.f32 0.0, %v2597
      %2599 = vmatmul.bf16.gmra.mxu0 %v2377
      %v2600 = vpop.f32.mrf.mxu0
      %v2601 = vadd.f32 0.0, %v2600
      %v2602 = vpop.f32.mrf.mxu0
      %v2603 = vadd.f32 0.0, %v2602
      %2604 = vmatmul.bf16.gmra.mxu0 %v2380
      %v2605 = vpop.f32.mrf.mxu0
      %v2606 = vadd.f32 0.0, %v2605
      %v2607 = vpop.f32.mrf.mxu0
      %v2608 = vadd.f32 0.0, %v2607
      %2609 = vmatmul.bf16.gmra.mxu0 %v2383
      %v2610 = vpop.f32.mrf.mxu0
      %v2611 = vadd.f32 0.0, %v2610
      %v2612 = vpop.f32.mrf.mxu0
      %v2613 = vadd.f32 0.0, %v2612
      %2614 = vmatmul.bf16.gmra.mxu0 %v2386
      %v2615 = vpop.f32.mrf.mxu0
      %v2616 = vadd.f32 0.0, %v2615
      %v2617 = vpop.f32.mrf.mxu0
      %v2618 = vadd.f32 0.0, %v2617
      %2619 = vmatmul.bf16.gmra.mxu0 %v2389
      %v2620 = vpop.f32.mrf.mxu0
      %v2621 = vadd.f32 0.0, %v2620
      %v2622 = vpop.f32.mrf.mxu0
      %v2623 = vadd.f32 0.0, %v2622
      %2624 = vmatmul.bf16.gmra.mxu0 %v2392
      %v2625 = vpop.f32.mrf.mxu0
      %v2626 = vadd.f32 0.0, %v2625
      %v2627 = vpop.f32.mrf.mxu0
      %v2628 = vadd.f32 0.0, %v2627
      %2629 = vmatmul.bf16.gmra.mxu0 %v2395
      %v2630 = vpop.f32.mrf.mxu0
      %v2631 = vadd.f32 0.0, %v2630
      %v2632 = vpop.f32.mrf.mxu0
      %v2633 = vadd.f32 0.0, %v2632
      %2634 = vmatmul.bf16.gmra.mxu0 %v2398
      %v2635 = vpop.f32.mrf.mxu0
      %v2636 = vadd.f32 0.0, %v2635
      %v2637 = vpop.f32.mrf.mxu0
      %v2638 = vadd.f32 0.0, %v2637
      %2639 = vmatmul.bf16.gmra.mxu0 %v2401
      %v2640 = vpop.f32.mrf.mxu0
      %v2641 = vadd.f32 0.0, %v2640
      %v2642 = vpop.f32.mrf.mxu0
      %v2643 = vadd.f32 0.0, %v2642
      %2644 = vmatmul.bf16.gmra.mxu0 %v2404
      %v2645 = vpop.f32.mrf.mxu0
      %v2646 = vadd.f32 0.0, %v2645
      %v2647 = vpop.f32.mrf.mxu0
      %v2648 = vadd.f32 0.0, %v2647
      %2649 = vmatmul.bf16.gmra.mxu0 %v2407
      %v2650 = vpop.f32.mrf.mxu0
      %v2651 = vadd.f32 0.0, %v2650
      %v2652 = vpop.f32.mrf.mxu0
      %v2653 = vadd.f32 0.0, %v2652
      %2654 = vmatmul.bf16.gmra.mxu0 %v2410
      %v2655 = vpop.f32.mrf.mxu0
      %v2656 = vadd.f32 0.0, %v2655
      %v2657 = vpop.f32.mrf.mxu0
      %v2658 = vadd.f32 0.0, %v2657
      %2659 = vmatmul.bf16.gmra.mxu0 %v2413
      %v2660 = vpop.f32.mrf.mxu0
      %v2661 = vadd.f32 0.0, %v2660
      %v2662 = vpop.f32.mrf.mxu0
      %v2663 = vadd.f32 0.0, %v2662
      %2664 = vmatmul.bf16.gmra.mxu0 %v2416
      %v2665 = vpop.f32.mrf.mxu0
      %v2666 = vadd.f32 0.0, %v2665
      %v2667 = vpop.f32.mrf.mxu0
      %v2668 = vadd.f32 0.0, %v2667
      %2669 = vmatmul.bf16.gmra.mxu0 %v2419
      %v2670 = vpop.f32.mrf.mxu0
      %v2671 = vadd.f32 0.0, %v2670
      %v2672 = vpop.f32.mrf.mxu0
      %v2673 = vadd.f32 0.0, %v2672
      %2674 = vdwg.mxu0
      %v2675 = vmax.f32 %v1833, %v2431
      %v2676 = vmax.f32 %v1834, %v2433
      %v2677 = vmax.f32 %v1835, %v2436
      %v2678 = vmax.f32 %v1836, %v2438
      %v2679 = vmax.f32 %v1837, %v2441
      %v2680 = vmax.f32 %v1838, %v2443
      %v2681 = vmax.f32 %v1839, %v2446
      %v2682 = vmax.f32 %v1840, %v2448
      %v2683 = vmax.f32 %v1841, %v2451
      %v2684 = vmax.f32 %v1842, %v2453
      %v2685 = vmax.f32 %v1843, %v2456
      %v2686 = vmax.f32 %v1844, %v2458
      %v2687 = vmax.f32 %v1845, %v2461
      %v2688 = vmax.f32 %v1846, %v2463
      %v2689 = vmax.f32 %v1847, %v2466
      %v2690 = vmax.f32 %v1848, %v2468
      %v2691 = vmax.f32 %v1849, %v2471
      %v2692 = vmax.f32 %v1850, %v2473
      %v2693 = vmax.f32 %v1851, %v2476
      %v2694 = vmax.f32 %v1852, %v2478
      %v2695 = vmax.f32 %v1853, %v2481
      %v2696 = vmax.f32 %v1854, %v2483
      %v2697 = vmax.f32 %v1855, %v2486
      %v2698 = vmax.f32 %v1856, %v2488
      %v2699 = vmax.f32 %v1857, %v2491
      %v2700 = vmax.f32 %v1858, %v2493
      %v2701 = vmax.f32 %v1859, %v2496
      %v2702 = vmax.f32 %v1860, %v2498
      %v2703 = vmax.f32 %v1861, %v2501
      %v2704 = vmax.f32 %v1862, %v2503
      %v2705 = vmax.f32 %v1863, %v2506
      %v2706 = vmax.f32 %v1864, %v2508
      %v2707 = vmax.f32 %v1865, %v2511
      %v2708 = vmax.f32 %v1866, %v2513
      %v2709 = vmax.f32 %v1867, %v2516
      %v2710 = vmax.f32 %v1868, %v2518
      %v2711 = vmax.f32 %v1869, %v2521
      %v2712 = vmax.f32 %v1870, %v2523
      %v2713 = vmax.f32 %v1871, %v2526
      %v2714 = vmax.f32 %v1872, %v2528
      %v2715 = vmax.f32 %v1873, %v2531
      %v2716 = vmax.f32 %v1874, %v2533
      %v2717 = vmax.f32 %v1875, %v2536
      %v2718 = vmax.f32 %v1876, %v2538
      %v2719 = vmax.f32 %v1877, %v2541
      %v2720 = vmax.f32 %v1878, %v2543
      %v2721 = vmax.f32 %v1879, %v2546
      %v2722 = vmax.f32 %v1880, %v2548
      %v2723 = vmax.f32 %v1881, %v2551
      %v2724 = vmax.f32 %v1882, %v2553
      %v2725 = vmax.f32 %v1883, %v2556
      %v2726 = vmax.f32 %v1884, %v2558
      %v2727 = vmax.f32 %v1885, %v2561
      %v2728 = vmax.f32 %v1886, %v2563
      %v2729 = vmax.f32 %v1887, %v2566
      %v2730 = vmax.f32 %v1888, %v2568
      %v2731 = vmax.f32 %v1889, %v2571
      %v2732 = vmax.f32 %v1890, %v2573
      %v2733 = vmax.f32 %v1891, %v2576
      %v2734 = vmax.f32 %v1892, %v2578
      %v2735 = vmax.f32 %v1893, %v2581
      %v2736 = vmax.f32 %v1894, %v2583
      %v2737 = vmax.f32 %v1895, %v2586
      %v2738 = vmax.f32 %v1896, %v2588
      %v2739 = vmax.f32 %v1897, %v2591
      %v2740 = vmax.f32 %v1898, %v2593
      %v2741 = vmax.f32 %v1899, %v2596
      %v2742 = vmax.f32 %v1900, %v2598
      %v2743 = vmax.f32 %v1901, %v2601
      %v2744 = vmax.f32 %v1902, %v2603
      %v2745 = vmax.f32 %v1903, %v2606
      %v2746 = vmax.f32 %v1904, %v2608
      %v2747 = vmax.f32 %v1905, %v2611
      %v2748 = vmax.f32 %v1906, %v2613
      %v2749 = vmax.f32 %v1907, %v2616
      %v2750 = vmax.f32 %v1908, %v2618
      %v2751 = vmax.f32 %v1909, %v2621
      %v2752 = vmax.f32 %v1910, %v2623
      %v2753 = vmax.f32 %v1911, %v2626
      %v2754 = vmax.f32 %v1912, %v2628
      %v2755 = vmax.f32 %v1913, %v2631
      %v2756 = vmax.f32 %v1914, %v2633
      %v2757 = vmax.f32 %v1915, %v2636
      %v2758 = vmax.f32 %v1916, %v2638
      %v2759 = vmax.f32 %v1917, %v2641
      %v2760 = vmax.f32 %v1918, %v2643
      %v2761 = vmax.f32 %v1919, %v2646
      %v2762 = vmax.f32 %v1920, %v2648
      %v2763 = vmax.f32 %v1921, %v2651
      %v2764 = vmax.f32 %v1922, %v2653
      %v2765 = vmax.f32 %v1923, %v2656
      %v2766 = vmax.f32 %v1924, %v2658
      %v2767 = vmax.f32 %v1925, %v2661
      %v2768 = vmax.f32 %v1926, %v2663
      %v2769 = vmax.f32 %v1927, %v2666
      %v2770 = vmax.f32 %v1928, %v2668
      %v2771 = vmax.f32 %v1929, %v2671
      %v2772 = vmax.f32 %v1930, %v2673
      %v2773 = vld [vmem:[%s313] sm:$0xf]
      %v2774 = vld [vmem:[%s313 + $0x4] sm:$0xf]
      %v2775 = vld [vmem:[%s313 + $0x8] sm:$0xf]
      %v2776 = vld [vmem:[%s313 + $0xc] sm:$0xf]
      %v2777 = vld [vmem:[%s313 + $0x10] sm:$0xf]
      %v2778 = vld [vmem:[%s313 + $0x14] sm:$0xf]
      %v2779 = vld [vmem:[%s313 + $0x18] sm:$0xf]
      %v2780 = vld [vmem:[%s313 + $0x1c] sm:$0xf]
      %v2781 = vld [vmem:[%s313 + $0x20] sm:$0xf]
      %v2782 = vld [vmem:[%s313 + $0x24] sm:$0xf]
      %v2783 = vld [vmem:[%s313 + $0x28] sm:$0xf]
      %v2784 = vld [vmem:[%s313 + $0x2c] sm:$0xf]
      %v2785 = vld [vmem:[%s313 + $0x30] sm:$0xf]
      %v2786 = vld [vmem:[%s313 + $0x34] sm:$0xf]
      %v2787 = vld [vmem:[%s313 + $0x38] sm:$0xf]
      %v2788 = vld [vmem:[%s313 + $0x3c] sm:$0xf]
      %v2789 = vld [vmem:[%s313 + $0x40] sm:$0xf]
      %v2790 = vld [vmem:[%s313 + $0x44] sm:$0xf]
      %v2791 = vld [vmem:[%s313 + $0x48] sm:$0xf]
      %v2792 = vld [vmem:[%s313 + $0x4c] sm:$0xf]
      %v2793 = vld [vmem:[%s313 + $0x50] sm:$0xf]
      %v2794 = vld [vmem:[%s313 + $0x54] sm:$0xf]
      %v2795 = vld [vmem:[%s313 + $0x58] sm:$0xf]
      %v2796 = vld [vmem:[%s313 + $0x5c] sm:$0xf]
      %v2797 = vld [vmem:[%s313 + $0x60] sm:$0xf]
      %v2798 = vld [vmem:[%s313 + $0x64] sm:$0xf]
      %v2799 = vld [vmem:[%s313 + $0x68] sm:$0xf]
      %v2800 = vld [vmem:[%s313 + $0x6c] sm:$0xf]
      %v2801 = vld [vmem:[%s313 + $0x70] sm:$0xf]
      %v2802 = vld [vmem:[%s313 + $0x74] sm:$0xf]
      %v2803 = vld [vmem:[%s313 + $0x78] sm:$0xf]
      %v2804 = vld [vmem:[%s313 + $0x7c] sm:$0xf]
      %v2805 = vld [vmem:[%s313 + $0x80] sm:$0xf]
      %v2806 = vld [vmem:[%s313 + $0x84] sm:$0xf]
      %v2807 = vld [vmem:[%s313 + $0x88] sm:$0xf]
      %v2808 = vld [vmem:[%s313 + $0x8c] sm:$0xf]
      %v2809 = vld [vmem:[%s313 + $0x90] sm:$0xf]
      %v2810 = vld [vmem:[%s313 + $0x94] sm:$0xf]
      %v2811 = vld [vmem:[%s313 + $0x98] sm:$0xf]
      %v2812 = vld [vmem:[%s313 + $0x9c] sm:$0xf]
      %v2813 = vld [vmem:[%s313 + $0xa0] sm:$0xf]
      %v2814 = vld [vmem:[%s313 + $0xa4] sm:$0xf]
      %v2815 = vld [vmem:[%s313 + $0xa8] sm:$0xf]
      %v2816 = vld [vmem:[%s313 + $0xac] sm:$0xf]
      %v2817 = vld [vmem:[%s313 + $0xb0] sm:$0xf]
      %v2818 = vld [vmem:[%s313 + $0xb4] sm:$0xf]
      %v2819 = vld [vmem:[%s313 + $0xb8] sm:$0xf]
      %v2820 = vld [vmem:[%s313 + $0xbc] sm:$0xf]
      %v2821 = vld [vmem:[%s313 + $0xc0] sm:$0xf]
      %v2822 = vld [vmem:[%s313 + $0xc4] sm:$0xf]
      %v2823 = vld [vmem:[%s313 + $0xc8] sm:$0xf]
      %v2824 = vld [vmem:[%s313 + $0xcc] sm:$0xf]
      %v2825 = vld [vmem:[%s313 + $0xd0] sm:$0xf]
      %v2826 = vld [vmem:[%s313 + $0xd4] sm:$0xf]
      %v2827 = vld [vmem:[%s313 + $0xd8] sm:$0xf]
      %v2828 = vld [vmem:[%s313 + $0xdc] sm:$0xf]
      %v2829 = vld [vmem:[%s313 + $0xe0] sm:$0xf]
      %v2830 = vld [vmem:[%s313 + $0xe4] sm:$0xf]
      %v2831 = vld [vmem:[%s313 + $0xe8] sm:$0xf]
      %v2832 = vld [vmem:[%s313 + $0xec] sm:$0xf]
      %v2833 = vld [vmem:[%s313 + $0xf0] sm:$0xf]
      %v2834 = vld [vmem:[%s313 + $0xf4] sm:$0xf]
      %v2835 = vld [vmem:[%s313 + $0xf8] sm:$0xf]
      %v2836 = vld [vmem:[%s313 + $0xfc] sm:$0xf]
      %v2837 = vld [vmem:[%s313 + $0x100] sm:$0xf]
      %v2838 = vld [vmem:[%s313 + $0x104] sm:$0xf]
      %v2839 = vld [vmem:[%s313 + $0x108] sm:$0xf]
      %v2840 = vld [vmem:[%s313 + $0x10c] sm:$0xf]
      %v2841 = vld [vmem:[%s313 + $0x110] sm:$0xf]
      %v2842 = vld [vmem:[%s313 + $0x114] sm:$0xf]
      %v2843 = vld [vmem:[%s313 + $0x118] sm:$0xf]
      %v2844 = vld [vmem:[%s313 + $0x11c] sm:$0xf]
      %v2845 = vld [vmem:[%s313 + $0x120] sm:$0xf]
      %v2846 = vld [vmem:[%s313 + $0x124] sm:$0xf]
      %v2847 = vld [vmem:[%s313 + $0x128] sm:$0xf]
      %v2848 = vld [vmem:[%s313 + $0x12c] sm:$0xf]
      %v2849 = vld [vmem:[%s313 + $0x130] sm:$0xf]
      %v2850 = vld [vmem:[%s313 + $0x134] sm:$0xf]
      %v2851 = vld [vmem:[%s313 + $0x138] sm:$0xf]
      %v2852 = vld [vmem:[%s313 + $0x13c] sm:$0xf]
      %v2853 = vld [vmem:[%s313 + $0x140] sm:$0xf]
      %v2854 = vld [vmem:[%s313 + $0x144] sm:$0xf]
      %v2855 = vld [vmem:[%s313 + $0x148] sm:$0xf]
      %v2856 = vld [vmem:[%s313 + $0x14c] sm:$0xf]
      %v2857 = vld [vmem:[%s313 + $0x150] sm:$0xf]
      %v2858 = vld [vmem:[%s313 + $0x154] sm:$0xf]
      %v2859 = vld [vmem:[%s313 + $0x158] sm:$0xf]
      %v2860 = vld [vmem:[%s313 + $0x15c] sm:$0xf]
      %v2861 = vld [vmem:[%s313 + $0x160] sm:$0xf]
      %v2862 = vld [vmem:[%s313 + $0x164] sm:$0xf]
      %v2863 = vld [vmem:[%s313 + $0x168] sm:$0xf]
      %v2864 = vld [vmem:[%s313 + $0x16c] sm:$0xf]
      %v2865 = vld [vmem:[%s313 + $0x170] sm:$0xf]
      %v2866 = vld [vmem:[%s313 + $0x174] sm:$0xf]
      %v2867 = vld [vmem:[%s313 + $0x178] sm:$0xf]
      %v2868 = vld [vmem:[%s313 + $0x17c] sm:$0xf]
      %v2869 = vld [vmem:[%s313 + $0x180] sm:$0xf]
      %v2870 = vld [vmem:[%s313 + $0x184] sm:$0xf]
      %v2969 = vunpack.c.l.b16 %v2773
      %v2970 = vunpack.c.l.b16 %v2774
      %v2971 = vunpack.c.l.b16 %v2775
      %v2972 = vunpack.c.l.b16 %v2776
      %v2973 = vunpack.c.l.b16 %v2777
      %v2974 = vunpack.c.l.b16 %v2778
      %v2975 = vunpack.c.l.b16 %v2779
      %v2976 = vunpack.c.l.b16 %v2780
      %v2977 = vunpack.c.l.b16 %v2781
      %v2978 = vunpack.c.l.b16 %v2782
      %v2979 = vunpack.c.l.b16 %v2783
      %v2980 = vunpack.c.l.b16 %v2784
      %v2981 = vunpack.c.l.b16 %v2785
      %v2982 = vunpack.c.l.b16 %v2786
      %v2983 = vunpack.c.l.b16 %v2787
      %v2984 = vunpack.c.l.b16 %v2788
      %v2985 = vunpack.c.l.b16 %v2789
      %v2986 = vunpack.c.l.b16 %v2790
      %v2987 = vunpack.c.l.b16 %v2791
      %v2988 = vunpack.c.l.b16 %v2792
      %v2989 = vunpack.c.l.b16 %v2793
      %v2990 = vunpack.c.l.b16 %v2794
      %v2991 = vunpack.c.l.b16 %v2795
      %v2992 = vunpack.c.l.b16 %v2796
      %v2993 = vunpack.c.l.b16 %v2797
      %v2994 = vunpack.c.l.b16 %v2798
      %v2995 = vunpack.c.l.b16 %v2799
      %v2996 = vunpack.c.l.b16 %v2800
      %v2997 = vunpack.c.l.b16 %v2801
      %v2998 = vunpack.c.l.b16 %v2802
      %v2999 = vunpack.c.l.b16 %v2803
      %v3000 = vunpack.c.l.b16 %v2804
      %v3001 = vunpack.c.l.b16 %v2805
      %v3002 = vunpack.c.l.b16 %v2806
      %v3003 = vunpack.c.l.b16 %v2807
      %v3004 = vunpack.c.l.b16 %v2808
      %v3005 = vunpack.c.l.b16 %v2809
      %v3006 = vunpack.c.l.b16 %v2810
      %v3007 = vunpack.c.l.b16 %v2811
      %v3008 = vunpack.c.l.b16 %v2812
      %v3009 = vunpack.c.l.b16 %v2813
      %v3010 = vunpack.c.l.b16 %v2814
      %v3011 = vunpack.c.l.b16 %v2815
      %v3012 = vunpack.c.l.b16 %v2816
      %v3013 = vunpack.c.l.b16 %v2817
      %v3014 = vunpack.c.l.b16 %v2818
      %v3015 = vunpack.c.l.b16 %v2819
      %v3016 = vunpack.c.l.b16 %v2820
      %v3017 = vunpack.c.l.b16 %v2821
      %v3018 = vunpack.c.l.b16 %v2822
      %v3019 = vunpack.c.l.b16 %v2823
      %v3020 = vunpack.c.l.b16 %v2824
      %v3021 = vunpack.c.l.b16 %v2825
      %v3022 = vunpack.c.l.b16 %v2826
      %v3023 = vunpack.c.l.b16 %v2827
      %v3024 = vunpack.c.l.b16 %v2828
      %v3025 = vunpack.c.l.b16 %v2829
      %v3026 = vunpack.c.l.b16 %v2830
      %v3027 = vunpack.c.l.b16 %v2831
      %v3028 = vunpack.c.l.b16 %v2832
      %v3029 = vunpack.c.l.b16 %v2833
      %v3030 = vunpack.c.l.b16 %v2834
      %v3031 = vunpack.c.l.b16 %v2835
      %v3032 = vunpack.c.l.b16 %v2836
      %v3033 = vunpack.c.l.b16 %v2837
      %v3034 = vunpack.c.l.b16 %v2838
      %v3035 = vunpack.c.l.b16 %v2839
      %v3036 = vunpack.c.l.b16 %v2840
      %v3037 = vunpack.c.l.b16 %v2841
      %v3038 = vunpack.c.l.b16 %v2842
      %v3039 = vunpack.c.l.b16 %v2843
      %v3040 = vunpack.c.l.b16 %v2844
      %v3041 = vunpack.c.l.b16 %v2845
      %v3042 = vunpack.c.l.b16 %v2846
      %v3043 = vunpack.c.l.b16 %v2847
      %v3044 = vunpack.c.l.b16 %v2848
      %v3045 = vunpack.c.l.b16 %v2849
      %v3046 = vunpack.c.l.b16 %v2850
      %v3047 = vunpack.c.l.b16 %v2851
      %v3048 = vunpack.c.l.b16 %v2852
      %v3049 = vunpack.c.l.b16 %v2853
      %v3050 = vunpack.c.l.b16 %v2854
      %v3051 = vunpack.c.l.b16 %v2855
      %v3052 = vunpack.c.l.b16 %v2856
      %v3053 = vunpack.c.l.b16 %v2857
      %v3054 = vunpack.c.l.b16 %v2858
      %v3055 = vunpack.c.l.b16 %v2859
      %v3056 = vunpack.c.l.b16 %v2860
      %v3057 = vunpack.c.l.b16 %v2861
      %v3058 = vunpack.c.l.b16 %v2862
      %v3059 = vunpack.c.l.b16 %v2863
      %v3060 = vunpack.c.l.b16 %v2864
      %v3061 = vunpack.c.l.b16 %v2865
      %v3062 = vunpack.c.l.b16 %v2866
      %v3063 = vunpack.c.l.b16 %v2867
      %v3064 = vunpack.c.l.b16 %v2868
      %v3065 = vunpack.c.l.b16 %v2869
      %v3066 = vunpack.c.l.b16 %v2870
      %v3067 = vpack.c.b16 %v2970, %v2969
      %v3068 = vpack.c.b16 %v2972, %v2971
      %v3069 = vpack.c.b16 %v2974, %v2973
      %v3070 = vpack.c.b16 %v2976, %v2975
      %v3071 = vpack.c.b16 %v2978, %v2977
      %v3072 = vpack.c.b16 %v2980, %v2979
      %v3073 = vpack.c.b16 %v2982, %v2981
      %v3074 = vpack.c.b16 %v2984, %v2983
      %v3075 = vpack.c.b16 %v2986, %v2985
      %v3076 = vpack.c.b16 %v2988, %v2987
      %v3077 = vpack.c.b16 %v2990, %v2989
      %v3078 = vpack.c.b16 %v2992, %v2991
      %v3079 = vpack.c.b16 %v2994, %v2993
      %v3080 = vpack.c.b16 %v2996, %v2995
      %v3081 = vpack.c.b16 %v2998, %v2997
      %v3082 = vpack.c.b16 %v3000, %v2999
      %v3083 = vpack.c.b16 %v3002, %v3001
      %v3084 = vpack.c.b16 %v3004, %v3003
      %v3085 = vpack.c.b16 %v3006, %v3005
      %v3086 = vpack.c.b16 %v3008, %v3007
      %v3087 = vpack.c.b16 %v3010, %v3009
      %v3088 = vpack.c.b16 %v3012, %v3011
      %v3089 = vpack.c.b16 %v3014, %v3013
      %v3090 = vpack.c.b16 %v3016, %v3015
      %v3091 = vpack.c.b16 %v3018, %v3017
      %v3092 = vpack.c.b16 %v3020, %v3019
      %v3093 = vpack.c.b16 %v3022, %v3021
      %v3094 = vpack.c.b16 %v3024, %v3023
      %v3095 = vpack.c.b16 %v3026, %v3025
      %v3096 = vpack.c.b16 %v3028, %v3027
      %v3097 = vpack.c.b16 %v3030, %v3029
      %v3098 = vpack.c.b16 %v3032, %v3031
      %v3099 = vpack.c.b16 %v3034, %v3033
      %v3100 = vpack.c.b16 %v3036, %v3035
      %v3101 = vpack.c.b16 %v3038, %v3037
      %v3102 = vpack.c.b16 %v3040, %v3039
      %v3103 = vpack.c.b16 %v3042, %v3041
      %v3104 = vpack.c.b16 %v3044, %v3043
      %v3105 = vpack.c.b16 %v3046, %v3045
      %v3106 = vpack.c.b16 %v3048, %v3047
      %v3107 = vpack.c.b16 %v3050, %v3049
      %v3108 = vpack.c.b16 %v3052, %v3051
      %v3109 = vpack.c.b16 %v3054, %v3053
      %v3110 = vpack.c.b16 %v3056, %v3055
      %v3111 = vpack.c.b16 %v3058, %v3057
      %v3112 = vpack.c.b16 %v3060, %v3059
      %v3113 = vpack.c.b16 %v3062, %v3061
      %v3114 = vpack.c.b16 %v3064, %v3063
      %v3115 = vpack.c.b16 %v3066, %v3065
      %v3117 = vsel %vm680, %v3067, 0
      %v3120 = vsel %vm680, %v3068, 0
      %v3123 = vsel %vm680, %v3069, 0
      %v3126 = vsel %vm680, %v3070, 0
      %v3129 = vsel %vm680, %v3071, 0
      %v3132 = vsel %vm680, %v3072, 0
      %v3135 = vsel %vm680, %v3073, 0
      %v3138 = vsel %vm680, %v3074, 0
      %v3141 = vsel %vm680, %v3075, 0
      %v3144 = vsel %vm680, %v3076, 0
      %v3147 = vsel %vm680, %v3077, 0
      %v3150 = vsel %vm680, %v3078, 0
      %v3153 = vsel %vm680, %v3079, 0
      %v3156 = vsel %vm680, %v3080, 0
      %v3159 = vsel %vm680, %v3081, 0
      %v3162 = vsel %vm680, %v3082, 0
      %v3165 = vsel %vm680, %v3083, 0
      %v3168 = vsel %vm680, %v3084, 0
      %v3171 = vsel %vm680, %v3085, 0
      %v3174 = vsel %vm680, %v3086, 0
      %v3177 = vsel %vm680, %v3087, 0
      %v3180 = vsel %vm680, %v3088, 0
      %v3183 = vsel %vm680, %v3089, 0
      %v3186 = vsel %vm680, %v3090, 0
      %v3189 = vsel %vm680, %v3091, 0
      %v3192 = vsel %vm680, %v3092, 0
      %v3195 = vsel %vm680, %v3093, 0
      %v3198 = vsel %vm680, %v3094, 0
      %v3201 = vsel %vm680, %v3095, 0
      %v3204 = vsel %vm680, %v3096, 0
      %v3207 = vsel %vm680, %v3097, 0
      %v3210 = vsel %vm680, %v3098, 0
      %v3213 = vsel %vm680, %v3099, 0
      %v3216 = vsel %vm680, %v3100, 0
      %v3219 = vsel %vm680, %v3101, 0
      %v3222 = vsel %vm680, %v3102, 0
      %v3225 = vsel %vm680, %v3103, 0
      %v3228 = vsel %vm680, %v3104, 0
      %v3231 = vsel %vm680, %v3105, 0
      %v3234 = vsel %vm680, %v3106, 0
      %v3237 = vsel %vm680, %v3107, 0
      %v3240 = vsel %vm680, %v3108, 0
      %v3243 = vsel %vm680, %v3109, 0
      %v3246 = vsel %vm680, %v3110, 0
      %v3249 = vsel %vm680, %v3111, 0
      %v3252 = vsel %vm680, %v3112, 0
      %v3255 = vsel %vm680, %v3113, 0
      %v3258 = vsel %vm680, %v3114, 0
      %v3261 = vsel %vm680, %v3115, 0
      %3263 = vmatpush.bf16.msra.mxu0 0
      %3264 = vmatpush.bf16.msra.mxu0 0
      %3265 = vmatpush.bf16.msra.mxu0 0
      %3266 = vmatpush.bf16.msra.mxu0 0
      %3267 = vmatpush.bf16.msra.mxu0 0
      %3268 = vmatpush.bf16.msra.mxu0 0
      %3269 = vmatpush.bf16.msra.mxu0 %v833
      %3270 = vmatpush.bf16.msra.mxu0 %v677
      %3271 = vmatmul.bf16.gmra.mxu0 %v3117
      %v3272 = vpop.f32.mrf.mxu0
      %v3273 = vadd.f32 0.0, %v3272
      %v3274 = vpop.f32.mrf.mxu0
      %v3275 = vadd.f32 0.0, %v3274
      %3276 = vmatmul.bf16.gmra.mxu0 %v3120
      %v3277 = vpop.f32.mrf.mxu0
      %v3278 = vadd.f32 0.0, %v3277
      %v3279 = vpop.f32.mrf.mxu0
      %v3280 = vadd.f32 0.0, %v3279
      %3281 = vmatmul.bf16.gmra.mxu0 %v3123
      %v3282 = vpop.f32.mrf.mxu0
      %v3283 = vadd.f32 0.0, %v3282
      %v3284 = vpop.f32.mrf.mxu0
      %v3285 = vadd.f32 0.0, %v3284
      %3286 = vmatmul.bf16.gmra.mxu0 %v3126
      %v3287 = vpop.f32.mrf.mxu0
      %v3288 = vadd.f32 0.0, %v3287
      %v3289 = vpop.f32.mrf.mxu0
      %v3290 = vadd.f32 0.0, %v3289
      %3291 = vmatmul.bf16.gmra.mxu0 %v3129
      %v3292 = vpop.f32.mrf.mxu0
      %v3293 = vadd.f32 0.0, %v3292
      %v3294 = vpop.f32.mrf.mxu0
      %v3295 = vadd.f32 0.0, %v3294
      %3296 = vmatmul.bf16.gmra.mxu0 %v3132
      %v3297 = vpop.f32.mrf.mxu0
      %v3298 = vadd.f32 0.0, %v3297
      %v3299 = vpop.f32.mrf.mxu0
      %v3300 = vadd.f32 0.0, %v3299
      %3301 = vmatmul.bf16.gmra.mxu0 %v3135
      %v3302 = vpop.f32.mrf.mxu0
      %v3303 = vadd.f32 0.0, %v3302
      %v3304 = vpop.f32.mrf.mxu0
      %v3305 = vadd.f32 0.0, %v3304
      %3306 = vmatmul.bf16.gmra.mxu0 %v3138
      %v3307 = vpop.f32.mrf.mxu0
      %v3308 = vadd.f32 0.0, %v3307
      %v3309 = vpop.f32.mrf.mxu0
      %v3310 = vadd.f32 0.0, %v3309
      %3311 = vmatmul.bf16.gmra.mxu0 %v3141
      %v3312 = vpop.f32.mrf.mxu0
      %v3313 = vadd.f32 0.0, %v3312
      %v3314 = vpop.f32.mrf.mxu0
      %v3315 = vadd.f32 0.0, %v3314
      %3316 = vmatmul.bf16.gmra.mxu0 %v3144
      %v3317 = vpop.f32.mrf.mxu0
      %v3318 = vadd.f32 0.0, %v3317
      %v3319 = vpop.f32.mrf.mxu0
      %v3320 = vadd.f32 0.0, %v3319
      %3321 = vmatmul.bf16.gmra.mxu0 %v3147
      %v3322 = vpop.f32.mrf.mxu0
      %v3323 = vadd.f32 0.0, %v3322
      %v3324 = vpop.f32.mrf.mxu0
      %v3325 = vadd.f32 0.0, %v3324
      %3326 = vmatmul.bf16.gmra.mxu0 %v3150
      %v3327 = vpop.f32.mrf.mxu0
      %v3328 = vadd.f32 0.0, %v3327
      %v3329 = vpop.f32.mrf.mxu0
      %v3330 = vadd.f32 0.0, %v3329
      %3331 = vmatmul.bf16.gmra.mxu0 %v3153
      %v3332 = vpop.f32.mrf.mxu0
      %v3333 = vadd.f32 0.0, %v3332
      %v3334 = vpop.f32.mrf.mxu0
      %v3335 = vadd.f32 0.0, %v3334
      %3336 = vmatmul.bf16.gmra.mxu0 %v3156
      %v3337 = vpop.f32.mrf.mxu0
      %v3338 = vadd.f32 0.0, %v3337
      %v3339 = vpop.f32.mrf.mxu0
      %v3340 = vadd.f32 0.0, %v3339
      %3341 = vmatmul.bf16.gmra.mxu0 %v3159
      %v3342 = vpop.f32.mrf.mxu0
      %v3343 = vadd.f32 0.0, %v3342
      %v3344 = vpop.f32.mrf.mxu0
      %v3345 = vadd.f32 0.0, %v3344
      %3346 = vmatmul.bf16.gmra.mxu0 %v3162
      %v3347 = vpop.f32.mrf.mxu0
      %v3348 = vadd.f32 0.0, %v3347
      %v3349 = vpop.f32.mrf.mxu0
      %v3350 = vadd.f32 0.0, %v3349
      %3351 = vmatmul.bf16.gmra.mxu0 %v3165
      %v3352 = vpop.f32.mrf.mxu0
      %v3353 = vadd.f32 0.0, %v3352
      %v3354 = vpop.f32.mrf.mxu0
      %v3355 = vadd.f32 0.0, %v3354
      %3356 = vmatmul.bf16.gmra.mxu0 %v3168
      %v3357 = vpop.f32.mrf.mxu0
      %v3358 = vadd.f32 0.0, %v3357
      %v3359 = vpop.f32.mrf.mxu0
      %v3360 = vadd.f32 0.0, %v3359
      %3361 = vmatmul.bf16.gmra.mxu0 %v3171
      %v3362 = vpop.f32.mrf.mxu0
      %v3363 = vadd.f32 0.0, %v3362
      %v3364 = vpop.f32.mrf.mxu0
      %v3365 = vadd.f32 0.0, %v3364
      %3366 = vmatmul.bf16.gmra.mxu0 %v3174
      %v3367 = vpop.f32.mrf.mxu0
      %v3368 = vadd.f32 0.0, %v3367
      %v3369 = vpop.f32.mrf.mxu0
      %v3370 = vadd.f32 0.0, %v3369
      %3371 = vmatmul.bf16.gmra.mxu0 %v3177
      %v3372 = vpop.f32.mrf.mxu0
      %v3373 = vadd.f32 0.0, %v3372
      %v3374 = vpop.f32.mrf.mxu0
      %v3375 = vadd.f32 0.0, %v3374
      %3376 = vmatmul.bf16.gmra.mxu0 %v3180
      %v3377 = vpop.f32.mrf.mxu0
      %v3378 = vadd.f32 0.0, %v3377
      %v3379 = vpop.f32.mrf.mxu0
      %v3380 = vadd.f32 0.0, %v3379
      %3381 = vmatmul.bf16.gmra.mxu0 %v3183
      %v3382 = vpop.f32.mrf.mxu0
      %v3383 = vadd.f32 0.0, %v3382
      %v3384 = vpop.f32.mrf.mxu0
      %v3385 = vadd.f32 0.0, %v3384
      %3386 = vmatmul.bf16.gmra.mxu0 %v3186
      %v3387 = vpop.f32.mrf.mxu0
      %v3388 = vadd.f32 0.0, %v3387
      %v3389 = vpop.f32.mrf.mxu0
      %v3390 = vadd.f32 0.0, %v3389
      %3391 = vmatmul.bf16.gmra.mxu0 %v3189
      %v3392 = vpop.f32.mrf.mxu0
      %v3393 = vadd.f32 0.0, %v3392
      %v3394 = vpop.f32.mrf.mxu0
      %v3395 = vadd.f32 0.0, %v3394
      %3396 = vmatmul.bf16.gmra.mxu0 %v3192
      %v3397 = vpop.f32.mrf.mxu0
      %v3398 = vadd.f32 0.0, %v3397
      %v3399 = vpop.f32.mrf.mxu0
      %v3400 = vadd.f32 0.0, %v3399
      %3401 = vmatmul.bf16.gmra.mxu0 %v3195
      %v3402 = vpop.f32.mrf.mxu0
      %v3403 = vadd.f32 0.0, %v3402
      %v3404 = vpop.f32.mrf.mxu0
      %v3405 = vadd.f32 0.0, %v3404
      %3406 = vmatmul.bf16.gmra.mxu0 %v3198
      %v3407 = vpop.f32.mrf.mxu0
      %v3408 = vadd.f32 0.0, %v3407
      %v3409 = vpop.f32.mrf.mxu0
      %v3410 = vadd.f32 0.0, %v3409
      %3411 = vmatmul.bf16.gmra.mxu0 %v3201
      %v3412 = vpop.f32.mrf.mxu0
      %v3413 = vadd.f32 0.0, %v3412
      %v3414 = vpop.f32.mrf.mxu0
      %v3415 = vadd.f32 0.0, %v3414
      %3416 = vmatmul.bf16.gmra.mxu0 %v3204
      %v3417 = vpop.f32.mrf.mxu0
      %v3418 = vadd.f32 0.0, %v3417
      %v3419 = vpop.f32.mrf.mxu0
      %v3420 = vadd.f32 0.0, %v3419
      %3421 = vmatmul.bf16.gmra.mxu0 %v3207
      %v3422 = vpop.f32.mrf.mxu0
      %v3423 = vadd.f32 0.0, %v3422
      %v3424 = vpop.f32.mrf.mxu0
      %v3425 = vadd.f32 0.0, %v3424
      %3426 = vmatmul.bf16.gmra.mxu0 %v3210
      %v3427 = vpop.f32.mrf.mxu0
      %v3428 = vadd.f32 0.0, %v3427
      %v3429 = vpop.f32.mrf.mxu0
      %v3430 = vadd.f32 0.0, %v3429
      %3431 = vmatmul.bf16.gmra.mxu0 %v3213
      %v3432 = vpop.f32.mrf.mxu0
      %v3433 = vadd.f32 0.0, %v3432
      %v3434 = vpop.f32.mrf.mxu0
      %v3435 = vadd.f32 0.0, %v3434
      %3436 = vmatmul.bf16.gmra.mxu0 %v3216
      %v3437 = vpop.f32.mrf.mxu0
      %v3438 = vadd.f32 0.0, %v3437
      %v3439 = vpop.f32.mrf.mxu0
      %v3440 = vadd.f32 0.0, %v3439
      %3441 = vmatmul.bf16.gmra.mxu0 %v3219
      %v3442 = vpop.f32.mrf.mxu0
      %v3443 = vadd.f32 0.0, %v3442
      %v3444 = vpop.f32.mrf.mxu0
      %v3445 = vadd.f32 0.0, %v3444
      %3446 = vmatmul.bf16.gmra.mxu0 %v3222
      %v3447 = vpop.f32.mrf.mxu0
      %v3448 = vadd.f32 0.0, %v3447
      %v3449 = vpop.f32.mrf.mxu0
      %v3450 = vadd.f32 0.0, %v3449
      %3451 = vmatmul.bf16.gmra.mxu0 %v3225
      %v3452 = vpop.f32.mrf.mxu0
      %v3453 = vadd.f32 0.0, %v3452
      %v3454 = vpop.f32.mrf.mxu0
      %v3455 = vadd.f32 0.0, %v3454
      %3456 = vmatmul.bf16.gmra.mxu0 %v3228
      %v3457 = vpop.f32.mrf.mxu0
      %v3458 = vadd.f32 0.0, %v3457
      %v3459 = vpop.f32.mrf.mxu0
      %v3460 = vadd.f32 0.0, %v3459
      %3461 = vmatmul.bf16.gmra.mxu0 %v3231
      %v3462 = vpop.f32.mrf.mxu0
      %v3463 = vadd.f32 0.0, %v3462
      %v3464 = vpop.f32.mrf.mxu0
      %v3465 = vadd.f32 0.0, %v3464
      %3466 = vmatmul.bf16.gmra.mxu0 %v3234
      %v3467 = vpop.f32.mrf.mxu0
      %v3468 = vadd.f32 0.0, %v3467
      %v3469 = vpop.f32.mrf.mxu0
      %v3470 = vadd.f32 0.0, %v3469
      %3471 = vmatmul.bf16.gmra.mxu0 %v3237
      %v3472 = vpop.f32.mrf.mxu0
      %v3473 = vadd.f32 0.0, %v3472
      %v3474 = vpop.f32.mrf.mxu0
      %v3475 = vadd.f32 0.0, %v3474
      %3476 = vmatmul.bf16.gmra.mxu0 %v3240
      %v3477 = vpop.f32.mrf.mxu0
      %v3478 = vadd.f32 0.0, %v3477
      %v3479 = vpop.f32.mrf.mxu0
      %v3480 = vadd.f32 0.0, %v3479
      %3481 = vmatmul.bf16.gmra.mxu0 %v3243
      %v3482 = vpop.f32.mrf.mxu0
      %v3483 = vadd.f32 0.0, %v3482
      %v3484 = vpop.f32.mrf.mxu0
      %v3485 = vadd.f32 0.0, %v3484
      %3486 = vmatmul.bf16.gmra.mxu0 %v3246
      %v3487 = vpop.f32.mrf.mxu0
      %v3488 = vadd.f32 0.0, %v3487
      %v3489 = vpop.f32.mrf.mxu0
      %v3490 = vadd.f32 0.0, %v3489
      %3491 = vmatmul.bf16.gmra.mxu0 %v3249
      %v3492 = vpop.f32.mrf.mxu0
      %v3493 = vadd.f32 0.0, %v3492
      %v3494 = vpop.f32.mrf.mxu0
      %v3495 = vadd.f32 0.0, %v3494
      %3496 = vmatmul.bf16.gmra.mxu0 %v3252
      %v3497 = vpop.f32.mrf.mxu0
      %v3498 = vadd.f32 0.0, %v3497
      %v3499 = vpop.f32.mrf.mxu0
      %v3500 = vadd.f32 0.0, %v3499
      %3501 = vmatmul.bf16.gmra.mxu0 %v3255
      %v3502 = vpop.f32.mrf.mxu0
      %v3503 = vadd.f32 0.0, %v3502
      %v3504 = vpop.f32.mrf.mxu0
      %v3505 = vadd.f32 0.0, %v3504
      %3506 = vmatmul.bf16.gmra.mxu0 %v3258
      %v3507 = vpop.f32.mrf.mxu0
      %v3508 = vadd.f32 0.0, %v3507
      %v3509 = vpop.f32.mrf.mxu0
      %v3510 = vadd.f32 0.0, %v3509
      %3511 = vmatmul.bf16.gmra.mxu0 %v3261
      %v3512 = vpop.f32.mrf.mxu0
      %v3513 = vadd.f32 0.0, %v3512
      %v3514 = vpop.f32.mrf.mxu0
      %v3515 = vadd.f32 0.0, %v3514
      %3516 = vdwg.mxu0
      %v3517 = vmax.f32 %v2675, %v3273
      %v3518 = vmax.f32 %v2676, %v3275
      %v3519 = vmax.f32 %v2677, %v3278
      %v3520 = vmax.f32 %v2678, %v3280
      %v3521 = vmax.f32 %v2679, %v3283
      %v3522 = vmax.f32 %v2680, %v3285
      %v3523 = vmax.f32 %v2681, %v3288
      %v3524 = vmax.f32 %v2682, %v3290
      %v3525 = vmax.f32 %v2683, %v3293
      %v3526 = vmax.f32 %v2684, %v3295
      %v3527 = vmax.f32 %v2685, %v3298
      %v3528 = vmax.f32 %v2686, %v3300
      %v3529 = vmax.f32 %v2687, %v3303
      %v3530 = vmax.f32 %v2688, %v3305
      %v3531 = vmax.f32 %v2689, %v3308
      %v3532 = vmax.f32 %v2690, %v3310
      %v3533 = vmax.f32 %v2691, %v3313
      %v3534 = vmax.f32 %v2692, %v3315
      %v3535 = vmax.f32 %v2693, %v3318
      %v3536 = vmax.f32 %v2694, %v3320
      %v3537 = vmax.f32 %v2695, %v3323
      %v3538 = vmax.f32 %v2696, %v3325
      %v3539 = vmax.f32 %v2697, %v3328
      %v3540 = vmax.f32 %v2698, %v3330
      %v3541 = vmax.f32 %v2699, %v3333
      %v3542 = vmax.f32 %v2700, %v3335
      %v3543 = vmax.f32 %v2701, %v3338
      %v3544 = vmax.f32 %v2702, %v3340
      %v3545 = vmax.f32 %v2703, %v3343
      %v3546 = vmax.f32 %v2704, %v3345
      %v3547 = vmax.f32 %v2705, %v3348
      %v3548 = vmax.f32 %v2706, %v3350
      %v3549 = vmax.f32 %v2707, %v3353
      %v3550 = vmax.f32 %v2708, %v3355
      %v3551 = vmax.f32 %v2709, %v3358
      %v3552 = vmax.f32 %v2710, %v3360
      %v3553 = vmax.f32 %v2711, %v3363
      %v3554 = vmax.f32 %v2712, %v3365
      %v3555 = vmax.f32 %v2713, %v3368
      %v3556 = vmax.f32 %v2714, %v3370
      %v3557 = vmax.f32 %v2715, %v3373
      %v3558 = vmax.f32 %v2716, %v3375
      %v3559 = vmax.f32 %v2717, %v3378
      %v3560 = vmax.f32 %v2718, %v3380
      %v3561 = vmax.f32 %v2719, %v3383
      %v3562 = vmax.f32 %v2720, %v3385
      %v3563 = vmax.f32 %v2721, %v3388
      %v3564 = vmax.f32 %v2722, %v3390
      %v3565 = vmax.f32 %v2723, %v3393
      %v3566 = vmax.f32 %v2724, %v3395
      %v3567 = vmax.f32 %v2725, %v3398
      %v3568 = vmax.f32 %v2726, %v3400
      %v3569 = vmax.f32 %v2727, %v3403
      %v3570 = vmax.f32 %v2728, %v3405
      %v3571 = vmax.f32 %v2729, %v3408
      %v3572 = vmax.f32 %v2730, %v3410
      %v3573 = vmax.f32 %v2731, %v3413
      %v3574 = vmax.f32 %v2732, %v3415
      %v3575 = vmax.f32 %v2733, %v3418
      %v3576 = vmax.f32 %v2734, %v3420
      %v3577 = vmax.f32 %v2735, %v3423
      %v3578 = vmax.f32 %v2736, %v3425
      %v3579 = vmax.f32 %v2737, %v3428
      %v3580 = vmax.f32 %v2738, %v3430
      %v3581 = vmax.f32 %v2739, %v3433
      %v3582 = vmax.f32 %v2740, %v3435
      %v3583 = vmax.f32 %v2741, %v3438
      %v3584 = vmax.f32 %v2742, %v3440
      %v3585 = vmax.f32 %v2743, %v3443
      %v3586 = vmax.f32 %v2744, %v3445
      %v3587 = vmax.f32 %v2745, %v3448
      %v3588 = vmax.f32 %v2746, %v3450
      %v3589 = vmax.f32 %v2747, %v3453
      %v3590 = vmax.f32 %v2748, %v3455
      %v3591 = vmax.f32 %v2749, %v3458
      %v3592 = vmax.f32 %v2750, %v3460
      %v3593 = vmax.f32 %v2751, %v3463
      %v3594 = vmax.f32 %v2752, %v3465
      %v3595 = vmax.f32 %v2753, %v3468
      %v3596 = vmax.f32 %v2754, %v3470
      %v3597 = vmax.f32 %v2755, %v3473
      %v3598 = vmax.f32 %v2756, %v3475
      %v3599 = vmax.f32 %v2757, %v3478
      %v3600 = vmax.f32 %v2758, %v3480
      %v3601 = vmax.f32 %v2759, %v3483
      %v3602 = vmax.f32 %v2760, %v3485
      %v3603 = vmax.f32 %v2761, %v3488
      %v3604 = vmax.f32 %v2762, %v3490
      %v3605 = vmax.f32 %v2763, %v3493
      %v3606 = vmax.f32 %v2764, %v3495
      %v3607 = vmax.f32 %v2765, %v3498
      %v3608 = vmax.f32 %v2766, %v3500
      %v3609 = vmax.f32 %v2767, %v3503
      %v3610 = vmax.f32 %v2768, %v3505
      %v3611 = vmax.f32 %v2769, %v3508
      %v3612 = vmax.f32 %v2770, %v3510
      %v3613 = vmax.f32 %v2771, %v3513
      %v3614 = vmax.f32 %v2772, %v3515
      %v3615 = vld [vmem:[%s5] sm:$0x1]
      %v3617 = vperm.slane %v3615, 0
      %v3619 = vadd.f32 %v3517, %v3617
      %v3620 = vadd.f32 %v3518, %v3617
      %v3621 = vadd.f32 %v3519, %v3617
      %v3622 = vadd.f32 %v3520, %v3617
      %v3623 = vadd.f32 %v3521, %v3617
      %v3624 = vadd.f32 %v3522, %v3617
      %v3625 = vadd.f32 %v3523, %v3617
      %v3626 = vadd.f32 %v3524, %v3617
      %v3627 = vadd.f32 %v3525, %v3617
      %v3628 = vadd.f32 %v3526, %v3617
      %v3629 = vadd.f32 %v3527, %v3617
      %v3630 = vadd.f32 %v3528, %v3617
      %v3631 = vadd.f32 %v3529, %v3617
      %v3632 = vadd.f32 %v3530, %v3617
      %v3633 = vadd.f32 %v3531, %v3617
      %v3634 = vadd.f32 %v3532, %v3617
      %v3635 = vadd.f32 %v3533, %v3617
      %v3636 = vadd.f32 %v3534, %v3617
      %v3637 = vadd.f32 %v3535, %v3617
      %v3638 = vadd.f32 %v3536, %v3617
      %v3639 = vadd.f32 %v3537, %v3617
      %v3640 = vadd.f32 %v3538, %v3617
      %v3641 = vadd.f32 %v3539, %v3617
      %v3642 = vadd.f32 %v3540, %v3617
      %v3643 = vadd.f32 %v3541, %v3617
      %v3644 = vadd.f32 %v3542, %v3617
      %v3645 = vadd.f32 %v3543, %v3617
      %v3646 = vadd.f32 %v3544, %v3617
      %v3647 = vadd.f32 %v3545, %v3617
      %v3648 = vadd.f32 %v3546, %v3617
      %v3649 = vadd.f32 %v3547, %v3617
      %v3650 = vadd.f32 %v3548, %v3617
      %v3651 = vadd.f32 %v3549, %v3617
      %v3652 = vadd.f32 %v3550, %v3617
      %v3653 = vadd.f32 %v3551, %v3617
      %v3654 = vadd.f32 %v3552, %v3617
      %v3655 = vadd.f32 %v3553, %v3617
      %v3656 = vadd.f32 %v3554, %v3617
      %v3657 = vadd.f32 %v3555, %v3617
      %v3658 = vadd.f32 %v3556, %v3617
      %v3659 = vadd.f32 %v3557, %v3617
      %v3660 = vadd.f32 %v3558, %v3617
      %v3661 = vadd.f32 %v3559, %v3617
      %v3662 = vadd.f32 %v3560, %v3617
      %v3663 = vadd.f32 %v3561, %v3617
      %v3664 = vadd.f32 %v3562, %v3617
      %v3665 = vadd.f32 %v3563, %v3617
      %v3666 = vadd.f32 %v3564, %v3617
      %v3667 = vadd.f32 %v3565, %v3617
      %v3668 = vadd.f32 %v3566, %v3617
      %v3669 = vadd.f32 %v3567, %v3617
      %v3670 = vadd.f32 %v3568, %v3617
      %v3671 = vadd.f32 %v3569, %v3617
      %v3672 = vadd.f32 %v3570, %v3617
      %v3673 = vadd.f32 %v3571, %v3617
      %v3674 = vadd.f32 %v3572, %v3617
      %v3675 = vadd.f32 %v3573, %v3617
      %v3676 = vadd.f32 %v3574, %v3617
      %v3677 = vadd.f32 %v3575, %v3617
      %v3678 = vadd.f32 %v3576, %v3617
      %v3679 = vadd.f32 %v3577, %v3617
      %v3680 = vadd.f32 %v3578, %v3617
      %v3681 = vadd.f32 %v3579, %v3617
      %v3682 = vadd.f32 %v3580, %v3617
      %v3683 = vadd.f32 %v3581, %v3617
      %v3684 = vadd.f32 %v3582, %v3617
      %v3685 = vadd.f32 %v3583, %v3617
      %v3686 = vadd.f32 %v3584, %v3617
      %v3687 = vadd.f32 %v3585, %v3617
      %v3688 = vadd.f32 %v3586, %v3617
      %v3689 = vadd.f32 %v3587, %v3617
      %v3690 = vadd.f32 %v3588, %v3617
      %v3691 = vadd.f32 %v3589, %v3617
      %v3692 = vadd.f32 %v3590, %v3617
      %v3693 = vadd.f32 %v3591, %v3617
      %v3694 = vadd.f32 %v3592, %v3617
      %v3695 = vadd.f32 %v3593, %v3617
      %v3696 = vadd.f32 %v3594, %v3617
      %v3697 = vadd.f32 %v3595, %v3617
      %v3698 = vadd.f32 %v3596, %v3617
      %v3699 = vadd.f32 %v3597, %v3617
      %v3700 = vadd.f32 %v3598, %v3617
      %v3701 = vadd.f32 %v3599, %v3617
      %v3702 = vadd.f32 %v3600, %v3617
      %v3703 = vadd.f32 %v3601, %v3617
      %v3704 = vadd.f32 %v3602, %v3617
      %v3705 = vadd.f32 %v3603, %v3617
      %v3706 = vadd.f32 %v3604, %v3617
      %v3707 = vadd.f32 %v3605, %v3617
      %v3708 = vadd.f32 %v3606, %v3617
      %v3709 = vadd.f32 %v3607, %v3617
      %v3710 = vadd.f32 %v3608, %v3617
      %v3711 = vadd.f32 %v3609, %v3617
      %v3712 = vadd.f32 %v3610, %v3617
      %v3713 = vadd.f32 %v3611, %v3617
      %v3714 = vadd.f32 %v3612, %v3617
      %v3715 = vadd.f32 %v3613, %v3617
      %v3716 = vadd.f32 %v3614, %v3617
      %v3717 = vmax.f32 %v3619, 0.0
      %v3718 = vmax.f32 %v3620, 0.0
      %v3719 = vmax.f32 %v3621, 0.0
      %v3720 = vmax.f32 %v3622, 0.0
      %v3721 = vmax.f32 %v3623, 0.0
      %v3722 = vmax.f32 %v3624, 0.0
      %v3723 = vmax.f32 %v3625, 0.0
      %v3724 = vmax.f32 %v3626, 0.0
      %v3725 = vmax.f32 %v3627, 0.0
      %v3726 = vmax.f32 %v3628, 0.0
      %v3727 = vmax.f32 %v3629, 0.0
      %v3728 = vmax.f32 %v3630, 0.0
      %v3729 = vmax.f32 %v3631, 0.0
      %v3730 = vmax.f32 %v3632, 0.0
      %v3731 = vmax.f32 %v3633, 0.0
      %v3732 = vmax.f32 %v3634, 0.0
      %v3733 = vmax.f32 %v3635, 0.0
      %v3734 = vmax.f32 %v3636, 0.0
      %v3735 = vmax.f32 %v3637, 0.0
      %v3736 = vmax.f32 %v3638, 0.0
      %v3737 = vmax.f32 %v3639, 0.0
      %v3738 = vmax.f32 %v3640, 0.0
      %v3739 = vmax.f32 %v3641, 0.0
      %v3740 = vmax.f32 %v3642, 0.0
      %v3741 = vmax.f32 %v3643, 0.0
      %v3742 = vmax.f32 %v3644, 0.0
      %v3743 = vmax.f32 %v3645, 0.0
      %v3744 = vmax.f32 %v3646, 0.0
      %v3745 = vmax.f32 %v3647, 0.0
      %v3746 = vmax.f32 %v3648, 0.0
      %v3747 = vmax.f32 %v3649, 0.0
      %v3748 = vmax.f32 %v3650, 0.0
      %v3749 = vmax.f32 %v3651, 0.0
      %v3750 = vmax.f32 %v3652, 0.0
      %v3751 = vmax.f32 %v3653, 0.0
      %v3752 = vmax.f32 %v3654, 0.0
      %v3753 = vmax.f32 %v3655, 0.0
      %v3754 = vmax.f32 %v3656, 0.0
      %v3755 = vmax.f32 %v3657, 0.0
      %v3756 = vmax.f32 %v3658, 0.0
      %v3757 = vmax.f32 %v3659, 0.0
      %v3758 = vmax.f32 %v3660, 0.0
      %v3759 = vmax.f32 %v3661, 0.0
      %v3760 = vmax.f32 %v3662, 0.0
      %v3761 = vmax.f32 %v3663, 0.0
      %v3762 = vmax.f32 %v3664, 0.0
      %v3763 = vmax.f32 %v3665, 0.0
      %v3764 = vmax.f32 %v3666, 0.0
      %v3765 = vmax.f32 %v3667, 0.0
      %v3766 = vmax.f32 %v3668, 0.0
      %v3767 = vmax.f32 %v3669, 0.0
      %v3768 = vmax.f32 %v3670, 0.0
      %v3769 = vmax.f32 %v3671, 0.0
      %v3770 = vmax.f32 %v3672, 0.0
      %v3771 = vmax.f32 %v3673, 0.0
      %v3772 = vmax.f32 %v3674, 0.0
      %v3773 = vmax.f32 %v3675, 0.0
      %v3774 = vmax.f32 %v3676, 0.0
      %v3775 = vmax.f32 %v3677, 0.0
      %v3776 = vmax.f32 %v3678, 0.0
      %v3777 = vmax.f32 %v3679, 0.0
      %v3778 = vmax.f32 %v3680, 0.0
      %v3779 = vmax.f32 %v3681, 0.0
      %v3780 = vmax.f32 %v3682, 0.0
      %v3781 = vmax.f32 %v3683, 0.0
      %v3782 = vmax.f32 %v3684, 0.0
      %v3783 = vmax.f32 %v3685, 0.0
      %v3784 = vmax.f32 %v3686, 0.0
      %v3785 = vmax.f32 %v3687, 0.0
      %v3786 = vmax.f32 %v3688, 0.0
      %v3787 = vmax.f32 %v3689, 0.0
      %v3788 = vmax.f32 %v3690, 0.0
      %v3789 = vmax.f32 %v3691, 0.0
      %v3790 = vmax.f32 %v3692, 0.0
      %v3791 = vmax.f32 %v3693, 0.0
      %v3792 = vmax.f32 %v3694, 0.0
      %v3793 = vmax.f32 %v3695, 0.0
      %v3794 = vmax.f32 %v3696, 0.0
      %v3795 = vmax.f32 %v3697, 0.0
      %v3796 = vmax.f32 %v3698, 0.0
      %v3797 = vmax.f32 %v3699, 0.0
      %v3798 = vmax.f32 %v3700, 0.0
      %v3799 = vmax.f32 %v3701, 0.0
      %v3800 = vmax.f32 %v3702, 0.0
      %v3801 = vmax.f32 %v3703, 0.0
      %v3802 = vmax.f32 %v3704, 0.0
      %v3803 = vmax.f32 %v3705, 0.0
      %v3804 = vmax.f32 %v3706, 0.0
      %v3805 = vmax.f32 %v3707, 0.0
      %v3806 = vmax.f32 %v3708, 0.0
      %v3807 = vmax.f32 %v3709, 0.0
      %v3808 = vmax.f32 %v3710, 0.0
      %v3809 = vmax.f32 %v3711, 0.0
      %v3810 = vmax.f32 %v3712, 0.0
      %v3811 = vmax.f32 %v3713, 0.0
      %v3812 = vmax.f32 %v3714, 0.0
      %v3813 = vmax.f32 %v3715, 0.0
      %v3814 = vmax.f32 %v3716, 0.0
      %v3815 = vpack.c.bf16 %v3717, %v3717
      %v3816 = vpack.c.bf16 %v3718, %v3718
      %v3817 = vpack.c.bf16 %v3719, %v3719
      %v3818 = vpack.c.bf16 %v3720, %v3720
      %v3819 = vpack.c.bf16 %v3721, %v3721
      %v3820 = vpack.c.bf16 %v3722, %v3722
      %v3821 = vpack.c.bf16 %v3723, %v3723
      %v3822 = vpack.c.bf16 %v3724, %v3724
      %v3823 = vpack.c.bf16 %v3725, %v3725
      %v3824 = vpack.c.bf16 %v3726, %v3726
      %v3825 = vpack.c.bf16 %v3727, %v3727
      %v3826 = vpack.c.bf16 %v3728, %v3728
      %v3827 = vpack.c.bf16 %v3729, %v3729
      %v3828 = vpack.c.bf16 %v3730, %v3730
      %v3829 = vpack.c.bf16 %v3731, %v3731
      %v3830 = vpack.c.bf16 %v3732, %v3732
      %v3831 = vpack.c.bf16 %v3733, %v3733
      %v3832 = vpack.c.bf16 %v3734, %v3734
      %v3833 = vpack.c.bf16 %v3735, %v3735
      %v3834 = vpack.c.bf16 %v3736, %v3736
      %v3835 = vpack.c.bf16 %v3737, %v3737
      %v3836 = vpack.c.bf16 %v3738, %v3738
      %v3837 = vpack.c.bf16 %v3739, %v3739
      %v3838 = vpack.c.bf16 %v3740, %v3740
      %v3839 = vpack.c.bf16 %v3741, %v3741
      %v3840 = vpack.c.bf16 %v3742, %v3742
      %v3841 = vpack.c.bf16 %v3743, %v3743
      %v3842 = vpack.c.bf16 %v3744, %v3744
      %v3843 = vpack.c.bf16 %v3745, %v3745
      %v3844 = vpack.c.bf16 %v3746, %v3746
      %v3845 = vpack.c.bf16 %v3747, %v3747
      %v3846 = vpack.c.bf16 %v3748, %v3748
      %v3847 = vpack.c.bf16 %v3749, %v3749
      %v3848 = vpack.c.bf16 %v3750, %v3750
      %v3849 = vpack.c.bf16 %v3751, %v3751
      %v3850 = vpack.c.bf16 %v3752, %v3752
      %v3851 = vpack.c.bf16 %v3753, %v3753
      %v3852 = vpack.c.bf16 %v3754, %v3754
      %v3853 = vpack.c.bf16 %v3755, %v3755
      %v3854 = vpack.c.bf16 %v3756, %v3756
      %v3855 = vpack.c.bf16 %v3757, %v3757
      %v3856 = vpack.c.bf16 %v3758, %v3758
      %v3857 = vpack.c.bf16 %v3759, %v3759
      %v3858 = vpack.c.bf16 %v3760, %v3760
      %v3859 = vpack.c.bf16 %v3761, %v3761
      %v3860 = vpack.c.bf16 %v3762, %v3762
      %v3861 = vpack.c.bf16 %v3763, %v3763
      %v3862 = vpack.c.bf16 %v3764, %v3764
      %v3863 = vpack.c.bf16 %v3765, %v3765
      %v3864 = vpack.c.bf16 %v3766, %v3766
      %v3865 = vpack.c.bf16 %v3767, %v3767
      %v3866 = vpack.c.bf16 %v3768, %v3768
      %v3867 = vpack.c.bf16 %v3769, %v3769
      %v3868 = vpack.c.bf16 %v3770, %v3770
      %v3869 = vpack.c.bf16 %v3771, %v3771
      %v3870 = vpack.c.bf16 %v3772, %v3772
      %v3871 = vpack.c.bf16 %v3773, %v3773
      %v3872 = vpack.c.bf16 %v3774, %v3774
      %v3873 = vpack.c.bf16 %v3775, %v3775
      %v3874 = vpack.c.bf16 %v3776, %v3776
      %v3875 = vpack.c.bf16 %v3777, %v3777
      %v3876 = vpack.c.bf16 %v3778, %v3778
      %v3877 = vpack.c.bf16 %v3779, %v3779
      %v3878 = vpack.c.bf16 %v3780, %v3780
      %v3879 = vpack.c.bf16 %v3781, %v3781
      %v3880 = vpack.c.bf16 %v3782, %v3782
      %v3881 = vpack.c.bf16 %v3783, %v3783
      %v3882 = vpack.c.bf16 %v3784, %v3784
      %v3883 = vpack.c.bf16 %v3785, %v3785
      %v3884 = vpack.c.bf16 %v3786, %v3786
      %v3885 = vpack.c.bf16 %v3787, %v3787
      %v3886 = vpack.c.bf16 %v3788, %v3788
      %v3887 = vpack.c.bf16 %v3789, %v3789
      %v3888 = vpack.c.bf16 %v3790, %v3790
      %v3889 = vpack.c.bf16 %v3791, %v3791
      %v3890 = vpack.c.bf16 %v3792, %v3792
      %v3891 = vpack.c.bf16 %v3793, %v3793
      %v3892 = vpack.c.bf16 %v3794, %v3794
      %v3893 = vpack.c.bf16 %v3795, %v3795
      %v3894 = vpack.c.bf16 %v3796, %v3796
      %v3895 = vpack.c.bf16 %v3797, %v3797
      %v3896 = vpack.c.bf16 %v3798, %v3798
      %v3897 = vpack.c.bf16 %v3799, %v3799
      %v3898 = vpack.c.bf16 %v3800, %v3800
      %v3899 = vpack.c.bf16 %v3801, %v3801
      %v3900 = vpack.c.bf16 %v3802, %v3802
      %v3901 = vpack.c.bf16 %v3803, %v3803
      %v3902 = vpack.c.bf16 %v3804, %v3804
      %v3903 = vpack.c.bf16 %v3805, %v3805
      %v3904 = vpack.c.bf16 %v3806, %v3806
      %v3905 = vpack.c.bf16 %v3807, %v3807
      %v3906 = vpack.c.bf16 %v3808, %v3808
      %v3907 = vpack.c.bf16 %v3809, %v3809
      %v3908 = vpack.c.bf16 %v3810, %v3810
      %v3909 = vpack.c.bf16 %v3811, %v3811
      %v3910 = vpack.c.bf16 %v3812, %v3812
      %v3911 = vpack.c.bf16 %v3813, %v3813
      %v3912 = vpack.c.bf16 %v3814, %v3814
      %vm3913 = vcmask 125952
      %3914 = vst.msk [vmem:[%s319] sm:$0xf] %vm3913, %v3815
      %3915 = vst.msk [vmem:[%s319 + $0x4] sm:$0xf] %vm3913, %v3816
      %3916 = vst.msk [vmem:[%s319 + $0x8] sm:$0xf] %vm3913, %v3817
      %3917 = vst.msk [vmem:[%s319 + $0xc] sm:$0xf] %vm3913, %v3818
      %3918 = vst.msk [vmem:[%s319 + $0x10] sm:$0xf] %vm3913, %v3819
      %3919 = vst.msk [vmem:[%s319 + $0x14] sm:$0xf] %vm3913, %v3820
      %3920 = vst.msk [vmem:[%s319 + $0x18] sm:$0xf] %vm3913, %v3821
      %3921 = vst.msk [vmem:[%s319 + $0x1c] sm:$0xf] %vm3913, %v3822
      %3922 = vst.msk [vmem:[%s319 + $0x20] sm:$0xf] %vm3913, %v3823
      %3923 = vst.msk [vmem:[%s319 + $0x24] sm:$0xf] %vm3913, %v3824
      %3924 = vst.msk [vmem:[%s319 + $0x28] sm:$0xf] %vm3913, %v3825
      %3925 = vst.msk [vmem:[%s319 + $0x2c] sm:$0xf] %vm3913, %v3826
      %3926 = vst.msk [vmem:[%s319 + $0x30] sm:$0xf] %vm3913, %v3827
      %3927 = vst.msk [vmem:[%s319 + $0x34] sm:$0xf] %vm3913, %v3828
      %3928 = vst.msk [vmem:[%s319 + $0x38] sm:$0xf] %vm3913, %v3829
      %3929 = vst.msk [vmem:[%s319 + $0x3c] sm:$0xf] %vm3913, %v3830
      %3930 = vst.msk [vmem:[%s319 + $0x40] sm:$0xf] %vm3913, %v3831
      %3931 = vst.msk [vmem:[%s319 + $0x44] sm:$0xf] %vm3913, %v3832
      %3932 = vst.msk [vmem:[%s319 + $0x48] sm:$0xf] %vm3913, %v3833
      %3933 = vst.msk [vmem:[%s319 + $0x4c] sm:$0xf] %vm3913, %v3834
      %3934 = vst.msk [vmem:[%s319 + $0x50] sm:$0xf] %vm3913, %v3835
      %3935 = vst.msk [vmem:[%s319 + $0x54] sm:$0xf] %vm3913, %v3836
      %3936 = vst.msk [vmem:[%s319 + $0x58] sm:$0xf] %vm3913, %v3837
      %3937 = vst.msk [vmem:[%s319 + $0x5c] sm:$0xf] %vm3913, %v3838
      %3938 = vst.msk [vmem:[%s319 + $0x60] sm:$0xf] %vm3913, %v3839
      %3939 = vst.msk [vmem:[%s319 + $0x64] sm:$0xf] %vm3913, %v3840
      %3940 = vst.msk [vmem:[%s319 + $0x68] sm:$0xf] %vm3913, %v3841
      %3941 = vst.msk [vmem:[%s319 + $0x6c] sm:$0xf] %vm3913, %v3842
      %3942 = vst.msk [vmem:[%s319 + $0x70] sm:$0xf] %vm3913, %v3843
      %3943 = vst.msk [vmem:[%s319 + $0x74] sm:$0xf] %vm3913, %v3844
      %3944 = vst.msk [vmem:[%s319 + $0x78] sm:$0xf] %vm3913, %v3845
      %3945 = vst.msk [vmem:[%s319 + $0x7c] sm:$0xf] %vm3913, %v3846
      %3946 = vst.msk [vmem:[%s319 + $0x80] sm:$0xf] %vm3913, %v3847
      %3947 = vst.msk [vmem:[%s319 + $0x84] sm:$0xf] %vm3913, %v3848
      %3948 = vst.msk [vmem:[%s319 + $0x88] sm:$0xf] %vm3913, %v3849
      %3949 = vst.msk [vmem:[%s319 + $0x8c] sm:$0xf] %vm3913, %v3850
      %3950 = vst.msk [vmem:[%s319 + $0x90] sm:$0xf] %vm3913, %v3851
      %3951 = vst.msk [vmem:[%s319 + $0x94] sm:$0xf] %vm3913, %v3852
      %3952 = vst.msk [vmem:[%s319 + $0x98] sm:$0xf] %vm3913, %v3853
      %3953 = vst.msk [vmem:[%s319 + $0x9c] sm:$0xf] %vm3913, %v3854
      %3954 = vst.msk [vmem:[%s319 + $0xa0] sm:$0xf] %vm3913, %v3855
      %3955 = vst.msk [vmem:[%s319 + $0xa4] sm:$0xf] %vm3913, %v3856
      %3956 = vst.msk [vmem:[%s319 + $0xa8] sm:$0xf] %vm3913, %v3857
      %3957 = vst.msk [vmem:[%s319 + $0xac] sm:$0xf] %vm3913, %v3858
      %3958 = vst.msk [vmem:[%s319 + $0xb0] sm:$0xf] %vm3913, %v3859
      %3959 = vst.msk [vmem:[%s319 + $0xb4] sm:$0xf] %vm3913, %v3860
      %3960 = vst.msk [vmem:[%s319 + $0xb8] sm:$0xf] %vm3913, %v3861
      %3961 = vst.msk [vmem:[%s319 + $0xbc] sm:$0xf] %vm3913, %v3862
      %3962 = vst.msk [vmem:[%s319 + $0xc0] sm:$0xf] %vm3913, %v3863
      %3963 = vst.msk [vmem:[%s319 + $0xc4] sm:$0xf] %vm3913, %v3864
      %3964 = vst.msk [vmem:[%s319 + $0xc8] sm:$0xf] %vm3913, %v3865
      %3965 = vst.msk [vmem:[%s319 + $0xcc] sm:$0xf] %vm3913, %v3866
      %3966 = vst.msk [vmem:[%s319 + $0xd0] sm:$0xf] %vm3913, %v3867
      %3967 = vst.msk [vmem:[%s319 + $0xd4] sm:$0xf] %vm3913, %v3868
      %3968 = vst.msk [vmem:[%s319 + $0xd8] sm:$0xf] %vm3913, %v3869
      %3969 = vst.msk [vmem:[%s319 + $0xdc] sm:$0xf] %vm3913, %v3870
      %3970 = vst.msk [vmem:[%s319 + $0xe0] sm:$0xf] %vm3913, %v3871
      %3971 = vst.msk [vmem:[%s319 + $0xe4] sm:$0xf] %vm3913, %v3872
      %3972 = vst.msk [vmem:[%s319 + $0xe8] sm:$0xf] %vm3913, %v3873
      %3973 = vst.msk [vmem:[%s319 + $0xec] sm:$0xf] %vm3913, %v3874
      %3974 = vst.msk [vmem:[%s319 + $0xf0] sm:$0xf] %vm3913, %v3875
      %3975 = vst.msk [vmem:[%s319 + $0xf4] sm:$0xf] %vm3913, %v3876
      %3976 = vst.msk [vmem:[%s319 + $0xf8] sm:$0xf] %vm3913, %v3877
      %3977 = vst.msk [vmem:[%s319 + $0xfc] sm:$0xf] %vm3913, %v3878
      %3978 = vst.msk [vmem:[%s319 + $0x100] sm:$0xf] %vm3913, %v3879
      %3979 = vst.msk [vmem:[%s319 + $0x104] sm:$0xf] %vm3913, %v3880
      %3980 = vst.msk [vmem:[%s319 + $0x108] sm:$0xf] %vm3913, %v3881
      %3981 = vst.msk [vmem:[%s319 + $0x10c] sm:$0xf] %vm3913, %v3882
      %3982 = vst.msk [vmem:[%s319 + $0x110] sm:$0xf] %vm3913, %v3883
      %3983 = vst.msk [vmem:[%s319 + $0x114] sm:$0xf] %vm3913, %v3884
      %3984 = vst.msk [vmem:[%s319 + $0x118] sm:$0xf] %vm3913, %v3885
      %3985 = vst.msk [vmem:[%s319 + $0x11c] sm:$0xf] %vm3913, %v3886
      %3986 = vst.msk [vmem:[%s319 + $0x120] sm:$0xf] %vm3913, %v3887
      %3987 = vst.msk [vmem:[%s319 + $0x124] sm:$0xf] %vm3913, %v3888
      %3988 = vst.msk [vmem:[%s319 + $0x128] sm:$0xf] %vm3913, %v3889
      %3989 = vst.msk [vmem:[%s319 + $0x12c] sm:$0xf] %vm3913, %v3890
      %3990 = vst.msk [vmem:[%s319 + $0x130] sm:$0xf] %vm3913, %v3891
      %3991 = vst.msk [vmem:[%s319 + $0x134] sm:$0xf] %vm3913, %v3892
      %3992 = vst.msk [vmem:[%s319 + $0x138] sm:$0xf] %vm3913, %v3893
      %3993 = vst.msk [vmem:[%s319 + $0x13c] sm:$0xf] %vm3913, %v3894
      %3994 = vst.msk [vmem:[%s319 + $0x140] sm:$0xf] %vm3913, %v3895
      %3995 = vst.msk [vmem:[%s319 + $0x144] sm:$0xf] %vm3913, %v3896
      %3996 = vst.msk [vmem:[%s319 + $0x148] sm:$0xf] %vm3913, %v3897
      %3997 = vst.msk [vmem:[%s319 + $0x14c] sm:$0xf] %vm3913, %v3898
      %3998 = vst.msk [vmem:[%s319 + $0x150] sm:$0xf] %vm3913, %v3899
      %3999 = vst.msk [vmem:[%s319 + $0x154] sm:$0xf] %vm3913, %v3900
      %4000 = vst.msk [vmem:[%s319 + $0x158] sm:$0xf] %vm3913, %v3901
      %4001 = vst.msk [vmem:[%s319 + $0x15c] sm:$0xf] %vm3913, %v3902
      %4002 = vst.msk [vmem:[%s319 + $0x160] sm:$0xf] %vm3913, %v3903
      %4003 = vst.msk [vmem:[%s319 + $0x164] sm:$0xf] %vm3913, %v3904
      %4004 = vst.msk [vmem:[%s319 + $0x168] sm:$0xf] %vm3913, %v3905
      %4005 = vst.msk [vmem:[%s319 + $0x16c] sm:$0xf] %vm3913, %v3906
      %4006 = vst.msk [vmem:[%s319 + $0x170] sm:$0xf] %vm3913, %v3907
      %4007 = vst.msk [vmem:[%s319 + $0x174] sm:$0xf] %vm3913, %v3908
      %4008 = vst.msk [vmem:[%s319 + $0x178] sm:$0xf] %vm3913, %v3909
      %4009 = vst.msk [vmem:[%s319 + $0x17c] sm:$0xf] %vm3913, %v3910
      %4010 = vst.msk [vmem:[%s319 + $0x180] sm:$0xf] %vm3913, %v3911
      %4011 = vst.msk [vmem:[%s319 + $0x184] sm:$0xf] %vm3913, %v3912
      %s4012 = smul.u32 98, %s17
      %p4013 = scmp.lt.s32.totalorder %s4012, 195
      %s4014 = scalar_select %p4013, %s4012, 195
      %s4015 = smul.addr %s4014, 4
      %s4016 = scalar_lea.vmem %s6, %s4015
      // Predicated region
      $region45: #{net_forward.4} parent=43 // pred_check
        %p4017 = pneg %p181
      $region46: #{net_forward.4} parent=43 // pred_check_branch
        %4019 = sbr.rel (%p4017) target = $region48
      $region47: #{net_forward.4} parent=43 // pred_region
        %s4020 = smul.u32 98, %s17
      $region48: #{net_forward.4} parent=43 // pred_fallthru
        _
    $region44: #{net_forward.4} parent=5 // pred_fallthru
      _
    %p4021 = scmp.le.s32.totalorder 2, %s12
    // Predicated region
    $region49: #{net_forward.4} parent=5 // pred_check
      %p4022 = pneg %p4021
    $region50: #{net_forward.4} parent=5 // pred_check_branch
      %4024 = sbr.rel (%p4022) target = $region52
    $region51: #{net_forward.4} parent=5 // pred_region
      %s4025 = ssub.s32 %s12, 2
      // Predicated region
      $region53: #{net_forward.4} parent=51 // pred_check
        %p4026 = pneg %p187
      $region54: #{net_forward.4} parent=51 // pred_check_branch
        %4028 = sbr.rel (%p4026) target = $region56
      $region55: #{net_forward.4} parent=51 // pred_region
        %s4029 = smul.u32 98, %s18
        %p4030 = scmp.lt.s32.totalorder %s4029, 195
        %s4031 = scalar_select %p4030, %s4029, 195
        %s4032 = smul.addr %s4031, 4
        %s4033 = scalar_lea.vmem %s6, %s4032
      $region56: #{net_forward.4} parent=51 // pred_fallthru
        _
    $region52: #{net_forward.4} parent=5 // pred_fallthru
      _
  $region6: #{net_forward.4} parent=0 // loop_footer
    %s16 = sadd.s32 1, %s12
  $region7: #{net_forward.4} parent=0 // loop_footer_branch
    %11 = sbr.rel target = $region3
  $region8: #{net_forward.4} parent=0 // loop_exit
    _

// kernel: net_forward.5
$region0: #{net_forward.5}
  #allocation0 [shape = 'u32[]', space=smem, size = 0x4, offset = 0x4, fixed_abs, tag = 'smem constant byte address 0x4 - core index']
  #allocation1 [shape = 'u32[72,128]{1,0:T(1,128)}', space=vmem, size = 0x9000, scoped, tag = 'internal scratch']
  %s0 = inlined_call_operand.vmem [shape: bf16[400,144], index: 0, kind: input, shape index: {}]
  %s1 = inlined_call_operand.vmem [shape: bf16[400,144], index: 1, kind: input, shape index: {}]
  %s2 = inlined_call_operand.vmem [shape: bf16[400,144], index: 2, kind: input, shape index: {}]
  %s3 = inlined_call_operand.vmem [shape: bf16[400,144], index: 3, kind: input, shape index: {}]
  %s4 = inlined_call_operand.vmem [shape: bf16[144,32], index: 4, kind: input, shape index: {}]
  %s5 = inlined_call_operand.vmem [shape: f32[1,32], index: 5, kind: input, shape index: {}]
  %s6 = inlined_call_operand.vmem [shape: bf16[400,32], index: 6, kind: output, shape index: {}]
  %s7 = sld [smem:[#allocation0]]
  $region57: #{net_forward.5} parent=0
    _
  %s9 = ssub.s32 1, %s7
  %s10 = scalar_select 0, %s9, %s7
  loop: start=0, step=1, limit=4
  $region2: #{net_forward.5} parent=0 // loop_pre_header
    _
  $region3: #{net_forward.5} parent=0 // loop_header
    %s12 = sphi 0, %s16
    %p13 = scmp.ge.s32.totalorder %s12, 4
    %s22 = sphi 0, %s24
    %s25 = sphi 0, %s22
    %s26 = sphi 0, %s25
    %s42 = sphi 0, %s26
    %s48 = sphi 0, %s50
    %s51 = sphi 0, %s48
    %s52 = sphi 0, %s51
    %s68 = sphi 0, %s52
    %s74 = sphi 0, %s76
    %s77 = sphi 0, %s74
    %s78 = sphi 0, %s77
    %s94 = sphi 0, %s78
    %s100 = sphi 0, %s102
    %s103 = sphi 0, %s100
    %s104 = sphi 0, %s103
    %s120 = sphi 0, %s104
    %s124 = sphi 0, %s124
    %s126 = sphi 0, %s124
    %s127 = sphi 0, %s126
    %s141 = sphi 0, %s127
    %s145 = sphi 0, %s145
    %s147 = sphi 0, %s145
    %s148 = sphi 0, %s147
    %s162 = sphi 0, %s148
    %s168 = sphi 0, %s170
    %s171 = sphi 0, %s168
    %s172 = sphi 0, %s171
    %s188 = sphi 0, %s172
  $region4: #{net_forward.5} parent=0 // loop_header_branch
    %15 = sbr.rel (%p13) target = $region8
  $region5: #{net_forward.5} parent=0 // loop_body
    %s17 = ssub.s32 %s12, 1
    %s18 = ssub.s32 %s12, 2
    %s19 = sadd.s32 %s12, 1
    %s20 = ssub.s32 %s12, %s19
    %p21 = scmp.eq.s32.totalorder %s20, 0
    %s23 = sadd.s32 %s22, 1
    %s24 = scalar_select %p21, %s22, %s23
    %p27 = pneg %p21
    %p28 = scmp.eq.s32.totalorder %s12, 1
    %p29 = por %p27, %p28
    %p30 = scmp.ne.s32.totalorder %s22, %s25
    %p31 = scmp.eq.s32.totalorder %s12, 0
    %p32 = por %p30, %p31
    %p33 = scmp.ne.s32.totalorder %s22, %s25
    %p34 = scmp.eq.s32.totalorder %s17, 1
    %p35 = por %p33, %p34
    %p36 = scmp.ne.s32.totalorder %s25, %s26
    %p37 = scmp.eq.s32.totalorder %s17, 0
    %p38 = por %p36, %p37
    %p39 = scmp.ne.s32.totalorder %s25, %s26
    %p40 = scmp.eq.s32.totalorder %s18, 1
    %p41 = por %p39, %p40
    %p43 = scmp.ne.s32.totalorder %s26, %s42
    %p44 = scmp.eq.s32.totalorder %s18, 0
    %p45 = por %p43, %p44
    %s46 = ssub.s32 %s12, %s19
    %p47 = scmp.eq.s32.totalorder %s46, 0
    %s49 = sadd.s32 %s48, 1
    %s50 = scalar_select %p47, %s48, %s49
    %p53 = pneg %p47
    %p54 = scmp.eq.s32.totalorder %s12, 1
    %p55 = por %p53, %p54
    %p56 = scmp.ne.s32.totalorder %s48, %s51
    %p57 = scmp.eq.s32.totalorder %s12, 0
    %p58 = por %p56, %p57
    %p59 = scmp.ne.s32.totalorder %s48, %s51
    %p60 = scmp.eq.s32.totalorder %s17, 1
    %p61 = por %p59, %p60
    %p62 = scmp.ne.s32.totalorder %s51, %s52
    %p63 = scmp.eq.s32.totalorder %s17, 0
    %p64 = por %p62, %p63
    %p65 = scmp.ne.s32.totalorder %s51, %s52
    %p66 = scmp.eq.s32.totalorder %s18, 1
    %p67 = por %p65, %p66
    %p69 = scmp.ne.s32.totalorder %s52, %s68
    %p70 = scmp.eq.s32.totalorder %s18, 0
    %p71 = por %p69, %p70
    %s72 = ssub.s32 %s12, %s19
    %p73 = scmp.eq.s32.totalorder %s72, 0
    %s75 = sadd.s32 %s74, 1
    %s76 = scalar_select %p73, %s74, %s75
    %p79 = pneg %p73
    %p80 = scmp.eq.s32.totalorder %s12, 1
    %p81 = por %p79, %p80
    %p82 = scmp.ne.s32.totalorder %s74, %s77
    %p83 = scmp.eq.s32.totalorder %s12, 0
    %p84 = por %p82, %p83
    %p85 = scmp.ne.s32.totalorder %s74, %s77
    %p86 = scmp.eq.s32.totalorder %s17, 1
    %p87 = por %p85, %p86
    %p88 = scmp.ne.s32.totalorder %s77, %s78
    %p89 = scmp.eq.s32.totalorder %s17, 0
    %p90 = por %p88, %p89
    %p91 = scmp.ne.s32.totalorder %s77, %s78
    %p92 = scmp.eq.s32.totalorder %s18, 1
    %p93 = por %p91, %p92
    %p95 = scmp.ne.s32.totalorder %s78, %s94
    %p96 = scmp.eq.s32.totalorder %s18, 0
    %p97 = por %p95, %p96
    %s98 = ssub.s32 %s12, %s19
    %p99 = scmp.eq.s32.totalorder %s98, 0
    %s101 = sadd.s32 %s100, 1
    %s102 = scalar_select %p99, %s100, %s101
    %p105 = pneg %p99
    %p106 = scmp.eq.s32.totalorder %s12, 1
    %p107 = por %p105, %p106
    %p108 = scmp.ne.s32.totalorder %s100, %s103
    %p109 = scmp.eq.s32.totalorder %s12, 0
    %p110 = por %p108, %p109
    %p111 = scmp.ne.s32.totalorder %s100, %s103
    %p112 = scmp.eq.s32.totalorder %s17, 1
    %p113 = por %p111, %p112
    %p114 = scmp.ne.s32.totalorder %s103, %s104
    %p115 = scmp.eq.s32.totalorder %s17, 0
    %p116 = por %p114, %p115
    %p117 = scmp.ne.s32.totalorder %s103, %s104
    %p118 = scmp.eq.s32.totalorder %s18, 1
    %p119 = por %p117, %p118
    %p121 = scmp.ne.s32.totalorder %s104, %s120
    %p122 = scmp.eq.s32.totalorder %s18, 0
    %p123 = por %p121, %p122
    %s125 = sadd.s32 %s124, 1
    %p128 = scmp.eq.s32.totalorder %s12, 1
    %p129 = scmp.ne.s32.totalorder %s124, %s126
    %p130 = scmp.eq.s32.totalorder %s12, 0
    %p131 = por %p129, %p130
    %p132 = scmp.ne.s32.totalorder %s124, %s126
    %p133 = scmp.eq.s32.totalorder %s17, 1
    %p134 = por %p132, %p133
    %p135 = scmp.ne.s32.totalorder %s126, %s127
    %p136 = scmp.eq.s32.totalorder %s17, 0
    %p137 = por %p135, %p136
    %p138 = scmp.ne.s32.totalorder %s126, %s127
    %p139 = scmp.eq.s32.totalorder %s18, 1
    %p140 = por %p138, %p139
    %p142 = scmp.ne.s32.totalorder %s127, %s141
    %p143 = scmp.eq.s32.totalorder %s18, 0
    %p144 = por %p142, %p143
    %s146 = sadd.s32 %s145, 1
    %p149 = scmp.eq.s32.totalorder %s12, 1
    %p150 = scmp.ne.s32.totalorder %s145, %s147
    %p151 = scmp.eq.s32.totalorder %s12, 0
    %p152 = por %p150, %p151
    %p153 = scmp.ne.s32.totalorder %s145, %s147
    %p154 = scmp.eq.s32.totalorder %s17, 1
    %p155 = por %p153, %p154
    %p156 = scmp.ne.s32.totalorder %s147, %s148
    %p157 = scmp.eq.s32.totalorder %s17, 0
    %p158 = por %p156, %p157
    %p159 = scmp.ne.s32.totalorder %s147, %s148
    %p160 = scmp.eq.s32.totalorder %s18, 1
    %p161 = por %p159, %p160
    %p163 = scmp.ne.s32.totalorder %s148, %s162
    %p164 = scmp.eq.s32.totalorder %s18, 0
    %p165 = por %p163, %p164
    %s166 = ssub.s32 %s12, %s19
    %p167 = scmp.eq.s32.totalorder %s166, 0
    %s169 = sadd.s32 %s168, 1
    %s170 = scalar_select %p167, %s168, %s169
    %p173 = pneg %p167
    %p174 = scmp.eq.s32.totalorder %s12, 1
    %p175 = por %p173, %p174
    %p176 = scmp.ne.s32.totalorder %s168, %s171
    %p177 = scmp.eq.s32.totalorder %s12, 0
    %p178 = por %p176, %p177
    %p179 = scmp.ne.s32.totalorder %s168, %s171
    %p180 = scmp.eq.s32.totalorder %s17, 1
    %p181 = por %p179, %p180
    %p182 = scmp.ne.s32.totalorder %s171, %s172
    %p183 = scmp.eq.s32.totalorder %s17, 0
    %p184 = por %p182, %p183
    %p185 = scmp.ne.s32.totalorder %s171, %s172
    %p186 = scmp.eq.s32.totalorder %s18, 1
    %p187 = por %p185, %p186
    %p189 = scmp.ne.s32.totalorder %s172, %s188
    %p190 = scmp.eq.s32.totalorder %s18, 0
    %p191 = por %p189, %p190
    %p192 = scmp.le.s32.totalorder 1, %s12
    %p193 = scmp.lt.s32.totalorder %s12, 3
    %p194 = pnand %p192, %p193
    %p195 = pneg %p194
    // Predicated region
    $region9: #{net_forward.5} parent=5 // pred_check
      _
    $region10: #{net_forward.5} parent=5 // pred_check_branch
      %197 = sbr.rel (%p194) target = $region12
    $region11: #{net_forward.5} parent=5 // pred_region
      %s198 = ssub.s32 %s12, 1
      // Predicated region
      $region13: #{net_forward.5} parent=11 // pred_check
        %p199 = pneg %p137
      $region14: #{net_forward.5} parent=11 // pred_check_branch
        %201 = sbr.rel (%p199) target = $region16
      $region15: #{net_forward.5} parent=11 // pred_region
        _
      $region16: #{net_forward.5} parent=11 // pred_fallthru
        _
      // Predicated region
      $region17: #{net_forward.5} parent=11 // pred_check
        %p202 = pneg %p158
      $region18: #{net_forward.5} parent=11 // pred_check_branch
        %204 = sbr.rel (%p202) target = $region20
      $region19: #{net_forward.5} parent=11 // pred_region
        _
      $region20: #{net_forward.5} parent=11 // pred_fallthru
        _
    $region12: #{net_forward.5} parent=5 // pred_fallthru
      _
    %p205 = scmp.lt.s32.totalorder %s12, 2
    // Predicated region
    $region21: #{net_forward.5} parent=5 // pred_check
      %p206 = pneg %p205
    $region22: #{net_forward.5} parent=5 // pred_check_branch
      %208 = sbr.rel (%p206) target = $region24
    $region23: #{net_forward.5} parent=5 // pred_region
      // Predicated region
      $region25: #{net_forward.5} parent=23 // pred_check
        %p209 = pneg %p32
      $region26: #{net_forward.5} parent=23 // pred_check_branch
        %211 = sbr.rel (%p209) target = $region28
      $region27: #{net_forward.5} parent=23 // pred_region
        %s212 = smul.u32 25, %s12
        %p213 = scmp.lt.s32.totalorder %s212, 49
        %s214 = scalar_select %p213, %s212, 49
        %s215 = smul.addr %s214, 2
        %s216 = smul.addr %s215, 4
        %s217 = scalar_lea.vmem %s0, %s216
        %s218 = smul.u32 25, %s12
      $region28: #{net_forward.5} parent=23 // pred_fallthru
        _
      // Predicated region
      $region29: #{net_forward.5} parent=23 // pred_check
        %p219 = pneg %p58
      $region30: #{net_forward.5} parent=23 // pred_check_branch
        %221 = sbr.rel (%p219) target = $region32
      $region31: #{net_forward.5} parent=23 // pred_region
        %s222 = smul.u32 25, %s12
        %p223 = scmp.lt.s32.totalorder %s222, 49
        %s224 = scalar_select %p223, %s222, 49
        %s225 = smul.addr %s224, 2
        %s226 = smul.addr %s225, 4
        %s227 = scalar_lea.vmem %s1, %s226
        %s228 = smul.u32 25, %s12
      $region32: #{net_forward.5} parent=23 // pred_fallthru
        _
      // Predicated region
      $region33: #{net_forward.5} parent=23 // pred_check
        %p229 = pneg %p84
      $region34: #{net_forward.5} parent=23 // pred_check_branch
        %231 = sbr.rel (%p229) target = $region36
      $region35: #{net_forward.5} parent=23 // pred_region
        %s232 = smul.u32 25, %s12
        %p233 = scmp.lt.s32.totalorder %s232, 49
        %s234 = scalar_select %p233, %s232, 49
        %s235 = smul.addr %s234, 2
        %s236 = smul.addr %s235, 4
        %s237 = scalar_lea.vmem %s2, %s236
        %s238 = smul.u32 25, %s12
      $region36: #{net_forward.5} parent=23 // pred_fallthru
        _
      // Predicated region
      $region37: #{net_forward.5} parent=23 // pred_check
        %p239 = pneg %p110
      $region38: #{net_forward.5} parent=23 // pred_check_branch
        %241 = sbr.rel (%p239) target = $region40
      $region39: #{net_forward.5} parent=23 // pred_region
        %s242 = smul.u32 25, %s12
        %p243 = scmp.lt.s32.totalorder %s242, 49
        %s244 = scalar_select %p243, %s242, 49
        %s245 = smul.addr %s244, 2
        %s246 = smul.addr %s245, 4
        %s247 = scalar_lea.vmem %s3, %s246
        %s248 = smul.u32 25, %s12
      $region40: #{net_forward.5} parent=23 // pred_fallthru
        _
    $region24: #{net_forward.5} parent=5 // pred_fallthru
      _
    %p249 = scmp.le.s32.totalorder 1, %s12
    %p250 = scmp.lt.s32.totalorder %s12, 3
    %p251 = pnand %p249, %p250
    %p252 = pneg %p251
    // Predicated region
    $region41: #{net_forward.5} parent=5 // pred_check
      _
    $region42: #{net_forward.5} parent=5 // pred_check_branch
      %254 = sbr.rel (%p251) target = $region44
    $region43: #{net_forward.5} parent=5 // pred_region
      %s255 = ssub.s32 %s12, 1
      %s256 = smul.u32 25, %s17
      %p257 = scmp.lt.s32.totalorder %s256, 49
      %s258 = scalar_select %p257, %s256, 49
      %s259 = smul.addr %s258, 2
      %s260 = smul.addr %s259, 4
      %s261 = scalar_lea.vmem %s0, %s260
      %p262 = pneg %p38
      %p263 = pneg %p35
      %s264 = smul.u32 25, %s17
      %p265 = scmp.lt.s32.totalorder %s264, 49
      %s266 = scalar_select %p265, %s264, 49
      %s267 = smul.addr %s266, 2
      %s268 = smul.addr %s267, 4
      %s269 = scalar_lea.vmem %s1, %s268
      %p270 = pneg %p64
      %p271 = pneg %p61
      %s272 = smul.u32 25, %s17
      %p273 = scmp.lt.s32.totalorder %s272, 49
      %s274 = scalar_select %p273, %s272, 49
      %s275 = smul.addr %s274, 2
      %s276 = smul.addr %s275, 4
      %s277 = scalar_lea.vmem %s2, %s276
      %p278 = pneg %p90
      %p279 = pneg %p87
      %s280 = smul.u32 25, %s17
      %p281 = scmp.lt.s32.totalorder %s280, 49
      %s282 = scalar_select %p281, %s280, 49
      %s283 = smul.addr %s282, 2
      %s284 = smul.addr %s283, 4
      %s285 = scalar_lea.vmem %s3, %s284
      %p286 = pneg %p116
      %p287 = pneg %p113
      %p288 = pneg %p137
      %p289 = pneg %p134
      %p290 = pneg %p158
      %p291 = pneg %p155
      %p292 = pneg %p184
      %p293 = pneg %p181
      %s294 = smul.u32 25, %s17
      %p295 = scmp.lt.s32.totalorder %s294, 49
      %s296 = scalar_select %p295, %s294, 49
      %s297 = smul.addr %s296, 4
      %s298 = scalar_lea.vmem %s6, %s297
      %s299 = smul.u32 25, %s17
      %p300 = scmp.lt.s32.totalorder %s299, 49
      %s301 = scalar_select %p300, %s299, 49
      %s302 = smul.addr %s301, 2
      %s303 = smul.addr %s302, 4
      %s304 = scalar_lea.vmem %s0, %s303
      %s305 = smul.u32 25, %s17
      %s306 = smul.u32 25, %s17
      %p307 = scmp.lt.s32.totalorder %s306, 49
      %s308 = scalar_select %p307, %s306, 49
      %s309 = smul.addr %s308, 2
      %s310 = smul.addr %s309, 4
      %s311 = scalar_lea.vmem %s1, %s310
      %s312 = smul.u32 25, %s17
      %s313 = smul.u32 25, %s17
      %p314 = scmp.lt.s32.totalorder %s313, 49
      %s315 = scalar_select %p314, %s313, 49
      %s316 = smul.addr %s315, 2
      %s317 = smul.addr %s316, 4
      %s318 = scalar_lea.vmem %s2, %s317
      %s319 = smul.u32 25, %s17
      %s320 = smul.u32 25, %s17
      %p321 = scmp.lt.s32.totalorder %s320, 49
      %s322 = scalar_select %p321, %s320, 49
      %s323 = smul.addr %s322, 2
      %s324 = smul.addr %s323, 4
      %s325 = scalar_lea.vmem %s3, %s324
      %s326 = smul.u32 25, %s17
      %s327 = smul.u32 25, %s17
      %p328 = scmp.lt.s32.totalorder %s327, 49
      %s329 = scalar_select %p328, %s327, 49
      %s330 = smul.addr %s329, 4
      %s331 = scalar_lea.vmem %s6, %s330
      %s332 = smul.u32 25, %s17
      %v334 = vld [vmem:[%s4] sm:$0xf]
      %v335 = vld [vmem:[%s4 + $0x4] sm:$0xf]
      %v336 = vld [vmem:[%s4 + $0x8] sm:$0xf]
      %v337 = vld [vmem:[%s4 + $0xc] sm:$0xf]
      %v338 = vld [vmem:[%s4 + $0x10] sm:$0xf]
      %v339 = vld [vmem:[%s4 + $0x14] sm:$0xf]
      %v340 = vld [vmem:[%s4 + $0x18] sm:$0xf]
      %v341 = vld [vmem:[%s4 + $0x1c] sm:$0xf]
      %v342 = vld [vmem:[%s4 + $0x20] sm:$0xf]
      %v343 = vld [vmem:[%s4 + $0x24] sm:$0xf]
      %v344 = vld [vmem:[%s4 + $0x28] sm:$0xf]
      %v345 = vld [vmem:[%s4 + $0x2c] sm:$0xf]
      %v346 = vld [vmem:[%s4 + $0x30] sm:$0xf]
      %v347 = vld [vmem:[%s4 + $0x34] sm:$0xf]
      %v348 = vld [vmem:[%s4 + $0x38] sm:$0xf]
      %v349 = vld [vmem:[%s4 + $0x3c] sm:$0xf]
      %v350 = vld [vmem:[%s4 + $0x40] sm:$0xf]
      %v351 = vld [vmem:[%s4 + $0x44] sm:$0xf]
      %v352 = vld [vmem:[%s304] sm:$0xff]
      %v353 = vld [vmem:[%s304 + $0x8] sm:$0xff]
      %v354 = vld [vmem:[%s304 + $0x10] sm:$0xff]
      %v355 = vld [vmem:[%s304 + $0x18] sm:$0xff]
      %v356 = vld [vmem:[%s304 + $0x20] sm:$0xff]
      %v357 = vld [vmem:[%s304 + $0x28] sm:$0xff]
      %v358 = vld [vmem:[%s304 + $0x30] sm:$0xff]
      %v359 = vld [vmem:[%s304 + $0x38] sm:$0xff]
      %v360 = vld [vmem:[%s304 + $0x40] sm:$0xff]
      %v361 = vld [vmem:[%s304 + $0x48] sm:$0xff]
      %v362 = vld [vmem:[%s304 + $0x50] sm:$0xff]
      %v363 = vld [vmem:[%s304 + $0x58] sm:$0xff]
      %v364 = vld [vmem:[%s304 + $0x60] sm:$0xff]
      %v365 = vld [vmem:[%s304 + $0x68] sm:$0xff]
      %v366 = vld [vmem:[%s304 + $0x70] sm:$0xff]
      %v367 = vld [vmem:[%s304 + $0x78] sm:$0xff]
      %v368 = vld [vmem:[%s304 + $0x80] sm:$0xff]
      %v369 = vld [vmem:[%s304 + $0x88] sm:$0xff]
      %v370 = vld [vmem:[%s304 + $0x90] sm:$0xff]
      %v371 = vld [vmem:[%s304 + $0x98] sm:$0xff]
      %v372 = vld [vmem:[%s304 + $0xa0] sm:$0xff]
      %v373 = vld [vmem:[%s304 + $0xa8] sm:$0xff]
      %v374 = vld [vmem:[%s304 + $0xb0] sm:$0xff]
      %v375 = vld [vmem:[%s304 + $0xb8] sm:$0xff]
      %v376 = vld [vmem:[%s304 + $0xc0] sm:$0xff]
      %v402 = vunpack.c.l.b16 %v352
      %v403 = vunpack.c.h.b16 %v352
      %v404 = vunpack.c.l.b16 %v353
      %v405 = vunpack.c.h.b16 %v353
      %v406 = vunpack.c.l.b16 %v354
      %v407 = vunpack.c.h.b16 %v354
      %v408 = vunpack.c.l.b16 %v355
      %v409 = vunpack.c.h.b16 %v355
      %v410 = vunpack.c.l.b16 %v356
      %v411 = vunpack.c.h.b16 %v356
      %v412 = vunpack.c.l.b16 %v357
      %v413 = vunpack.c.h.b16 %v357
      %v414 = vunpack.c.l.b16 %v358
      %v415 = vunpack.c.h.b16 %v358
      %v416 = vunpack.c.l.b16 %v359
      %v417 = vunpack.c.h.b16 %v359
      %v418 = vunpack.c.l.b16 %v360
      %v419 = vunpack.c.h.b16 %v360
      %v420 = vunpack.c.l.b16 %v361
      %v421 = vunpack.c.h.b16 %v361
      %v422 = vunpack.c.l.b16 %v362
      %v423 = vunpack.c.h.b16 %v362
      %v424 = vunpack.c.l.b16 %v363
      %v425 = vunpack.c.h.b16 %v363
      %v426 = vunpack.c.l.b16 %v364
      %v427 = vunpack.c.h.b16 %v364
      %v428 = vunpack.c.l.b16 %v365
      %v429 = vunpack.c.h.b16 %v365
      %v430 = vunpack.c.l.b16 %v366
      %v431 = vunpack.c.h.b16 %v366
      %v432 = vunpack.c.l.b16 %v367
      %v433 = vunpack.c.h.b16 %v367
      %v434 = vunpack.c.l.b16 %v368
      %v435 = vunpack.c.h.b16 %v368
      %v436 = vunpack.c.l.b16 %v369
      %v437 = vunpack.c.h.b16 %v369
      %v438 = vunpack.c.l.b16 %v370
      %v439 = vunpack.c.h.b16 %v370
      %v440 = vunpack.c.l.b16 %v371
      %v441 = vunpack.c.h.b16 %v371
      %v442 = vunpack.c.l.b16 %v372
      %v443 = vunpack.c.h.b16 %v372
      %v444 = vunpack.c.l.b16 %v373
      %v445 = vunpack.c.h.b16 %v373
      %v446 = vunpack.c.l.b16 %v374
      %v447 = vunpack.c.h.b16 %v374
      %v448 = vunpack.c.l.b16 %v375
      %v449 = vunpack.c.h.b16 %v375
      %v450 = vunpack.c.l.b16 %v376
      %v451 = vunpack.c.h.b16 %v376
      %v452 = vpack.c.b16 %v404, %v402
      %v453 = vpack.c.b16 %v405, %v403
      %v454 = vpack.c.b16 %v408, %v406
      %v455 = vpack.c.b16 %v409, %v407
      %v456 = vpack.c.b16 %v412, %v410
      %v457 = vpack.c.b16 %v413, %v411
      %v458 = vpack.c.b16 %v416, %v414
      %v459 = vpack.c.b16 %v417, %v415
      %v460 = vpack.c.b16 %v420, %v418
      %v461 = vpack.c.b16 %v421, %v419
      %v462 = vpack.c.b16 %v424, %v422
      %v463 = vpack.c.b16 %v425, %v423
      %v464 = vpack.c.b16 %v428, %v426
      %v465 = vpack.c.b16 %v429, %v427
      %v466 = vpack.c.b16 %v432, %v430
      %v467 = vpack.c.b16 %v433, %v431
      %v468 = vpack.c.b16 %v436, %v434
      %v469 = vpack.c.b16 %v437, %v435
      %v470 = vpack.c.b16 %v440, %v438
      %v471 = vpack.c.b16 %v441, %v439
      %v472 = vpack.c.b16 %v444, %v442
      %v473 = vpack.c.b16 %v445, %v443
      %v474 = vpack.c.b16 %v448, %v446
      %v475 = vpack.c.b16 %v449, %v447
      %v476 = vpack.c.b16 %v450, %v450
      %v477 = vpack.c.b16 %v451, %v451
      %v509 = vunpack.c.l.b16 %v334
      %v510 = vunpack.c.l.b16 %v335
      %v511 = vunpack.c.l.b16 %v336
      %v512 = vunpack.c.l.b16 %v337
      %v513 = vunpack.c.l.b16 %v338
      %v514 = vunpack.c.l.b16 %v339
      %v515 = vunpack.c.l.b16 %v340
      %v516 = vunpack.c.l.b16 %v341
      %v517 = vunpack.c.l.b16 %v342
      %v518 = vunpack.c.l.b16 %v343
      %v519 = vunpack.c.l.b16 %v344
      %v520 = vunpack.c.l.b16 %v345
      %v521 = vunpack.c.l.b16 %v346
      %v522 = vunpack.c.l.b16 %v347
      %v523 = vunpack.c.l.b16 %v348
      %v524 = vunpack.c.l.b16 %v349
      %v525 = vunpack.c.l.b16 %v350
      %v526 = vunpack.c.l.b16 %v351
      %v527 = vpack.c.b16 %v510, %v509
      %v528 = vpack.c.b16 %v512, %v511
      %v529 = vpack.c.b16 %v514, %v513
      %v530 = vpack.c.b16 %v516, %v515
      %v531 = vpack.c.b16 %v518, %v517
      %v532 = vpack.c.b16 %v520, %v519
      %v533 = vpack.c.b16 %v522, %v521
      %v534 = vpack.c.b16 %v524, %v523
      %v535 = vpack.c.b16 %v526, %v525
      %vm545 = vcmask 130048
      %v547 = vsel %vm545, %v453, 0
      %v550 = vsel %vm545, %v455, 0
      %v553 = vsel %vm545, %v457, 0
      %v556 = vsel %vm545, %v459, 0
      %v559 = vsel %vm545, %v461, 0
      %v562 = vsel %vm545, %v463, 0
      %v565 = vsel %vm545, %v465, 0
      %v568 = vsel %vm545, %v467, 0
      %v571 = vsel %vm545, %v469, 0
      %v574 = vsel %vm545, %v471, 0
      %v577 = vsel %vm545, %v473, 0
      %v580 = vsel %vm545, %v475, 0
      %v583 = vsel %vm545, %v477, 0
      %585 = vmatpush.bf16.msra.mxu0 %v534
      %586 = vmatpush.bf16.msra.mxu0 %v533
      %587 = vmatpush.bf16.msra.mxu0 %v532
      %588 = vmatpush.bf16.msra.mxu0 %v531
      %589 = vmatpush.bf16.msra.mxu0 %v530
      %590 = vmatpush.bf16.msra.mxu0 %v529
      %591 = vmatpush.bf16.msra.mxu0 %v528
      %592 = vmatpush.bf16.msra.mxu0 %v527
      %593 = vmatmul.bf16.gmra.mxu0 %v452
      %v594 = vpop.f32.mrf.mxu0
      %v595 = vadd.f32 0.0, %v594
      %v596 = vpop.f32.mrf.mxu0
      %v597 = vadd.f32 0.0, %v596
      %598 = vmatmul.bf16.gmra.mxu0 %v454
      %v599 = vpop.f32.mrf.mxu0
      %v600 = vadd.f32 0.0, %v599
      %v601 = vpop.f32.mrf.mxu0
      %v602 = vadd.f32 0.0, %v601
      %603 = vmatmul.bf16.gmra.mxu0 %v456
      %v604 = vpop.f32.mrf.mxu0
      %v605 = vadd.f32 0.0, %v604
      %v606 = vpop.f32.mrf.mxu0
      %v607 = vadd.f32 0.0, %v606
      %608 = vmatmul.bf16.gmra.mxu0 %v458
      %v609 = vpop.f32.mrf.mxu0
      %v610 = vadd.f32 0.0, %v609
      %v611 = vpop.f32.mrf.mxu0
      %v612 = vadd.f32 0.0, %v611
      %613 = vmatmul.bf16.gmra.mxu0 %v460
      %v614 = vpop.f32.mrf.mxu0
      %v615 = vadd.f32 0.0, %v614
      %v616 = vpop.f32.mrf.mxu0
      %v617 = vadd.f32 0.0, %v616
      %618 = vmatmul.bf16.gmra.mxu0 %v462
      %v619 = vpop.f32.mrf.mxu0
      %v620 = vadd.f32 0.0, %v619
      %v621 = vpop.f32.mrf.mxu0
      %v622 = vadd.f32 0.0, %v621
      %623 = vmatmul.bf16.gmra.mxu0 %v464
      %v624 = vpop.f32.mrf.mxu0
      %v625 = vadd.f32 0.0, %v624
      %v626 = vpop.f32.mrf.mxu0
      %v627 = vadd.f32 0.0, %v626
      %628 = vmatmul.bf16.gmra.mxu0 %v466
      %v629 = vpop.f32.mrf.mxu0
      %v630 = vadd.f32 0.0, %v629
      %v631 = vpop.f32.mrf.mxu0
      %v632 = vadd.f32 0.0, %v631
      %633 = vmatmul.bf16.gmra.mxu0 %v468
      %v634 = vpop.f32.mrf.mxu0
      %v635 = vadd.f32 0.0, %v634
      %v636 = vpop.f32.mrf.mxu0
      %v637 = vadd.f32 0.0, %v636
      %638 = vmatmul.bf16.gmra.mxu0 %v470
      %v639 = vpop.f32.mrf.mxu0
      %v640 = vadd.f32 0.0, %v639
      %v641 = vpop.f32.mrf.mxu0
      %v642 = vadd.f32 0.0, %v641
      %643 = vmatmul.bf16.gmra.mxu0 %v472
      %v644 = vpop.f32.mrf.mxu0
      %v645 = vadd.f32 0.0, %v644
      %v646 = vpop.f32.mrf.mxu0
      %v647 = vadd.f32 0.0, %v646
      %648 = vmatmul.bf16.gmra.mxu0 %v474
      %v649 = vpop.f32.mrf.mxu0
      %v650 = vadd.f32 0.0, %v649
      %v651 = vpop.f32.mrf.mxu0
      %v652 = vadd.f32 0.0, %v651
      %653 = vmatmul.bf16.gmra.mxu0 %v476
      %v654 = vpop.f32.mrf.mxu0
      %v655 = vadd.f32 0.0, %v654
      %v656 = vpop.f32.mrf.mxu0
      %657 = vdwg.mxu0
      %658 = vmatpush.bf16.msra.mxu0 0
      %659 = vmatpush.bf16.msra.mxu0 0
      %660 = vmatpush.bf16.msra.mxu0 0
      %661 = vmatpush.bf16.msra.mxu0 0
      %662 = vmatpush.bf16.msra.mxu0 0
      %663 = vmatpush.bf16.msra.mxu0 0
      %664 = vmatpush.bf16.msra.mxu0 0
      %665 = vmatpush.bf16.msra.mxu0 %v535
      %666 = vmatmul.bf16.gmra.mxu0 %v547
      %v667 = vpop.f32.mrf.mxu0
      %v668 = vadd.f32 %v595, %v667
      %v669 = vpop.f32.mrf.mxu0
      %v670 = vadd.f32 %v597, %v669
      %671 = vmatmul.bf16.gmra.mxu0 %v550
      %v672 = vpop.f32.mrf.mxu0
      %v673 = vadd.f32 %v600, %v672
      %v674 = vpop.f32.mrf.mxu0
      %v675 = vadd.f32 %v602, %v674
      %676 = vmatmul.bf16.gmra.mxu0 %v553
      %v677 = vpop.f32.mrf.mxu0
      %v678 = vadd.f32 %v605, %v677
      %v679 = vpop.f32.mrf.mxu0
      %v680 = vadd.f32 %v607, %v679
      %681 = vmatmul.bf16.gmra.mxu0 %v556
      %v682 = vpop.f32.mrf.mxu0
      %v683 = vadd.f32 %v610, %v682
      %v684 = vpop.f32.mrf.mxu0
      %v685 = vadd.f32 %v612, %v684
      %686 = vmatmul.bf16.gmra.mxu0 %v559
      %v687 = vpop.f32.mrf.mxu0
      %v688 = vadd.f32 %v615, %v687
      %v689 = vpop.f32.mrf.mxu0
      %v690 = vadd.f32 %v617, %v689
      %691 = vmatmul.bf16.gmra.mxu0 %v562
      %v692 = vpop.f32.mrf.mxu0
      %v693 = vadd.f32 %v620, %v692
      %v694 = vpop.f32.mrf.mxu0
      %v695 = vadd.f32 %v622, %v694
      %696 = vmatmul.bf16.gmra.mxu0 %v565
      %v697 = vpop.f32.mrf.mxu0
      %v698 = vadd.f32 %v625, %v697
      %v699 = vpop.f32.mrf.mxu0
      %v700 = vadd.f32 %v627, %v699
      %701 = vmatmul.bf16.gmra.mxu0 %v568
      %v702 = vpop.f32.mrf.mxu0
      %v703 = vadd.f32 %v630, %v702
      %v704 = vpop.f32.mrf.mxu0
      %v705 = vadd.f32 %v632, %v704
      %706 = vmatmul.bf16.gmra.mxu0 %v571
      %v707 = vpop.f32.mrf.mxu0
      %v708 = vadd.f32 %v635, %v707
      %v709 = vpop.f32.mrf.mxu0
      %v710 = vadd.f32 %v637, %v709
      %711 = vmatmul.bf16.gmra.mxu0 %v574
      %v712 = vpop.f32.mrf.mxu0
      %v713 = vadd.f32 %v640, %v712
      %v714 = vpop.f32.mrf.mxu0
      %v715 = vadd.f32 %v642, %v714
      %716 = vmatmul.bf16.gmra.mxu0 %v577
      %v717 = vpop.f32.mrf.mxu0
      %v718 = vadd.f32 %v645, %v717
      %v719 = vpop.f32.mrf.mxu0
      %v720 = vadd.f32 %v647, %v719
      %721 = vmatmul.bf16.gmra.mxu0 %v580
      %v722 = vpop.f32.mrf.mxu0
      %v723 = vadd.f32 %v650, %v722
      %v724 = vpop.f32.mrf.mxu0
      %v725 = vadd.f32 %v652, %v724
      %726 = vmatmul.bf16.gmra.mxu0 %v583
      %v727 = vpop.f32.mrf.mxu0
      %v728 = vadd.f32 %v655, %v727
      %v729 = vpop.f32.mrf.mxu0
      %730 = vdwg.mxu0
      %v731 = vld [vmem:[%s311] sm:$0xff]
      %v732 = vld [vmem:[%s311 + $0x8] sm:$0xff]
      %v733 = vld [vmem:[%s311 + $0x10] sm:$0xff]
      %v734 = vld [vmem:[%s311 + $0x18] sm:$0xff]
      %v735 = vld [vmem:[%s311 + $0x20] sm:$0xff]
      %v736 = vld [vmem:[%s311 + $0x28] sm:$0xff]
      %v737 = vld [vmem:[%s311 + $0x30] sm:$0xff]
      %v738 = vld [vmem:[%s311 + $0x38] sm:$0xff]
      %v739 = vld [vmem:[%s311 + $0x40] sm:$0xff]
      %v740 = vld [vmem:[%s311 + $0x48] sm:$0xff]
      %v741 = vld [vmem:[%s311 + $0x50] sm:$0xff]
      %v742 = vld [vmem:[%s311 + $0x58] sm:$0xff]
      %v743 = vld [vmem:[%s311 + $0x60] sm:$0xff]
      %v744 = vld [vmem:[%s311 + $0x68] sm:$0xff]
      %v745 = vld [vmem:[%s311 + $0x70] sm:$0xff]
      %v746 = vld [vmem:[%s311 + $0x78] sm:$0xff]
      %v747 = vld [vmem:[%s311 + $0x80] sm:$0xff]
      %v748 = vld [vmem:[%s311 + $0x88] sm:$0xff]
      %v749 = vld [vmem:[%s311 + $0x90] sm:$0xff]
      %v750 = vld [vmem:[%s311 + $0x98] sm:$0xff]
      %v751 = vld [vmem:[%s311 + $0xa0] sm:$0xff]
      %v752 = vld [vmem:[%s311 + $0xa8] sm:$0xff]
      %v753 = vld [vmem:[%s311 + $0xb0] sm:$0xff]
      %v754 = vld [vmem:[%s311 + $0xb8] sm:$0xff]
      %v755 = vld [vmem:[%s311 + $0xc0] sm:$0xff]
      %v781 = vunpack.c.l.b16 %v731
      %v782 = vunpack.c.h.b16 %v731
      %v783 = vunpack.c.l.b16 %v732
      %v784 = vunpack.c.h.b16 %v732
      %v785 = vunpack.c.l.b16 %v733
      %v786 = vunpack.c.h.b16 %v733
      %v787 = vunpack.c.l.b16 %v734
      %v788 = vunpack.c.h.b16 %v734
      %v789 = vunpack.c.l.b16 %v735
      %v790 = vunpack.c.h.b16 %v735
      %v791 = vunpack.c.l.b16 %v736
      %v792 = vunpack.c.h.b16 %v736
      %v793 = vunpack.c.l.b16 %v737
      %v794 = vunpack.c.h.b16 %v737
      %v795 = vunpack.c.l.b16 %v738
      %v796 = vunpack.c.h.b16 %v738
      %v797 = vunpack.c.l.b16 %v739
      %v798 = vunpack.c.h.b16 %v739
      %v799 = vunpack.c.l.b16 %v740
      %v800 = vunpack.c.h.b16 %v740
      %v801 = vunpack.c.l.b16 %v741
      %v802 = vunpack.c.h.b16 %v741
      %v803 = vunpack.c.l.b16 %v742
      %v804 = vunpack.c.h.b16 %v742
      %v805 = vunpack.c.l.b16 %v743
      %v806 = vunpack.c.h.b16 %v743
      %v807 = vunpack.c.l.b16 %v744
      %v808 = vunpack.c.h.b16 %v744
      %v809 = vunpack.c.l.b16 %v745
      %v810 = vunpack.c.h.b16 %v745
      %v811 = vunpack.c.l.b16 %v746
      %v812 = vunpack.c.h.b16 %v746
      %v813 = vunpack.c.l.b16 %v747
      %v814 = vunpack.c.h.b16 %v747
      %v815 = vunpack.c.l.b16 %v748
      %v816 = vunpack.c.h.b16 %v748
      %v817 = vunpack.c.l.b16 %v749
      %v818 = vunpack.c.h.b16 %v749
      %v819 = vunpack.c.l.b16 %v750
      %v820 = vunpack.c.h.b16 %v750
      %v821 = vunpack.c.l.b16 %v751
      %v822 = vunpack.c.h.b16 %v751
      %v823 = vunpack.c.l.b16 %v752
      %v824 = vunpack.c.h.b16 %v752
      %v825 = vunpack.c.l.b16 %v753
      %v826 = vunpack.c.h.b16 %v753
      %v827 = vunpack.c.l.b16 %v754
      %v828 = vunpack.c.h.b16 %v754
      %v829 = vunpack.c.l.b16 %v755
      %v830 = vunpack.c.h.b16 %v755
      %v831 = vpack.c.b16 %v783, %v781
      %v832 = vpack.c.b16 %v784, %v782
      %v833 = vpack.c.b16 %v787, %v785
      %v834 = vpack.c.b16 %v788, %v786
      %v835 = vpack.c.b16 %v791, %v789
      %v836 = vpack.c.b16 %v792, %v790
      %v837 = vpack.c.b16 %v795, %v793
      %v838 = vpack.c.b16 %v796, %v794
      %v839 = vpack.c.b16 %v799, %v797
      %v840 = vpack.c.b16 %v800, %v798
      %v841 = vpack.c.b16 %v803, %v801
      %v842 = vpack.c.b16 %v804, %v802
      %v843 = vpack.c.b16 %v807, %v805
      %v844 = vpack.c.b16 %v808, %v806
      %v845 = vpack.c.b16 %v811, %v809
      %v846 = vpack.c.b16 %v812, %v810
      %v847 = vpack.c.b16 %v815, %v813
      %v848 = vpack.c.b16 %v816, %v814
      %v849 = vpack.c.b16 %v819, %v817
      %v850 = vpack.c.b16 %v820, %v818
      %v851 = vpack.c.b16 %v823, %v821
      %v852 = vpack.c.b16 %v824, %v822
      %v853 = vpack.c.b16 %v827, %v825
      %v854 = vpack.c.b16 %v828, %v826
      %v855 = vpack.c.b16 %v829, %v829
      %v856 = vpack.c.b16 %v830, %v830
      %v871 = vsel %vm545, %v832, 0
      %v874 = vsel %vm545, %v834, 0
      %v877 = vsel %vm545, %v836, 0
      %v880 = vsel %vm545, %v838, 0
      %v883 = vsel %vm545, %v840, 0
      %v886 = vsel %vm545, %v842, 0
      %v889 = vsel %vm545, %v844, 0
      %v892 = vsel %vm545, %v846, 0
      %v895 = vsel %vm545, %v848, 0
      %v898 = vsel %vm545, %v850, 0
      %v901 = vsel %vm545, %v852, 0
      %v904 = vsel %vm545, %v854, 0
      %v907 = vsel %vm545, %v856, 0
      %909 = vmatpush.bf16.msra.mxu0 %v534
      %910 = vmatpush.bf16.msra.mxu0 %v533
      %911 = vmatpush.bf16.msra.mxu0 %v532
      %912 = vmatpush.bf16.msra.mxu0 %v531
      %913 = vmatpush.bf16.msra.mxu0 %v530
      %914 = vmatpush.bf16.msra.mxu0 %v529
      %915 = vmatpush.bf16.msra.mxu0 %v528
      %916 = vmatpush.bf16.msra.mxu0 %v527
      %917 = vmatmul.bf16.gmra.mxu0 %v831
      %v918 = vpop.f32.mrf.mxu0
      %v919 = vadd.f32 0.0, %v918
      %v920 = vpop.f32.mrf.mxu0
      %v921 = vadd.f32 0.0, %v920
      %922 = vmatmul.bf16.gmra.mxu0 %v833
      %v923 = vpop.f32.mrf.mxu0
      %v924 = vadd.f32 0.0, %v923
      %v925 = vpop.f32.mrf.mxu0
      %v926 = vadd.f32 0.0, %v925
      %927 = vmatmul.bf16.gmra.mxu0 %v835
      %v928 = vpop.f32.mrf.mxu0
      %v929 = vadd.f32 0.0, %v928
      %v930 = vpop.f32.mrf.mxu0
      %v931 = vadd.f32 0.0, %v930
      %932 = vmatmul.bf16.gmra.mxu0 %v837
      %v933 = vpop.f32.mrf.mxu0
      %v934 = vadd.f32 0.0, %v933
      %v935 = vpop.f32.mrf.mxu0
      %v936 = vadd.f32 0.0, %v935
      %937 = vmatmul.bf16.gmra.mxu0 %v839
      %v938 = vpop.f32.mrf.mxu0
      %v939 = vadd.f32 0.0, %v938
      %v940 = vpop.f32.mrf.mxu0
      %v941 = vadd.f32 0.0, %v940
      %942 = vmatmul.bf16.gmra.mxu0 %v841
      %v943 = vpop.f32.mrf.mxu0
      %v944 = vadd.f32 0.0, %v943
      %v945 = vpop.f32.mrf.mxu0
      %v946 = vadd.f32 0.0, %v945
      %947 = vmatmul.bf16.gmra.mxu0 %v843
      %v948 = vpop.f32.mrf.mxu0
      %v949 = vadd.f32 0.0, %v948
      %v950 = vpop.f32.mrf.mxu0
      %v951 = vadd.f32 0.0, %v950
      %952 = vmatmul.bf16.gmra.mxu0 %v845
      %v953 = vpop.f32.mrf.mxu0
      %v954 = vadd.f32 0.0, %v953
      %v955 = vpop.f32.mrf.mxu0
      %v956 = vadd.f32 0.0, %v955
      %957 = vmatmul.bf16.gmra.mxu0 %v847
      %v958 = vpop.f32.mrf.mxu0
      %v959 = vadd.f32 0.0, %v958
      %v960 = vpop.f32.mrf.mxu0
      %v961 = vadd.f32 0.0, %v960
      %962 = vmatmul.bf16.gmra.mxu0 %v849
      %v963 = vpop.f32.mrf.mxu0
      %v964 = vadd.f32 0.0, %v963
      %v965 = vpop.f32.mrf.mxu0
      %v966 = vadd.f32 0.0, %v965
      %967 = vmatmul.bf16.gmra.mxu0 %v851
      %v968 = vpop.f32.mrf.mxu0
      %v969 = vadd.f32 0.0, %v968
      %v970 = vpop.f32.mrf.mxu0
      %v971 = vadd.f32 0.0, %v970
      %972 = vmatmul.bf16.gmra.mxu0 %v853
      %v973 = vpop.f32.mrf.mxu0
      %v974 = vadd.f32 0.0, %v973
      %v975 = vpop.f32.mrf.mxu0
      %v976 = vadd.f32 0.0, %v975
      %977 = vmatmul.bf16.gmra.mxu0 %v855
      %v978 = vpop.f32.mrf.mxu0
      %v979 = vadd.f32 0.0, %v978
      %v980 = vpop.f32.mrf.mxu0
      %981 = vdwg.mxu0
      %982 = vmatpush.bf16.msra.mxu0 0
      %983 = vmatpush.bf16.msra.mxu0 0
      %984 = vmatpush.bf16.msra.mxu0 0
      %985 = vmatpush.bf16.msra.mxu0 0
      %986 = vmatpush.bf16.msra.mxu0 0
      %987 = vmatpush.bf16.msra.mxu0 0
      %988 = vmatpush.bf16.msra.mxu0 0
      %989 = vmatpush.bf16.msra.mxu0 %v535
      %990 = vmatmul.bf16.gmra.mxu0 %v871
      %v991 = vpop.f32.mrf.mxu0
      %v992 = vadd.f32 %v919, %v991
      %v993 = vpop.f32.mrf.mxu0
      %v994 = vadd.f32 %v921, %v993
      %995 = vmatmul.bf16.gmra.mxu0 %v874
      %v996 = vpop.f32.mrf.mxu0
      %v997 = vadd.f32 %v924, %v996
      %v998 = vpop.f32.mrf.mxu0
      %v999 = vadd.f32 %v926, %v998
      %1000 = vmatmul.bf16.gmra.mxu0 %v877
      %v1001 = vpop.f32.mrf.mxu0
      %v1002 = vadd.f32 %v929, %v1001
      %v1003 = vpop.f32.mrf.mxu0
      %v1004 = vadd.f32 %v931, %v1003
      %1005 = vmatmul.bf16.gmra.mxu0 %v880
      %v1006 = vpop.f32.mrf.mxu0
      %v1007 = vadd.f32 %v934, %v1006
      %v1008 = vpop.f32.mrf.mxu0
      %v1009 = vadd.f32 %v936, %v1008
      %1010 = vmatmul.bf16.gmra.mxu0 %v883
      %v1011 = vpop.f32.mrf.mxu0
      %v1012 = vadd.f32 %v939, %v1011
      %v1013 = vpop.f32.mrf.mxu0
      %v1014 = vadd.f32 %v941, %v1013
      %1015 = vmatmul.bf16.gmra.mxu0 %v886
      %v1016 = vpop.f32.mrf.mxu0
      %v1017 = vadd.f32 %v944, %v1016
      %v1018 = vpop.f32.mrf.mxu0
      %v1019 = vadd.f32 %v946, %v1018
      %1020 = vmatmul.bf16.gmra.mxu0 %v889
      %v1021 = vpop.f32.mrf.mxu0
      %v1022 = vadd.f32 %v949, %v1021
      %v1023 = vpop.f32.mrf.mxu0
      %v1024 = vadd.f32 %v951, %v1023
      %1025 = vmatmul.bf16.gmra.mxu0 %v892
      %v1026 = vpop.f32.mrf.mxu0
      %v1027 = vadd.f32 %v954, %v1026
      %v1028 = vpop.f32.mrf.mxu0
      %v1029 = vadd.f32 %v956, %v1028
      %1030 = vmatmul.bf16.gmra.mxu0 %v895
      %v1031 = vpop.f32.mrf.mxu0
      %v1032 = vadd.f32 %v959, %v1031
      %v1033 = vpop.f32.mrf.mxu0
      %v1034 = vadd.f32 %v961, %v1033
      %1035 = vmatmul.bf16.gmra.mxu0 %v898
      %v1036 = vpop.f32.mrf.mxu0
      %v1037 = vadd.f32 %v964, %v1036
      %v1038 = vpop.f32.mrf.mxu0
      %v1039 = vadd.f32 %v966, %v1038
      %1040 = vmatmul.bf16.gmra.mxu0 %v901
      %v1041 = vpop.f32.mrf.mxu0
      %v1042 = vadd.f32 %v969, %v1041
      %v1043 = vpop.f32.mrf.mxu0
      %v1044 = vadd.f32 %v971, %v1043
      %1045 = vmatmul.bf16.gmra.mxu0 %v904
      %v1046 = vpop.f32.mrf.mxu0
      %v1047 = vadd.f32 %v974, %v1046
      %v1048 = vpop.f32.mrf.mxu0
      %v1049 = vadd.f32 %v976, %v1048
      %1050 = vmatmul.bf16.gmra.mxu0 %v907
      %v1051 = vpop.f32.mrf.mxu0
      %v1052 = vadd.f32 %v979, %v1051
      %v1053 = vpop.f32.mrf.mxu0
      %1054 = vdwg.mxu0
      %v1055 = vmax.f32 %v668, %v992
      %v1056 = vmax.f32 %v670, %v994
      %v1057 = vmax.f32 %v673, %v997
      %v1058 = vmax.f32 %v675, %v999
      %v1059 = vmax.f32 %v678, %v1002
      %v1060 = vmax.f32 %v680, %v1004
      %v1061 = vmax.f32 %v683, %v1007
      %v1062 = vmax.f32 %v685, %v1009
      %v1063 = vmax.f32 %v688, %v1012
      %v1064 = vmax.f32 %v690, %v1014
      %v1065 = vmax.f32 %v693, %v1017
      %v1066 = vmax.f32 %v695, %v1019
      %v1067 = vmax.f32 %v698, %v1022
      %v1068 = vmax.f32 %v700, %v1024
      %v1069 = vmax.f32 %v703, %v1027
      %v1070 = vmax.f32 %v705, %v1029
      %v1071 = vmax.f32 %v708, %v1032
      %v1072 = vmax.f32 %v710, %v1034
      %v1073 = vmax.f32 %v713, %v1037
      %v1074 = vmax.f32 %v715, %v1039
      %v1075 = vmax.f32 %v718, %v1042
      %v1076 = vmax.f32 %v720, %v1044
      %v1077 = vmax.f32 %v723, %v1047
      %v1078 = vmax.f32 %v725, %v1049
      %v1079 = vmax.f32 %v728, %v1052
      %v1080 = vld [vmem:[%s318] sm:$0xff]
      %v1081 = vld [vmem:[%s318 + $0x8] sm:$0xff]
      %v1082 = vld [vmem:[%s318 + $0x10] sm:$0xff]
      %v1083 = vld [vmem:[%s318 + $0x18] sm:$0xff]
      %v1084 = vld [vmem:[%s318 + $0x20] sm:$0xff]
      %v1085 = vld [vmem:[%s318 + $0x28] sm:$0xff]
      %v1086 = vld [vmem:[%s318 + $0x30] sm:$0xff]
      %v1087 = vld [vmem:[%s318 + $0x38] sm:$0xff]
      %v1088 = vld [vmem:[%s318 + $0x40] sm:$0xff]
      %v1089 = vld [vmem:[%s318 + $0x48] sm:$0xff]
      %v1090 = vld [vmem:[%s318 + $0x50] sm:$0xff]
      %v1091 = vld [vmem:[%s318 + $0x58] sm:$0xff]
      %v1092 = vld [vmem:[%s318 + $0x60] sm:$0xff]
      %v1093 = vld [vmem:[%s318 + $0x68] sm:$0xff]
      %v1094 = vld [vmem:[%s318 + $0x70] sm:$0xff]
      %v1095 = vld [vmem:[%s318 + $0x78] sm:$0xff]
      %v1096 = vld [vmem:[%s318 + $0x80] sm:$0xff]
      %v1097 = vld [vmem:[%s318 + $0x88] sm:$0xff]
      %v1098 = vld [vmem:[%s318 + $0x90] sm:$0xff]
      %v1099 = vld [vmem:[%s318 + $0x98] sm:$0xff]
      %v1100 = vld [vmem:[%s318 + $0xa0] sm:$0xff]
      %v1101 = vld [vmem:[%s318 + $0xa8] sm:$0xff]
      %v1102 = vld [vmem:[%s318 + $0xb0] sm:$0xff]
      %v1103 = vld [vmem:[%s318 + $0xb8] sm:$0xff]
      %v1104 = vld [vmem:[%s318 + $0xc0] sm:$0xff]
      %v1130 = vunpack.c.l.b16 %v1080
      %v1131 = vunpack.c.h.b16 %v1080
      %v1132 = vunpack.c.l.b16 %v1081
      %v1133 = vunpack.c.h.b16 %v1081
      %v1134 = vunpack.c.l.b16 %v1082
      %v1135 = vunpack.c.h.b16 %v1082
      %v1136 = vunpack.c.l.b16 %v1083
      %v1137 = vunpack.c.h.b16 %v1083
      %v1138 = vunpack.c.l.b16 %v1084
      %v1139 = vunpack.c.h.b16 %v1084
      %v1140 = vunpack.c.l.b16 %v1085
      %v1141 = vunpack.c.h.b16 %v1085
      %v1142 = vunpack.c.l.b16 %v1086
      %v1143 = vunpack.c.h.b16 %v1086
      %v1144 = vunpack.c.l.b16 %v1087
      %v1145 = vunpack.c.h.b16 %v1087
      %v1146 = vunpack.c.l.b16 %v1088
      %v1147 = vunpack.c.h.b16 %v1088
      %v1148 = vunpack.c.l.b16 %v1089
      %v1149 = vunpack.c.h.b16 %v1089
      %v1150 = vunpack.c.l.b16 %v1090
      %v1151 = vunpack.c.h.b16 %v1090
      %v1152 = vunpack.c.l.b16 %v1091
      %v1153 = vunpack.c.h.b16 %v1091
      %v1154 = vunpack.c.l.b16 %v1092
      %v1155 = vunpack.c.h.b16 %v1092
      %v1156 = vunpack.c.l.b16 %v1093
      %v1157 = vunpack.c.h.b16 %v1093
      %v1158 = vunpack.c.l.b16 %v1094
      %v1159 = vunpack.c.h.b16 %v1094
      %v1160 = vunpack.c.l.b16 %v1095
      %v1161 = vunpack.c.h.b16 %v1095
      %v1162 = vunpack.c.l.b16 %v1096
      %v1163 = vunpack.c.h.b16 %v1096
      %v1164 = vunpack.c.l.b16 %v1097
      %v1165 = vunpack.c.h.b16 %v1097
      %v1166 = vunpack.c.l.b16 %v1098
      %v1167 = vunpack.c.h.b16 %v1098
      %v1168 = vunpack.c.l.b16 %v1099
      %v1169 = vunpack.c.h.b16 %v1099
      %v1170 = vunpack.c.l.b16 %v1100
      %v1171 = vunpack.c.h.b16 %v1100
      %v1172 = vunpack.c.l.b16 %v1101
      %v1173 = vunpack.c.h.b16 %v1101
      %v1174 = vunpack.c.l.b16 %v1102
      %v1175 = vunpack.c.h.b16 %v1102
      %v1176 = vunpack.c.l.b16 %v1103
      %v1177 = vunpack.c.h.b16 %v1103
      %v1178 = vunpack.c.l.b16 %v1104
      %v1179 = vunpack.c.h.b16 %v1104
      %v1180 = vpack.c.b16 %v1132, %v1130
      %v1181 = vpack.c.b16 %v1133, %v1131
      %v1182 = vpack.c.b16 %v1136, %v1134
      %v1183 = vpack.c.b16 %v1137, %v1135
      %v1184 = vpack.c.b16 %v1140, %v1138
      %v1185 = vpack.c.b16 %v1141, %v1139
      %v1186 = vpack.c.b16 %v1144, %v1142
      %v1187 = vpack.c.b16 %v1145, %v1143
      %v1188 = vpack.c.b16 %v1148, %v1146
      %v1189 = vpack.c.b16 %v1149, %v1147
      %v1190 = vpack.c.b16 %v1152, %v1150
      %v1191 = vpack.c.b16 %v1153, %v1151
      %v1192 = vpack.c.b16 %v1156, %v1154
      %v1193 = vpack.c.b16 %v1157, %v1155
      %v1194 = vpack.c.b16 %v1160, %v1158
      %v1195 = vpack.c.b16 %v1161, %v1159
      %v1196 = vpack.c.b16 %v1164, %v1162
      %v1197 = vpack.c.b16 %v1165, %v1163
      %v1198 = vpack.c.b16 %v1168, %v1166
      %v1199 = vpack.c.b16 %v1169, %v1167
      %v1200 = vpack.c.b16 %v1172, %v1170
      %v1201 = vpack.c.b16 %v1173, %v1171
      %v1202 = vpack.c.b16 %v1176, %v1174
      %v1203 = vpack.c.b16 %v1177, %v1175
      %v1204 = vpack.c.b16 %v1178, %v1178
      %v1205 = vpack.c.b16 %v1179, %v1179
      %v1220 = vsel %vm545, %v1181, 0
      %v1223 = vsel %vm545, %v1183, 0
      %v1226 = vsel %vm545, %v1185, 0
      %v1229 = vsel %vm545, %v1187, 0
      %v1232 = vsel %vm545, %v1189, 0
      %v1235 = vsel %vm545, %v1191, 0
      %v1238 = vsel %vm545, %v1193, 0
      %v1241 = vsel %vm545, %v1195, 0
      %v1244 = vsel %vm545, %v1197, 0
      %v1247 = vsel %vm545, %v1199, 0
      %v1250 = vsel %vm545, %v1201, 0
      %v1253 = vsel %vm545, %v1203, 0
      %v1256 = vsel %vm545, %v1205, 0
      %1258 = vmatpush.bf16.msra.mxu0 %v534
      %1259 = vmatpush.bf16.msra.mxu0 %v533
      %1260 = vmatpush.bf16.msra.mxu0 %v532
      %1261 = vmatpush.bf16.msra.mxu0 %v531
      %1262 = vmatpush.bf16.msra.mxu0 %v530
      %1263 = vmatpush.bf16.msra.mxu0 %v529
      %1264 = vmatpush.bf16.msra.mxu0 %v528
      %1265 = vmatpush.bf16.msra.mxu0 %v527
      %1266 = vmatmul.bf16.gmra.mxu0 %v1180
      %v1267 = vpop.f32.mrf.mxu0
      %v1268 = vadd.f32 0.0, %v1267
      %v1269 = vpop.f32.mrf.mxu0
      %v1270 = vadd.f32 0.0, %v1269
      %1271 = vmatmul.bf16.gmra.mxu0 %v1182
      %v1272 = vpop.f32.mrf.mxu0
      %v1273 = vadd.f32 0.0, %v1272
      %v1274 = vpop.f32.mrf.mxu0
      %v1275 = vadd.f32 0.0, %v1274
      %1276 = vmatmul.bf16.gmra.mxu0 %v1184
      %v1277 = vpop.f32.mrf.mxu0
      %v1278 = vadd.f32 0.0, %v1277
      %v1279 = vpop.f32.mrf.mxu0
      %v1280 = vadd.f32 0.0, %v1279
      %1281 = vmatmul.bf16.gmra.mxu0 %v1186
      %v1282 = vpop.f32.mrf.mxu0
      %v1283 = vadd.f32 0.0, %v1282
      %v1284 = vpop.f32.mrf.mxu0
      %v1285 = vadd.f32 0.0, %v1284
      %1286 = vmatmul.bf16.gmra.mxu0 %v1188
      %v1287 = vpop.f32.mrf.mxu0
      %v1288 = vadd.f32 0.0, %v1287
      %v1289 = vpop.f32.mrf.mxu0
      %v1290 = vadd.f32 0.0, %v1289
      %1291 = vmatmul.bf16.gmra.mxu0 %v1190
      %v1292 = vpop.f32.mrf.mxu0
      %v1293 = vadd.f32 0.0, %v1292
      %v1294 = vpop.f32.mrf.mxu0
      %v1295 = vadd.f32 0.0, %v1294
      %1296 = vmatmul.bf16.gmra.mxu0 %v1192
      %v1297 = vpop.f32.mrf.mxu0
      %v1298 = vadd.f32 0.0, %v1297
      %v1299 = vpop.f32.mrf.mxu0
      %v1300 = vadd.f32 0.0, %v1299
      %1301 = vmatmul.bf16.gmra.mxu0 %v1194
      %v1302 = vpop.f32.mrf.mxu0
      %v1303 = vadd.f32 0.0, %v1302
      %v1304 = vpop.f32.mrf.mxu0
      %v1305 = vadd.f32 0.0, %v1304
      %1306 = vmatmul.bf16.gmra.mxu0 %v1196
      %v1307 = vpop.f32.mrf.mxu0
      %v1308 = vadd.f32 0.0, %v1307
      %v1309 = vpop.f32.mrf.mxu0
      %v1310 = vadd.f32 0.0, %v1309
      %1311 = vmatmul.bf16.gmra.mxu0 %v1198
      %v1312 = vpop.f32.mrf.mxu0
      %v1313 = vadd.f32 0.0, %v1312
      %v1314 = vpop.f32.mrf.mxu0
      %v1315 = vadd.f32 0.0, %v1314
      %1316 = vmatmul.bf16.gmra.mxu0 %v1200
      %v1317 = vpop.f32.mrf.mxu0
      %v1318 = vadd.f32 0.0, %v1317
      %v1319 = vpop.f32.mrf.mxu0
      %v1320 = vadd.f32 0.0, %v1319
      %1321 = vmatmul.bf16.gmra.mxu0 %v1202
      %v1322 = vpop.f32.mrf.mxu0
      %v1323 = vadd.f32 0.0, %v1322
      %v1324 = vpop.f32.mrf.mxu0
      %v1325 = vadd.f32 0.0, %v1324
      %1326 = vmatmul.bf16.gmra.mxu0 %v1204
      %v1327 = vpop.f32.mrf.mxu0
      %v1328 = vadd.f32 0.0, %v1327
      %v1329 = vpop.f32.mrf.mxu0
      %1330 = vdwg.mxu0
      %1331 = vmatpush.bf16.msra.mxu0 0
      %1332 = vmatpush.bf16.msra.mxu0 0
      %1333 = vmatpush.bf16.msra.mxu0 0
      %1334 = vmatpush.bf16.msra.mxu0 0
      %1335 = vmatpush.bf16.msra.mxu0 0
      %1336 = vmatpush.bf16.msra.mxu0 0
      %1337 = vmatpush.bf16.msra.mxu0 0
      %1338 = vmatpush.bf16.msra.mxu0 %v535
      %1339 = vmatmul.bf16.gmra.mxu0 %v1220
      %v1340 = vpop.f32.mrf.mxu0
      %v1341 = vadd.f32 %v1268, %v1340
      %v1342 = vpop.f32.mrf.mxu0
      %v1343 = vadd.f32 %v1270, %v1342
      %1344 = vmatmul.bf16.gmra.mxu0 %v1223
      %v1345 = vpop.f32.mrf.mxu0
      %v1346 = vadd.f32 %v1273, %v1345
      %v1347 = vpop.f32.mrf.mxu0
      %v1348 = vadd.f32 %v1275, %v1347
      %1349 = vmatmul.bf16.gmra.mxu0 %v1226
      %v1350 = vpop.f32.mrf.mxu0
      %v1351 = vadd.f32 %v1278, %v1350
      %v1352 = vpop.f32.mrf.mxu0
      %v1353 = vadd.f32 %v1280, %v1352
      %1354 = vmatmul.bf16.gmra.mxu0 %v1229
      %v1355 = vpop.f32.mrf.mxu0
      %v1356 = vadd.f32 %v1283, %v1355
      %v1357 = vpop.f32.mrf.mxu0
      %v1358 = vadd.f32 %v1285, %v1357
      %1359 = vmatmul.bf16.gmra.mxu0 %v1232
      %v1360 = vpop.f32.mrf.mxu0
      %v1361 = vadd.f32 %v1288, %v1360
      %v1362 = vpop.f32.mrf.mxu0
      %v1363 = vadd.f32 %v1290, %v1362
      %1364 = vmatmul.bf16.gmra.mxu0 %v1235
      %v1365 = vpop.f32.mrf.mxu0
      %v1366 = vadd.f32 %v1293, %v1365
      %v1367 = vpop.f32.mrf.mxu0
      %v1368 = vadd.f32 %v1295, %v1367
      %1369 = vmatmul.bf16.gmra.mxu0 %v1238
      %v1370 = vpop.f32.mrf.mxu0
      %v1371 = vadd.f32 %v1298, %v1370
      %v1372 = vpop.f32.mrf.mxu0
      %v1373 = vadd.f32 %v1300, %v1372
      %1374 = vmatmul.bf16.gmra.mxu0 %v1241
      %v1375 = vpop.f32.mrf.mxu0
      %v1376 = vadd.f32 %v1303, %v1375
      %v1377 = vpop.f32.mrf.mxu0
      %v1378 = vadd.f32 %v1305, %v1377
      %1379 = vmatmul.bf16.gmra.mxu0 %v1244
      %v1380 = vpop.f32.mrf.mxu0
      %v1381 = vadd.f32 %v1308, %v1380
      %v1382 = vpop.f32.mrf.mxu0
      %v1383 = vadd.f32 %v1310, %v1382
      %1384 = vmatmul.bf16.gmra.mxu0 %v1247
      %v1385 = vpop.f32.mrf.mxu0
      %v1386 = vadd.f32 %v1313, %v1385
      %v1387 = vpop.f32.mrf.mxu0
      %v1388 = vadd.f32 %v1315, %v1387
      %1389 = vmatmul.bf16.gmra.mxu0 %v1250
      %v1390 = vpop.f32.mrf.mxu0
      %v1391 = vadd.f32 %v1318, %v1390
      %v1392 = vpop.f32.mrf.mxu0
      %v1393 = vadd.f32 %v1320, %v1392
      %1394 = vmatmul.bf16.gmra.mxu0 %v1253
      %v1395 = vpop.f32.mrf.mxu0
      %v1396 = vadd.f32 %v1323, %v1395
      %v1397 = vpop.f32.mrf.mxu0
      %v1398 = vadd.f32 %v1325, %v1397
      %1399 = vmatmul.bf16.gmra.mxu0 %v1256
      %v1400 = vpop.f32.mrf.mxu0
      %v1401 = vadd.f32 %v1328, %v1400
      %v1402 = vpop.f32.mrf.mxu0
      %1403 = vdwg.mxu0
      %v1404 = vmax.f32 %v1055, %v1341
      %v1405 = vmax.f32 %v1056, %v1343
      %v1406 = vmax.f32 %v1057, %v1346
      %v1407 = vmax.f32 %v1058, %v1348
      %v1408 = vmax.f32 %v1059, %v1351
      %v1409 = vmax.f32 %v1060, %v1353
      %v1410 = vmax.f32 %v1061, %v1356
      %v1411 = vmax.f32 %v1062, %v1358
      %v1412 = vmax.f32 %v1063, %v1361
      %v1413 = vmax.f32 %v1064, %v1363
      %v1414 = vmax.f32 %v1065, %v1366
      %v1415 = vmax.f32 %v1066, %v1368
      %v1416 = vmax.f32 %v1067, %v1371
      %v1417 = vmax.f32 %v1068, %v1373
      %v1418 = vmax.f32 %v1069, %v1376
      %v1419 = vmax.f32 %v1070, %v1378
      %v1420 = vmax.f32 %v1071, %v1381
      %v1421 = vmax.f32 %v1072, %v1383
      %v1422 = vmax.f32 %v1073, %v1386
      %v1423 = vmax.f32 %v1074, %v1388
      %v1424 = vmax.f32 %v1075, %v1391
      %v1425 = vmax.f32 %v1076, %v1393
      %v1426 = vmax.f32 %v1077, %v1396
      %v1427 = vmax.f32 %v1078, %v1398
      %v1428 = vmax.f32 %v1079, %v1401
      %v1429 = vld [vmem:[%s325] sm:$0xff]
      %v1430 = vld [vmem:[%s325 + $0x8] sm:$0xff]
      %v1431 = vld [vmem:[%s325 + $0x10] sm:$0xff]
      %v1432 = vld [vmem:[%s325 + $0x18] sm:$0xff]
      %v1433 = vld [vmem:[%s325 + $0x20] sm:$0xff]
      %v1434 = vld [vmem:[%s325 + $0x28] sm:$0xff]
      %v1435 = vld [vmem:[%s325 + $0x30] sm:$0xff]
      %v1436 = vld [vmem:[%s325 + $0x38] sm:$0xff]
      %v1437 = vld [vmem:[%s325 + $0x40] sm:$0xff]
      %v1438 = vld [vmem:[%s325 + $0x48] sm:$0xff]
      %v1439 = vld [vmem:[%s325 + $0x50] sm:$0xff]
      %v1440 = vld [vmem:[%s325 + $0x58] sm:$0xff]
      %v1441 = vld [vmem:[%s325 + $0x60] sm:$0xff]
      %v1442 = vld [vmem:[%s325 + $0x68] sm:$0xff]
      %v1443 = vld [vmem:[%s325 + $0x70] sm:$0xff]
      %v1444 = vld [vmem:[%s325 + $0x78] sm:$0xff]
      %v1445 = vld [vmem:[%s325 + $0x80] sm:$0xff]
      %v1446 = vld [vmem:[%s325 + $0x88] sm:$0xff]
      %v1447 = vld [vmem:[%s325 + $0x90] sm:$0xff]
      %v1448 = vld [vmem:[%s325 + $0x98] sm:$0xff]
      %v1449 = vld [vmem:[%s325 + $0xa0] sm:$0xff]
      %v1450 = vld [vmem:[%s325 + $0xa8] sm:$0xff]
      %v1451 = vld [vmem:[%s325 + $0xb0] sm:$0xff]
      %v1452 = vld [vmem:[%s325 + $0xb8] sm:$0xff]
      %v1453 = vld [vmem:[%s325 + $0xc0] sm:$0xff]
      %v1479 = vunpack.c.l.b16 %v1429
      %v1480 = vunpack.c.h.b16 %v1429
      %v1481 = vunpack.c.l.b16 %v1430
      %v1482 = vunpack.c.h.b16 %v1430
      %v1483 = vunpack.c.l.b16 %v1431
      %v1484 = vunpack.c.h.b16 %v1431
      %v1485 = vunpack.c.l.b16 %v1432
      %v1486 = vunpack.c.h.b16 %v1432
      %v1487 = vunpack.c.l.b16 %v1433
      %v1488 = vunpack.c.h.b16 %v1433
      %v1489 = vunpack.c.l.b16 %v1434
      %v1490 = vunpack.c.h.b16 %v1434
      %v1491 = vunpack.c.l.b16 %v1435
      %v1492 = vunpack.c.h.b16 %v1435
      %v1493 = vunpack.c.l.b16 %v1436
      %v1494 = vunpack.c.h.b16 %v1436
      %v1495 = vunpack.c.l.b16 %v1437
      %v1496 = vunpack.c.h.b16 %v1437
      %v1497 = vunpack.c.l.b16 %v1438
      %v1498 = vunpack.c.h.b16 %v1438
      %v1499 = vunpack.c.l.b16 %v1439
      %v1500 = vunpack.c.h.b16 %v1439
      %v1501 = vunpack.c.l.b16 %v1440
      %v1502 = vunpack.c.h.b16 %v1440
      %v1503 = vunpack.c.l.b16 %v1441
      %v1504 = vunpack.c.h.b16 %v1441
      %v1505 = vunpack.c.l.b16 %v1442
      %v1506 = vunpack.c.h.b16 %v1442
      %v1507 = vunpack.c.l.b16 %v1443
      %v1508 = vunpack.c.h.b16 %v1443
      %v1509 = vunpack.c.l.b16 %v1444
      %v1510 = vunpack.c.h.b16 %v1444
      %v1511 = vunpack.c.l.b16 %v1445
      %v1512 = vunpack.c.h.b16 %v1445
      %v1513 = vunpack.c.l.b16 %v1446
      %v1514 = vunpack.c.h.b16 %v1446
      %v1515 = vunpack.c.l.b16 %v1447
      %v1516 = vunpack.c.h.b16 %v1447
      %v1517 = vunpack.c.l.b16 %v1448
      %v1518 = vunpack.c.h.b16 %v1448
      %v1519 = vunpack.c.l.b16 %v1449
      %v1520 = vunpack.c.h.b16 %v1449
      %v1521 = vunpack.c.l.b16 %v1450
      %v1522 = vunpack.c.h.b16 %v1450
      %v1523 = vunpack.c.l.b16 %v1451
      %v1524 = vunpack.c.h.b16 %v1451
      %v1525 = vunpack.c.l.b16 %v1452
      %v1526 = vunpack.c.h.b16 %v1452
      %v1527 = vunpack.c.l.b16 %v1453
      %v1528 = vunpack.c.h.b16 %v1453
      %v1529 = vpack.c.b16 %v1481, %v1479
      %v1530 = vpack.c.b16 %v1482, %v1480
      %v1531 = vpack.c.b16 %v1485, %v1483
      %v1532 = vpack.c.b16 %v1486, %v1484
      %v1533 = vpack.c.b16 %v1489, %v1487
      %v1534 = vpack.c.b16 %v1490, %v1488
      %v1535 = vpack.c.b16 %v1493, %v1491
      %v1536 = vpack.c.b16 %v1494, %v1492
      %v1537 = vpack.c.b16 %v1497, %v1495
      %v1538 = vpack.c.b16 %v1498, %v1496
      %v1539 = vpack.c.b16 %v1501, %v1499
      %v1540 = vpack.c.b16 %v1502, %v1500
      %v1541 = vpack.c.b16 %v1505, %v1503
      %v1542 = vpack.c.b16 %v1506, %v1504
      %v1543 = vpack.c.b16 %v1509, %v1507
      %v1544 = vpack.c.b16 %v1510, %v1508
      %v1545 = vpack.c.b16 %v1513, %v1511
      %v1546 = vpack.c.b16 %v1514, %v1512
      %v1547 = vpack.c.b16 %v1517, %v1515
      %v1548 = vpack.c.b16 %v1518, %v1516
      %v1549 = vpack.c.b16 %v1521, %v1519
      %v1550 = vpack.c.b16 %v1522, %v1520
      %v1551 = vpack.c.b16 %v1525, %v1523
      %v1552 = vpack.c.b16 %v1526, %v1524
      %v1553 = vpack.c.b16 %v1527, %v1527
      %v1554 = vpack.c.b16 %v1528, %v1528
      %v1569 = vsel %vm545, %v1530, 0
      %v1572 = vsel %vm545, %v1532, 0
      %v1575 = vsel %vm545, %v1534, 0
      %v1578 = vsel %vm545, %v1536, 0
      %v1581 = vsel %vm545, %v1538, 0
      %v1584 = vsel %vm545, %v1540, 0
      %v1587 = vsel %vm545, %v1542, 0
      %v1590 = vsel %vm545, %v1544, 0
      %v1593 = vsel %vm545, %v1546, 0
      %v1596 = vsel %vm545, %v1548, 0
      %v1599 = vsel %vm545, %v1550, 0
      %v1602 = vsel %vm545, %v1552, 0
      %v1605 = vsel %vm545, %v1554, 0
      %1607 = vmatpush.bf16.msra.mxu0 %v534
      %1608 = vmatpush.bf16.msra.mxu0 %v533
      %1609 = vmatpush.bf16.msra.mxu0 %v532
      %1610 = vmatpush.bf16.msra.mxu0 %v531
      %1611 = vmatpush.bf16.msra.mxu0 %v530
      %1612 = vmatpush.bf16.msra.mxu0 %v529
      %1613 = vmatpush.bf16.msra.mxu0 %v528
      %1614 = vmatpush.bf16.msra.mxu0 %v527
      %1615 = vmatmul.bf16.gmra.mxu0 %v1529
      %v1616 = vpop.f32.mrf.mxu0
      %v1617 = vadd.f32 0.0, %v1616
      %v1618 = vpop.f32.mrf.mxu0
      %v1619 = vadd.f32 0.0, %v1618
      %1620 = vmatmul.bf16.gmra.mxu0 %v1531
      %v1621 = vpop.f32.mrf.mxu0
      %v1622 = vadd.f32 0.0, %v1621
      %v1623 = vpop.f32.mrf.mxu0
      %v1624 = vadd.f32 0.0, %v1623
      %1625 = vmatmul.bf16.gmra.mxu0 %v1533
      %v1626 = vpop.f32.mrf.mxu0
      %v1627 = vadd.f32 0.0, %v1626
      %v1628 = vpop.f32.mrf.mxu0
      %v1629 = vadd.f32 0.0, %v1628
      %1630 = vmatmul.bf16.gmra.mxu0 %v1535
      %v1631 = vpop.f32.mrf.mxu0
      %v1632 = vadd.f32 0.0, %v1631
      %v1633 = vpop.f32.mrf.mxu0
      %v1634 = vadd.f32 0.0, %v1633
      %1635 = vmatmul.bf16.gmra.mxu0 %v1537
      %v1636 = vpop.f32.mrf.mxu0
      %v1637 = vadd.f32 0.0, %v1636
      %v1638 = vpop.f32.mrf.mxu0
      %v1639 = vadd.f32 0.0, %v1638
      %1640 = vmatmul.bf16.gmra.mxu0 %v1539
      %v1641 = vpop.f32.mrf.mxu0
      %v1642 = vadd.f32 0.0, %v1641
      %v1643 = vpop.f32.mrf.mxu0
      %v1644 = vadd.f32 0.0, %v1643
      %1645 = vmatmul.bf16.gmra.mxu0 %v1541
      %v1646 = vpop.f32.mrf.mxu0
      %v1647 = vadd.f32 0.0, %v1646
      %v1648 = vpop.f32.mrf.mxu0
      %v1649 = vadd.f32 0.0, %v1648
      %1650 = vmatmul.bf16.gmra.mxu0 %v1543
      %v1651 = vpop.f32.mrf.mxu0
      %v1652 = vadd.f32 0.0, %v1651
      %v1653 = vpop.f32.mrf.mxu0
      %v1654 = vadd.f32 0.0, %v1653
      %1655 = vmatmul.bf16.gmra.mxu0 %v1545
      %v1656 = vpop.f32.mrf.mxu0
      %v1657 = vadd.f32 0.0, %v1656
      %v1658 = vpop.f32.mrf.mxu0
      %v1659 = vadd.f32 0.0, %v1658
      %1660 = vmatmul.bf16.gmra.mxu0 %v1547
      %v1661 = vpop.f32.mrf.mxu0
      %v1662 = vadd.f32 0.0, %v1661
      %v1663 = vpop.f32.mrf.mxu0
      %v1664 = vadd.f32 0.0, %v1663
      %1665 = vmatmul.bf16.gmra.mxu0 %v1549
      %v1666 = vpop.f32.mrf.mxu0
      %v1667 = vadd.f32 0.0, %v1666
      %v1668 = vpop.f32.mrf.mxu0
      %v1669 = vadd.f32 0.0, %v1668
      %1670 = vmatmul.bf16.gmra.mxu0 %v1551
      %v1671 = vpop.f32.mrf.mxu0
      %v1672 = vadd.f32 0.0, %v1671
      %v1673 = vpop.f32.mrf.mxu0
      %v1674 = vadd.f32 0.0, %v1673
      %1675 = vmatmul.bf16.gmra.mxu0 %v1553
      %v1676 = vpop.f32.mrf.mxu0
      %v1677 = vadd.f32 0.0, %v1676
      %v1678 = vpop.f32.mrf.mxu0
      %1679 = vdwg.mxu0
      %1680 = vmatpush.bf16.msra.mxu0 0
      %1681 = vmatpush.bf16.msra.mxu0 0
      %1682 = vmatpush.bf16.msra.mxu0 0
      %1683 = vmatpush.bf16.msra.mxu0 0
      %1684 = vmatpush.bf16.msra.mxu0 0
      %1685 = vmatpush.bf16.msra.mxu0 0
      %1686 = vmatpush.bf16.msra.mxu0 0
      %1687 = vmatpush.bf16.msra.mxu0 %v535
      %1688 = vmatmul.bf16.gmra.mxu0 %v1569
      %v1689 = vpop.f32.mrf.mxu0
      %v1690 = vadd.f32 %v1617, %v1689
      %v1691 = vpop.f32.mrf.mxu0
      %v1692 = vadd.f32 %v1619, %v1691
      %1693 = vmatmul.bf16.gmra.mxu0 %v1572
      %v1694 = vpop.f32.mrf.mxu0
      %v1695 = vadd.f32 %v1622, %v1694
      %v1696 = vpop.f32.mrf.mxu0
      %v1697 = vadd.f32 %v1624, %v1696
      %1698 = vmatmul.bf16.gmra.mxu0 %v1575
      %v1699 = vpop.f32.mrf.mxu0
      %v1700 = vadd.f32 %v1627, %v1699
      %v1701 = vpop.f32.mrf.mxu0
      %v1702 = vadd.f32 %v1629, %v1701
      %1703 = vmatmul.bf16.gmra.mxu0 %v1578
      %v1704 = vpop.f32.mrf.mxu0
      %v1705 = vadd.f32 %v1632, %v1704
      %v1706 = vpop.f32.mrf.mxu0
      %v1707 = vadd.f32 %v1634, %v1706
      %1708 = vmatmul.bf16.gmra.mxu0 %v1581
      %v1709 = vpop.f32.mrf.mxu0
      %v1710 = vadd.f32 %v1637, %v1709
      %v1711 = vpop.f32.mrf.mxu0
      %v1712 = vadd.f32 %v1639, %v1711
      %1713 = vmatmul.bf16.gmra.mxu0 %v1584
      %v1714 = vpop.f32.mrf.mxu0
      %v1715 = vadd.f32 %v1642, %v1714
      %v1716 = vpop.f32.mrf.mxu0
      %v1717 = vadd.f32 %v1644, %v1716
      %1718 = vmatmul.bf16.gmra.mxu0 %v1587
      %v1719 = vpop.f32.mrf.mxu0
      %v1720 = vadd.f32 %v1647, %v1719
      %v1721 = vpop.f32.mrf.mxu0
      %v1722 = vadd.f32 %v1649, %v1721
      %1723 = vmatmul.bf16.gmra.mxu0 %v1590
      %v1724 = vpop.f32.mrf.mxu0
      %v1725 = vadd.f32 %v1652, %v1724
      %v1726 = vpop.f32.mrf.mxu0
      %v1727 = vadd.f32 %v1654, %v1726
      %1728 = vmatmul.bf16.gmra.mxu0 %v1593
      %v1729 = vpop.f32.mrf.mxu0
      %v1730 = vadd.f32 %v1657, %v1729
      %v1731 = vpop.f32.mrf.mxu0
      %v1732 = vadd.f32 %v1659, %v1731
      %1733 = vmatmul.bf16.gmra.mxu0 %v1596
      %v1734 = vpop.f32.mrf.mxu0
      %v1735 = vadd.f32 %v1662, %v1734
      %v1736 = vpop.f32.mrf.mxu0
      %v1737 = vadd.f32 %v1664, %v1736
      %1738 = vmatmul.bf16.gmra.mxu0 %v1599
      %v1739 = vpop.f32.mrf.mxu0
      %v1740 = vadd.f32 %v1667, %v1739
      %v1741 = vpop.f32.mrf.mxu0
      %v1742 = vadd.f32 %v1669, %v1741
      %1743 = vmatmul.bf16.gmra.mxu0 %v1602
      %v1744 = vpop.f32.mrf.mxu0
      %v1745 = vadd.f32 %v1672, %v1744
      %v1746 = vpop.f32.mrf.mxu0
      %v1747 = vadd.f32 %v1674, %v1746
      %1748 = vmatmul.bf16.gmra.mxu0 %v1605
      %v1749 = vpop.f32.mrf.mxu0
      %v1750 = vadd.f32 %v1677, %v1749
      %v1751 = vpop.f32.mrf.mxu0
      %1752 = vdwg.mxu0
      %v1753 = vmax.f32 %v1404, %v1690
      %v1754 = vmax.f32 %v1405, %v1692
      %v1755 = vmax.f32 %v1406, %v1695
      %v1756 = vmax.f32 %v1407, %v1697
      %v1757 = vmax.f32 %v1408, %v1700
      %v1758 = vmax.f32 %v1409, %v1702
      %v1759 = vmax.f32 %v1410, %v1705
      %v1760 = vmax.f32 %v1411, %v1707
      %v1761 = vmax.f32 %v1412, %v1710
      %v1762 = vmax.f32 %v1413, %v1712
      %v1763 = vmax.f32 %v1414, %v1715
      %v1764 = vmax.f32 %v1415, %v1717
      %v1765 = vmax.f32 %v1416, %v1720
      %v1766 = vmax.f32 %v1417, %v1722
      %v1767 = vmax.f32 %v1418, %v1725
      %v1768 = vmax.f32 %v1419, %v1727
      %v1769 = vmax.f32 %v1420, %v1730
      %v1770 = vmax.f32 %v1421, %v1732
      %v1771 = vmax.f32 %v1422, %v1735
      %v1772 = vmax.f32 %v1423, %v1737
      %v1773 = vmax.f32 %v1424, %v1740
      %v1774 = vmax.f32 %v1425, %v1742
      %v1775 = vmax.f32 %v1426, %v1745
      %v1776 = vmax.f32 %v1427, %v1747
      %v1777 = vmax.f32 %v1428, %v1750
      %v1778 = vld [vmem:[%s5] sm:$0x1]
      %v1780 = vperm.slane %v1778, 0
      %v1782 = vadd.f32 %v1753, %v1780
      %v1783 = vadd.f32 %v1754, %v1780
      %v1784 = vadd.f32 %v1755, %v1780
      %v1785 = vadd.f32 %v1756, %v1780
      %v1786 = vadd.f32 %v1757, %v1780
      %v1787 = vadd.f32 %v1758, %v1780
      %v1788 = vadd.f32 %v1759, %v1780
      %v1789 = vadd.f32 %v1760, %v1780
      %v1790 = vadd.f32 %v1761, %v1780
      %v1791 = vadd.f32 %v1762, %v1780
      %v1792 = vadd.f32 %v1763, %v1780
      %v1793 = vadd.f32 %v1764, %v1780
      %v1794 = vadd.f32 %v1765, %v1780
      %v1795 = vadd.f32 %v1766, %v1780
      %v1796 = vadd.f32 %v1767, %v1780
      %v1797 = vadd.f32 %v1768, %v1780
      %v1798 = vadd.f32 %v1769, %v1780
      %v1799 = vadd.f32 %v1770, %v1780
      %v1800 = vadd.f32 %v1771, %v1780
      %v1801 = vadd.f32 %v1772, %v1780
      %v1802 = vadd.f32 %v1773, %v1780
      %v1803 = vadd.f32 %v1774, %v1780
      %v1804 = vadd.f32 %v1775, %v1780
      %v1805 = vadd.f32 %v1776, %v1780
      %v1806 = vadd.f32 %v1777, %v1780
      %v1807 = vmax.f32 %v1782, 0.0
      %v1808 = vmax.f32 %v1783, 0.0
      %v1809 = vmax.f32 %v1784, 0.0
      %v1810 = vmax.f32 %v1785, 0.0
      %v1811 = vmax.f32 %v1786, 0.0
      %v1812 = vmax.f32 %v1787, 0.0
      %v1813 = vmax.f32 %v1788, 0.0
      %v1814 = vmax.f32 %v1789, 0.0
      %v1815 = vmax.f32 %v1790, 0.0
      %v1816 = vmax.f32 %v1791, 0.0
      %v1817 = vmax.f32 %v1792, 0.0
      %v1818 = vmax.f32 %v1793, 0.0
      %v1819 = vmax.f32 %v1794, 0.0
      %v1820 = vmax.f32 %v1795, 0.0
      %v1821 = vmax.f32 %v1796, 0.0
      %v1822 = vmax.f32 %v1797, 0.0
      %v1823 = vmax.f32 %v1798, 0.0
      %v1824 = vmax.f32 %v1799, 0.0
      %v1825 = vmax.f32 %v1800, 0.0
      %v1826 = vmax.f32 %v1801, 0.0
      %v1827 = vmax.f32 %v1802, 0.0
      %v1828 = vmax.f32 %v1803, 0.0
      %v1829 = vmax.f32 %v1804, 0.0
      %v1830 = vmax.f32 %v1805, 0.0
      %v1831 = vmax.f32 %v1806, 0.0
      %v1832 = vpack.c.bf16 %v1807, %v1807
      %v1833 = vpack.c.bf16 %v1808, %v1808
      %v1834 = vpack.c.bf16 %v1809, %v1809
      %v1835 = vpack.c.bf16 %v1810, %v1810
      %v1836 = vpack.c.bf16 %v1811, %v1811
      %v1837 = vpack.c.bf16 %v1812, %v1812
      %v1838 = vpack.c.bf16 %v1813, %v1813
      %v1839 = vpack.c.bf16 %v1814, %v1814
      %v1840 = vpack.c.bf16 %v1815, %v1815
      %v1841 = vpack.c.bf16 %v1816, %v1816
      %v1842 = vpack.c.bf16 %v1817, %v1817
      %v1843 = vpack.c.bf16 %v1818, %v1818
      %v1844 = vpack.c.bf16 %v1819, %v1819
      %v1845 = vpack.c.bf16 %v1820, %v1820
      %v1846 = vpack.c.bf16 %v1821, %v1821
      %v1847 = vpack.c.bf16 %v1822, %v1822
      %v1848 = vpack.c.bf16 %v1823, %v1823
      %v1849 = vpack.c.bf16 %v1824, %v1824
      %v1850 = vpack.c.bf16 %v1825, %v1825
      %v1851 = vpack.c.bf16 %v1826, %v1826
      %v1852 = vpack.c.bf16 %v1827, %v1827
      %v1853 = vpack.c.bf16 %v1828, %v1828
      %v1854 = vpack.c.bf16 %v1829, %v1829
      %v1855 = vpack.c.bf16 %v1830, %v1830
      %v1856 = vpack.c.bf16 %v1831, %v1831
      %vm1857 = vcmask 257024
      %1858 = vst.msk [vmem:[%s331] sm:$0xf] %vm1857, %v1832
      %1859 = vst.msk [vmem:[%s331 + $0x4] sm:$0xf] %vm1857, %v1833
      %1860 = vst.msk [vmem:[%s331 + $0x8] sm:$0xf] %vm1857, %v1834
      %1861 = vst.msk [vmem:[%s331 + $0xc] sm:$0xf] %vm1857, %v1835
      %1862 = vst.msk [vmem:[%s331 + $0x10] sm:$0xf] %vm1857, %v1836
      %1863 = vst.msk [vmem:[%s331 + $0x14] sm:$0xf] %vm1857, %v1837
      %1864 = vst.msk [vmem:[%s331 + $0x18] sm:$0xf] %vm1857, %v1838
      %1865 = vst.msk [vmem:[%s331 + $0x1c] sm:$0xf] %vm1857, %v1839
      %1866 = vst.msk [vmem:[%s331 + $0x20] sm:$0xf] %vm1857, %v1840
      %1867 = vst.msk [vmem:[%s331 + $0x24] sm:$0xf] %vm1857, %v1841
      %1868 = vst.msk [vmem:[%s331 + $0x28] sm:$0xf] %vm1857, %v1842
      %1869 = vst.msk [vmem:[%s331 + $0x2c] sm:$0xf] %vm1857, %v1843
      %1870 = vst.msk [vmem:[%s331 + $0x30] sm:$0xf] %vm1857, %v1844
      %1871 = vst.msk [vmem:[%s331 + $0x34] sm:$0xf] %vm1857, %v1845
      %1872 = vst.msk [vmem:[%s331 + $0x38] sm:$0xf] %vm1857, %v1846
      %1873 = vst.msk [vmem:[%s331 + $0x3c] sm:$0xf] %vm1857, %v1847
      %1874 = vst.msk [vmem:[%s331 + $0x40] sm:$0xf] %vm1857, %v1848
      %1875 = vst.msk [vmem:[%s331 + $0x44] sm:$0xf] %vm1857, %v1849
      %1876 = vst.msk [vmem:[%s331 + $0x48] sm:$0xf] %vm1857, %v1850
      %1877 = vst.msk [vmem:[%s331 + $0x4c] sm:$0xf] %vm1857, %v1851
      %1878 = vst.msk [vmem:[%s331 + $0x50] sm:$0xf] %vm1857, %v1852
      %1879 = vst.msk [vmem:[%s331 + $0x54] sm:$0xf] %vm1857, %v1853
      %1880 = vst.msk [vmem:[%s331 + $0x58] sm:$0xf] %vm1857, %v1854
      %1881 = vst.msk [vmem:[%s331 + $0x5c] sm:$0xf] %vm1857, %v1855
      %1882 = vst.msk [vmem:[%s331 + $0x60] sm:$0xf] %vm1857, %v1856
      %s1883 = smul.u32 25, %s17
      %p1884 = scmp.lt.s32.totalorder %s1883, 49
      %s1885 = scalar_select %p1884, %s1883, 49
      %s1886 = smul.addr %s1885, 4
      %s1887 = scalar_lea.vmem %s6, %s1886
      // Predicated region
      $region45: #{net_forward.5} parent=43 // pred_check
        %p1888 = pneg %p181
      $region46: #{net_forward.5} parent=43 // pred_check_branch
        %1890 = sbr.rel (%p1888) target = $region48
      $region47: #{net_forward.5} parent=43 // pred_region
        %s1891 = smul.u32 25, %s17
      $region48: #{net_forward.5} parent=43 // pred_fallthru
        _
    $region44: #{net_forward.5} parent=5 // pred_fallthru
      _
    %p1892 = scmp.le.s32.totalorder 2, %s12
    // Predicated region
    $region49: #{net_forward.5} parent=5 // pred_check
      %p1893 = pneg %p1892
    $region50: #{net_forward.5} parent=5 // pred_check_branch
      %1895 = sbr.rel (%p1893) target = $region52
    $region51: #{net_forward.5} parent=5 // pred_region
      %s1896 = ssub.s32 %s12, 2
      // Predicated region
      $region53: #{net_forward.5} parent=51 // pred_check
        %p1897 = pneg %p187
      $region54: #{net_forward.5} parent=51 // pred_check_branch
        %1899 = sbr.rel (%p1897) target = $region56
      $region55: #{net_forward.5} parent=51 // pred_region
        %s1900 = smul.u32 25, %s18
        %p1901 = scmp.lt.s32.totalorder %s1900, 49
        %s1902 = scalar_select %p1901, %s1900, 49
        %s1903 = smul.addr %s1902, 4
        %s1904 = scalar_lea.vmem %s6, %s1903
      $region56: #{net_forward.5} parent=51 // pred_fallthru
        _
    $region52: #{net_forward.5} parent=5 // pred_fallthru
      _
  $region6: #{net_forward.5} parent=0 // loop_footer
    %s16 = sadd.s32 1, %s12
  $region7: #{net_forward.5} parent=0 // loop_footer_branch
    %11 = sbr.rel target = $region3
  $region8: #{net_forward.5} parent=0 // loop_exit
    _

// kernel: net_forward.6
$region0: #{net_forward.6}
  #allocation0 [shape = 'u32[]', space=smem, size = 0x4, offset = 0x4, fixed_abs, tag = 'smem constant byte address 0x4 - core index']
  #allocation1 [shape = 'u32[72,128]{1,0:T(1,128)}', space=vmem, size = 0x9000, scoped, tag = 'internal scratch']
  %s0 = inlined_call_operand.vmem [shape: bf16[112,288], index: 0, kind: input, shape index: {}]
  %s1 = inlined_call_operand.vmem [shape: bf16[112,288], index: 1, kind: input, shape index: {}]
  %s2 = inlined_call_operand.vmem [shape: bf16[112,288], index: 2, kind: input, shape index: {}]
  %s3 = inlined_call_operand.vmem [shape: bf16[112,288], index: 3, kind: input, shape index: {}]
  %s4 = inlined_call_operand.vmem [shape: bf16[288,64], index: 4, kind: input, shape index: {}]
  %s5 = inlined_call_operand.vmem [shape: f32[1,64], index: 5, kind: input, shape index: {}]
  %s6 = inlined_call_operand.vmem [shape: bf16[112,64], index: 6, kind: output, shape index: {}]
  %s7 = sld [smem:[#allocation0]]
  $region57: #{net_forward.6} parent=0
    _
  %s9 = ssub.s32 1, %s7
  %s10 = scalar_select 0, %s9, %s7
  loop: start=0, step=1, limit=4
  $region2: #{net_forward.6} parent=0 // loop_pre_header
    _
  $region3: #{net_forward.6} parent=0 // loop_header
    %s12 = sphi 0, %s16
    %p13 = scmp.ge.s32.totalorder %s12, 4
    %s22 = sphi 0, %s24
    %s25 = sphi 0, %s22
    %s26 = sphi 0, %s25
    %s42 = sphi 0, %s26
    %s48 = sphi 0, %s50
    %s51 = sphi 0, %s48
    %s52 = sphi 0, %s51
    %s68 = sphi 0, %s52
    %s74 = sphi 0, %s76
    %s77 = sphi 0, %s74
    %s78 = sphi 0, %s77
    %s94 = sphi 0, %s78
    %s100 = sphi 0, %s102
    %s103 = sphi 0, %s100
    %s104 = sphi 0, %s103
    %s120 = sphi 0, %s104
    %s124 = sphi 0, %s124
    %s126 = sphi 0, %s124
    %s127 = sphi 0, %s126
    %s141 = sphi 0, %s127
    %s145 = sphi 0, %s145
    %s147 = sphi 0, %s145
    %s148 = sphi 0, %s147
    %s162 = sphi 0, %s148
    %s168 = sphi 0, %s170
    %s171 = sphi 0, %s168
    %s172 = sphi 0, %s171
    %s188 = sphi 0, %s172
  $region4: #{net_forward.6} parent=0 // loop_header_branch
    %15 = sbr.rel (%p13) target = $region8
  $region5: #{net_forward.6} parent=0 // loop_body
    %s17 = ssub.s32 %s12, 1
    %s18 = ssub.s32 %s12, 2
    %s19 = sadd.s32 %s12, 1
    %s20 = ssub.s32 %s12, %s19
    %p21 = scmp.eq.s32.totalorder %s20, 0
    %s23 = sadd.s32 %s22, 1
    %s24 = scalar_select %p21, %s22, %s23
    %p27 = pneg %p21
    %p28 = scmp.eq.s32.totalorder %s12, 1
    %p29 = por %p27, %p28
    %p30 = scmp.ne.s32.totalorder %s22, %s25
    %p31 = scmp.eq.s32.totalorder %s12, 0
    %p32 = por %p30, %p31
    %p33 = scmp.ne.s32.totalorder %s22, %s25
    %p34 = scmp.eq.s32.totalorder %s17, 1
    %p35 = por %p33, %p34
    %p36 = scmp.ne.s32.totalorder %s25, %s26
    %p37 = scmp.eq.s32.totalorder %s17, 0
    %p38 = por %p36, %p37
    %p39 = scmp.ne.s32.totalorder %s25, %s26
    %p40 = scmp.eq.s32.totalorder %s18, 1
    %p41 = por %p39, %p40
    %p43 = scmp.ne.s32.totalorder %s26, %s42
    %p44 = scmp.eq.s32.totalorder %s18, 0
    %p45 = por %p43, %p44
    %s46 = ssub.s32 %s12, %s19
    %p47 = scmp.eq.s32.totalorder %s46, 0
    %s49 = sadd.s32 %s48, 1
    %s50 = scalar_select %p47, %s48, %s49
    %p53 = pneg %p47
    %p54 = scmp.eq.s32.totalorder %s12, 1
    %p55 = por %p53, %p54
    %p56 = scmp.ne.s32.totalorder %s48, %s51
    %p57 = scmp.eq.s32.totalorder %s12, 0
    %p58 = por %p56, %p57
    %p59 = scmp.ne.s32.totalorder %s48, %s51
    %p60 = scmp.eq.s32.totalorder %s17, 1
    %p61 = por %p59, %p60
    %p62 = scmp.ne.s32.totalorder %s51, %s52
    %p63 = scmp.eq.s32.totalorder %s17, 0
    %p64 = por %p62, %p63
    %p65 = scmp.ne.s32.totalorder %s51, %s52
    %p66 = scmp.eq.s32.totalorder %s18, 1
    %p67 = por %p65, %p66
    %p69 = scmp.ne.s32.totalorder %s52, %s68
    %p70 = scmp.eq.s32.totalorder %s18, 0
    %p71 = por %p69, %p70
    %s72 = ssub.s32 %s12, %s19
    %p73 = scmp.eq.s32.totalorder %s72, 0
    %s75 = sadd.s32 %s74, 1
    %s76 = scalar_select %p73, %s74, %s75
    %p79 = pneg %p73
    %p80 = scmp.eq.s32.totalorder %s12, 1
    %p81 = por %p79, %p80
    %p82 = scmp.ne.s32.totalorder %s74, %s77
    %p83 = scmp.eq.s32.totalorder %s12, 0
    %p84 = por %p82, %p83
    %p85 = scmp.ne.s32.totalorder %s74, %s77
    %p86 = scmp.eq.s32.totalorder %s17, 1
    %p87 = por %p85, %p86
    %p88 = scmp.ne.s32.totalorder %s77, %s78
    %p89 = scmp.eq.s32.totalorder %s17, 0
    %p90 = por %p88, %p89
    %p91 = scmp.ne.s32.totalorder %s77, %s78
    %p92 = scmp.eq.s32.totalorder %s18, 1
    %p93 = por %p91, %p92
    %p95 = scmp.ne.s32.totalorder %s78, %s94
    %p96 = scmp.eq.s32.totalorder %s18, 0
    %p97 = por %p95, %p96
    %s98 = ssub.s32 %s12, %s19
    %p99 = scmp.eq.s32.totalorder %s98, 0
    %s101 = sadd.s32 %s100, 1
    %s102 = scalar_select %p99, %s100, %s101
    %p105 = pneg %p99
    %p106 = scmp.eq.s32.totalorder %s12, 1
    %p107 = por %p105, %p106
    %p108 = scmp.ne.s32.totalorder %s100, %s103
    %p109 = scmp.eq.s32.totalorder %s12, 0
    %p110 = por %p108, %p109
    %p111 = scmp.ne.s32.totalorder %s100, %s103
    %p112 = scmp.eq.s32.totalorder %s17, 1
    %p113 = por %p111, %p112
    %p114 = scmp.ne.s32.totalorder %s103, %s104
    %p115 = scmp.eq.s32.totalorder %s17, 0
    %p116 = por %p114, %p115
    %p117 = scmp.ne.s32.totalorder %s103, %s104
    %p118 = scmp.eq.s32.totalorder %s18, 1
    %p119 = por %p117, %p118
    %p121 = scmp.ne.s32.totalorder %s104, %s120
    %p122 = scmp.eq.s32.totalorder %s18, 0
    %p123 = por %p121, %p122
    %s125 = sadd.s32 %s124, 1
    %p128 = scmp.eq.s32.totalorder %s12, 1
    %p129 = scmp.ne.s32.totalorder %s124, %s126
    %p130 = scmp.eq.s32.totalorder %s12, 0
    %p131 = por %p129, %p130
    %p132 = scmp.ne.s32.totalorder %s124, %s126
    %p133 = scmp.eq.s32.totalorder %s17, 1
    %p134 = por %p132, %p133
    %p135 = scmp.ne.s32.totalorder %s126, %s127
    %p136 = scmp.eq.s32.totalorder %s17, 0
    %p137 = por %p135, %p136
    %p138 = scmp.ne.s32.totalorder %s126, %s127
    %p139 = scmp.eq.s32.totalorder %s18, 1
    %p140 = por %p138, %p139
    %p142 = scmp.ne.s32.totalorder %s127, %s141
    %p143 = scmp.eq.s32.totalorder %s18, 0
    %p144 = por %p142, %p143
    %s146 = sadd.s32 %s145, 1
    %p149 = scmp.eq.s32.totalorder %s12, 1
    %p150 = scmp.ne.s32.totalorder %s145, %s147
    %p151 = scmp.eq.s32.totalorder %s12, 0
    %p152 = por %p150, %p151
    %p153 = scmp.ne.s32.totalorder %s145, %s147
    %p154 = scmp.eq.s32.totalorder %s17, 1
    %p155 = por %p153, %p154
    %p156 = scmp.ne.s32.totalorder %s147, %s148
    %p157 = scmp.eq.s32.totalorder %s17, 0
    %p158 = por %p156, %p157
    %p159 = scmp.ne.s32.totalorder %s147, %s148
    %p160 = scmp.eq.s32.totalorder %s18, 1
    %p161 = por %p159, %p160
    %p163 = scmp.ne.s32.totalorder %s148, %s162
    %p164 = scmp.eq.s32.totalorder %s18, 0
    %p165 = por %p163, %p164
    %s166 = ssub.s32 %s12, %s19
    %p167 = scmp.eq.s32.totalorder %s166, 0
    %s169 = sadd.s32 %s168, 1
    %s170 = scalar_select %p167, %s168, %s169
    %p173 = pneg %p167
    %p174 = scmp.eq.s32.totalorder %s12, 1
    %p175 = por %p173, %p174
    %p176 = scmp.ne.s32.totalorder %s168, %s171
    %p177 = scmp.eq.s32.totalorder %s12, 0
    %p178 = por %p176, %p177
    %p179 = scmp.ne.s32.totalorder %s168, %s171
    %p180 = scmp.eq.s32.totalorder %s17, 1
    %p181 = por %p179, %p180
    %p182 = scmp.ne.s32.totalorder %s171, %s172
    %p183 = scmp.eq.s32.totalorder %s17, 0
    %p184 = por %p182, %p183
    %p185 = scmp.ne.s32.totalorder %s171, %s172
    %p186 = scmp.eq.s32.totalorder %s18, 1
    %p187 = por %p185, %p186
    %p189 = scmp.ne.s32.totalorder %s172, %s188
    %p190 = scmp.eq.s32.totalorder %s18, 0
    %p191 = por %p189, %p190
    %p192 = scmp.le.s32.totalorder 1, %s12
    %p193 = scmp.lt.s32.totalorder %s12, 3
    %p194 = pnand %p192, %p193
    %p195 = pneg %p194
    // Predicated region
    $region9: #{net_forward.6} parent=5 // pred_check
      _
    $region10: #{net_forward.6} parent=5 // pred_check_branch
      %197 = sbr.rel (%p194) target = $region12
    $region11: #{net_forward.6} parent=5 // pred_region
      %s198 = ssub.s32 %s12, 1
      // Predicated region
      $region13: #{net_forward.6} parent=11 // pred_check
        %p199 = pneg %p137
      $region14: #{net_forward.6} parent=11 // pred_check_branch
        %201 = sbr.rel (%p199) target = $region16
      $region15: #{net_forward.6} parent=11 // pred_region
        _
      $region16: #{net_forward.6} parent=11 // pred_fallthru
        _
      // Predicated region
      $region17: #{net_forward.6} parent=11 // pred_check
        %p202 = pneg %p158
      $region18: #{net_forward.6} parent=11 // pred_check_branch
        %204 = sbr.rel (%p202) target = $region20
      $region19: #{net_forward.6} parent=11 // pred_region
        _
      $region20: #{net_forward.6} parent=11 // pred_fallthru
        _
    $region12: #{net_forward.6} parent=5 // pred_fallthru
      _
    %p205 = scmp.lt.s32.totalorder %s12, 2
    // Predicated region
    $region21: #{net_forward.6} parent=5 // pred_check
      %p206 = pneg %p205
    $region22: #{net_forward.6} parent=5 // pred_check_branch
      %208 = sbr.rel (%p206) target = $region24
    $region23: #{net_forward.6} parent=5 // pred_region
      // Predicated region
      $region25: #{net_forward.6} parent=23 // pred_check
        %p209 = pneg %p32
      $region26: #{net_forward.6} parent=23 // pred_check_branch
        %211 = sbr.rel (%p209) target = $region28
      $region27: #{net_forward.6} parent=23 // pred_region
        %s212 = smul.u32 7, %s12
        %p213 = scmp.lt.s32.totalorder %s212, 13
        %s214 = scalar_select %p213, %s212, 13
        %s215 = smul.addr %s214, 3
        %s216 = smul.addr %s215, 4
        %s217 = scalar_lea.vmem %s0, %s216
        %s218 = smul.u32 7, %s12
      $region28: #{net_forward.6} parent=23 // pred_fallthru
        _
      // Predicated region
      $region29: #{net_forward.6} parent=23 // pred_check
        %p219 = pneg %p58
      $region30: #{net_forward.6} parent=23 // pred_check_branch
        %221 = sbr.rel (%p219) target = $region32
      $region31: #{net_forward.6} parent=23 // pred_region
        %s222 = smul.u32 7, %s12
        %p223 = scmp.lt.s32.totalorder %s222, 13
        %s224 = scalar_select %p223, %s222, 13
        %s225 = smul.addr %s224, 3
        %s226 = smul.addr %s225, 4
        %s227 = scalar_lea.vmem %s1, %s226
        %s228 = smul.u32 7, %s12
      $region32: #{net_forward.6} parent=23 // pred_fallthru
        _
      // Predicated region
      $region33: #{net_forward.6} parent=23 // pred_check
        %p229 = pneg %p84
      $region34: #{net_forward.6} parent=23 // pred_check_branch
        %231 = sbr.rel (%p229) target = $region36
      $region35: #{net_forward.6} parent=23 // pred_region
        %s232 = smul.u32 7, %s12
        %p233 = scmp.lt.s32.totalorder %s232, 13
        %s234 = scalar_select %p233, %s232, 13
        %s235 = smul.addr %s234, 3
        %s236 = smul.addr %s235, 4
        %s237 = scalar_lea.vmem %s2, %s236
        %s238 = smul.u32 7, %s12
      $region36: #{net_forward.6} parent=23 // pred_fallthru
        _
      // Predicated region
      $region37: #{net_forward.6} parent=23 // pred_check
        %p239 = pneg %p110
      $region38: #{net_forward.6} parent=23 // pred_check_branch
        %241 = sbr.rel (%p239) target = $region40
      $region39: #{net_forward.6} parent=23 // pred_region
        %s242 = smul.u32 7, %s12
        %p243 = scmp.lt.s32.totalorder %s242, 13
        %s244 = scalar_select %p243, %s242, 13
        %s245 = smul.addr %s244, 3
        %s246 = smul.addr %s245, 4
        %s247 = scalar_lea.vmem %s3, %s246
        %s248 = smul.u32 7, %s12
      $region40: #{net_forward.6} parent=23 // pred_fallthru
        _
    $region24: #{net_forward.6} parent=5 // pred_fallthru
      _
    %p249 = scmp.le.s32.totalorder 1, %s12
    %p250 = scmp.lt.s32.totalorder %s12, 3
    %p251 = pnand %p249, %p250
    %p252 = pneg %p251
    // Predicated region
    $region41: #{net_forward.6} parent=5 // pred_check
      _
    $region42: #{net_forward.6} parent=5 // pred_check_branch
      %254 = sbr.rel (%p251) target = $region44
    $region43: #{net_forward.6} parent=5 // pred_region
      %s255 = ssub.s32 %s12, 1
      %s256 = smul.u32 7, %s17
      %p257 = scmp.lt.s32.totalorder %s256, 13
      %s258 = scalar_select %p257, %s256, 13
      %s259 = smul.addr %s258, 3
      %s260 = smul.addr %s259, 4
      %s261 = scalar_lea.vmem %s0, %s260
      %p262 = pneg %p38
      %p263 = pneg %p35
      %s264 = smul.u32 7, %s17
      %p265 = scmp.lt.s32.totalorder %s264, 13
      %s266 = scalar_select %p265, %s264, 13
      %s267 = smul.addr %s266, 3
      %s268 = smul.addr %s267, 4
      %s269 = scalar_lea.vmem %s1, %s268
      %p270 = pneg %p64
      %p271 = pneg %p61
      %s272 = smul.u32 7, %s17
      %p273 = scmp.lt.s32.totalorder %s272, 13
      %s274 = scalar_select %p273, %s272, 13
      %s275 = smul.addr %s274, 3
      %s276 = smul.addr %s275, 4
      %s277 = scalar_lea.vmem %s2, %s276
      %p278 = pneg %p90
      %p279 = pneg %p87
      %s280 = smul.u32 7, %s17
      %p281 = scmp.lt.s32.totalorder %s280, 13
      %s282 = scalar_select %p281, %s280, 13
      %s283 = smul.addr %s282, 3
      %s284 = smul.addr %s283, 4
      %s285 = scalar_lea.vmem %s3, %s284
      %p286 = pneg %p116
      %p287 = pneg %p113
      %p288 = pneg %p137
      %p289 = pneg %p134
      %p290 = pneg %p158
      %p291 = pneg %p155
      %p292 = pneg %p184
      %p293 = pneg %p181
      %s294 = smul.u32 7, %s17
      %p295 = scmp.lt.s32.totalorder %s294, 13
      %s296 = scalar_select %p295, %s294, 13
      %s297 = smul.addr %s296, 4
      %s298 = scalar_lea.vmem %s6, %s297
      %s299 = smul.u32 7, %s17
      %p300 = scmp.lt.s32.totalorder %s299, 13
      %s301 = scalar_select %p300, %s299, 13
      %s302 = smul.addr %s301, 3
      %s303 = smul.addr %s302, 4
      %s304 = scalar_lea.vmem %s0, %s303
      %s305 = smul.u32 7, %s17
      %s306 = smul.u32 7, %s17
      %p307 = scmp.lt.s32.totalorder %s306, 13
      %s308 = scalar_select %p307, %s306, 13
      %s309 = smul.addr %s308, 3
      %s310 = smul.addr %s309, 4
      %s311 = scalar_lea.vmem %s1, %s310
      %s312 = smul.u32 7, %s17
      %s313 = smul.u32 7, %s17
      %p314 = scmp.lt.s32.totalorder %s313, 13
      %s315 = scalar_select %p314, %s313, 13
      %s316 = smul.addr %s315, 3
      %s317 = smul.addr %s316, 4
      %s318 = scalar_lea.vmem %s2, %s317
      %s319 = smul.u32 7, %s17
      %s320 = smul.u32 7, %s17
      %p321 = scmp.lt.s32.totalorder %s320, 13
      %s322 = scalar_select %p321, %s320, 13
      %s323 = smul.addr %s322, 3
      %s324 = smul.addr %s323, 4
      %s325 = scalar_lea.vmem %s3, %s324
      %s326 = smul.u32 7, %s17
      %s327 = smul.u32 7, %s17
      %p328 = scmp.lt.s32.totalorder %s327, 13
      %s329 = scalar_select %p328, %s327, 13
      %s330 = smul.addr %s329, 4
      %s331 = scalar_lea.vmem %s6, %s330
      %s332 = smul.u32 7, %s17
      %v334 = vld [vmem:[%s4] sm:$0xf]
      %v335 = vld [vmem:[%s4 + $0x4] sm:$0xf]
      %v336 = vld [vmem:[%s4 + $0x8] sm:$0xf]
      %v337 = vld [vmem:[%s4 + $0xc] sm:$0xf]
      %v338 = vld [vmem:[%s4 + $0x10] sm:$0xf]
      %v339 = vld [vmem:[%s4 + $0x14] sm:$0xf]
      %v340 = vld [vmem:[%s4 + $0x18] sm:$0xf]
      %v341 = vld [vmem:[%s4 + $0x1c] sm:$0xf]
      %v342 = vld [vmem:[%s4 + $0x20] sm:$0xf]
      %v343 = vld [vmem:[%s4 + $0x24] sm:$0xf]
      %v344 = vld [vmem:[%s4 + $0x28] sm:$0xf]
      %v345 = vld [vmem:[%s4 + $0x2c] sm:$0xf]
      %v346 = vld [vmem:[%s4 + $0x30] sm:$0xf]
      %v347 = vld [vmem:[%s4 + $0x34] sm:$0xf]
      %v348 = vld [vmem:[%s4 + $0x38] sm:$0xf]
      %v349 = vld [vmem:[%s4 + $0x3c] sm:$0xf]
      %v350 = vld [vmem:[%s4 + $0x40] sm:$0xf]
      %v351 = vld [vmem:[%s4 + $0x44] sm:$0xf]
      %v352 = vld [vmem:[%s4 + $0x48] sm:$0xf]
      %v353 = vld [vmem:[%s4 + $0x4c] sm:$0xf]
      %v354 = vld [vmem:[%s4 + $0x50] sm:$0xf]
      %v355 = vld [vmem:[%s4 + $0x54] sm:$0xf]
      %v356 = vld [vmem:[%s4 + $0x58] sm:$0xf]
      %v357 = vld [vmem:[%s4 + $0x5c] sm:$0xf]
      %v358 = vld [vmem:[%s4 + $0x60] sm:$0xf]
      %v359 = vld [vmem:[%s4 + $0x64] sm:$0xf]
      %v360 = vld [vmem:[%s4 + $0x68] sm:$0xf]
      %v361 = vld [vmem:[%s4 + $0x6c] sm:$0xf]
      %v362 = vld [vmem:[%s4 + $0x70] sm:$0xf]
      %v363 = vld [vmem:[%s4 + $0x74] sm:$0xf]
      %v364 = vld [vmem:[%s4 + $0x78] sm:$0xf]
      %v365 = vld [vmem:[%s4 + $0x7c] sm:$0xf]
      %v366 = vld [vmem:[%s4 + $0x80] sm:$0xf]
      %v367 = vld [vmem:[%s4 + $0x84] sm:$0xf]
      %v368 = vld [vmem:[%s4 + $0x88] sm:$0xf]
      %v369 = vld [vmem:[%s4 + $0x8c] sm:$0xf]
      %v370 = vld [vmem:[%s304] sm:$0xff]
      %v371 = vld [vmem:[%s304 + $0x8] sm:$0xf]
      %v372 = vld [vmem:[%s304 + $0xc] sm:$0xff]
      %v373 = vld [vmem:[%s304 + $0x14] sm:$0xf]
      %v374 = vld [vmem:[%s304 + $0x18] sm:$0xff]
      %v375 = vld [vmem:[%s304 + $0x20] sm:$0xf]
      %v376 = vld [vmem:[%s304 + $0x24] sm:$0xff]
      %v377 = vld [vmem:[%s304 + $0x2c] sm:$0xf]
      %v378 = vld [vmem:[%s304 + $0x30] sm:$0xff]
      %v379 = vld [vmem:[%s304 + $0x38] sm:$0xf]
      %v380 = vld [vmem:[%s304 + $0x3c] sm:$0xff]
      %v381 = vld [vmem:[%s304 + $0x44] sm:$0xf]
      %v382 = vld [vmem:[%s304 + $0x48] sm:$0xff]
      %v383 = vld [vmem:[%s304 + $0x50] sm:$0xf]
      %v398 = vunpack.c.l.b16 %v370
      %v399 = vunpack.c.h.b16 %v370
      %v400 = vunpack.c.l.b16 %v371
      %v401 = vunpack.c.l.b16 %v372
      %v402 = vunpack.c.h.b16 %v372
      %v403 = vunpack.c.l.b16 %v373
      %v404 = vunpack.c.l.b16 %v374
      %v405 = vunpack.c.h.b16 %v374
      %v406 = vunpack.c.l.b16 %v375
      %v407 = vunpack.c.l.b16 %v376
      %v408 = vunpack.c.h.b16 %v376
      %v409 = vunpack.c.l.b16 %v377
      %v410 = vunpack.c.l.b16 %v378
      %v411 = vunpack.c.h.b16 %v378
      %v412 = vunpack.c.l.b16 %v379
      %v413 = vunpack.c.l.b16 %v380
      %v414 = vunpack.c.h.b16 %v380
      %v415 = vunpack.c.l.b16 %v381
      %v416 = vunpack.c.l.b16 %v382
      %v417 = vunpack.c.h.b16 %v382
      %v418 = vunpack.c.l.b16 %v383
      %v419 = vpack.c.b16 %v401, %v398
      %v420 = vpack.c.b16 %v402, %v399
      %v421 = vpack.c.b16 %v403, %v400
      %v422 = vpack.c.b16 %v407, %v404
      %v423 = vpack.c.b16 %v408, %v405
      %v424 = vpack.c.b16 %v409, %v406
      %v425 = vpack.c.b16 %v413, %v410
      %v426 = vpack.c.b16 %v414, %v411
      %v427 = vpack.c.b16 %v415, %v412
      %v428 = vpack.c.b16 %v416, %v416
      %v429 = vpack.c.b16 %v417, %v417
      %v430 = vpack.c.b16 %v418, %v418
      %v475 = vunpack.c.l.b16 %v334
      %v476 = vunpack.c.l.b16 %v335
      %v477 = vunpack.c.l.b16 %v336
      %v478 = vunpack.c.l.b16 %v337
      %v479 = vunpack.c.l.b16 %v338
      %v480 = vunpack.c.l.b16 %v339
      %v481 = vunpack.c.l.b16 %v340
      %v482 = vunpack.c.l.b16 %v341
      %v483 = vunpack.c.l.b16 %v342
      %v484 = vunpack.c.l.b16 %v343
      %v485 = vunpack.c.l.b16 %v344
      %v486 = vunpack.c.l.b16 %v345
      %v487 = vunpack.c.l.b16 %v346
      %v488 = vunpack.c.l.b16 %v347
      %v489 = vunpack.c.l.b16 %v348
      %v490 = vunpack.c.l.b16 %v349
      %v491 = vunpack.c.l.b16 %v350
      %v492 = vunpack.c.l.b16 %v351
      %v493 = vunpack.c.l.b16 %v352
      %v494 = vunpack.c.l.b16 %v353
      %v495 = vunpack.c.l.b16 %v354
      %v496 = vunpack.c.l.b16 %v355
      %v497 = vunpack.c.l.b16 %v356
      %v498 = vunpack.c.l.b16 %v357
      %v499 = vunpack.c.l.b16 %v358
      %v500 = vunpack.c.l.b16 %v359
      %v501 = vunpack.c.l.b16 %v360
      %v502 = vunpack.c.l.b16 %v361
      %v503 = vunpack.c.l.b16 %v362
      %v504 = vunpack.c.l.b16 %v363
      %v505 = vunpack.c.l.b16 %v364
      %v506 = vunpack.c.l.b16 %v365
      %v507 = vunpack.c.l.b16 %v366
      %v508 = vunpack.c.l.b16 %v367
      %v509 = vunpack.c.l.b16 %v368
      %v510 = vunpack.c.l.b16 %v369
      %v511 = vpack.c.b16 %v476, %v475
      %v512 = vpack.c.b16 %v478, %v477
      %v513 = vpack.c.b16 %v480, %v479
      %v514 = vpack.c.b16 %v482, %v481
      %v515 = vpack.c.b16 %v484, %v483
      %v516 = vpack.c.b16 %v486, %v485
      %v517 = vpack.c.b16 %v488, %v487
      %v518 = vpack.c.b16 %v490, %v489
      %v519 = vpack.c.b16 %v492, %v491
      %v520 = vpack.c.b16 %v494, %v493
      %v521 = vpack.c.b16 %v496, %v495
      %v522 = vpack.c.b16 %v498, %v497
      %v523 = vpack.c.b16 %v500, %v499
      %v524 = vpack.c.b16 %v502, %v501
      %v525 = vpack.c.b16 %v504, %v503
      %v526 = vpack.c.b16 %v506, %v505
      %v527 = vpack.c.b16 %v508, %v507
      %v528 = vpack.c.b16 %v510, %v509
      %vm547 = vcmask 261120
      %v549 = vsel %vm547, %v421, 0
      %v552 = vsel %vm547, %v424, 0
      %v555 = vsel %vm547, %v427, 0
      %v558 = vsel %vm547, %v430, 0
      %560 = vmatpush.bf16.msra.mxu0 %v518
      %561 = vmatpush.bf16.msra.mxu0 %v517
      %562 = vmatpush.bf16.msra.mxu0 %v516
      %563 = vmatpush.bf16.msra.mxu0 %v515
      %564 = vmatpush.bf16.msra.mxu0 %v514
      %565 = vmatpush.bf16.msra.mxu0 %v513
      %566 = vmatpush.bf16.msra.mxu0 %v512
      %567 = vmatpush.bf16.msra.mxu0 %v511
      %568 = vmatmul.bf16.gmra.mxu0 %v419
      %v569 = vpop.f32.mrf.mxu0
      %v570 = vadd.f32 0.0, %v569
      %v571 = vpop.f32.mrf.mxu0
      %v572 = vadd.f32 0.0, %v571
      %573 = vmatmul.bf16.gmra.mxu0 %v422
      %v574 = vpop.f32.mrf.mxu0
      %v575 = vadd.f32 0.0, %v574
      %v576 = vpop.f32.mrf.mxu0
      %v577 = vadd.f32 0.0, %v576
      %578 = vmatmul.bf16.gmra.mxu0 %v425
      %v579 = vpop.f32.mrf.mxu0
      %v580 = vadd.f32 0.0, %v579
      %v581 = vpop.f32.mrf.mxu0
      %v582 = vadd.f32 0.0, %v581
      %583 = vmatmul.bf16.gmra.mxu0 %v428
      %v584 = vpop.f32.mrf.mxu0
      %v585 = vadd.f32 0.0, %v584
      %v586 = vpop.f32.mrf.mxu0
      %587 = vdwg.mxu0
      %588 = vmatpush.bf16.msra.mxu0 %v526
      %589 = vmatpush.bf16.msra.mxu0 %v525
      %590 = vmatpush.bf16.msra.mxu0 %v524
      %591 = vmatpush.bf16.msra.mxu0 %v523
      %592 = vmatpush.bf16.msra.mxu0 %v522
      %593 = vmatpush.bf16.msra.mxu0 %v521
      %594 = vmatpush.bf16.msra.mxu0 %v520
      %595 = vmatpush.bf16.msra.mxu0 %v519
      %596 = vmatmul.bf16.gmra.mxu0 %v420
      %v597 = vpop.f32.mrf.mxu0
      %v598 = vadd.f32 %v570, %v597
      %v599 = vpop.f32.mrf.mxu0
      %v600 = vadd.f32 %v572, %v599
      %601 = vmatmul.bf16.gmra.mxu0 %v423
      %v602 = vpop.f32.mrf.mxu0
      %v603 = vadd.f32 %v575, %v602
      %v604 = vpop.f32.mrf.mxu0
      %v605 = vadd.f32 %v577, %v604
      %606 = vmatmul.bf16.gmra.mxu0 %v426
      %v607 = vpop.f32.mrf.mxu0
      %v608 = vadd.f32 %v580, %v607
      %v609 = vpop.f32.mrf.mxu0
      %v610 = vadd.f32 %v582, %v609
      %611 = vmatmul.bf16.gmra.mxu0 %v429
      %v612 = vpop.f32.mrf.mxu0
      %v613 = vadd.f32 %v585, %v612
      %v614 = vpop.f32.mrf.mxu0
      %615 = vdwg.mxu0
      %616 = vmatpush.bf16.msra.mxu0 0
      %617 = vmatpush.bf16.msra.mxu0 0
      %618 = vmatpush.bf16.msra.mxu0 0
      %619 = vmatpush.bf16.msra.mxu0 0
      %620 = vmatpush.bf16.msra.mxu0 0
      %621 = vmatpush.bf16.msra.mxu0 0
      %622 = vmatpush.bf16.msra.mxu0 %v528
      %623 = vmatpush.bf16.msra.mxu0 %v527
      %624 = vmatmul.bf16.gmra.mxu0 %v549
      %v625 = vpop.f32.mrf.mxu0
      %v626 = vadd.f32 %v598, %v625
      %v627 = vpop.f32.mrf.mxu0
      %v628 = vadd.f32 %v600, %v627
      %629 = vmatmul.bf16.gmra.mxu0 %v552
      %v630 = vpop.f32.mrf.mxu0
      %v631 = vadd.f32 %v603, %v630
      %v632 = vpop.f32.mrf.mxu0
      %v633 = vadd.f32 %v605, %v632
      %634 = vmatmul.bf16.gmra.mxu0 %v555
      %v635 = vpop.f32.mrf.mxu0
      %v636 = vadd.f32 %v608, %v635
      %v637 = vpop.f32.mrf.mxu0
      %v638 = vadd.f32 %v610, %v637
      %639 = vmatmul.bf16.gmra.mxu0 %v558
      %v640 = vpop.f32.mrf.mxu0
      %v641 = vadd.f32 %v613, %v640
      %v642 = vpop.f32.mrf.mxu0
      %643 = vdwg.mxu0
      %v644 = vld [vmem:[%s311] sm:$0xff]
      %v645 = vld [vmem:[%s311 + $0x8] sm:$0xf]
      %v646 = vld [vmem:[%s311 + $0xc] sm:$0xff]
      %v647 = vld [vmem:[%s311 + $0x14] sm:$0xf]
      %v648 = vld [vmem:[%s311 + $0x18] sm:$0xff]
      %v649 = vld [vmem:[%s311 + $0x20] sm:$0xf]
      %v650 = vld [vmem:[%s311 + $0x24] sm:$0xff]
      %v651 = vld [vmem:[%s311 + $0x2c] sm:$0xf]
      %v652 = vld [vmem:[%s311 + $0x30] sm:$0xff]
      %v653 = vld [vmem:[%s311 + $0x38] sm:$0xf]
      %v654 = vld [vmem:[%s311 + $0x3c] sm:$0xff]
      %v655 = vld [vmem:[%s311 + $0x44] sm:$0xf]
      %v656 = vld [vmem:[%s311 + $0x48] sm:$0xff]
      %v657 = vld [vmem:[%s311 + $0x50] sm:$0xf]
      %v672 = vunpack.c.l.b16 %v644
      %v673 = vunpack.c.h.b16 %v644
      %v674 = vunpack.c.l.b16 %v645
      %v675 = vunpack.c.l.b16 %v646
      %v676 = vunpack.c.h.b16 %v646
      %v677 = vunpack.c.l.b16 %v647
      %v678 = vunpack.c.l.b16 %v648
      %v679 = vunpack.c.h.b16 %v648
      %v680 = vunpack.c.l.b16 %v649
      %v681 = vunpack.c.l.b16 %v650
      %v682 = vunpack.c.h.b16 %v650
      %v683 = vunpack.c.l.b16 %v651
      %v684 = vunpack.c.l.b16 %v652
      %v685 = vunpack.c.h.b16 %v652
      %v686 = vunpack.c.l.b16 %v653
      %v687 = vunpack.c.l.b16 %v654
      %v688 = vunpack.c.h.b16 %v654
      %v689 = vunpack.c.l.b16 %v655
      %v690 = vunpack.c.l.b16 %v656
      %v691 = vunpack.c.h.b16 %v656
      %v692 = vunpack.c.l.b16 %v657
      %v693 = vpack.c.b16 %v675, %v672
      %v694 = vpack.c.b16 %v676, %v673
      %v695 = vpack.c.b16 %v677, %v674
      %v696 = vpack.c.b16 %v681, %v678
      %v697 = vpack.c.b16 %v682, %v679
      %v698 = vpack.c.b16 %v683, %v680
      %v699 = vpack.c.b16 %v687, %v684
      %v700 = vpack.c.b16 %v688, %v685
      %v701 = vpack.c.b16 %v689, %v686
      %v702 = vpack.c.b16 %v690, %v690
      %v703 = vpack.c.b16 %v691, %v691
      %v704 = vpack.c.b16 %v692, %v692
      %v714 = vsel %vm547, %v695, 0
      %v717 = vsel %vm547, %v698, 0
      %v720 = vsel %vm547, %v701, 0
      %v723 = vsel %vm547, %v704, 0
      %725 = vmatpush.bf16.msra.mxu0 %v518
      %726 = vmatpush.bf16.msra.mxu0 %v517
      %727 = vmatpush.bf16.msra.mxu0 %v516
      %728 = vmatpush.bf16.msra.mxu0 %v515
      %729 = vmatpush.bf16.msra.mxu0 %v514
      %730 = vmatpush.bf16.msra.mxu0 %v513
      %731 = vmatpush.bf16.msra.mxu0 %v512
      %732 = vmatpush.bf16.msra.mxu0 %v511
      %733 = vmatmul.bf16.gmra.mxu0 %v693
      %v734 = vpop.f32.mrf.mxu0
      %v735 = vadd.f32 0.0, %v734
      %v736 = vpop.f32.mrf.mxu0
      %v737 = vadd.f32 0.0, %v736
      %738 = vmatmul.bf16.gmra.mxu0 %v696
      %v739 = vpop.f32.mrf.mxu0
      %v740 = vadd.f32 0.0, %v739
      %v741 = vpop.f32.mrf.mxu0
      %v742 = vadd.f32 0.0, %v741
      %743 = vmatmul.bf16.gmra.mxu0 %v699
      %v744 = vpop.f32.mrf.mxu0
      %v745 = vadd.f32 0.0, %v744
      %v746 = vpop.f32.mrf.mxu0
      %v747 = vadd.f32 0.0, %v746
      %748 = vmatmul.bf16.gmra.mxu0 %v702
      %v749 = vpop.f32.mrf.mxu0
      %v750 = vadd.f32 0.0, %v749
      %v751 = vpop.f32.mrf.mxu0
      %752 = vdwg.mxu0
      %753 = vmatpush.bf16.msra.mxu0 %v526
      %754 = vmatpush.bf16.msra.mxu0 %v525
      %755 = vmatpush.bf16.msra.mxu0 %v524
      %756 = vmatpush.bf16.msra.mxu0 %v523
      %757 = vmatpush.bf16.msra.mxu0 %v522
      %758 = vmatpush.bf16.msra.mxu0 %v521
      %759 = vmatpush.bf16.msra.mxu0 %v520
      %760 = vmatpush.bf16.msra.mxu0 %v519
      %761 = vmatmul.bf16.gmra.mxu0 %v694
      %v762 = vpop.f32.mrf.mxu0
      %v763 = vadd.f32 %v735, %v762
      %v764 = vpop.f32.mrf.mxu0
      %v765 = vadd.f32 %v737, %v764
      %766 = vmatmul.bf16.gmra.mxu0 %v697
      %v767 = vpop.f32.mrf.mxu0
      %v768 = vadd.f32 %v740, %v767
      %v769 = vpop.f32.mrf.mxu0
      %v770 = vadd.f32 %v742, %v769
      %771 = vmatmul.bf16.gmra.mxu0 %v700
      %v772 = vpop.f32.mrf.mxu0
      %v773 = vadd.f32 %v745, %v772
      %v774 = vpop.f32.mrf.mxu0
      %v775 = vadd.f32 %v747, %v774
      %776 = vmatmul.bf16.gmra.mxu0 %v703
      %v777 = vpop.f32.mrf.mxu0
      %v778 = vadd.f32 %v750, %v777
      %v779 = vpop.f32.mrf.mxu0
      %780 = vdwg.mxu0
      %781 = vmatpush.bf16.msra.mxu0 0
      %782 = vmatpush.bf16.msra.mxu0 0
      %783 = vmatpush.bf16.msra.mxu0 0
      %784 = vmatpush.bf16.msra.mxu0 0
      %785 = vmatpush.bf16.msra.mxu0 0
      %786 = vmatpush.bf16.msra.mxu0 0
      %787 = vmatpush.bf16.msra.mxu0 %v528
      %788 = vmatpush.bf16.msra.mxu0 %v527
      %789 = vmatmul.bf16.gmra.mxu0 %v714
      %v790 = vpop.f32.mrf.mxu0
      %v791 = vadd.f32 %v763, %v790
      %v792 = vpop.f32.mrf.mxu0
      %v793 = vadd.f32 %v765, %v792
      %794 = vmatmul.bf16.gmra.mxu0 %v717
      %v795 = vpop.f32.mrf.mxu0
      %v796 = vadd.f32 %v768, %v795
      %v797 = vpop.f32.mrf.mxu0
      %v798 = vadd.f32 %v770, %v797
      %799 = vmatmul.bf16.gmra.mxu0 %v720
      %v800 = vpop.f32.mrf.mxu0
      %v801 = vadd.f32 %v773, %v800
      %v802 = vpop.f32.mrf.mxu0
      %v803 = vadd.f32 %v775, %v802
      %804 = vmatmul.bf16.gmra.mxu0 %v723
      %v805 = vpop.f32.mrf.mxu0
      %v806 = vadd.f32 %v778, %v805
      %v807 = vpop.f32.mrf.mxu0
      %808 = vdwg.mxu0
      %v809 = vmax.f32 %v626, %v791
      %v810 = vmax.f32 %v628, %v793
      %v811 = vmax.f32 %v631, %v796
      %v812 = vmax.f32 %v633, %v798
      %v813 = vmax.f32 %v636, %v801
      %v814 = vmax.f32 %v638, %v803
      %v815 = vmax.f32 %v641, %v806
      %v816 = vld [vmem:[%s318] sm:$0xff]
      %v817 = vld [vmem:[%s318 + $0x8] sm:$0xf]
      %v818 = vld [vmem:[%s318 + $0xc] sm:$0xff]
      %v819 = vld [vmem:[%s318 + $0x14] sm:$0xf]
      %v820 = vld [vmem:[%s318 + $0x18] sm:$0xff]
      %v821 = vld [vmem:[%s318 + $0x20] sm:$0xf]
      %v822 = vld [vmem:[%s318 + $0x24] sm:$0xff]
      %v823 = vld [vmem:[%s318 + $0x2c] sm:$0xf]
      %v824 = vld [vmem:[%s318 + $0x30] sm:$0xff]
      %v825 = vld [vmem:[%s318 + $0x38] sm:$0xf]
      %v826 = vld [vmem:[%s318 + $0x3c] sm:$0xff]
      %v827 = vld [vmem:[%s318 + $0x44] sm:$0xf]
      %v828 = vld [vmem:[%s318 + $0x48] sm:$0xff]
      %v829 = vld [vmem:[%s318 + $0x50] sm:$0xf]
      %v844 = vunpack.c.l.b16 %v816
      %v845 = vunpack.c.h.b16 %v816
      %v846 = vunpack.c.l.b16 %v817
      %v847 = vunpack.c.l.b16 %v818
      %v848 = vunpack.c.h.b16 %v818
      %v849 = vunpack.c.l.b16 %v819
      %v850 = vunpack.c.l.b16 %v820
      %v851 = vunpack.c.h.b16 %v820
      %v852 = vunpack.c.l.b16 %v821
      %v853 = vunpack.c.l.b16 %v822
      %v854 = vunpack.c.h.b16 %v822
      %v855 = vunpack.c.l.b16 %v823
      %v856 = vunpack.c.l.b16 %v824
      %v857 = vunpack.c.h.b16 %v824
      %v858 = vunpack.c.l.b16 %v825
      %v859 = vunpack.c.l.b16 %v826
      %v860 = vunpack.c.h.b16 %v826
      %v861 = vunpack.c.l.b16 %v827
      %v862 = vunpack.c.l.b16 %v828
      %v863 = vunpack.c.h.b16 %v828
      %v864 = vunpack.c.l.b16 %v829
      %v865 = vpack.c.b16 %v847, %v844
      %v866 = vpack.c.b16 %v848, %v845
      %v867 = vpack.c.b16 %v849, %v846
      %v868 = vpack.c.b16 %v853, %v850
      %v869 = vpack.c.b16 %v854, %v851
      %v870 = vpack.c.b16 %v855, %v852
      %v871 = vpack.c.b16 %v859, %v856
      %v872 = vpack.c.b16 %v860, %v857
      %v873 = vpack.c.b16 %v861, %v858
      %v874 = vpack.c.b16 %v862, %v862
      %v875 = vpack.c.b16 %v863, %v863
      %v876 = vpack.c.b16 %v864, %v864
      %v886 = vsel %vm547, %v867, 0
      %v889 = vsel %vm547, %v870, 0
      %v892 = vsel %vm547, %v873, 0
      %v895 = vsel %vm547, %v876, 0
      %897 = vmatpush.bf16.msra.mxu0 %v518
      %898 = vmatpush.bf16.msra.mxu0 %v517
      %899 = vmatpush.bf16.msra.mxu0 %v516
      %900 = vmatpush.bf16.msra.mxu0 %v515
      %901 = vmatpush.bf16.msra.mxu0 %v514
      %902 = vmatpush.bf16.msra.mxu0 %v513
      %903 = vmatpush.bf16.msra.mxu0 %v512
      %904 = vmatpush.bf16.msra.mxu0 %v511
      %905 = vmatmul.bf16.gmra.mxu0 %v865
      %v906 = vpop.f32.mrf.mxu0
      %v907 = vadd.f32 0.0, %v906
      %v908 = vpop.f32.mrf.mxu0
      %v909 = vadd.f32 0.0, %v908
      %910 = vmatmul.bf16.gmra.mxu0 %v868
      %v911 = vpop.f32.mrf.mxu0
      %v912 = vadd.f32 0.0, %v911
      %v913 = vpop.f32.mrf.mxu0
      %v914 = vadd.f32 0.0, %v913
      %915 = vmatmul.bf16.gmra.mxu0 %v871
      %v916 = vpop.f32.mrf.mxu0
      %v917 = vadd.f32 0.0, %v916
      %v918 = vpop.f32.mrf.mxu0
      %v919 = vadd.f32 0.0, %v918
      %920 = vmatmul.bf16.gmra.mxu0 %v874
      %v921 = vpop.f32.mrf.mxu0
      %v922 = vadd.f32 0.0, %v921
      %v923 = vpop.f32.mrf.mxu0
      %924 = vdwg.mxu0
      %925 = vmatpush.bf16.msra.mxu0 %v526
      %926 = vmatpush.bf16.msra.mxu0 %v525
      %927 = vmatpush.bf16.msra.mxu0 %v524
      %928 = vmatpush.bf16.msra.mxu0 %v523
      %929 = vmatpush.bf16.msra.mxu0 %v522
      %930 = vmatpush.bf16.msra.mxu0 %v521
      %931 = vmatpush.bf16.msra.mxu0 %v520
      %932 = vmatpush.bf16.msra.mxu0 %v519
      %933 = vmatmul.bf16.gmra.mxu0 %v866
      %v934 = vpop.f32.mrf.mxu0
      %v935 = vadd.f32 %v907, %v934
      %v936 = vpop.f32.mrf.mxu0
      %v937 = vadd.f32 %v909, %v936
      %938 = vmatmul.bf16.gmra.mxu0 %v869
      %v939 = vpop.f32.mrf.mxu0
      %v940 = vadd.f32 %v912, %v939
      %v941 = vpop.f32.mrf.mxu0
      %v942 = vadd.f32 %v914, %v941
      %943 = vmatmul.bf16.gmra.mxu0 %v872
      %v944 = vpop.f32.mrf.mxu0
      %v945 = vadd.f32 %v917, %v944
      %v946 = vpop.f32.mrf.mxu0
      %v947 = vadd.f32 %v919, %v946
      %948 = vmatmul.bf16.gmra.mxu0 %v875
      %v949 = vpop.f32.mrf.mxu0
      %v950 = vadd.f32 %v922, %v949
      %v951 = vpop.f32.mrf.mxu0
      %952 = vdwg.mxu0
      %953 = vmatpush.bf16.msra.mxu0 0
      %954 = vmatpush.bf16.msra.mxu0 0
      %955 = vmatpush.bf16.msra.mxu0 0
      %956 = vmatpush.bf16.msra.mxu0 0
      %957 = vmatpush.bf16.msra.mxu0 0
      %958 = vmatpush.bf16.msra.mxu0 0
      %959 = vmatpush.bf16.msra.mxu0 %v528
      %960 = vmatpush.bf16.msra.mxu0 %v527
      %961 = vmatmul.bf16.gmra.mxu0 %v886
      %v962 = vpop.f32.mrf.mxu0
      %v963 = vadd.f32 %v935, %v962
      %v964 = vpop.f32.mrf.mxu0
      %v965 = vadd.f32 %v937, %v964
      %966 = vmatmul.bf16.gmra.mxu0 %v889
      %v967 = vpop.f32.mrf.mxu0
      %v968 = vadd.f32 %v940, %v967
      %v969 = vpop.f32.mrf.mxu0
      %v970 = vadd.f32 %v942, %v969
      %971 = vmatmul.bf16.gmra.mxu0 %v892
      %v972 = vpop.f32.mrf.mxu0
      %v973 = vadd.f32 %v945, %v972
      %v974 = vpop.f32.mrf.mxu0
      %v975 = vadd.f32 %v947, %v974
      %976 = vmatmul.bf16.gmra.mxu0 %v895
      %v977 = vpop.f32.mrf.mxu0
      %v978 = vadd.f32 %v950, %v977
      %v979 = vpop.f32.mrf.mxu0
      %980 = vdwg.mxu0
      %v981 = vmax.f32 %v809, %v963
      %v982 = vmax.f32 %v810, %v965
      %v983 = vmax.f32 %v811, %v968
      %v984 = vmax.f32 %v812, %v970
      %v985 = vmax.f32 %v813, %v973
      %v986 = vmax.f32 %v814, %v975
      %v987 = vmax.f32 %v815, %v978
      %v988 = vld [vmem:[%s325] sm:$0xff]
      %v989 = vld [vmem:[%s325 + $0x8] sm:$0xf]
      %v990 = vld [vmem:[%s325 + $0xc] sm:$0xff]
      %v991 = vld [vmem:[%s325 + $0x14] sm:$0xf]
      %v992 = vld [vmem:[%s325 + $0x18] sm:$0xff]
      %v993 = vld [vmem:[%s325 + $0x20] sm:$0xf]
      %v994 = vld [vmem:[%s325 + $0x24] sm:$0xff]
      %v995 = vld [vmem:[%s325 + $0x2c] sm:$0xf]
      %v996 = vld [vmem:[%s325 + $0x30] sm:$0xff]
      %v997 = vld [vmem:[%s325 + $0x38] sm:$0xf]
      %v998 = vld [vmem:[%s325 + $0x3c] sm:$0xff]
      %v999 = vld [vmem:[%s325 + $0x44] sm:$0xf]
      %v1000 = vld [vmem:[%s325 + $0x48] sm:$0xff]
      %v1001 = vld [vmem:[%s325 + $0x50] sm:$0xf]
      %v1016 = vunpack.c.l.b16 %v988
      %v1017 = vunpack.c.h.b16 %v988
      %v1018 = vunpack.c.l.b16 %v989
      %v1019 = vunpack.c.l.b16 %v990
      %v1020 = vunpack.c.h.b16 %v990
      %v1021 = vunpack.c.l.b16 %v991
      %v1022 = vunpack.c.l.b16 %v992
      %v1023 = vunpack.c.h.b16 %v992
      %v1024 = vunpack.c.l.b16 %v993
      %v1025 = vunpack.c.l.b16 %v994
      %v1026 = vunpack.c.h.b16 %v994
      %v1027 = vunpack.c.l.b16 %v995
      %v1028 = vunpack.c.l.b16 %v996
      %v1029 = vunpack.c.h.b16 %v996
      %v1030 = vunpack.c.l.b16 %v997
      %v1031 = vunpack.c.l.b16 %v998
      %v1032 = vunpack.c.h.b16 %v998
      %v1033 = vunpack.c.l.b16 %v999
      %v1034 = vunpack.c.l.b16 %v1000
      %v1035 = vunpack.c.h.b16 %v1000
      %v1036 = vunpack.c.l.b16 %v1001
      %v1037 = vpack.c.b16 %v1019, %v1016
      %v1038 = vpack.c.b16 %v1020, %v1017
      %v1039 = vpack.c.b16 %v1021, %v1018
      %v1040 = vpack.c.b16 %v1025, %v1022
      %v1041 = vpack.c.b16 %v1026, %v1023
      %v1042 = vpack.c.b16 %v1027, %v1024
      %v1043 = vpack.c.b16 %v1031, %v1028
      %v1044 = vpack.c.b16 %v1032, %v1029
      %v1045 = vpack.c.b16 %v1033, %v1030
      %v1046 = vpack.c.b16 %v1034, %v1034
      %v1047 = vpack.c.b16 %v1035, %v1035
      %v1048 = vpack.c.b16 %v1036, %v1036
      %v1058 = vsel %vm547, %v1039, 0
      %v1061 = vsel %vm547, %v1042, 0
      %v1064 = vsel %vm547, %v1045, 0
      %v1067 = vsel %vm547, %v1048, 0
      %1069 = vmatpush.bf16.msra.mxu0 %v518
      %1070 = vmatpush.bf16.msra.mxu0 %v517
      %1071 = vmatpush.bf16.msra.mxu0 %v516
      %1072 = vmatpush.bf16.msra.mxu0 %v515
      %1073 = vmatpush.bf16.msra.mxu0 %v514
      %1074 = vmatpush.bf16.msra.mxu0 %v513
      %1075 = vmatpush.bf16.msra.mxu0 %v512
      %1076 = vmatpush.bf16.msra.mxu0 %v511
      %1077 = vmatmul.bf16.gmra.mxu0 %v1037
      %v1078 = vpop.f32.mrf.mxu0
      %v1079 = vadd.f32 0.0, %v1078
      %v1080 = vpop.f32.mrf.mxu0
      %v1081 = vadd.f32 0.0, %v1080
      %1082 = vmatmul.bf16.gmra.mxu0 %v1040
      %v1083 = vpop.f32.mrf.mxu0
      %v1084 = vadd.f32 0.0, %v1083
      %v1085 = vpop.f32.mrf.mxu0
      %v1086 = vadd.f32 0.0, %v1085
      %1087 = vmatmul.bf16.gmra.mxu0 %v1043
      %v1088 = vpop.f32.mrf.mxu0
      %v1089 = vadd.f32 0.0, %v1088
      %v1090 = vpop.f32.mrf.mxu0
      %v1091 = vadd.f32 0.0, %v1090
      %1092 = vmatmul.bf16.gmra.mxu0 %v1046
      %v1093 = vpop.f32.mrf.mxu0
      %v1094 = vadd.f32 0.0, %v1093
      %v1095 = vpop.f32.mrf.mxu0
      %1096 = vdwg.mxu0
      %1097 = vmatpush.bf16.msra.mxu0 %v526
      %1098 = vmatpush.bf16.msra.mxu0 %v525
      %1099 = vmatpush.bf16.msra.mxu0 %v524
      %1100 = vmatpush.bf16.msra.mxu0 %v523
      %1101 = vmatpush.bf16.msra.mxu0 %v522
      %1102 = vmatpush.bf16.msra.mxu0 %v521
      %1103 = vmatpush.bf16.msra.mxu0 %v520
      %1104 = vmatpush.bf16.msra.mxu0 %v519
      %1105 = vmatmul.bf16.gmra.mxu0 %v1038
      %v1106 = vpop.f32.mrf.mxu0
      %v1107 = vadd.f32 %v1079, %v1106
      %v1108 = vpop.f32.mrf.mxu0
      %v1109 = vadd.f32 %v1081, %v1108
      %1110 = vmatmul.bf16.gmra.mxu0 %v1041
      %v1111 = vpop.f32.mrf.mxu0
      %v1112 = vadd.f32 %v1084, %v1111
      %v1113 = vpop.f32.mrf.mxu0
      %v1114 = vadd.f32 %v1086, %v1113
      %1115 = vmatmul.bf16.gmra.mxu0 %v1044
      %v1116 = vpop.f32.mrf.mxu0
      %v1117 = vadd.f32 %v1089, %v1116
      %v1118 = vpop.f32.mrf.mxu0
      %v1119 = vadd.f32 %v1091, %v1118
      %1120 = vmatmul.bf16.gmra.mxu0 %v1047
      %v1121 = vpop.f32.mrf.mxu0
      %v1122 = vadd.f32 %v1094, %v1121
      %v1123 = vpop.f32.mrf.mxu0
      %1124 = vdwg.mxu0
      %1125 = vmatpush.bf16.msra.mxu0 0
      %1126 = vmatpush.bf16.msra.mxu0 0
      %1127 = vmatpush.bf16.msra.mxu0 0
      %1128 = vmatpush.bf16.msra.mxu0 0
      %1129 = vmatpush.bf16.msra.mxu0 0
      %1130 = vmatpush.bf16.msra.mxu0 0
      %1131 = vmatpush.bf16.msra.mxu0 %v528
      %1132 = vmatpush.bf16.msra.mxu0 %v527
      %1133 = vmatmul.bf16.gmra.mxu0 %v1058
      %v1134 = vpop.f32.mrf.mxu0
      %v1135 = vadd.f32 %v1107, %v1134
      %v1136 = vpop.f32.mrf.mxu0
      %v1137 = vadd.f32 %v1109, %v1136
      %1138 = vmatmul.bf16.gmra.mxu0 %v1061
      %v1139 = vpop.f32.mrf.mxu0
      %v1140 = vadd.f32 %v1112, %v1139
      %v1141 = vpop.f32.mrf.mxu0
      %v1142 = vadd.f32 %v1114, %v1141
      %1143 = vmatmul.bf16.gmra.mxu0 %v1064
      %v1144 = vpop.f32.mrf.mxu0
      %v1145 = vadd.f32 %v1117, %v1144
      %v1146 = vpop.f32.mrf.mxu0
      %v1147 = vadd.f32 %v1119, %v1146
      %1148 = vmatmul.bf16.gmra.mxu0 %v1067
      %v1149 = vpop.f32.mrf.mxu0
      %v1150 = vadd.f32 %v1122, %v1149
      %v1151 = vpop.f32.mrf.mxu0
      %1152 = vdwg.mxu0
      %v1153 = vmax.f32 %v981, %v1135
      %v1154 = vmax.f32 %v982, %v1137
      %v1155 = vmax.f32 %v983, %v1140
      %v1156 = vmax.f32 %v984, %v1142
      %v1157 = vmax.f32 %v985, %v1145
      %v1158 = vmax.f32 %v986, %v1147
      %v1159 = vmax.f32 %v987, %v1150
      %v1160 = vld [vmem:[%s5] sm:$0x1]
      %v1162 = vperm.slane %v1160, 0
      %v1164 = vadd.f32 %v1153, %v1162
      %v1165 = vadd.f32 %v1154, %v1162
      %v1166 = vadd.f32 %v1155, %v1162
      %v1167 = vadd.f32 %v1156, %v1162
      %v1168 = vadd.f32 %v1157, %v1162
      %v1169 = vadd.f32 %v1158, %v1162
      %v1170 = vadd.f32 %v1159, %v1162
      %v1171 = vmax.f32 %v1164, 0.0
      %v1172 = vmax.f32 %v1165, 0.0
      %v1173 = vmax.f32 %v1166, 0.0
      %v1174 = vmax.f32 %v1167, 0.0
      %v1175 = vmax.f32 %v1168, 0.0
      %v1176 = vmax.f32 %v1169, 0.0
      %v1177 = vmax.f32 %v1170, 0.0
      %v1178 = vpack.c.bf16 %v1171, %v1171
      %v1179 = vpack.c.bf16 %v1172, %v1172
      %v1180 = vpack.c.bf16 %v1173, %v1173
      %v1181 = vpack.c.bf16 %v1174, %v1174
      %v1182 = vpack.c.bf16 %v1175, %v1175
      %v1183 = vpack.c.bf16 %v1176, %v1176
      %v1184 = vpack.c.bf16 %v1177, %v1177
      %vm1185 = vcmask 519168
      %1186 = vst.msk [vmem:[%s331] sm:$0xf] %vm1185, %v1178
      %1187 = vst.msk [vmem:[%s331 + $0x4] sm:$0xf] %vm1185, %v1179
      %1188 = vst.msk [vmem:[%s331 + $0x8] sm:$0xf] %vm1185, %v1180
      %1189 = vst.msk [vmem:[%s331 + $0xc] sm:$0xf] %vm1185, %v1181
      %1190 = vst.msk [vmem:[%s331 + $0x10] sm:$0xf] %vm1185, %v1182
      %1191 = vst.msk [vmem:[%s331 + $0x14] sm:$0xf] %vm1185, %v1183
      %1192 = vst.msk [vmem:[%s331 + $0x18] sm:$0xf] %vm1185, %v1184
      %s1193 = smul.u32 7, %s17
      %p1194 = scmp.lt.s32.totalorder %s1193, 13
      %s1195 = scalar_select %p1194, %s1193, 13
      %s1196 = smul.addr %s1195, 4
      %s1197 = scalar_lea.vmem %s6, %s1196
      // Predicated region
      $region45: #{net_forward.6} parent=43 // pred_check
        %p1198 = pneg %p181
      $region46: #{net_forward.6} parent=43 // pred_check_branch
        %1200 = sbr.rel (%p1198) target = $region48
      $region47: #{net_forward.6} parent=43 // pred_region
        %s1201 = smul.u32 7, %s17
      $region48: #{net_forward.6} parent=43 // pred_fallthru
        _
    $region44: #{net_forward.6} parent=5 // pred_fallthru
      _
    %p1202 = scmp.le.s32.totalorder 2, %s12
    // Predicated region
    $region49: #{net_forward.6} parent=5 // pred_check
      %p1203 = pneg %p1202
    $region50: #{net_forward.6} parent=5 // pred_check_branch
      %1205 = sbr.rel (%p1203) target = $region52
    $region51: #{net_forward.6} parent=5 // pred_region
      %s1206 = ssub.s32 %s12, 2
      // Predicated region
      $region53: #{net_forward.6} parent=51 // pred_check
        %p1207 = pneg %p187
      $region54: #{net_forward.6} parent=51 // pred_check_branch
        %1209 = sbr.rel (%p1207) target = $region56
      $region55: #{net_forward.6} parent=51 // pred_region
        %s1210 = smul.u32 7, %s18
        %p1211 = scmp.lt.s32.totalorder %s1210, 13
        %s1212 = scalar_select %p1211, %s1210, 13
        %s1213 = smul.addr %s1212, 4
        %s1214 = scalar_lea.vmem %s6, %s1213
      $region56: #{net_forward.6} parent=51 // pred_fallthru
        _
    $region52: #{net_forward.6} parent=5 // pred_fallthru
      _
  $region6: #{net_forward.6} parent=0 // loop_footer
    %s16 = sadd.s32 1, %s12
  $region7: #{net_forward.6} parent=0 // loop_footer_branch
    %11 = sbr.rel target = $region3
  $region8: #{net_forward.6} parent=0 // loop_exit
    _

// kernel: net_forward.7
$region0: #{net_forward.7}
  #allocation0 [shape = 'u32[]', space=smem, size = 0x4, offset = 0x4, fixed_abs, tag = 'smem constant byte address 0x4 - core index']
  #allocation1 [shape = 'u32[72,128]{1,0:T(1,128)}', space=vmem, size = 0x9000, scoped, tag = 'internal scratch']
  #allocation2 [shape = 'f32[8,1024]{1,0:T(8,128)}', space=vmem, size = 0x8000, scoped, tag = 'scratch operand']
  %s0 = inlined_call_operand.vmem [shape: bf16[8,3200], index: 0, kind: input, shape index: {}]
  %s1 = inlined_call_operand.vmem [shape: bf16[3200,1024], index: 1, kind: input, shape index: {}]
  %s2 = inlined_call_operand.vmem [shape: f32[1,1024], index: 2, kind: input, shape index: {}]
  %s3 = inlined_call_operand.vmem [shape: bf16[1024,128], index: 3, kind: input, shape index: {}]
  %s4 = inlined_call_operand.vmem [shape: f32[1,128], index: 4, kind: input, shape index: {}]
  %s5 = inlined_call_operand.vmem [shape: f32[8,128], index: 5, kind: output, shape index: {}]
  %s6 = sld [smem:[#allocation0]]
  $region61: #{net_forward.7} parent=0
    _
  %s8 = ssub.s32 1, %s6
  %s9 = scalar_select 0, %s8, %s6
  loop: start=0, step=1, limit=7
  $region2: #{net_forward.7} parent=0 // loop_pre_header
    _
  $region3: #{net_forward.7} parent=0 // loop_header
    %s11 = sphi 0, %s15
    %p12 = scmp.ge.s32.totalorder %s11, 7
    %s21 = sphi 0, %s23
    %s24 = sphi 0, %s21
    %s25 = sphi 0, %s24
    %s41 = sphi 0, %s25
    %s47 = sphi 0, %s49
    %s50 = sphi 0, %s47
    %s51 = sphi 0, %s50
    %s67 = sphi 0, %s51
    %s71 = sphi 0, %s71
    %s73 = sphi 0, %s71
    %s74 = sphi 0, %s73
    %s88 = sphi 0, %s74
    %s92 = sphi 0, %s92
    %s94 = sphi 0, %s92
    %s95 = sphi 0, %s94
    %s109 = sphi 0, %s95
    %s113 = sphi 0, %s113
    %s115 = sphi 0, %s113
    %s116 = sphi 0, %s115
    %s130 = sphi 0, %s116
    %s134 = sphi 0, %s134
    %s136 = sphi 0, %s134
    %s137 = sphi 0, %s136
    %s151 = sphi 0, %s137
  $region4: #{net_forward.7} parent=0 // loop_header_branch
    %14 = sbr.rel (%p12) target = $region8
  $region5: #{net_forward.7} parent=0 // loop_body
    %s16 = ssub.s32 %s11, 1
    %s17 = ssub.s32 %s11, 2
    %s18 = sadd.s32 %s11, 1
    %s19 = ssub.s32 %s11, %s18
    %p20 = scmp.eq.s32.totalorder %s19, 0
    %s22 = sadd.s32 %s21, 1
    %s23 = scalar_select %p20, %s21, %s22
    %p26 = pneg %p20
    %p27 = scmp.eq.s32.totalorder %s11, 4
    %p28 = por %p26, %p27
    %p29 = scmp.ne.s32.totalorder %s21, %s24
    %p30 = scmp.eq.s32.totalorder %s11, 0
    %p31 = por %p29, %p30
    %p32 = scmp.ne.s32.totalorder %s21, %s24
    %p33 = scmp.eq.s32.totalorder %s16, 4
    %p34 = por %p32, %p33
    %p35 = scmp.ne.s32.totalorder %s24, %s25
    %p36 = scmp.eq.s32.totalorder %s16, 0
    %p37 = por %p35, %p36
    %p38 = scmp.ne.s32.totalorder %s24, %s25
    %p39 = scmp.eq.s32.totalorder %s17, 4
    %p40 = por %p38, %p39
    %p42 = scmp.ne.s32.totalorder %s25, %s41
    %p43 = scmp.eq.s32.totalorder %s17, 0
    %p44 = por %p42, %p43
    %s45 = ssub.s32 %s11, %s18
    %p46 = scmp.eq.s32.totalorder %s45, 0
    %s48 = sadd.s32 %s47, 1
    %s49 = scalar_select %p46, %s47, %s48
    %p52 = pneg %p46
    %p53 = scmp.eq.s32.totalorder %s11, 4
    %p54 = por %p52, %p53
    %p55 = scmp.ne.s32.totalorder %s47, %s50
    %p56 = scmp.eq.s32.totalorder %s11, 0
    %p57 = por %p55, %p56
    %p58 = scmp.ne.s32.totalorder %s47, %s50
    %p59 = scmp.eq.s32.totalorder %s16, 4
    %p60 = por %p58, %p59
    %p61 = scmp.ne.s32.totalorder %s50, %s51
    %p62 = scmp.eq.s32.totalorder %s16, 0
    %p63 = por %p61, %p62
    %p64 = scmp.ne.s32.totalorder %s50, %s51
    %p65 = scmp.eq.s32.totalorder %s17, 4
    %p66 = por %p64, %p65
    %p68 = scmp.ne.s32.totalorder %s51, %s67
    %p69 = scmp.eq.s32.totalorder %s17, 0
    %p70 = por %p68, %p69
    %s72 = sadd.s32 %s71, 1
    %p75 = scmp.eq.s32.totalorder %s11, 4
    %p76 = scmp.ne.s32.totalorder %s71, %s73
    %p77 = scmp.eq.s32.totalorder %s11, 0
    %p78 = por %p76, %p77
    %p79 = scmp.ne.s32.totalorder %s71, %s73
    %p80 = scmp.eq.s32.totalorder %s16, 4
    %p81 = por %p79, %p80
    %p82 = scmp.ne.s32.totalorder %s73, %s74
    %p83 = scmp.eq.s32.totalorder %s16, 0
    %p84 = por %p82, %p83
    %p85 = scmp.ne.s32.totalorder %s73, %s74
    %p86 = scmp.eq.s32.totalorder %s17, 4
    %p87 = por %p85, %p86
    %p89 = scmp.ne.s32.totalorder %s74, %s88
    %p90 = scmp.eq.s32.totalorder %s17, 0
    %p91 = por %p89, %p90
    %s93 = sadd.s32 %s92, 1
    %p96 = scmp.eq.s32.totalorder %s11, 4
    %p97 = scmp.ne.s32.totalorder %s92, %s94
    %p98 = scmp.eq.s32.totalorder %s11, 0
    %p99 = por %p97, %p98
    %p100 = scmp.ne.s32.totalorder %s92, %s94
    %p101 = scmp.eq.s32.totalorder %s16, 4
    %p102 = por %p100, %p101
    %p103 = scmp.ne.s32.totalorder %s94, %s95
    %p104 = scmp.eq.s32.totalorder %s16, 0
    %p105 = por %p103, %p104
    %p106 = scmp.ne.s32.totalorder %s94, %s95
    %p107 = scmp.eq.s32.totalorder %s17, 4
    %p108 = por %p106, %p107
    %p110 = scmp.ne.s32.totalorder %s95, %s109
    %p111 = scmp.eq.s32.totalorder %s17, 0
    %p112 = por %p110, %p111
    %s114 = sadd.s32 %s113, 1
    %p117 = scmp.eq.s32.totalorder %s11, 4
    %p118 = scmp.ne.s32.totalorder %s113, %s115
    %p119 = scmp.eq.s32.totalorder %s11, 0
    %p120 = por %p118, %p119
    %p121 = scmp.ne.s32.totalorder %s113, %s115
    %p122 = scmp.eq.s32.totalorder %s16, 4
    %p123 = por %p121, %p122
    %p124 = scmp.ne.s32.totalorder %s115, %s116
    %p125 = scmp.eq.s32.totalorder %s16, 0
    %p126 = por %p124, %p125
    %p127 = scmp.ne.s32.totalorder %s115, %s116
    %p128 = scmp.eq.s32.totalorder %s17, 4
    %p129 = por %p127, %p128
    %p131 = scmp.ne.s32.totalorder %s116, %s130
    %p132 = scmp.eq.s32.totalorder %s17, 0
    %p133 = por %p131, %p132
    %s135 = sadd.s32 %s134, 1
    %p138 = scmp.eq.s32.totalorder %s11, 4
    %p139 = scmp.ne.s32.totalorder %s134, %s136
    %p140 = scmp.eq.s32.totalorder %s11, 0
    %p141 = por %p139, %p140
    %p142 = scmp.ne.s32.totalorder %s134, %s136
    %p143 = scmp.eq.s32.totalorder %s16, 4
    %p144 = por %p142, %p143
    %p145 = scmp.ne.s32.totalorder %s136, %s137
    %p146 = scmp.eq.s32.totalorder %s16, 0
    %p147 = por %p145, %p146
    %p148 = scmp.ne.s32.totalorder %s136, %s137
    %p149 = scmp.eq.s32.totalorder %s17, 4
    %p150 = por %p148, %p149
    %p152 = scmp.ne.s32.totalorder %s137, %s151
    %p153 = scmp.eq.s32.totalorder %s17, 0
    %p154 = por %p152, %p153
    %p155 = scmp.le.s32.totalorder 1, %s11
    %p156 = scmp.lt.s32.totalorder %s11, 6
    %p157 = pnand %p155, %p156
    %p158 = pneg %p157
    // Predicated region
    $region9: #{net_forward.7} parent=5 // pred_check
      _
    $region10: #{net_forward.7} parent=5 // pred_check_branch
      %160 = sbr.rel (%p157) target = $region12
    $region11: #{net_forward.7} parent=5 // pred_region
      %s161 = ssub.s32 %s11, 1
      // Predicated region
      $region13: #{net_forward.7} parent=11 // pred_check
        %p162 = pneg %p84
      $region14: #{net_forward.7} parent=11 // pred_check_branch
        %164 = sbr.rel (%p162) target = $region16
      $region15: #{net_forward.7} parent=11 // pred_region
        _
      $region16: #{net_forward.7} parent=11 // pred_fallthru
        _
      // Predicated region
      $region17: #{net_forward.7} parent=11 // pred_check
        %p165 = pneg %p105
      $region18: #{net_forward.7} parent=11 // pred_check_branch
        %167 = sbr.rel (%p165) target = $region20
      $region19: #{net_forward.7} parent=11 // pred_region
        _
      $region20: #{net_forward.7} parent=11 // pred_fallthru
        _
      // Predicated region
      $region21: #{net_forward.7} parent=11 // pred_check
        %p168 = pneg %p126
      $region22: #{net_forward.7} parent=11 // pred_check_branch
        %170 = sbr.rel (%p168) target = $region24
      $region23: #{net_forward.7} parent=11 // pred_region
        _
      $region24: #{net_forward.7} parent=11 // pred_fallthru
        _
    $region12: #{net_forward.7} parent=5 // pred_fallthru
      _
    %p171 = scmp.lt.s32.totalorder %s11, 5
    // Predicated region
    $region25: #{net_forward.7} parent=5 // pred_check
      %p172 = pneg %p171
    $region26: #{net_forward.7} parent=5 // pred_check_branch
      %174 = sbr.rel (%p172) target = $region28
    $region27: #{net_forward.7} parent=5 // pred_region
      // Predicated region
      $region29: #{net_forward.7} parent=27 // pred_check
        %p175 = pneg %p31
      $region30: #{net_forward.7} parent=27 // pred_check_branch
        %177 = sbr.rel (%p175) target = $region32
      $region31: #{net_forward.7} parent=27 // pred_region
        %s178 = smul.u32 5, %s11
        %p179 = scmp.lt.s32.totalorder %s178, 24
        %s180 = scalar_select %p179, %s178, 24
        %s181 = smul.addr %s180, 4
        %s182 = scalar_lea.vmem %s0, %s181
        %s183 = smul.u32 5, %s11
      $region32: #{net_forward.7} parent=27 // pred_fallthru
        _
      // Predicated region
      $region33: #{net_forward.7} parent=27 // pred_check
        %p184 = pneg %p57
      $region34: #{net_forward.7} parent=27 // pred_check_branch
        %186 = sbr.rel (%p184) target = $region36
      $region35: #{net_forward.7} parent=27 // pred_region
        %s187 = smul.u32 80, %s11
        %p188 = scmp.lt.s32.totalorder %s187, 399
        %s189 = scalar_select %p188, %s187, 399
        %s190 = smul.addr %s189, 8
        %s191 = smul.addr %s190, 4
        %s192 = scalar_lea.vmem %s1, %s191
        %s193 = smul.u32 80, %s11
      $region36: #{net_forward.7} parent=27 // pred_fallthru
        _
    $region28: #{net_forward.7} parent=5 // pred_fallthru
      _
    %p194 = scmp.le.s32.totalorder 1, %s11
    %p195 = scmp.lt.s32.totalorder %s11, 6
    %p196 = pnand %p194, %p195
    %p197 = pneg %p196
    // Predicated region
    $region37: #{net_forward.7} parent=5 // pred_check
      _
    $region38: #{net_forward.7} parent=5 // pred_check_branch
      %199 = sbr.rel (%p196) target = $region40
    $region39: #{net_forward.7} parent=5 // pred_region
      %s200 = ssub.s32 %s11, 1
      %s201 = smul.u32 5, %s16
      %p202 = scmp.lt.s32.totalorder %s201, 24
      %s203 = scalar_select %p202, %s201, 24
      %s204 = smul.addr %s203, 4
      %s205 = scalar_lea.vmem %s0, %s204
      %p206 = pneg %p37
      %p207 = pneg %p34
      %s208 = smul.u32 80, %s16
      %p209 = scmp.lt.s32.totalorder %s208, 399
      %s210 = scalar_select %p209, %s208, 399
      %s211 = smul.addr %s210, 8
      %s212 = smul.addr %s211, 4
      %s213 = scalar_lea.vmem %s1, %s212
      %p214 = pneg %p63
      %p215 = pneg %p60
      %p216 = pneg %p84
      %p217 = pneg %p81
      %p218 = pneg %p105
      %p219 = pneg %p102
      %p220 = pneg %p126
      %p221 = pneg %p123
      %p222 = pneg %p147
      %p223 = pneg %p144
      %s224 = smul.u32 5, %s16
      %p225 = scmp.lt.s32.totalorder %s224, 24
      %s226 = scalar_select %p225, %s224, 24
      %s227 = smul.addr %s226, 4
      %s228 = scalar_lea.vmem %s0, %s227
      %s229 = smul.u32 5, %s16
      %s230 = smul.u32 80, %s16
      %p231 = scmp.lt.s32.totalorder %s230, 399
      %s232 = scalar_select %p231, %s230, 399
      %s233 = smul.addr %s232, 8
      %s234 = smul.addr %s233, 4
      %s235 = scalar_lea.vmem %s1, %s234
      %s236 = smul.u32 80, %s16
      %p237 = scmp.eq.s32.totalorder %s16, 0
      // Predicated region
      $region41: #{net_forward.7} parent=39 // pred_check
        %p238 = pneg %p237
      $region42: #{net_forward.7} parent=39 // pred_check_branch
        %240 = sbr.rel (%p238) target = $region44
      $region43: #{net_forward.7} parent=39 // pred_region
        %241 = vst [vmem:[#allocation2] sm:$0xff] 0.0
        %242 = vst [vmem:[#allocation2 + $0x8] sm:$0xff] 0.0
        %243 = vst [vmem:[#allocation2 + $0x10] sm:$0xff] 0.0
        %244 = vst [vmem:[#allocation2 + $0x18] sm:$0xff] 0.0
        %245 = vst [vmem:[#allocation2 + $0x20] sm:$0xff] 0.0
        %246 = vst [vmem:[#allocation2 + $0x28] sm:$0xff] 0.0
        %247 = vst [vmem:[#allocation2 + $0x30] sm:$0xff] 0.0
        %248 = vst [vmem:[#allocation2 + $0x38] sm:$0xff] 0.0
      $region44: #{net_forward.7} parent=39 // pred_fallthru
        _
      %v249 = vld [vmem:[#allocation2] sm:$0xff]
      %v250 = vld [vmem:[#allocation2 + $0x8] sm:$0xff]
      %v251 = vld [vmem:[#allocation2 + $0x10] sm:$0xff]
      %v252 = vld [vmem:[#allocation2 + $0x18] sm:$0xff]
      %v253 = vld [vmem:[#allocation2 + $0x20] sm:$0xff]
      %v254 = vld [vmem:[#allocation2 + $0x28] sm:$0xff]
      %v255 = vld [vmem:[#allocation2 + $0x30] sm:$0xff]
      %v256 = vld [vmem:[#allocation2 + $0x38] sm:$0xff]
      %v257 = vld [vmem:[%s228] sm:$0xff]
      %v258 = vld [vmem:[%s228 + $0x8] sm:$0xff]
      %v259 = vld [vmem:[%s228 + $0x10] sm:$0xf]
      %v260 = vld [vmem:[%s235] sm:$0xff]
      %v261 = vld [vmem:[%s235 + $0x8] sm:$0xff]
      %v262 = vld [vmem:[%s235 + $0x10] sm:$0xff]
      %v263 = vld [vmem:[%s235 + $0x18] sm:$0xff]
      %v264 = vld [vmem:[%s235 + $0x20] sm:$0xff]
      %v265 = vld [vmem:[%s235 + $0x28] sm:$0xff]
      %v266 = vld [vmem:[%s235 + $0x30] sm:$0xff]
      %v267 = vld [vmem:[%s235 + $0x38] sm:$0xff]
      %v268 = vld [vmem:[%s235 + $0x40] sm:$0xff]
      %v269 = vld [vmem:[%s235 + $0x48] sm:$0xff]
      %v270 = vld [vmem:[%s235 + $0x50] sm:$0xff]
      %v271 = vld [vmem:[%s235 + $0x58] sm:$0xff]
      %v272 = vld [vmem:[%s235 + $0x60] sm:$0xff]
      %v273 = vld [vmem:[%s235 + $0x68] sm:$0xff]
      %v274 = vld [vmem:[%s235 + $0x70] sm:$0xff]
      %v275 = vld [vmem:[%s235 + $0x78] sm:$0xff]
      %v276 = vld [vmem:[%s235 + $0x80] sm:$0xff]
      %v277 = vld [vmem:[%s235 + $0x88] sm:$0xff]
      %v278 = vld [vmem:[%s235 + $0x90] sm:$0xff]
      %v279 = vld [vmem:[%s235 + $0x98] sm:$0xff]
      %v280 = vld [vmem:[%s235 + $0xa0] sm:$0xff]
      %v281 = vld [vmem:[%s235 + $0xa8] sm:$0xff]
      %v282 = vld [vmem:[%s235 + $0xb0] sm:$0xff]
      %v283 = vld [vmem:[%s235 + $0xb8] sm:$0xff]
      %v284 = vld [vmem:[%s235 + $0xc0] sm:$0xff]
      %v285 = vld [vmem:[%s235 + $0xc8] sm:$0xff]
      %v286 = vld [vmem:[%s235 + $0xd0] sm:$0xff]
      %v287 = vld [vmem:[%s235 + $0xd8] sm:$0xff]
      %v288 = vld [vmem:[%s235 + $0xe0] sm:$0xff]
      %v289 = vld [vmem:[%s235 + $0xe8] sm:$0xff]
      %v290 = vld [vmem:[%s235 + $0xf0] sm:$0xff]
      %v291 = vld [vmem:[%s235 + $0xf8] sm:$0xff]
      %v292 = vld [vmem:[%s235 + $0x100] sm:$0xff]
      %v293 = vld [vmem:[%s235 + $0x108] sm:$0xff]
      %v294 = vld [vmem:[%s235 + $0x110] sm:$0xff]
      %v295 = vld [vmem:[%s235 + $0x118] sm:$0xff]
      %v296 = vld [vmem:[%s235 + $0x120] sm:$0xff]
      %v297 = vld [vmem:[%s235 + $0x128] sm:$0xff]
      %v298 = vld [vmem:[%s235 + $0x130] sm:$0xff]
      %v299 = vld [vmem:[%s235 + $0x138] sm:$0xff]
      %v300 = vld [vmem:[%s235 + $0x140] sm:$0xff]
      %v301 = vld [vmem:[%s235 + $0x148] sm:$0xff]
      %v302 = vld [vmem:[%s235 + $0x150] sm:$0xff]
      %v303 = vld [vmem:[%s235 + $0x158] sm:$0xff]
      %v304 = vld [vmem:[%s235 + $0x160] sm:$0xff]
      %v305 = vld [vmem:[%s235 + $0x168] sm:$0xff]
      %v306 = vld [vmem:[%s235 + $0x170] sm:$0xff]
      %v307 = vld [vmem:[%s235 + $0x178] sm:$0xff]
      %v308 = vld [vmem:[%s235 + $0x180] sm:$0xff]
      %v309 = vld [vmem:[%s235 + $0x188] sm:$0xff]
      %v310 = vld [vmem:[%s235 + $0x190] sm:$0xff]
      %v311 = vld [vmem:[%s235 + $0x198] sm:$0xff]
      %v312 = vld [vmem:[%s235 + $0x1a0] sm:$0xff]
      %v313 = vld [vmem:[%s235 + $0x1a8] sm:$0xff]
      %v314 = vld [vmem:[%s235 + $0x1b0] sm:$0xff]
      %v315 = vld [vmem:[%s235 + $0x1b8] sm:$0xff]
      %v316 = vld [vmem:[%s235 + $0x1c0] sm:$0xff]
      %v317 = vld [vmem:[%s235 + $0x1c8] sm:$0xff]
      %v318 = vld [vmem:[%s235 + $0x1d0] sm:$0xff]
      %v319 = vld [vmem:[%s235 + $0x1d8] sm:$0xff]
      %v320 = vld [vmem:[%s235 + $0x1e0] sm:$0xff]
      %v321 = vld [vmem:[%s235 + $0x1e8] sm:$0xff]
      %v322 = vld [vmem:[%s235 + $0x1f0] sm:$0xff]
      %v323 = vld [vmem:[%s235 + $0x1f8] sm:$0xff]
      %v324 = vld [vmem:[%s235 + $0x200] sm:$0xff]
      %v325 = vld [vmem:[%s235 + $0x208] sm:$0xff]
      %v326 = vld [vmem:[%s235 + $0x210] sm:$0xff]
      %v327 = vld [vmem:[%s235 + $0x218] sm:$0xff]
      %v328 = vld [vmem:[%s235 + $0x220] sm:$0xff]
      %v329 = vld [vmem:[%s235 + $0x228] sm:$0xff]
      %v330 = vld [vmem:[%s235 + $0x230] sm:$0xff]
      %v331 = vld [vmem:[%s235 + $0x238] sm:$0xff]
      %v332 = vld [vmem:[%s235 + $0x240] sm:$0xff]
      %v333 = vld [vmem:[%s235 + $0x248] sm:$0xff]
      %v334 = vld [vmem:[%s235 + $0x250] sm:$0xff]
      %v335 = vld [vmem:[%s235 + $0x258] sm:$0xff]
      %v336 = vld [vmem:[%s235 + $0x260] sm:$0xff]
      %v337 = vld [vmem:[%s235 + $0x268] sm:$0xff]
      %v338 = vld [vmem:[%s235 + $0x270] sm:$0xff]
      %v339 = vld [vmem:[%s235 + $0x278] sm:$0xff]
      %v340 = vld [vmem:[%s235 + $0x280] sm:$0xff]
      %v341 = vld [vmem:[%s235 + $0x288] sm:$0xff]
      %v342 = vld [vmem:[%s235 + $0x290] sm:$0xff]
      %v343 = vld [vmem:[%s235 + $0x298] sm:$0xff]
      %v344 = vld [vmem:[%s235 + $0x2a0] sm:$0xff]
      %v345 = vld [vmem:[%s235 + $0x2a8] sm:$0xff]
      %v346 = vld [vmem:[%s235 + $0x2b0] sm:$0xff]
      %v347 = vld [vmem:[%s235 + $0x2b8] sm:$0xff]
      %v348 = vld [vmem:[%s235 + $0x2c0] sm:$0xff]
      %v349 = vld [vmem:[%s235 + $0x2c8] sm:$0xff]
      %v350 = vld [vmem:[%s235 + $0x2d0] sm:$0xff]
      %v351 = vld [vmem:[%s235 + $0x2d8] sm:$0xff]
      %v352 = vld [vmem:[%s235 + $0x2e0] sm:$0xff]
      %v353 = vld [vmem:[%s235 + $0x2e8] sm:$0xff]
      %v354 = vld [vmem:[%s235 + $0x2f0] sm:$0xff]
      %v355 = vld [vmem:[%s235 + $0x2f8] sm:$0xff]
      %v356 = vld [vmem:[%s235 + $0x300] sm:$0xff]
      %v357 = vld [vmem:[%s235 + $0x308] sm:$0xff]
      %v358 = vld [vmem:[%s235 + $0x310] sm:$0xff]
      %v359 = vld [vmem:[%s235 + $0x318] sm:$0xff]
      %v360 = vld [vmem:[%s235 + $0x320] sm:$0xff]
      %v361 = vld [vmem:[%s235 + $0x328] sm:$0xff]
      %v362 = vld [vmem:[%s235 + $0x330] sm:$0xff]
      %v363 = vld [vmem:[%s235 + $0x338] sm:$0xff]
      %v364 = vld [vmem:[%s235 + $0x340] sm:$0xff]
      %v365 = vld [vmem:[%s235 + $0x348] sm:$0xff]
      %v366 = vld [vmem:[%s235 + $0x350] sm:$0xff]
      %v367 = vld [vmem:[%s235 + $0x358] sm:$0xff]
      %v368 = vld [vmem:[%s235 + $0x360] sm:$0xff]
      %v369 = vld [vmem:[%s235 + $0x368] sm:$0xff]
      %v370 = vld [vmem:[%s235 + $0x370] sm:$0xff]
      %v371 = vld [vmem:[%s235 + $0x378] sm:$0xff]
      %v372 = vld [vmem:[%s235 + $0x380] sm:$0xff]
      %v373 = vld [vmem:[%s235 + $0x388] sm:$0xff]
      %v374 = vld [vmem:[%s235 + $0x390] sm:$0xff]
      %v375 = vld [vmem:[%s235 + $0x398] sm:$0xff]
      %v376 = vld [vmem:[%s235 + $0x3a0] sm:$0xff]
      %v377 = vld [vmem:[%s235 + $0x3a8] sm:$0xff]
      %v378 = vld [vmem:[%s235 + $0x3b0] sm:$0xff]
      %v379 = vld [vmem:[%s235 + $0x3b8] sm:$0xff]
      %v380 = vld [vmem:[%s235 + $0x3c0] sm:$0xff]
      %v381 = vld [vmem:[%s235 + $0x3c8] sm:$0xff]
      %v382 = vld [vmem:[%s235 + $0x3d0] sm:$0xff]
      %v383 = vld [vmem:[%s235 + $0x3d8] sm:$0xff]
      %v384 = vld [vmem:[%s235 + $0x3e0] sm:$0xff]
      %v385 = vld [vmem:[%s235 + $0x3e8] sm:$0xff]
      %v386 = vld [vmem:[%s235 + $0x3f0] sm:$0xff]
      %v387 = vld [vmem:[%s235 + $0x3f8] sm:$0xff]
      %v388 = vld [vmem:[%s235 + $0x400] sm:$0xff]
      %v389 = vld [vmem:[%s235 + $0x408] sm:$0xff]
      %v390 = vld [vmem:[%s235 + $0x410] sm:$0xff]
      %v391 = vld [vmem:[%s235 + $0x418] sm:$0xff]
      %v392 = vld [vmem:[%s235 + $0x420] sm:$0xff]
      %v393 = vld [vmem:[%s235 + $0x428] sm:$0xff]
      %v394 = vld [vmem:[%s235 + $0x430] sm:$0xff]
      %v395 = vld [vmem:[%s235 + $0x438] sm:$0xff]
      %v396 = vld [vmem:[%s235 + $0x440] sm:$0xff]
      %v397 = vld [vmem:[%s235 + $0x448] sm:$0xff]
      %v398 = vld [vmem:[%s235 + $0x450] sm:$0xff]
      %v399 = vld [vmem:[%s235 + $0x458] sm:$0xff]
      %v400 = vld [vmem:[%s235 + $0x460] sm:$0xff]
      %v401 = vld [vmem:[%s235 + $0x468] sm:$0xff]
      %v402 = vld [vmem:[%s235 + $0x470] sm:$0xff]
      %v403 = vld [vmem:[%s235 + $0x478] sm:$0xff]
      %v404 = vld [vmem:[%s235 + $0x480] sm:$0xff]
      %v405 = vld [vmem:[%s235 + $0x488] sm:$0xff]
      %v406 = vld [vmem:[%s235 + $0x490] sm:$0xff]
      %v407 = vld [vmem:[%s235 + $0x498] sm:$0xff]
      %v408 = vld [vmem:[%s235 + $0x4a0] sm:$0xff]
      %v409 = vld [vmem:[%s235 + $0x4a8] sm:$0xff]
      %v410 = vld [vmem:[%s235 + $0x4b0] sm:$0xff]
      %v411 = vld [vmem:[%s235 + $0x4b8] sm:$0xff]
      %v412 = vld [vmem:[%s235 + $0x4c0] sm:$0xff]
      %v413 = vld [vmem:[%s235 + $0x4c8] sm:$0xff]
      %v414 = vld [vmem:[%s235 + $0x4d0] sm:$0xff]
      %v415 = vld [vmem:[%s235 + $0x4d8] sm:$0xff]
      %v416 = vld [vmem:[%s235 + $0x4e0] sm:$0xff]
      %v417 = vld [vmem:[%s235 + $0x4e8] sm:$0xff]
      %v418 = vld [vmem:[%s235 + $0x4f0] sm:$0xff]
      %v419 = vld [vmem:[%s235 + $0x4f8] sm:$0xff]
      %v420 = vld [vmem:[%s235 + $0x500] sm:$0xff]
      %v421 = vld [vmem:[%s235 + $0x508] sm:$0xff]
      %v422 = vld [vmem:[%s235 + $0x510] sm:$0xff]
      %v423 = vld [vmem:[%s235 + $0x518] sm:$0xff]
      %v424 = vld [vmem:[%s235 + $0x520] sm:$0xff]
      %v425 = vld [vmem:[%s235 + $0x528] sm:$0xff]
      %v426 = vld [vmem:[%s235 + $0x530] sm:$0xff]
      %v427 = vld [vmem:[%s235 + $0x538] sm:$0xff]
      %v428 = vld [vmem:[%s235 + $0x540] sm:$0xff]
      %v429 = vld [vmem:[%s235 + $0x548] sm:$0xff]
      %v430 = vld [vmem:[%s235 + $0x550] sm:$0xff]
      %v431 = vld [vmem:[%s235 + $0x558] sm:$0xff]
      %v432 = vld [vmem:[%s235 + $0x560] sm:$0xff]
      %v433 = vld [vmem:[%s235 + $0x568] sm:$0xff]
      %v434 = vld [vmem:[%s235 + $0x570] sm:$0xff]
      %v435 = vld [vmem:[%s235 + $0x578] sm:$0xff]
      %v436 = vld [vmem:[%s235 + $0x580] sm:$0xff]
      %v437 = vld [vmem:[%s235 + $0x588] sm:$0xff]
      %v438 = vld [vmem:[%s235 + $0x590] sm:$0xff]
      %v439 = vld [vmem:[%s235 + $0x598] sm:$0xff]
      %v440 = vld [vmem:[%s235 + $0x5a0] sm:$0xff]
      %v441 = vld [vmem:[%s235 + $0x5a8] sm:$0xff]
      %v442 = vld [vmem:[%s235 + $0x5b0] sm:$0xff]
      %v443 = vld [vmem:[%s235 + $0x5b8] sm:$0xff]
      %v444 = vld [vmem:[%s235 + $0x5c0] sm:$0xff]
      %v445 = vld [vmem:[%s235 + $0x5c8] sm:$0xff]
      %v446 = vld [vmem:[%s235 + $0x5d0] sm:$0xff]
      %v447 = vld [vmem:[%s235 + $0x5d8] sm:$0xff]
      %v448 = vld [vmem:[%s235 + $0x5e0] sm:$0xff]
      %v449 = vld [vmem:[%s235 + $0x5e8] sm:$0xff]
      %v450 = vld [vmem:[%s235 + $0x5f0] sm:$0xff]
      %v451 = vld [vmem:[%s235 + $0x5f8] sm:$0xff]
      %v452 = vld [vmem:[%s235 + $0x600] sm:$0xff]
      %v453 = vld [vmem:[%s235 + $0x608] sm:$0xff]
      %v454 = vld [vmem:[%s235 + $0x610] sm:$0xff]
      %v455 = vld [vmem:[%s235 + $0x618] sm:$0xff]
      %v456 = vld [vmem:[%s235 + $0x620] sm:$0xff]
      %v457 = vld [vmem:[%s235 + $0x628] sm:$0xff]
      %v458 = vld [vmem:[%s235 + $0x630] sm:$0xff]
      %v459 = vld [vmem:[%s235 + $0x638] sm:$0xff]
      %v460 = vld [vmem:[%s235 + $0x640] sm:$0xff]
      %v461 = vld [vmem:[%s235 + $0x648] sm:$0xff]
      %v462 = vld [vmem:[%s235 + $0x650] sm:$0xff]
      %v463 = vld [vmem:[%s235 + $0x658] sm:$0xff]
      %v464 = vld [vmem:[%s235 + $0x660] sm:$0xff]
      %v465 = vld [vmem:[%s235 + $0x668] sm:$0xff]
      %v466 = vld [vmem:[%s235 + $0x670] sm:$0xff]
      %v467 = vld [vmem:[%s235 + $0x678] sm:$0xff]
      %v468 = vld [vmem:[%s235 + $0x680] sm:$0xff]
      %v469 = vld [vmem:[%s235 + $0x688] sm:$0xff]
      %v470 = vld [vmem:[%s235 + $0x690] sm:$0xff]
      %v471 = vld [vmem:[%s235 + $0x698] sm:$0xff]
      %v472 = vld [vmem:[%s235 + $0x6a0] sm:$0xff]
      %v473 = vld [vmem:[%s235 + $0x6a8] sm:$0xff]
      %v474 = vld [vmem:[%s235 + $0x6b0] sm:$0xff]
      %v475 = vld [vmem:[%s235 + $0x6b8] sm:$0xff]
      %v476 = vld [vmem:[%s235 + $0x6c0] sm:$0xff]
      %v477 = vld [vmem:[%s235 + $0x6c8] sm:$0xff]
      %v478 = vld [vmem:[%s235 + $0x6d0] sm:$0xff]
      %v479 = vld [vmem:[%s235 + $0x6d8] sm:$0xff]
      %v480 = vld [vmem:[%s235 + $0x6e0] sm:$0xff]
      %v481 = vld [vmem:[%s235 + $0x6e8] sm:$0xff]
      %v482 = vld [vmem:[%s235 + $0x6f0] sm:$0xff]
      %v483 = vld [vmem:[%s235 + $0x6f8] sm:$0xff]
      %v484 = vld [vmem:[%s235 + $0x700] sm:$0xff]
      %v485 = vld [vmem:[%s235 + $0x708] sm:$0xff]
      %v486 = vld [vmem:[%s235 + $0x710] sm:$0xff]
      %v487 = vld [vmem:[%s235 + $0x718] sm:$0xff]
      %v488 = vld [vmem:[%s235 + $0x720] sm:$0xff]
      %v489 = vld [vmem:[%s235 + $0x728] sm:$0xff]
      %v490 = vld [vmem:[%s235 + $0x730] sm:$0xff]
      %v491 = vld [vmem:[%s235 + $0x738] sm:$0xff]
      %v492 = vld [vmem:[%s235 + $0x740] sm:$0xff]
      %v493 = vld [vmem:[%s235 + $0x748] sm:$0xff]
      %v494 = vld [vmem:[%s235 + $0x750] sm:$0xff]
      %v495 = vld [vmem:[%s235 + $0x758] sm:$0xff]
      %v496 = vld [vmem:[%s235 + $0x760] sm:$0xff]
      %v497 = vld [vmem:[%s235 + $0x768] sm:$0xff]
      %v498 = vld [vmem:[%s235 + $0x770] sm:$0xff]
      %v499 = vld [vmem:[%s235 + $0x778] sm:$0xff]
      %v500 = vld [vmem:[%s235 + $0x780] sm:$0xff]
      %v501 = vld [vmem:[%s235 + $0x788] sm:$0xff]
      %v502 = vld [vmem:[%s235 + $0x790] sm:$0xff]
      %v503 = vld [vmem:[%s235 + $0x798] sm:$0xff]
      %v504 = vld [vmem:[%s235 + $0x7a0] sm:$0xff]
      %v505 = vld [vmem:[%s235 + $0x7a8] sm:$0xff]
      %v506 = vld [vmem:[%s235 + $0x7b0] sm:$0xff]
      %v507 = vld [vmem:[%s235 + $0x7b8] sm:$0xff]
      %v508 = vld [vmem:[%s235 + $0x7c0] sm:$0xff]
      %v509 = vld [vmem:[%s235 + $0x7c8] sm:$0xff]
      %v510 = vld [vmem:[%s235 + $0x7d0] sm:$0xff]
      %v511 = vld [vmem:[%s235 + $0x7d8] sm:$0xff]
      %v512 = vld [vmem:[%s235 + $0x7e0] sm:$0xff]
      %v513 = vld [vmem:[%s235 + $0x7e8] sm:$0xff]
      %v514 = vld [vmem:[%s235 + $0x7f0] sm:$0xff]
      %v515 = vld [vmem:[%s235 + $0x7f8] sm:$0xff]
      %v516 = vld [vmem:[%s235 + $0x800] sm:$0xff]
      %v517 = vld [vmem:[%s235 + $0x808] sm:$0xff]
      %v518 = vld [vmem:[%s235 + $0x810] sm:$0xff]
      %v519 = vld [vmem:[%s235 + $0x818] sm:$0xff]
      %v520 = vld [vmem:[%s235 + $0x820] sm:$0xff]
      %v521 = vld [vmem:[%s235 + $0x828] sm:$0xff]
      %v522 = vld [vmem:[%s235 + $0x830] sm:$0xff]
      %v523 = vld [vmem:[%s235 + $0x838] sm:$0xff]
      %v524 = vld [vmem:[%s235 + $0x840] sm:$0xff]
      %v525 = vld [vmem:[%s235 + $0x848] sm:$0xff]
      %v526 = vld [vmem:[%s235 + $0x850] sm:$0xff]
      %v527 = vld [vmem:[%s235 + $0x858] sm:$0xff]
      %v528 = vld [vmem:[%s235 + $0x860] sm:$0xff]
      %v529 = vld [vmem:[%s235 + $0x868] sm:$0xff]
      %v530 = vld [vmem:[%s235 + $0x870] sm:$0xff]
      %v531 = vld [vmem:[%s235 + $0x878] sm:$0xff]
      %v532 = vld [vmem:[%s235 + $0x880] sm:$0xff]
      %v533 = vld [vmem:[%s235 + $0x888] sm:$0xff]
      %v534 = vld [vmem:[%s235 + $0x890] sm:$0xff]
      %v535 = vld [vmem:[%s235 + $0x898] sm:$0xff]
      %v536 = vld [vmem:[%s235 + $0x8a0] sm:$0xff]
      %v537 = vld [vmem:[%s235 + $0x8a8] sm:$0xff]
      %v538 = vld [vmem:[%s235 + $0x8b0] sm:$0xff]
      %v539 = vld [vmem:[%s235 + $0x8b8] sm:$0xff]
      %v540 = vld [vmem:[%s235 + $0x8c0] sm:$0xff]
      %v541 = vld [vmem:[%s235 + $0x8c8] sm:$0xff]
      %v542 = vld [vmem:[%s235 + $0x8d0] sm:$0xff]
      %v543 = vld [vmem:[%s235 + $0x8d8] sm:$0xff]
      %v544 = vld [vmem:[%s235 + $0x8e0] sm:$0xff]
      %v545 = vld [vmem:[%s235 + $0x8e8] sm:$0xff]
      %v546 = vld [vmem:[%s235 + $0x8f0] sm:$0xff]
      %v547 = vld [vmem:[%s235 + $0x8f8] sm:$0xff]
      %v548 = vld [vmem:[%s235 + $0x900] sm:$0xff]
      %v549 = vld [vmem:[%s235 + $0x908] sm:$0xff]
      %v550 = vld [vmem:[%s235 + $0x910] sm:$0xff]
      %v551 = vld [vmem:[%s235 + $0x918] sm:$0xff]
      %v552 = vld [vmem:[%s235 + $0x920] sm:$0xff]
      %v553 = vld [vmem:[%s235 + $0x928] sm:$0xff]
      %v554 = vld [vmem:[%s235 + $0x930] sm:$0xff]
      %v555 = vld [vmem:[%s235 + $0x938] sm:$0xff]
      %v556 = vld [vmem:[%s235 + $0x940] sm:$0xff]
      %v557 = vld [vmem:[%s235 + $0x948] sm:$0xff]
      %v558 = vld [vmem:[%s235 + $0x950] sm:$0xff]
      %v559 = vld [vmem:[%s235 + $0x958] sm:$0xff]
      %v560 = vld [vmem:[%s235 + $0x960] sm:$0xff]
      %v561 = vld [vmem:[%s235 + $0x968] sm:$0xff]
      %v562 = vld [vmem:[%s235 + $0x970] sm:$0xff]
      %v563 = vld [vmem:[%s235 + $0x978] sm:$0xff]
      %v564 = vld [vmem:[%s235 + $0x980] sm:$0xff]
      %v565 = vld [vmem:[%s235 + $0x988] sm:$0xff]
      %v566 = vld [vmem:[%s235 + $0x990] sm:$0xff]
      %v567 = vld [vmem:[%s235 + $0x998] sm:$0xff]
      %v568 = vld [vmem:[%s235 + $0x9a0] sm:$0xff]
      %v569 = vld [vmem:[%s235 + $0x9a8] sm:$0xff]
      %v570 = vld [vmem:[%s235 + $0x9b0] sm:$0xff]
      %v571 = vld [vmem:[%s235 + $0x9b8] sm:$0xff]
      %v572 = vld [vmem:[%s235 + $0x9c0] sm:$0xff]
      %v573 = vld [vmem:[%s235 + $0x9c8] sm:$0xff]
      %v574 = vld [vmem:[%s235 + $0x9d0] sm:$0xff]
      %v575 = vld [vmem:[%s235 + $0x9d8] sm:$0xff]
      %v576 = vld [vmem:[%s235 + $0x9e0] sm:$0xff]
      %v577 = vld [vmem:[%s235 + $0x9e8] sm:$0xff]
      %v578 = vld [vmem:[%s235 + $0x9f0] sm:$0xff]
      %v579 = vld [vmem:[%s235 + $0x9f8] sm:$0xff]
      %v583 = vunpack.c.l.b16 %v257
      %v584 = vunpack.c.h.b16 %v257
      %v585 = vunpack.c.l.b16 %v258
      %v586 = vunpack.c.h.b16 %v258
      %v587 = vunpack.c.l.b16 %v259
      %v588 = vpack.c.b16 %v583, %v583
      %v589 = vpack.c.b16 %v584, %v584
      %v590 = vpack.c.b16 %v585, %v585
      %v591 = vpack.c.b16 %v586, %v586
      %v592 = vpack.c.b16 %v587, %v587
      %v918 = vunpack.c.l.b16 %v260
      %v919 = vunpack.c.h.b16 %v260
      %v920 = vunpack.c.l.b16 %v261
      %v921 = vunpack.c.h.b16 %v261
      %v922 = vunpack.c.l.b16 %v262
      %v923 = vunpack.c.h.b16 %v262
      %v924 = vunpack.c.l.b16 %v263
      %v925 = vunpack.c.h.b16 %v263
      %v926 = vunpack.c.l.b16 %v264
      %v927 = vunpack.c.h.b16 %v264
      %v928 = vunpack.c.l.b16 %v265
      %v929 = vunpack.c.h.b16 %v265
      %v930 = vunpack.c.l.b16 %v266
      %v931 = vunpack.c.h.b16 %v266
      %v932 = vunpack.c.l.b16 %v267
      %v933 = vunpack.c.h.b16 %v267
      %v934 = vunpack.c.l.b16 %v268
      %v935 = vunpack.c.h.b16 %v268
      %v936 = vunpack.c.l.b16 %v269
      %v937 = vunpack.c.h.b16 %v269
      %v938 = vunpack.c.l.b16 %v270
      %v939 = vunpack.c.h.b16 %v270
      %v940 = vunpack.c.l.b16 %v271
      %v941 = vunpack.c.h.b16 %v271
      %v942 = vunpack.c.l.b16 %v272
      %v943 = vunpack.c.h.b16 %v272
      %v944 = vunpack.c.l.b16 %v273
      %v945 = vunpack.c.h.b16 %v273
      %v946 = vunpack.c.l.b16 %v274
      %v947 = vunpack.c.h.b16 %v274
      %v948 = vunpack.c.l.b16 %v275
      %v949 = vunpack.c.h.b16 %v275
      %v950 = vunpack.c.l.b16 %v276
      %v951 = vunpack.c.h.b16 %v276
      %v952 = vunpack.c.l.b16 %v277
      %v953 = vunpack.c.h.b16 %v277
      %v954 = vunpack.c.l.b16 %v278
      %v955 = vunpack.c.h.b16 %v278
      %v956 = vunpack.c.l.b16 %v279
      %v957 = vunpack.c.h.b16 %v279
      %v958 = vunpack.c.l.b16 %v280
      %v959 = vunpack.c.h.b16 %v280
      %v960 = vunpack.c.l.b16 %v281
      %v961 = vunpack.c.h.b16 %v281
      %v962 = vunpack.c.l.b16 %v282
      %v963 = vunpack.c.h.b16 %v282
      %v964 = vunpack.c.l.b16 %v283
      %v965 = vunpack.c.h.b16 %v283
      %v966 = vunpack.c.l.b16 %v284
      %v967 = vunpack.c.h.b16 %v284
      %v968 = vunpack.c.l.b16 %v285
      %v969 = vunpack.c.h.b16 %v285
      %v970 = vunpack.c.l.b16 %v286
      %v971 = vunpack.c.h.b16 %v286
      %v972 = vunpack.c.l.b16 %v287
      %v973 = vunpack.c.h.b16 %v287
      %v974 = vunpack.c.l.b16 %v288
      %v975 = vunpack.c.h.b16 %v288
      %v976 = vunpack.c.l.b16 %v289
      %v977 = vunpack.c.h.b16 %v289
      %v978 = vunpack.c.l.b16 %v290
      %v979 = vunpack.c.h.b16 %v290
      %v980 = vunpack.c.l.b16 %v291
      %v981 = vunpack.c.h.b16 %v291
      %v982 = vunpack.c.l.b16 %v292
      %v983 = vunpack.c.h.b16 %v292
      %v984 = vunpack.c.l.b16 %v293
      %v985 = vunpack.c.h.b16 %v293
      %v986 = vunpack.c.l.b16 %v294
      %v987 = vunpack.c.h.b16 %v294
      %v988 = vunpack.c.l.b16 %v295
      %v989 = vunpack.c.h.b16 %v295
      %v990 = vunpack.c.l.b16 %v296
      %v991 = vunpack.c.h.b16 %v296
      %v992 = vunpack.c.l.b16 %v297
      %v993 = vunpack.c.h.b16 %v297
      %v994 = vunpack.c.l.b16 %v298
      %v995 = vunpack.c.h.b16 %v298
      %v996 = vunpack.c.l.b16 %v299
      %v997 = vunpack.c.h.b16 %v299
      %v998 = vunpack.c.l.b16 %v300
      %v999 = vunpack.c.h.b16 %v300
      %v1000 = vunpack.c.l.b16 %v301
      %v1001 = vunpack.c.h.b16 %v301
      %v1002 = vunpack.c.l.b16 %v302
      %v1003 = vunpack.c.h.b16 %v302
      %v1004 = vunpack.c.l.b16 %v303
      %v1005 = vunpack.c.h.b16 %v303
      %v1006 = vunpack.c.l.b16 %v304
      %v1007 = vunpack.c.h.b16 %v304
      %v1008 = vunpack.c.l.b16 %v305
      %v1009 = vunpack.c.h.b16 %v305
      %v1010 = vunpack.c.l.b16 %v306
      %v1011 = vunpack.c.h.b16 %v306
      %v1012 = vunpack.c.l.b16 %v307
      %v1013 = vunpack.c.h.b16 %v307
      %v1014 = vunpack.c.l.b16 %v308
      %v1015 = vunpack.c.h.b16 %v308
      %v1016 = vunpack.c.l.b16 %v309
      %v1017 = vunpack.c.h.b16 %v309
      %v1018 = vunpack.c.l.b16 %v310
      %v1019 = vunpack.c.h.b16 %v310
      %v1020 = vunpack.c.l.b16 %v311
      %v1021 = vunpack.c.h.b16 %v311
      %v1022 = vunpack.c.l.b16 %v312
      %v1023 = vunpack.c.h.b16 %v312
      %v1024 = vunpack.c.l.b16 %v313
      %v1025 = vunpack.c.h.b16 %v313
      %v1026 = vunpack.c.l.b16 %v314
      %v1027 = vunpack.c.h.b16 %v314
      %v1028 = vunpack.c.l.b16 %v315
      %v1029 = vunpack.c.h.b16 %v315
      %v1030 = vunpack.c.l.b16 %v316
      %v1031 = vunpack.c.h.b16 %v316
      %v1032 = vunpack.c.l.b16 %v317
      %v1033 = vunpack.c.h.b16 %v317
      %v1034 = vunpack.c.l.b16 %v318
      %v1035 = vunpack.c.h.b16 %v318
      %v1036 = vunpack.c.l.b16 %v319
      %v1037 = vunpack.c.h.b16 %v319
      %v1038 = vunpack.c.l.b16 %v320
      %v1039 = vunpack.c.h.b16 %v320
      %v1040 = vunpack.c.l.b16 %v321
      %v1041 = vunpack.c.h.b16 %v321
      %v1042 = vunpack.c.l.b16 %v322
      %v1043 = vunpack.c.h.b16 %v322
      %v1044 = vunpack.c.l.b16 %v323
      %v1045 = vunpack.c.h.b16 %v323
      %v1046 = vunpack.c.l.b16 %v324
      %v1047 = vunpack.c.h.b16 %v324
      %v1048 = vunpack.c.l.b16 %v325
      %v1049 = vunpack.c.h.b16 %v325
      %v1050 = vunpack.c.l.b16 %v326
      %v1051 = vunpack.c.h.b16 %v326
      %v1052 = vunpack.c.l.b16 %v327
      %v1053 = vunpack.c.h.b16 %v327
      %v1054 = vunpack.c.l.b16 %v328
      %v1055 = vunpack.c.h.b16 %v328
      %v1056 = vunpack.c.l.b16 %v329
      %v1057 = vunpack.c.h.b16 %v329
      %v1058 = vunpack.c.l.b16 %v330
      %v1059 = vunpack.c.h.b16 %v330
      %v1060 = vunpack.c.l.b16 %v331
      %v1061 = vunpack.c.h.b16 %v331
      %v1062 = vunpack.c.l.b16 %v332
      %v1063 = vunpack.c.h.b16 %v332
      %v1064 = vunpack.c.l.b16 %v333
      %v1065 = vunpack.c.h.b16 %v333
      %v1066 = vunpack.c.l.b16 %v334
      %v1067 = vunpack.c.h.b16 %v334
      %v1068 = vunpack.c.l.b16 %v335
      %v1069 = vunpack.c.h.b16 %v335
      %v1070 = vunpack.c.l.b16 %v336
      %v1071 = vunpack.c.h.b16 %v336
      %v1072 = vunpack.c.l.b16 %v337
      %v1073 = vunpack.c.h.b16 %v337
      %v1074 = vunpack.c.l.b16 %v338
      %v1075 = vunpack.c.h.b16 %v338
      %v1076 = vunpack.c.l.b16 %v339
      %v1077 = vunpack.c.h.b16 %v339
      %v1078 = vunpack.c.l.b16 %v340
      %v1079 = vunpack.c.h.b16 %v340
      %v1080 = vunpack.c.l.b16 %v341
      %v1081 = vunpack.c.h.b16 %v341
      %v1082 = vunpack.c.l.b16 %v342
      %v1083 = vunpack.c.h.b16 %v342
      %v1084 = vunpack.c.l.b16 %v343
      %v1085 = vunpack.c.h.b16 %v343
      %v1086 = vunpack.c.l.b16 %v344
      %v1087 = vunpack.c.h.b16 %v344
      %v1088 = vunpack.c.l.b16 %v345
      %v1089 = vunpack.c.h.b16 %v345
      %v1090 = vunpack.c.l.b16 %v346
      %v1091 = vunpack.c.h.b16 %v346
      %v1092 = vunpack.c.l.b16 %v347
      %v1093 = vunpack.c.h.b16 %v347
      %v1094 = vunpack.c.l.b16 %v348
      %v1095 = vunpack.c.h.b16 %v348
      %v1096 = vunpack.c.l.b16 %v349
      %v1097 = vunpack.c.h.b16 %v349
      %v1098 = vunpack.c.l.b16 %v350
      %v1099 = vunpack.c.h.b16 %v350
      %v1100 = vunpack.c.l.b16 %v351
      %v1101 = vunpack.c.h.b16 %v351
      %v1102 = vunpack.c.l.b16 %v352
      %v1103 = vunpack.c.h.b16 %v352
      %v1104 = vunpack.c.l.b16 %v353
      %v1105 = vunpack.c.h.b16 %v353
      %v1106 = vunpack.c.l.b16 %v354
      %v1107 = vunpack.c.h.b16 %v354
      %v1108 = vunpack.c.l.b16 %v355
      %v1109 = vunpack.c.h.b16 %v355
      %v1110 = vunpack.c.l.b16 %v356
      %v1111 = vunpack.c.h.b16 %v356
      %v1112 = vunpack.c.l.b16 %v357
      %v1113 = vunpack.c.h.b16 %v357
      %v1114 = vunpack.c.l.b16 %v358
      %v1115 = vunpack.c.h.b16 %v358
      %v1116 = vunpack.c.l.b16 %v359
      %v1117 = vunpack.c.h.b16 %v359
      %v1118 = vunpack.c.l.b16 %v360
      %v1119 = vunpack.c.h.b16 %v360
      %v1120 = vunpack.c.l.b16 %v361
      %v1121 = vunpack.c.h.b16 %v361
      %v1122 = vunpack.c.l.b16 %v362
      %v1123 = vunpack.c.h.b16 %v362
      %v1124 = vunpack.c.l.b16 %v363
      %v1125 = vunpack.c.h.b16 %v363
      %v1126 = vunpack.c.l.b16 %v364
      %v1127 = vunpack.c.h.b16 %v364
      %v1128 = vunpack.c.l.b16 %v365
      %v1129 = vunpack.c.h.b16 %v365
      %v1130 = vunpack.c.l.b16 %v366
      %v1131 = vunpack.c.h.b16 %v366
      %v1132 = vunpack.c.l.b16 %v367
      %v1133 = vunpack.c.h.b16 %v367
      %v1134 = vunpack.c.l.b16 %v368
      %v1135 = vunpack.c.h.b16 %v368
      %v1136 = vunpack.c.l.b16 %v369
      %v1137 = vunpack.c.h.b16 %v369
      %v1138 = vunpack.c.l.b16 %v370
      %v1139 = vunpack.c.h.b16 %v370
      %v1140 = vunpack.c.l.b16 %v371
      %v1141 = vunpack.c.h.b16 %v371
      %v1142 = vunpack.c.l.b16 %v372
      %v1143 = vunpack.c.h.b16 %v372
      %v1144 = vunpack.c.l.b16 %v373
      %v1145 = vunpack.c.h.b16 %v373
      %v1146 = vunpack.c.l.b16 %v374
      %v1147 = vunpack.c.h.b16 %v374
      %v1148 = vunpack.c.l.b16 %v375
      %v1149 = vunpack.c.h.b16 %v375
      %v1150 = vunpack.c.l.b16 %v376
      %v1151 = vunpack.c.h.b16 %v376
      %v1152 = vunpack.c.l.b16 %v377
      %v1153 = vunpack.c.h.b16 %v377
      %v1154 = vunpack.c.l.b16 %v378
      %v1155 = vunpack.c.h.b16 %v378
      %v1156 = vunpack.c.l.b16 %v379
      %v1157 = vunpack.c.h.b16 %v379
      %v1158 = vunpack.c.l.b16 %v380
      %v1159 = vunpack.c.h.b16 %v380
      %v1160 = vunpack.c.l.b16 %v381
      %v1161 = vunpack.c.h.b16 %v381
      %v1162 = vunpack.c.l.b16 %v382
      %v1163 = vunpack.c.h.b16 %v382
      %v1164 = vunpack.c.l.b16 %v383
      %v1165 = vunpack.c.h.b16 %v383
      %v1166 = vunpack.c.l.b16 %v384
      %v1167 = vunpack.c.h.b16 %v384
      %v1168 = vunpack.c.l.b16 %v385
      %v1169 = vunpack.c.h.b16 %v385
      %v1170 = vunpack.c.l.b16 %v386
      %v1171 = vunpack.c.h.b16 %v386
      %v1172 = vunpack.c.l.b16 %v387
      %v1173 = vunpack.c.h.b16 %v387
      %v1174 = vunpack.c.l.b16 %v388
      %v1175 = vunpack.c.h.b16 %v388
      %v1176 = vunpack.c.l.b16 %v389
      %v1177 = vunpack.c.h.b16 %v389
      %v1178 = vunpack.c.l.b16 %v390
      %v1179 = vunpack.c.h.b16 %v390
      %v1180 = vunpack.c.l.b16 %v391
      %v1181 = vunpack.c.h.b16 %v391
      %v1182 = vunpack.c.l.b16 %v392
      %v1183 = vunpack.c.h.b16 %v392
      %v1184 = vunpack.c.l.b16 %v393
      %v1185 = vunpack.c.h.b16 %v393
      %v1186 = vunpack.c.l.b16 %v394
      %v1187 = vunpack.c.h.b16 %v394
      %v1188 = vunpack.c.l.b16 %v395
      %v1189 = vunpack.c.h.b16 %v395
      %v1190 = vunpack.c.l.b16 %v396
      %v1191 = vunpack.c.h.b16 %v396
      %v1192 = vunpack.c.l.b16 %v397
      %v1193 = vunpack.c.h.b16 %v397
      %v1194 = vunpack.c.l.b16 %v398
      %v1195 = vunpack.c.h.b16 %v398
      %v1196 = vunpack.c.l.b16 %v399
      %v1197 = vunpack.c.h.b16 %v399
      %v1198 = vunpack.c.l.b16 %v400
      %v1199 = vunpack.c.h.b16 %v400
      %v1200 = vunpack.c.l.b16 %v401
      %v1201 = vunpack.c.h.b16 %v401
      %v1202 = vunpack.c.l.b16 %v402
      %v1203 = vunpack.c.h.b16 %v402
      %v1204 = vunpack.c.l.b16 %v403
      %v1205 = vunpack.c.h.b16 %v403
      %v1206 = vunpack.c.l.b16 %v404
      %v1207 = vunpack.c.h.b16 %v404
      %v1208 = vunpack.c.l.b16 %v405
      %v1209 = vunpack.c.h.b16 %v405
      %v1210 = vunpack.c.l.b16 %v406
      %v1211 = vunpack.c.h.b16 %v406
      %v1212 = vunpack.c.l.b16 %v407
      %v1213 = vunpack.c.h.b16 %v407
      %v1214 = vunpack.c.l.b16 %v408
      %v1215 = vunpack.c.h.b16 %v408
      %v1216 = vunpack.c.l.b16 %v409
      %v1217 = vunpack.c.h.b16 %v409
      %v1218 = vunpack.c.l.b16 %v410
      %v1219 = vunpack.c.h.b16 %v410
      %v1220 = vunpack.c.l.b16 %v411
      %v1221 = vunpack.c.h.b16 %v411
      %v1222 = vunpack.c.l.b16 %v412
      %v1223 = vunpack.c.h.b16 %v412
      %v1224 = vunpack.c.l.b16 %v413
      %v1225 = vunpack.c.h.b16 %v413
      %v1226 = vunpack.c.l.b16 %v414
      %v1227 = vunpack.c.h.b16 %v414
      %v1228 = vunpack.c.l.b16 %v415
      %v1229 = vunpack.c.h.b16 %v415
      %v1230 = vunpack.c.l.b16 %v416
      %v1231 = vunpack.c.h.b16 %v416
      %v1232 = vunpack.c.l.b16 %v417
      %v1233 = vunpack.c.h.b16 %v417
      %v1234 = vunpack.c.l.b16 %v418
      %v1235 = vunpack.c.h.b16 %v418
      %v1236 = vunpack.c.l.b16 %v419
      %v1237 = vunpack.c.h.b16 %v419
      %v1238 = vunpack.c.l.b16 %v420
      %v1239 = vunpack.c.h.b16 %v420
      %v1240 = vunpack.c.l.b16 %v421
      %v1241 = vunpack.c.h.b16 %v421
      %v1242 = vunpack.c.l.b16 %v422
      %v1243 = vunpack.c.h.b16 %v422
      %v1244 = vunpack.c.l.b16 %v423
      %v1245 = vunpack.c.h.b16 %v423
      %v1246 = vunpack.c.l.b16 %v424
      %v1247 = vunpack.c.h.b16 %v424
      %v1248 = vunpack.c.l.b16 %v425
      %v1249 = vunpack.c.h.b16 %v425
      %v1250 = vunpack.c.l.b16 %v426
      %v1251 = vunpack.c.h.b16 %v426
      %v1252 = vunpack.c.l.b16 %v427
      %v1253 = vunpack.c.h.b16 %v427
      %v1254 = vunpack.c.l.b16 %v428
      %v1255 = vunpack.c.h.b16 %v428
      %v1256 = vunpack.c.l.b16 %v429
      %v1257 = vunpack.c.h.b16 %v429
      %v1258 = vunpack.c.l.b16 %v430
      %v1259 = vunpack.c.h.b16 %v430
      %v1260 = vunpack.c.l.b16 %v431
      %v1261 = vunpack.c.h.b16 %v431
      %v1262 = vunpack.c.l.b16 %v432
      %v1263 = vunpack.c.h.b16 %v432
      %v1264 = vunpack.c.l.b16 %v433
      %v1265 = vunpack.c.h.b16 %v433
      %v1266 = vunpack.c.l.b16 %v434
      %v1267 = vunpack.c.h.b16 %v434
      %v1268 = vunpack.c.l.b16 %v435
      %v1269 = vunpack.c.h.b16 %v435
      %v1270 = vunpack.c.l.b16 %v436
      %v1271 = vunpack.c.h.b16 %v436
      %v1272 = vunpack.c.l.b16 %v437
      %v1273 = vunpack.c.h.b16 %v437
      %v1274 = vunpack.c.l.b16 %v438
      %v1275 = vunpack.c.h.b16 %v438
      %v1276 = vunpack.c.l.b16 %v439
      %v1277 = vunpack.c.h.b16 %v439
      %v1278 = vunpack.c.l.b16 %v440
      %v1279 = vunpack.c.h.b16 %v440
      %v1280 = vunpack.c.l.b16 %v441
      %v1281 = vunpack.c.h.b16 %v441
      %v1282 = vunpack.c.l.b16 %v442
      %v1283 = vunpack.c.h.b16 %v442
      %v1284 = vunpack.c.l.b16 %v443
      %v1285 = vunpack.c.h.b16 %v443
      %v1286 = vunpack.c.l.b16 %v444
      %v1287 = vunpack.c.h.b16 %v444
      %v1288 = vunpack.c.l.b16 %v445
      %v1289 = vunpack.c.h.b16 %v445
      %v1290 = vunpack.c.l.b16 %v446
      %v1291 = vunpack.c.h.b16 %v446
      %v1292 = vunpack.c.l.b16 %v447
      %v1293 = vunpack.c.h.b16 %v447
      %v1294 = vunpack.c.l.b16 %v448
      %v1295 = vunpack.c.h.b16 %v448
      %v1296 = vunpack.c.l.b16 %v449
      %v1297 = vunpack.c.h.b16 %v449
      %v1298 = vunpack.c.l.b16 %v450
      %v1299 = vunpack.c.h.b16 %v450
      %v1300 = vunpack.c.l.b16 %v451
      %v1301 = vunpack.c.h.b16 %v451
      %v1302 = vunpack.c.l.b16 %v452
      %v1303 = vunpack.c.h.b16 %v452
      %v1304 = vunpack.c.l.b16 %v453
      %v1305 = vunpack.c.h.b16 %v453
      %v1306 = vunpack.c.l.b16 %v454
      %v1307 = vunpack.c.h.b16 %v454
      %v1308 = vunpack.c.l.b16 %v455
      %v1309 = vunpack.c.h.b16 %v455
      %v1310 = vunpack.c.l.b16 %v456
      %v1311 = vunpack.c.h.b16 %v456
      %v1312 = vunpack.c.l.b16 %v457
      %v1313 = vunpack.c.h.b16 %v457
      %v1314 = vunpack.c.l.b16 %v458
      %v1315 = vunpack.c.h.b16 %v458
      %v1316 = vunpack.c.l.b16 %v459
      %v1317 = vunpack.c.h.b16 %v459
      %v1318 = vunpack.c.l.b16 %v460
      %v1319 = vunpack.c.h.b16 %v460
      %v1320 = vunpack.c.l.b16 %v461
      %v1321 = vunpack.c.h.b16 %v461
      %v1322 = vunpack.c.l.b16 %v462
      %v1323 = vunpack.c.h.b16 %v462
      %v1324 = vunpack.c.l.b16 %v463
      %v1325 = vunpack.c.h.b16 %v463
      %v1326 = vunpack.c.l.b16 %v464
      %v1327 = vunpack.c.h.b16 %v464
      %v1328 = vunpack.c.l.b16 %v465
      %v1329 = vunpack.c.h.b16 %v465
      %v1330 = vunpack.c.l.b16 %v466
      %v1331 = vunpack.c.h.b16 %v466
      %v1332 = vunpack.c.l.b16 %v467
      %v1333 = vunpack.c.h.b16 %v467
      %v1334 = vunpack.c.l.b16 %v468
      %v1335 = vunpack.c.h.b16 %v468
      %v1336 = vunpack.c.l.b16 %v469
      %v1337 = vunpack.c.h.b16 %v469
      %v1338 = vunpack.c.l.b16 %v470
      %v1339 = vunpack.c.h.b16 %v470
      %v1340 = vunpack.c.l.b16 %v471
      %v1341 = vunpack.c.h.b16 %v471
      %v1342 = vunpack.c.l.b16 %v472
      %v1343 = vunpack.c.h.b16 %v472
      %v1344 = vunpack.c.l.b16 %v473
      %v1345 = vunpack.c.h.b16 %v473
      %v1346 = vunpack.c.l.b16 %v474
      %v1347 = vunpack.c.h.b16 %v474
      %v1348 = vunpack.c.l.b16 %v475
      %v1349 = vunpack.c.h.b16 %v475
      %v1350 = vunpack.c.l.b16 %v476
      %v1351 = vunpack.c.h.b16 %v476
      %v1352 = vunpack.c.l.b16 %v477
      %v1353 = vunpack.c.h.b16 %v477
      %v1354 = vunpack.c.l.b16 %v478
      %v1355 = vunpack.c.h.b16 %v478
      %v1356 = vunpack.c.l.b16 %v479
      %v1357 = vunpack.c.h.b16 %v479
      %v1358 = vunpack.c.l.b16 %v480
      %v1359 = vunpack.c.h.b16 %v480
      %v1360 = vunpack.c.l.b16 %v481
      %v1361 = vunpack.c.h.b16 %v481
      %v1362 = vunpack.c.l.b16 %v482
      %v1363 = vunpack.c.h.b16 %v482
      %v1364 = vunpack.c.l.b16 %v483
      %v1365 = vunpack.c.h.b16 %v483
      %v1366 = vunpack.c.l.b16 %v484
      %v1367 = vunpack.c.h.b16 %v484
      %v1368 = vunpack.c.l.b16 %v485
      %v1369 = vunpack.c.h.b16 %v485
      %v1370 = vunpack.c.l.b16 %v486
      %v1371 = vunpack.c.h.b16 %v486
      %v1372 = vunpack.c.l.b16 %v487
      %v1373 = vunpack.c.h.b16 %v487
      %v1374 = vunpack.c.l.b16 %v488
      %v1375 = vunpack.c.h.b16 %v488
      %v1376 = vunpack.c.l.b16 %v489
      %v1377 = vunpack.c.h.b16 %v489
      %v1378 = vunpack.c.l.b16 %v490
      %v1379 = vunpack.c.h.b16 %v490
      %v1380 = vunpack.c.l.b16 %v491
      %v1381 = vunpack.c.h.b16 %v491
      %v1382 = vunpack.c.l.b16 %v492
      %v1383 = vunpack.c.h.b16 %v492
      %v1384 = vunpack.c.l.b16 %v493
      %v1385 = vunpack.c.h.b16 %v493
      %v1386 = vunpack.c.l.b16 %v494
      %v1387 = vunpack.c.h.b16 %v494
      %v1388 = vunpack.c.l.b16 %v495
      %v1389 = vunpack.c.h.b16 %v495
      %v1390 = vunpack.c.l.b16 %v496
      %v1391 = vunpack.c.h.b16 %v496
      %v1392 = vunpack.c.l.b16 %v497
      %v1393 = vunpack.c.h.b16 %v497
      %v1394 = vunpack.c.l.b16 %v498
      %v1395 = vunpack.c.h.b16 %v498
      %v1396 = vunpack.c.l.b16 %v499
      %v1397 = vunpack.c.h.b16 %v499
      %v1398 = vunpack.c.l.b16 %v500
      %v1399 = vunpack.c.h.b16 %v500
      %v1400 = vunpack.c.l.b16 %v501
      %v1401 = vunpack.c.h.b16 %v501
      %v1402 = vunpack.c.l.b16 %v502
      %v1403 = vunpack.c.h.b16 %v502
      %v1404 = vunpack.c.l.b16 %v503
      %v1405 = vunpack.c.h.b16 %v503
      %v1406 = vunpack.c.l.b16 %v504
      %v1407 = vunpack.c.h.b16 %v504
      %v1408 = vunpack.c.l.b16 %v505
      %v1409 = vunpack.c.h.b16 %v505
      %v1410 = vunpack.c.l.b16 %v506
      %v1411 = vunpack.c.h.b16 %v506
      %v1412 = vunpack.c.l.b16 %v507
      %v1413 = vunpack.c.h.b16 %v507
      %v1414 = vunpack.c.l.b16 %v508
      %v1415 = vunpack.c.h.b16 %v508
      %v1416 = vunpack.c.l.b16 %v509
      %v1417 = vunpack.c.h.b16 %v509
      %v1418 = vunpack.c.l.b16 %v510
      %v1419 = vunpack.c.h.b16 %v510
      %v1420 = vunpack.c.l.b16 %v511
      %v1421 = vunpack.c.h.b16 %v511
      %v1422 = vunpack.c.l.b16 %v512
      %v1423 = vunpack.c.h.b16 %v512
      %v1424 = vunpack.c.l.b16 %v513
      %v1425 = vunpack.c.h.b16 %v513
      %v1426 = vunpack.c.l.b16 %v514
      %v1427 = vunpack.c.h.b16 %v514
      %v1428 = vunpack.c.l.b16 %v515
      %v1429 = vunpack.c.h.b16 %v515
      %v1430 = vunpack.c.l.b16 %v516
      %v1431 = vunpack.c.h.b16 %v516
      %v1432 = vunpack.c.l.b16 %v517
      %v1433 = vunpack.c.h.b16 %v517
      %v1434 = vunpack.c.l.b16 %v518
      %v1435 = vunpack.c.h.b16 %v518
      %v1436 = vunpack.c.l.b16 %v519
      %v1437 = vunpack.c.h.b16 %v519
      %v1438 = vunpack.c.l.b16 %v520
      %v1439 = vunpack.c.h.b16 %v520
      %v1440 = vunpack.c.l.b16 %v521
      %v1441 = vunpack.c.h.b16 %v521
      %v1442 = vunpack.c.l.b16 %v522
      %v1443 = vunpack.c.h.b16 %v522
      %v1444 = vunpack.c.l.b16 %v523
      %v1445 = vunpack.c.h.b16 %v523
      %v1446 = vunpack.c.l.b16 %v524
      %v1447 = vunpack.c.h.b16 %v524
      %v1448 = vunpack.c.l.b16 %v525
      %v1449 = vunpack.c.h.b16 %v525
      %v1450 = vunpack.c.l.b16 %v526
      %v1451 = vunpack.c.h.b16 %v526
      %v1452 = vunpack.c.l.b16 %v527
      %v1453 = vunpack.c.h.b16 %v527
      %v1454 = vunpack.c.l.b16 %v528
      %v1455 = vunpack.c.h.b16 %v528
      %v1456 = vunpack.c.l.b16 %v529
      %v1457 = vunpack.c.h.b16 %v529
      %v1458 = vunpack.c.l.b16 %v530
      %v1459 = vunpack.c.h.b16 %v530
      %v1460 = vunpack.c.l.b16 %v531
      %v1461 = vunpack.c.h.b16 %v531
      %v1462 = vunpack.c.l.b16 %v532
      %v1463 = vunpack.c.h.b16 %v532
      %v1464 = vunpack.c.l.b16 %v533
      %v1465 = vunpack.c.h.b16 %v533
      %v1466 = vunpack.c.l.b16 %v534
      %v1467 = vunpack.c.h.b16 %v534
      %v1468 = vunpack.c.l.b16 %v535
      %v1469 = vunpack.c.h.b16 %v535
      %v1470 = vunpack.c.l.b16 %v536
      %v1471 = vunpack.c.h.b16 %v536
      %v1472 = vunpack.c.l.b16 %v537
      %v1473 = vunpack.c.h.b16 %v537
      %v1474 = vunpack.c.l.b16 %v538
      %v1475 = vunpack.c.h.b16 %v538
      %v1476 = vunpack.c.l.b16 %v539
      %v1477 = vunpack.c.h.b16 %v539
      %v1478 = vunpack.c.l.b16 %v540
      %v1479 = vunpack.c.h.b16 %v540
      %v1480 = vunpack.c.l.b16 %v541
      %v1481 = vunpack.c.h.b16 %v541
      %v1482 = vunpack.c.l.b16 %v542
      %v1483 = vunpack.c.h.b16 %v542
      %v1484 = vunpack.c.l.b16 %v543
      %v1485 = vunpack.c.h.b16 %v543
      %v1486 = vunpack.c.l.b16 %v544
      %v1487 = vunpack.c.h.b16 %v544
      %v1488 = vunpack.c.l.b16 %v545
      %v1489 = vunpack.c.h.b16 %v545
      %v1490 = vunpack.c.l.b16 %v546
      %v1491 = vunpack.c.h.b16 %v546
      %v1492 = vunpack.c.l.b16 %v547
      %v1493 = vunpack.c.h.b16 %v547
      %v1494 = vunpack.c.l.b16 %v548
      %v1495 = vunpack.c.h.b16 %v548
      %v1496 = vunpack.c.l.b16 %v549
      %v1497 = vunpack.c.h.b16 %v549
      %v1498 = vunpack.c.l.b16 %v550
      %v1499 = vunpack.c.h.b16 %v550
      %v1500 = vunpack.c.l.b16 %v551
      %v1501 = vunpack.c.h.b16 %v551
      %v1502 = vunpack.c.l.b16 %v552
      %v1503 = vunpack.c.h.b16 %v552
      %v1504 = vunpack.c.l.b16 %v553
      %v1505 = vunpack.c.h.b16 %v553
      %v1506 = vunpack.c.l.b16 %v554
      %v1507 = vunpack.c.h.b16 %v554
      %v1508 = vunpack.c.l.b16 %v555
      %v1509 = vunpack.c.h.b16 %v555
      %v1510 = vunpack.c.l.b16 %v556
      %v1511 = vunpack.c.h.b16 %v556
      %v1512 = vunpack.c.l.b16 %v557
      %v1513 = vunpack.c.h.b16 %v557
      %v1514 = vunpack.c.l.b16 %v558
      %v1515 = vunpack.c.h.b16 %v558
      %v1516 = vunpack.c.l.b16 %v559
      %v1517 = vunpack.c.h.b16 %v559
      %v1518 = vunpack.c.l.b16 %v560
      %v1519 = vunpack.c.h.b16 %v560
      %v1520 = vunpack.c.l.b16 %v561
      %v1521 = vunpack.c.h.b16 %v561
      %v1522 = vunpack.c.l.b16 %v562
      %v1523 = vunpack.c.h.b16 %v562
      %v1524 = vunpack.c.l.b16 %v563
      %v1525 = vunpack.c.h.b16 %v563
      %v1526 = vunpack.c.l.b16 %v564
      %v1527 = vunpack.c.h.b16 %v564
      %v1528 = vunpack.c.l.b16 %v565
      %v1529 = vunpack.c.h.b16 %v565
      %v1530 = vunpack.c.l.b16 %v566
      %v1531 = vunpack.c.h.b16 %v566
      %v1532 = vunpack.c.l.b16 %v567
      %v1533 = vunpack.c.h.b16 %v567
      %v1534 = vunpack.c.l.b16 %v568
      %v1535 = vunpack.c.h.b16 %v568
      %v1536 = vunpack.c.l.b16 %v569
      %v1537 = vunpack.c.h.b16 %v569
      %v1538 = vunpack.c.l.b16 %v570
      %v1539 = vunpack.c.h.b16 %v570
      %v1540 = vunpack.c.l.b16 %v571
      %v1541 = vunpack.c.h.b16 %v571
      %v1542 = vunpack.c.l.b16 %v572
      %v1543 = vunpack.c.h.b16 %v572
      %v1544 = vunpack.c.l.b16 %v573
      %v1545 = vunpack.c.h.b16 %v573
      %v1546 = vunpack.c.l.b16 %v574
      %v1547 = vunpack.c.h.b16 %v574
      %v1548 = vunpack.c.l.b16 %v575
      %v1549 = vunpack.c.h.b16 %v575
      %v1550 = vunpack.c.l.b16 %v576
      %v1551 = vunpack.c.h.b16 %v576
      %v1552 = vunpack.c.l.b16 %v577
      %v1553 = vunpack.c.h.b16 %v577
      %v1554 = vunpack.c.l.b16 %v578
      %v1555 = vunpack.c.h.b16 %v578
      %v1556 = vunpack.c.l.b16 %v579
      %v1557 = vunpack.c.h.b16 %v579
      %v1558 = vpack.c.b16 %v926, %v918
      %v1559 = vpack.c.b16 %v927, %v919
      %v1560 = vpack.c.b16 %v928, %v920
      %v1561 = vpack.c.b16 %v929, %v921
      %v1562 = vpack.c.b16 %v930, %v922
      %v1563 = vpack.c.b16 %v931, %v923
      %v1564 = vpack.c.b16 %v932, %v924
      %v1565 = vpack.c.b16 %v933, %v925
      %v1566 = vpack.c.b16 %v942, %v934
      %v1567 = vpack.c.b16 %v943, %v935
      %v1568 = vpack.c.b16 %v944, %v936
      %v1569 = vpack.c.b16 %v945, %v937
      %v1570 = vpack.c.b16 %v946, %v938
      %v1571 = vpack.c.b16 %v947, %v939
      %v1572 = vpack.c.b16 %v948, %v940
      %v1573 = vpack.c.b16 %v949, %v941
      %v1574 = vpack.c.b16 %v958, %v950
      %v1575 = vpack.c.b16 %v959, %v951
      %v1576 = vpack.c.b16 %v960, %v952
      %v1577 = vpack.c.b16 %v961, %v953
      %v1578 = vpack.c.b16 %v962, %v954
      %v1579 = vpack.c.b16 %v963, %v955
      %v1580 = vpack.c.b16 %v964, %v956
      %v1581 = vpack.c.b16 %v965, %v957
      %v1582 = vpack.c.b16 %v974, %v966
      %v1583 = vpack.c.b16 %v975, %v967
      %v1584 = vpack.c.b16 %v976, %v968
      %v1585 = vpack.c.b16 %v977, %v969
      %v1586 = vpack.c.b16 %v978, %v970
      %v1587 = vpack.c.b16 %v979, %v971
      %v1588 = vpack.c.b16 %v980, %v972
      %v1589 = vpack.c.b16 %v981, %v973
      %v1590 = vpack.c.b16 %v990, %v982
      %v1591 = vpack.c.b16 %v991, %v983
      %v1592 = vpack.c.b16 %v992, %v984
      %v1593 = vpack.c.b16 %v993, %v985
      %v1594 = vpack.c.b16 %v994, %v986
      %v1595 = vpack.c.b16 %v995, %v987
      %v1596 = vpack.c.b16 %v996, %v988
      %v1597 = vpack.c.b16 %v997, %v989
      %v1598 = vpack.c.b16 %v1006, %v998
      %v1599 = vpack.c.b16 %v1007, %v999
      %v1600 = vpack.c.b16 %v1008, %v1000
      %v1601 = vpack.c.b16 %v1009, %v1001
      %v1602 = vpack.c.b16 %v1010, %v1002
      %v1603 = vpack.c.b16 %v1011, %v1003
      %v1604 = vpack.c.b16 %v1012, %v1004
      %v1605 = vpack.c.b16 %v1013, %v1005
      %v1606 = vpack.c.b16 %v1022, %v1014
      %v1607 = vpack.c.b16 %v1023, %v1015
      %v1608 = vpack.c.b16 %v1024, %v1016
      %v1609 = vpack.c.b16 %v1025, %v1017
      %v1610 = vpack.c.b16 %v1026, %v1018
      %v1611 = vpack.c.b16 %v1027, %v1019
      %v1612 = vpack.c.b16 %v1028, %v1020
      %v1613 = vpack.c.b16 %v1029, %v1021
      %v1614 = vpack.c.b16 %v1038, %v1030
      %v1615 = vpack.c.b16 %v1039, %v1031
      %v1616 = vpack.c.b16 %v1040, %v1032
      %v1617 = vpack.c.b16 %v1041, %v1033
      %v1618 = vpack.c.b16 %v1042, %v1034
      %v1619 = vpack.c.b16 %v1043, %v1035
      %v1620 = vpack.c.b16 %v1044, %v1036
      %v1621 = vpack.c.b16 %v1045, %v1037
      %v1622 = vpack.c.b16 %v1054, %v1046
      %v1623 = vpack.c.b16 %v1055, %v1047
      %v1624 = vpack.c.b16 %v1056, %v1048
      %v1625 = vpack.c.b16 %v1057, %v1049
      %v1626 = vpack.c.b16 %v1058, %v1050
      %v1627 = vpack.c.b16 %v1059, %v1051
      %v1628 = vpack.c.b16 %v1060, %v1052
      %v1629 = vpack.c.b16 %v1061, %v1053
      %v1630 = vpack.c.b16 %v1070, %v1062
      %v1631 = vpack.c.b16 %v1071, %v1063
      %v1632 = vpack.c.b16 %v1072, %v1064
      %v1633 = vpack.c.b16 %v1073, %v1065
      %v1634 = vpack.c.b16 %v1074, %v1066
      %v1635 = vpack.c.b16 %v1075, %v1067
      %v1636 = vpack.c.b16 %v1076, %v1068
      %v1637 = vpack.c.b16 %v1077, %v1069
      %v1638 = vpack.c.b16 %v1086, %v1078
      %v1639 = vpack.c.b16 %v1087, %v1079
      %v1640 = vpack.c.b16 %v1088, %v1080
      %v1641 = vpack.c.b16 %v1089, %v1081
      %v1642 = vpack.c.b16 %v1090, %v1082
      %v1643 = vpack.c.b16 %v1091, %v1083
      %v1644 = vpack.c.b16 %v1092, %v1084
      %v1645 = vpack.c.b16 %v1093, %v1085
      %v1646 = vpack.c.b16 %v1102, %v1094
      %v1647 = vpack.c.b16 %v1103, %v1095
      %v1648 = vpack.c.b16 %v1104, %v1096
      %v1649 = vpack.c.b16 %v1105, %v1097
      %v1650 = vpack.c.b16 %v1106, %v1098
      %v1651 = vpack.c.b16 %v1107, %v1099
      %v1652 = vpack.c.b16 %v1108, %v1100
      %v1653 = vpack.c.b16 %v1109, %v1101
      %v1654 = vpack.c.b16 %v1118, %v1110
      %v1655 = vpack.c.b16 %v1119, %v1111
      %v1656 = vpack.c.b16 %v1120, %v1112
      %v1657 = vpack.c.b16 %v1121, %v1113
      %v1658 = vpack.c.b16 %v1122, %v1114
      %v1659 = vpack.c.b16 %v1123, %v1115
      %v1660 = vpack.c.b16 %v1124, %v1116
      %v1661 = vpack.c.b16 %v1125, %v1117
      %v1662 = vpack.c.b16 %v1134, %v1126
      %v1663 = vpack.c.b16 %v1135, %v1127
      %v1664 = vpack.c.b16 %v1136, %v1128
      %v1665 = vpack.c.b16 %v1137, %v1129
      %v1666 = vpack.c.b16 %v1138, %v1130
      %v1667 = vpack.c.b16 %v1139, %v1131
      %v1668 = vpack.c.b16 %v1140, %v1132
      %v1669 = vpack.c.b16 %v1141, %v1133
      %v1670 = vpack.c.b16 %v1150, %v1142
      %v1671 = vpack.c.b16 %v1151, %v1143
      %v1672 = vpack.c.b16 %v1152, %v1144
      %v1673 = vpack.c.b16 %v1153, %v1145
      %v1674 = vpack.c.b16 %v1154, %v1146
      %v1675 = vpack.c.b16 %v1155, %v1147
      %v1676 = vpack.c.b16 %v1156, %v1148
      %v1677 = vpack.c.b16 %v1157, %v1149
      %v1678 = vpack.c.b16 %v1166, %v1158
      %v1679 = vpack.c.b16 %v1167, %v1159
      %v1680 = vpack.c.b16 %v1168, %v1160
      %v1681 = vpack.c.b16 %v1169, %v1161
      %v1682 = vpack.c.b16 %v1170, %v1162
      %v1683 = vpack.c.b16 %v1171, %v1163
      %v1684 = vpack.c.b16 %v1172, %v1164
      %v1685 = vpack.c.b16 %v1173, %v1165
      %v1686 = vpack.c.b16 %v1182, %v1174
      %v1687 = vpack.c.b16 %v1183, %v1175
      %v1688 = vpack.c.b16 %v1184, %v1176
      %v1689 = vpack.c.b16 %v1185, %v1177
      %v1690 = vpack.c.b16 %v1186, %v1178
      %v1691 = vpack.c.b16 %v1187, %v1179
      %v1692 = vpack.c.b16 %v1188, %v1180
      %v1693 = vpack.c.b16 %v1189, %v1181
      %v1694 = vpack.c.b16 %v1198, %v1190
      %v1695 = vpack.c.b16 %v1199, %v1191
      %v1696 = vpack.c.b16 %v1200, %v1192
      %v1697 = vpack.c.b16 %v1201, %v1193
      %v1698 = vpack.c.b16 %v1202, %v1194
      %v1699 = vpack.c.b16 %v1203, %v1195
      %v1700 = vpack.c.b16 %v1204, %v1196
      %v1701 = vpack.c.b16 %v1205, %v1197
      %v1702 = vpack.c.b16 %v1214, %v1206
      %v1703 = vpack.c.b16 %v1215, %v1207
      %v1704 = vpack.c.b16 %v1216, %v1208
      %v1705 = vpack.c.b16 %v1217, %v1209
      %v1706 = vpack.c.b16 %v1218, %v1210
      %v1707 = vpack.c.b16 %v1219, %v1211
      %v1708 = vpack.c.b16 %v1220, %v1212
      %v1709 = vpack.c.b16 %v1221, %v1213
      %v1710 = vpack.c.b16 %v1230, %v1222
      %v1711 = vpack.c.b16 %v1231, %v1223
      %v1712 = vpack.c.b16 %v1232, %v1224
      %v1713 = vpack.c.b16 %v1233, %v1225
      %v1714 = vpack.c.b16 %v1234, %v1226
      %v1715 = vpack.c.b16 %v1235, %v1227
      %v1716 = vpack.c.b16 %v1236, %v1228
      %v1717 = vpack.c.b16 %v1237, %v1229
      %v1718 = vpack.c.b16 %v1246, %v1238
      %v1719 = vpack.c.b16 %v1247, %v1239
      %v1720 = vpack.c.b16 %v1248, %v1240
      %v1721 = vpack.c.b16 %v1249, %v1241
      %v1722 = vpack.c.b16 %v1250, %v1242
      %v1723 = vpack.c.b16 %v1251, %v1243
      %v1724 = vpack.c.b16 %v1252, %v1244
      %v1725 = vpack.c.b16 %v1253, %v1245
      %v1726 = vpack.c.b16 %v1262, %v1254
      %v1727 = vpack.c.b16 %v1263, %v1255
      %v1728 = vpack.c.b16 %v1264, %v1256
      %v1729 = vpack.c.b16 %v1265, %v1257
      %v1730 = vpack.c.b16 %v1266, %v1258
      %v1731 = vpack.c.b16 %v1267, %v1259
      %v1732 = vpack.c.b16 %v1268, %v1260
      %v1733 = vpack.c.b16 %v1269, %v1261
      %v1734 = vpack.c.b16 %v1278, %v1270
      %v1735 = vpack.c.b16 %v1279, %v1271
      %v1736 = vpack.c.b16 %v1280, %v1272
      %v1737 = vpack.c.b16 %v1281, %v1273
      %v1738 = vpack.c.b16 %v1282, %v1274
      %v1739 = vpack.c.b16 %v1283, %v1275
      %v1740 = vpack.c.b16 %v1284, %v1276
      %v1741 = vpack.c.b16 %v1285, %v1277
      %v1742 = vpack.c.b16 %v1294, %v1286
      %v1743 = vpack.c.b16 %v1295, %v1287
      %v1744 = vpack.c.b16 %v1296, %v1288
      %v1745 = vpack.c.b16 %v1297, %v1289
      %v1746 = vpack.c.b16 %v1298, %v1290
      %v1747 = vpack.c.b16 %v1299, %v1291
      %v1748 = vpack.c.b16 %v1300, %v1292
      %v1749 = vpack.c.b16 %v1301, %v1293
      %v1750 = vpack.c.b16 %v1310, %v1302
      %v1751 = vpack.c.b16 %v1311, %v1303
      %v1752 = vpack.c.b16 %v1312, %v1304
      %v1753 = vpack.c.b16 %v1313, %v1305
      %v1754 = vpack.c.b16 %v1314, %v1306
      %v1755 = vpack.c.b16 %v1315, %v1307
      %v1756 = vpack.c.b16 %v1316, %v1308
      %v1757 = vpack.c.b16 %v1317, %v1309
      %v1758 = vpack.c.b16 %v1326, %v1318
      %v1759 = vpack.c.b16 %v1327, %v1319
      %v1760 = vpack.c.b16 %v1328, %v1320
      %v1761 = vpack.c.b16 %v1329, %v1321
      %v1762 = vpack.c.b16 %v1330, %v1322
      %v1763 = vpack.c.b16 %v1331, %v1323
      %v1764 = vpack.c.b16 %v1332, %v1324
      %v1765 = vpack.c.b16 %v1333, %v1325
      %v1766 = vpack.c.b16 %v1342, %v1334
      %v1767 = vpack.c.b16 %v1343, %v1335
      %v1768 = vpack.c.b16 %v1344, %v1336
      %v1769 = vpack.c.b16 %v1345, %v1337
      %v1770 = vpack.c.b16 %v1346, %v1338
      %v1771 = vpack.c.b16 %v1347, %v1339
      %v1772 = vpack.c.b16 %v1348, %v1340
      %v1773 = vpack.c.b16 %v1349, %v1341
      %v1774 = vpack.c.b16 %v1358, %v1350
      %v1775 = vpack.c.b16 %v1359, %v1351
      %v1776 = vpack.c.b16 %v1360, %v1352
      %v1777 = vpack.c.b16 %v1361, %v1353
      %v1778 = vpack.c.b16 %v1362, %v1354
      %v1779 = vpack.c.b16 %v1363, %v1355
      %v1780 = vpack.c.b16 %v1364, %v1356
      %v1781 = vpack.c.b16 %v1365, %v1357
      %v1782 = vpack.c.b16 %v1374, %v1366
      %v1783 = vpack.c.b16 %v1375, %v1367
      %v1784 = vpack.c.b16 %v1376, %v1368
      %v1785 = vpack.c.b16 %v1377, %v1369
      %v1786 = vpack.c.b16 %v1378, %v1370
      %v1787 = vpack.c.b16 %v1379, %v1371
      %v1788 = vpack.c.b16 %v1380, %v1372
      %v1789 = vpack.c.b16 %v1381, %v1373
      %v1790 = vpack.c.b16 %v1390, %v1382
      %v1791 = vpack.c.b16 %v1391, %v1383
      %v1792 = vpack.c.b16 %v1392, %v1384
      %v1793 = vpack.c.b16 %v1393, %v1385
      %v1794 = vpack.c.b16 %v1394, %v1386
      %v1795 = vpack.c.b16 %v1395, %v1387
      %v1796 = vpack.c.b16 %v1396, %v1388
      %v1797 = vpack.c.b16 %v1397, %v1389
      %v1798 = vpack.c.b16 %v1406, %v1398
      %v1799 = vpack.c.b16 %v1407, %v1399
      %v1800 = vpack.c.b16 %v1408, %v1400
      %v1801 = vpack.c.b16 %v1409, %v1401
      %v1802 = vpack.c.b16 %v1410, %v1402
      %v1803 = vpack.c.b16 %v1411, %v1403
      %v1804 = vpack.c.b16 %v1412, %v1404
      %v1805 = vpack.c.b16 %v1413, %v1405
      %v1806 = vpack.c.b16 %v1422, %v1414
      %v1807 = vpack.c.b16 %v1423, %v1415
      %v1808 = vpack.c.b16 %v1424, %v1416
      %v1809 = vpack.c.b16 %v1425, %v1417
      %v1810 = vpack.c.b16 %v1426, %v1418
      %v1811 = vpack.c.b16 %v1427, %v1419
      %v1812 = vpack.c.b16 %v1428, %v1420
      %v1813 = vpack.c.b16 %v1429, %v1421
      %v1814 = vpack.c.b16 %v1438, %v1430
      %v1815 = vpack.c.b16 %v1439, %v1431
      %v1816 = vpack.c.b16 %v1440, %v1432
      %v1817 = vpack.c.b16 %v1441, %v1433
      %v1818 = vpack.c.b16 %v1442, %v1434
      %v1819 = vpack.c.b16 %v1443, %v1435
      %v1820 = vpack.c.b16 %v1444, %v1436
      %v1821 = vpack.c.b16 %v1445, %v1437
      %v1822 = vpack.c.b16 %v1454, %v1446
      %v1823 = vpack.c.b16 %v1455, %v1447
      %v1824 = vpack.c.b16 %v1456, %v1448
      %v1825 = vpack.c.b16 %v1457, %v1449
      %v1826 = vpack.c.b16 %v1458, %v1450
      %v1827 = vpack.c.b16 %v1459, %v1451
      %v1828 = vpack.c.b16 %v1460, %v1452
      %v1829 = vpack.c.b16 %v1461, %v1453
      %v1830 = vpack.c.b16 %v1470, %v1462
      %v1831 = vpack.c.b16 %v1471, %v1463
      %v1832 = vpack.c.b16 %v1472, %v1464
      %v1833 = vpack.c.b16 %v1473, %v1465
      %v1834 = vpack.c.b16 %v1474, %v1466
      %v1835 = vpack.c.b16 %v1475, %v1467
      %v1836 = vpack.c.b16 %v1476, %v1468
      %v1837 = vpack.c.b16 %v1477, %v1469
      %v1838 = vpack.c.b16 %v1486, %v1478
      %v1839 = vpack.c.b16 %v1487, %v1479
      %v1840 = vpack.c.b16 %v1488, %v1480
      %v1841 = vpack.c.b16 %v1489, %v1481
      %v1842 = vpack.c.b16 %v1490, %v1482
      %v1843 = vpack.c.b16 %v1491, %v1483
      %v1844 = vpack.c.b16 %v1492, %v1484
      %v1845 = vpack.c.b16 %v1493, %v1485
      %v1846 = vpack.c.b16 %v1502, %v1494
      %v1847 = vpack.c.b16 %v1503, %v1495
      %v1848 = vpack.c.b16 %v1504, %v1496
      %v1849 = vpack.c.b16 %v1505, %v1497
      %v1850 = vpack.c.b16 %v1506, %v1498
      %v1851 = vpack.c.b16 %v1507, %v1499
      %v1852 = vpack.c.b16 %v1508, %v1500
      %v1853 = vpack.c.b16 %v1509, %v1501
      %v1854 = vpack.c.b16 %v1518, %v1510
      %v1855 = vpack.c.b16 %v1519, %v1511
      %v1856 = vpack.c.b16 %v1520, %v1512
      %v1857 = vpack.c.b16 %v1521, %v1513
      %v1858 = vpack.c.b16 %v1522, %v1514
      %v1859 = vpack.c.b16 %v1523, %v1515
      %v1860 = vpack.c.b16 %v1524, %v1516
      %v1861 = vpack.c.b16 %v1525, %v1517
      %v1862 = vpack.c.b16 %v1534, %v1526
      %v1863 = vpack.c.b16 %v1535, %v1527
      %v1864 = vpack.c.b16 %v1536, %v1528
      %v1865 = vpack.c.b16 %v1537, %v1529
      %v1866 = vpack.c.b16 %v1538, %v1530
      %v1867 = vpack.c.b16 %v1539, %v1531
      %v1868 = vpack.c.b16 %v1540, %v1532
      %v1869 = vpack.c.b16 %v1541, %v1533
      %v1870 = vpack.c.b16 %v1550, %v1542
      %v1871 = vpack.c.b16 %v1551, %v1543
      %v1872 = vpack.c.b16 %v1552, %v1544
      %v1873 = vpack.c.b16 %v1553, %v1545
      %v1874 = vpack.c.b16 %v1554, %v1546
      %v1875 = vpack.c.b16 %v1555, %v1547
      %v1876 = vpack.c.b16 %v1556, %v1548
      %v1877 = vpack.c.b16 %v1557, %v1549
      %2198 = vmatpush.bf16.msra.mxu0 %v1614
      %2199 = vmatpush.bf16.msra.mxu0 %v1606
      %2200 = vmatpush.bf16.msra.mxu0 %v1598
      %2201 = vmatpush.bf16.msra.mxu0 %v1590
      %2202 = vmatpush.bf16.msra.mxu0 %v1582
      %2203 = vmatpush.bf16.msra.mxu0 %v1574
      %2204 = vmatpush.bf16.msra.mxu0 %v1566
      %2205 = vmatpush.bf16.msra.mxu0 %v1558
      %2206 = vmatmul.bf16.gmra.mxu0 %v588
      %v2207 = vpop.f32.mrf.mxu0
      %v2208 = vadd.f32 0.0, %v2207
      %v2209 = vpop.f32.mrf.mxu0
      %2210 = vdwg.mxu0
      %2211 = vmatpush.bf16.msra.mxu0 %v1678
      %2212 = vmatpush.bf16.msra.mxu0 %v1670
      %2213 = vmatpush.bf16.msra.mxu0 %v1662
      %2214 = vmatpush.bf16.msra.mxu0 %v1654
      %2215 = vmatpush.bf16.msra.mxu0 %v1646
      %2216 = vmatpush.bf16.msra.mxu0 %v1638
      %2217 = vmatpush.bf16.msra.mxu0 %v1630
      %2218 = vmatpush.bf16.msra.mxu0 %v1622
      %2219 = vmatmul.bf16.gmra.mxu0 %v589
      %v2220 = vpop.f32.mrf.mxu0
      %v2221 = vadd.f32 %v2208, %v2220
      %v2222 = vpop.f32.mrf.mxu0
      %2223 = vdwg.mxu0
      %2224 = vmatpush.bf16.msra.mxu0 %v1742
      %2225 = vmatpush.bf16.msra.mxu0 %v1734
      %2226 = vmatpush.bf16.msra.mxu0 %v1726
      %2227 = vmatpush.bf16.msra.mxu0 %v1718
      %2228 = vmatpush.bf16.msra.mxu0 %v1710
      %2229 = vmatpush.bf16.msra.mxu0 %v1702
      %2230 = vmatpush.bf16.msra.mxu0 %v1694
      %2231 = vmatpush.bf16.msra.mxu0 %v1686
      %2232 = vmatmul.bf16.gmra.mxu0 %v590
      %v2233 = vpop.f32.mrf.mxu0
      %v2234 = vadd.f32 %v2221, %v2233
      %v2235 = vpop.f32.mrf.mxu0
      %2236 = vdwg.mxu0
      %2237 = vmatpush.bf16.msra.mxu0 %v1806
      %2238 = vmatpush.bf16.msra.mxu0 %v1798
      %2239 = vmatpush.bf16.msra.mxu0 %v1790
      %2240 = vmatpush.bf16.msra.mxu0 %v1782
      %2241 = vmatpush.bf16.msra.mxu0 %v1774
      %2242 = vmatpush.bf16.msra.mxu0 %v1766
      %2243 = vmatpush.bf16.msra.mxu0 %v1758
      %2244 = vmatpush.bf16.msra.mxu0 %v1750
      %2245 = vmatmul.bf16.gmra.mxu0 %v591
      %v2246 = vpop.f32.mrf.mxu0
      %v2247 = vadd.f32 %v2234, %v2246
      %v2248 = vpop.f32.mrf.mxu0
      %2249 = vdwg.mxu0
      %2250 = vmatpush.bf16.msra.mxu0 %v1870
      %2251 = vmatpush.bf16.msra.mxu0 %v1862
      %2252 = vmatpush.bf16.msra.mxu0 %v1854
      %2253 = vmatpush.bf16.msra.mxu0 %v1846
      %2254 = vmatpush.bf16.msra.mxu0 %v1838
      %2255 = vmatpush.bf16.msra.mxu0 %v1830
      %2256 = vmatpush.bf16.msra.mxu0 %v1822
      %2257 = vmatpush.bf16.msra.mxu0 %v1814
      %2258 = vmatmul.bf16.gmra.mxu0 %v592
      %v2259 = vpop.f32.mrf.mxu0
      %v2260 = vadd.f32 %v2247, %v2259
      %v2261 = vpop.f32.mrf.mxu0
      %2262 = vdwg.mxu0
      %2263 = vmatpush.bf16.msra.mxu0 %v1615
      %2264 = vmatpush.bf16.msra.mxu0 %v1607
      %2265 = vmatpush.bf16.msra.mxu0 %v1599
      %2266 = vmatpush.bf16.msra.mxu0 %v1591
      %2267 = vmatpush.bf16.msra.mxu0 %v1583
      %2268 = vmatpush.bf16.msra.mxu0 %v1575
      %2269 = vmatpush.bf16.msra.mxu0 %v1567
      %2270 = vmatpush.bf16.msra.mxu0 %v1559
      %2271 = vmatmul.bf16.gmra.mxu0 %v588
      %v2272 = vpop.f32.mrf.mxu0
      %v2273 = vadd.f32 0.0, %v2272
      %v2274 = vpop.f32.mrf.mxu0
      %2275 = vdwg.mxu0
      %2276 = vmatpush.bf16.msra.mxu0 %v1679
      %2277 = vmatpush.bf16.msra.mxu0 %v1671
      %2278 = vmatpush.bf16.msra.mxu0 %v1663
      %2279 = vmatpush.bf16.msra.mxu0 %v1655
      %2280 = vmatpush.bf16.msra.mxu0 %v1647
      %2281 = vmatpush.bf16.msra.mxu0 %v1639
      %2282 = vmatpush.bf16.msra.mxu0 %v1631
      %2283 = vmatpush.bf16.msra.mxu0 %v1623
      %2284 = vmatmul.bf16.gmra.mxu0 %v589
      %v2285 = vpop.f32.mrf.mxu0
      %v2286 = vadd.f32 %v2273, %v2285
      %v2287 = vpop.f32.mrf.mxu0
      %2288 = vdwg.mxu0
      %2289 = vmatpush.bf16.msra.mxu0 %v1743
      %2290 = vmatpush.bf16.msra.mxu0 %v1735
      %2291 = vmatpush.bf16.msra.mxu0 %v1727
      %2292 = vmatpush.bf16.msra.mxu0 %v1719
      %2293 = vmatpush.bf16.msra.mxu0 %v1711
      %2294 = vmatpush.bf16.msra.mxu0 %v1703
      %2295 = vmatpush.bf16.msra.mxu0 %v1695
      %2296 = vmatpush.bf16.msra.mxu0 %v1687
      %2297 = vmatmul.bf16.gmra.mxu0 %v590
      %v2298 = vpop.f32.mrf.mxu0
      %v2299 = vadd.f32 %v2286, %v2298
      %v2300 = vpop.f32.mrf.mxu0
      %2301 = vdwg.mxu0
      %2302 = vmatpush.bf16.msra.mxu0 %v1807
      %2303 = vmatpush.bf16.msra.mxu0 %v1799
      %2304 = vmatpush.bf16.msra.mxu0 %v1791
      %2305 = vmatpush.bf16.msra.mxu0 %v1783
      %2306 = vmatpush.bf16.msra.mxu0 %v1775
      %2307 = vmatpush.bf16.msra.mxu0 %v1767
      %2308 = vmatpush.bf16.msra.mxu0 %v1759
      %2309 = vmatpush.bf16.msra.mxu0 %v1751
      %2310 = vmatmul.bf16.gmra.mxu0 %v591
      %v2311 = vpop.f32.mrf.mxu0
      %v2312 = vadd.f32 %v2299, %v2311
      %v2313 = vpop.f32.mrf.mxu0
      %2314 = vdwg.mxu0
      %2315 = vmatpush.bf16.msra.mxu0 %v1871
      %2316 = vmatpush.bf16.msra.mxu0 %v1863
      %2317 = vmatpush.bf16.msra.mxu0 %v1855
      %2318 = vmatpush.bf16.msra.mxu0 %v1847
      %2319 = vmatpush.bf16.msra.mxu0 %v1839
      %2320 = vmatpush.bf16.msra.mxu0 %v1831
      %2321 = vmatpush.bf16.msra.mxu0 %v1823
      %2322 = vmatpush.bf16.msra.mxu0 %v1815
      %2323 = vmatmul.bf16.gmra.mxu0 %v592
      %v2324 = vpop.f32.mrf.mxu0
      %v2325 = vadd.f32 %v2312, %v2324
      %v2326 = vpop.f32.mrf.mxu0
      %2327 = vdwg.mxu0
      %2328 = vmatpush.bf16.msra.mxu0 %v1616
      %2329 = vmatpush.bf16.msra.mxu0 %v1608
      %2330 = vmatpush.bf16.msra.mxu0 %v1600
      %2331 = vmatpush.bf16.msra.mxu0 %v1592
      %2332 = vmatpush.bf16.msra.mxu0 %v1584
      %2333 = vmatpush.bf16.msra.mxu0 %v1576
      %2334 = vmatpush.bf16.msra.mxu0 %v1568
      %2335 = vmatpush.bf16.msra.mxu0 %v1560
      %2336 = vmatmul.bf16.gmra.mxu0 %v588
      %v2337 = vpop.f32.mrf.mxu0
      %v2338 = vadd.f32 0.0, %v2337
      %v2339 = vpop.f32.mrf.mxu0
      %2340 = vdwg.mxu0
      %2341 = vmatpush.bf16.msra.mxu0 %v1680
      %2342 = vmatpush.bf16.msra.mxu0 %v1672
      %2343 = vmatpush.bf16.msra.mxu0 %v1664
      %2344 = vmatpush.bf16.msra.mxu0 %v1656
      %2345 = vmatpush.bf16.msra.mxu0 %v1648
      %2346 = vmatpush.bf16.msra.mxu0 %v1640
      %2347 = vmatpush.bf16.msra.mxu0 %v1632
      %2348 = vmatpush.bf16.msra.mxu0 %v1624
      %2349 = vmatmul.bf16.gmra.mxu0 %v589
      %v2350 = vpop.f32.mrf.mxu0
      %v2351 = vadd.f32 %v2338, %v2350
      %v2352 = vpop.f32.mrf.mxu0
      %2353 = vdwg.mxu0
      %2354 = vmatpush.bf16.msra.mxu0 %v1744
      %2355 = vmatpush.bf16.msra.mxu0 %v1736
      %2356 = vmatpush.bf16.msra.mxu0 %v1728
      %2357 = vmatpush.bf16.msra.mxu0 %v1720
      %2358 = vmatpush.bf16.msra.mxu0 %v1712
      %2359 = vmatpush.bf16.msra.mxu0 %v1704
      %2360 = vmatpush.bf16.msra.mxu0 %v1696
      %2361 = vmatpush.bf16.msra.mxu0 %v1688
      %2362 = vmatmul.bf16.gmra.mxu0 %v590
      %v2363 = vpop.f32.mrf.mxu0
      %v2364 = vadd.f32 %v2351, %v2363
      %v2365 = vpop.f32.mrf.mxu0
      %2366 = vdwg.mxu0
      %2367 = vmatpush.bf16.msra.mxu0 %v1808
      %2368 = vmatpush.bf16.msra.mxu0 %v1800
      %2369 = vmatpush.bf16.msra.mxu0 %v1792
      %2370 = vmatpush.bf16.msra.mxu0 %v1784
      %2371 = vmatpush.bf16.msra.mxu0 %v1776
      %2372 = vmatpush.bf16.msra.mxu0 %v1768
      %2373 = vmatpush.bf16.msra.mxu0 %v1760
      %2374 = vmatpush.bf16.msra.mxu0 %v1752
      %2375 = vmatmul.bf16.gmra.mxu0 %v591
      %v2376 = vpop.f32.mrf.mxu0
      %v2377 = vadd.f32 %v2364, %v2376
      %v2378 = vpop.f32.mrf.mxu0
      %2379 = vdwg.mxu0
      %2380 = vmatpush.bf16.msra.mxu0 %v1872
      %2381 = vmatpush.bf16.msra.mxu0 %v1864
      %2382 = vmatpush.bf16.msra.mxu0 %v1856
      %2383 = vmatpush.bf16.msra.mxu0 %v1848
      %2384 = vmatpush.bf16.msra.mxu0 %v1840
      %2385 = vmatpush.bf16.msra.mxu0 %v1832
      %2386 = vmatpush.bf16.msra.mxu0 %v1824
      %2387 = vmatpush.bf16.msra.mxu0 %v1816
      %2388 = vmatmul.bf16.gmra.mxu0 %v592
      %v2389 = vpop.f32.mrf.mxu0
      %v2390 = vadd.f32 %v2377, %v2389
      %v2391 = vpop.f32.mrf.mxu0
      %2392 = vdwg.mxu0
      %2393 = vmatpush.bf16.msra.mxu0 %v1617
      %2394 = vmatpush.bf16.msra.mxu0 %v1609
      %2395 = vmatpush.bf16.msra.mxu0 %v1601
      %2396 = vmatpush.bf16.msra.mxu0 %v1593
      %2397 = vmatpush.bf16.msra.mxu0 %v1585
      %2398 = vmatpush.bf16.msra.mxu0 %v1577
      %2399 = vmatpush.bf16.msra.mxu0 %v1569
      %2400 = vmatpush.bf16.msra.mxu0 %v1561
      %2401 = vmatmul.bf16.gmra.mxu0 %v588
      %v2402 = vpop.f32.mrf.mxu0
      %v2403 = vadd.f32 0.0, %v2402
      %v2404 = vpop.f32.mrf.mxu0
      %2405 = vdwg.mxu0
      %2406 = vmatpush.bf16.msra.mxu0 %v1681
      %2407 = vmatpush.bf16.msra.mxu0 %v1673
      %2408 = vmatpush.bf16.msra.mxu0 %v1665
      %2409 = vmatpush.bf16.msra.mxu0 %v1657
      %2410 = vmatpush.bf16.msra.mxu0 %v1649
      %2411 = vmatpush.bf16.msra.mxu0 %v1641
      %2412 = vmatpush.bf16.msra.mxu0 %v1633
      %2413 = vmatpush.bf16.msra.mxu0 %v1625
      %2414 = vmatmul.bf16.gmra.mxu0 %v589
      %v2415 = vpop.f32.mrf.mxu0
      %v2416 = vadd.f32 %v2403, %v2415
      %v2417 = vpop.f32.mrf.mxu0
      %2418 = vdwg.mxu0
      %2419 = vmatpush.bf16.msra.mxu0 %v1745
      %2420 = vmatpush.bf16.msra.mxu0 %v1737
      %2421 = vmatpush.bf16.msra.mxu0 %v1729
      %2422 = vmatpush.bf16.msra.mxu0 %v1721
      %2423 = vmatpush.bf16.msra.mxu0 %v1713
      %2424 = vmatpush.bf16.msra.mxu0 %v1705
      %2425 = vmatpush.bf16.msra.mxu0 %v1697
      %2426 = vmatpush.bf16.msra.mxu0 %v1689
      %2427 = vmatmul.bf16.gmra.mxu0 %v590
      %v2428 = vpop.f32.mrf.mxu0
      %v2429 = vadd.f32 %v2416, %v2428
      %v2430 = vpop.f32.mrf.mxu0
      %2431 = vdwg.mxu0
      %2432 = vmatpush.bf16.msra.mxu0 %v1809
      %2433 = vmatpush.bf16.msra.mxu0 %v1801
      %2434 = vmatpush.bf16.msra.mxu0 %v1793
      %2435 = vmatpush.bf16.msra.mxu0 %v1785
      %2436 = vmatpush.bf16.msra.mxu0 %v1777
      %2437 = vmatpush.bf16.msra.mxu0 %v1769
      %2438 = vmatpush.bf16.msra.mxu0 %v1761
      %2439 = vmatpush.bf16.msra.mxu0 %v1753
      %2440 = vmatmul.bf16.gmra.mxu0 %v591
      %v2441 = vpop.f32.mrf.mxu0
      %v2442 = vadd.f32 %v2429, %v2441
      %v2443 = vpop.f32.mrf.mxu0
      %2444 = vdwg.mxu0
      %2445 = vmatpush.bf16.msra.mxu0 %v1873
      %2446 = vmatpush.bf16.msra.mxu0 %v1865
      %2447 = vmatpush.bf16.msra.mxu0 %v1857
      %2448 = vmatpush.bf16.msra.mxu0 %v1849
      %2449 = vmatpush.bf16.msra.mxu0 %v1841
      %2450 = vmatpush.bf16.msra.mxu0 %v1833
      %2451 = vmatpush.bf16.msra.mxu0 %v1825
      %2452 = vmatpush.bf16.msra.mxu0 %v1817
      %2453 = vmatmul.bf16.gmra.mxu0 %v592
      %v2454 = vpop.f32.mrf.mxu0
      %v2455 = vadd.f32 %v2442, %v2454
      %v2456 = vpop.f32.mrf.mxu0
      %2457 = vdwg.mxu0
      %2458 = vmatpush.bf16.msra.mxu0 %v1618
      %2459 = vmatpush.bf16.msra.mxu0 %v1610
      %2460 = vmatpush.bf16.msra.mxu0 %v1602
      %2461 = vmatpush.bf16.msra.mxu0 %v1594
      %2462 = vmatpush.bf16.msra.mxu0 %v1586
      %2463 = vmatpush.bf16.msra.mxu0 %v1578
      %2464 = vmatpush.bf16.msra.mxu0 %v1570
      %2465 = vmatpush.bf16.msra.mxu0 %v1562
      %2466 = vmatmul.bf16.gmra.mxu0 %v588
      %v2467 = vpop.f32.mrf.mxu0
      %v2468 = vadd.f32 0.0, %v2467
      %v2469 = vpop.f32.mrf.mxu0
      %2470 = vdwg.mxu0
      %2471 = vmatpush.bf16.msra.mxu0 %v1682
      %2472 = vmatpush.bf16.msra.mxu0 %v1674
      %2473 = vmatpush.bf16.msra.mxu0 %v1666
      %2474 = vmatpush.bf16.msra.mxu0 %v1658
      %2475 = vmatpush.bf16.msra.mxu0 %v1650
      %2476 = vmatpush.bf16.msra.mxu0 %v1642
      %2477 = vmatpush.bf16.msra.mxu0 %v1634
      %2478 = vmatpush.bf16.msra.mxu0 %v1626
      %2479 = vmatmul.bf16.gmra.mxu0 %v589
      %v2480 = vpop.f32.mrf.mxu0
      %v2481 = vadd.f32 %v2468, %v2480
      %v2482 = vpop.f32.mrf.mxu0
      %2483 = vdwg.mxu0
      %2484 = vmatpush.bf16.msra.mxu0 %v1746
      %2485 = vmatpush.bf16.msra.mxu0 %v1738
      %2486 = vmatpush.bf16.msra.mxu0 %v1730
      %2487 = vmatpush.bf16.msra.mxu0 %v1722
      %2488 = vmatpush.bf16.msra.mxu0 %v1714
      %2489 = vmatpush.bf16.msra.mxu0 %v1706
      %2490 = vmatpush.bf16.msra.mxu0 %v1698
      %2491 = vmatpush.bf16.msra.mxu0 %v1690
      %2492 = vmatmul.bf16.gmra.mxu0 %v590
      %v2493 = vpop.f32.mrf.mxu0
      %v2494 = vadd.f32 %v2481, %v2493
      %v2495 = vpop.f32.mrf.mxu0
      %2496 = vdwg.mxu0
      %2497 = vmatpush.bf16.msra.mxu0 %v1810
      %2498 = vmatpush.bf16.msra.mxu0 %v1802
      %2499 = vmatpush.bf16.msra.mxu0 %v1794
      %2500 = vmatpush.bf16.msra.mxu0 %v1786
      %2501 = vmatpush.bf16.msra.mxu0 %v1778
      %2502 = vmatpush.bf16.msra.mxu0 %v1770
      %2503 = vmatpush.bf16.msra.mxu0 %v1762
      %2504 = vmatpush.bf16.msra.mxu0 %v1754
      %2505 = vmatmul.bf16.gmra.mxu0 %v591
      %v2506 = vpop.f32.mrf.mxu0
      %v2507 = vadd.f32 %v2494, %v2506
      %v2508 = vpop.f32.mrf.mxu0
      %2509 = vdwg.mxu0
      %2510 = vmatpush.bf16.msra.mxu0 %v1874
      %2511 = vmatpush.bf16.msra.mxu0 %v1866
      %2512 = vmatpush.bf16.msra.mxu0 %v1858
      %2513 = vmatpush.bf16.msra.mxu0 %v1850
      %2514 = vmatpush.bf16.msra.mxu0 %v1842
      %2515 = vmatpush.bf16.msra.mxu0 %v1834
      %2516 = vmatpush.bf16.msra.mxu0 %v1826
      %2517 = vmatpush.bf16.msra.mxu0 %v1818
      %2518 = vmatmul.bf16.gmra.mxu0 %v592
      %v2519 = vpop.f32.mrf.mxu0
      %v2520 = vadd.f32 %v2507, %v2519
      %v2521 = vpop.f32.mrf.mxu0
      %2522 = vdwg.mxu0
      %2523 = vmatpush.bf16.msra.mxu0 %v1619
      %2524 = vmatpush.bf16.msra.mxu0 %v1611
      %2525 = vmatpush.bf16.msra.mxu0 %v1603
      %2526 = vmatpush.bf16.msra.mxu0 %v1595
      %2527 = vmatpush.bf16.msra.mxu0 %v1587
      %2528 = vmatpush.bf16.msra.mxu0 %v1579
      %2529 = vmatpush.bf16.msra.mxu0 %v1571
      %2530 = vmatpush.bf16.msra.mxu0 %v1563
      %2531 = vmatmul.bf16.gmra.mxu0 %v588
      %v2532 = vpop.f32.mrf.mxu0
      %v2533 = vadd.f32 0.0, %v2532
      %v2534 = vpop.f32.mrf.mxu0
      %2535 = vdwg.mxu0
      %2536 = vmatpush.bf16.msra.mxu0 %v1683
      %2537 = vmatpush.bf16.msra.mxu0 %v1675
      %2538 = vmatpush.bf16.msra.mxu0 %v1667
      %2539 = vmatpush.bf16.msra.mxu0 %v1659
      %2540 = vmatpush.bf16.msra.mxu0 %v1651
      %2541 = vmatpush.bf16.msra.mxu0 %v1643
      %2542 = vmatpush.bf16.msra.mxu0 %v1635
      %2543 = vmatpush.bf16.msra.mxu0 %v1627
      %2544 = vmatmul.bf16.gmra.mxu0 %v589
      %v2545 = vpop.f32.mrf.mxu0
      %v2546 = vadd.f32 %v2533, %v2545
      %v2547 = vpop.f32.mrf.mxu0
      %2548 = vdwg.mxu0
      %2549 = vmatpush.bf16.msra.mxu0 %v1747
      %2550 = vmatpush.bf16.msra.mxu0 %v1739
      %2551 = vmatpush.bf16.msra.mxu0 %v1731
      %2552 = vmatpush.bf16.msra.mxu0 %v1723
      %2553 = vmatpush.bf16.msra.mxu0 %v1715
      %2554 = vmatpush.bf16.msra.mxu0 %v1707
      %2555 = vmatpush.bf16.msra.mxu0 %v1699
      %2556 = vmatpush.bf16.msra.mxu0 %v1691
      %2557 = vmatmul.bf16.gmra.mxu0 %v590
      %v2558 = vpop.f32.mrf.mxu0
      %v2559 = vadd.f32 %v2546, %v2558
      %v2560 = vpop.f32.mrf.mxu0
      %2561 = vdwg.mxu0
      %2562 = vmatpush.bf16.msra.mxu0 %v1811
      %2563 = vmatpush.bf16.msra.mxu0 %v1803
      %2564 = vmatpush.bf16.msra.mxu0 %v1795
      %2565 = vmatpush.bf16.msra.mxu0 %v1787
      %2566 = vmatpush.bf16.msra.mxu0 %v1779
      %2567 = vmatpush.bf16.msra.mxu0 %v1771
      %2568 = vmatpush.bf16.msra.mxu0 %v1763
      %2569 = vmatpush.bf16.msra.mxu0 %v1755
      %2570 = vmatmul.bf16.gmra.mxu0 %v591
      %v2571 = vpop.f32.mrf.mxu0
      %v2572 = vadd.f32 %v2559, %v2571
      %v2573 = vpop.f32.mrf.mxu0
      %2574 = vdwg.mxu0
      %2575 = vmatpush.bf16.msra.mxu0 %v1875
      %2576 = vmatpush.bf16.msra.mxu0 %v1867
      %2577 = vmatpush.bf16.msra.mxu0 %v1859
      %2578 = vmatpush.bf16.msra.mxu0 %v1851
      %2579 = vmatpush.bf16.msra.mxu0 %v1843
      %2580 = vmatpush.bf16.msra.mxu0 %v1835
      %2581 = vmatpush.bf16.msra.mxu0 %v1827
      %2582 = vmatpush.bf16.msra.mxu0 %v1819
      %2583 = vmatmul.bf16.gmra.mxu0 %v592
      %v2584 = vpop.f32.mrf.mxu0
      %v2585 = vadd.f32 %v2572, %v2584
      %v2586 = vpop.f32.mrf.mxu0
      %2587 = vdwg.mxu0
      %2588 = vmatpush.bf16.msra.mxu0 %v1620
      %2589 = vmatpush.bf16.msra.mxu0 %v1612
      %2590 = vmatpush.bf16.msra.mxu0 %v1604
      %2591 = vmatpush.bf16.msra.mxu0 %v1596
      %2592 = vmatpush.bf16.msra.mxu0 %v1588
      %2593 = vmatpush.bf16.msra.mxu0 %v1580
      %2594 = vmatpush.bf16.msra.mxu0 %v1572
      %2595 = vmatpush.bf16.msra.mxu0 %v1564
      %2596 = vmatmul.bf16.gmra.mxu0 %v588
      %v2597 = vpop.f32.mrf.mxu0
      %v2598 = vadd.f32 0.0, %v2597
      %v2599 = vpop.f32.mrf.mxu0
      %2600 = vdwg.mxu0
      %2601 = vmatpush.bf16.msra.mxu0 %v1684
      %2602 = vmatpush.bf16.msra.mxu0 %v1676
      %2603 = vmatpush.bf16.msra.mxu0 %v1668
      %2604 = vmatpush.bf16.msra.mxu0 %v1660
      %2605 = vmatpush.bf16.msra.mxu0 %v1652
      %2606 = vmatpush.bf16.msra.mxu0 %v1644
      %2607 = vmatpush.bf16.msra.mxu0 %v1636
      %2608 = vmatpush.bf16.msra.mxu0 %v1628
      %2609 = vmatmul.bf16.gmra.mxu0 %v589
      %v2610 = vpop.f32.mrf.mxu0
      %v2611 = vadd.f32 %v2598, %v2610
      %v2612 = vpop.f32.mrf.mxu0
      %2613 = vdwg.mxu0
      %2614 = vmatpush.bf16.msra.mxu0 %v1748
      %2615 = vmatpush.bf16.msra.mxu0 %v1740
      %2616 = vmatpush.bf16.msra.mxu0 %v1732
      %2617 = vmatpush.bf16.msra.mxu0 %v1724
      %2618 = vmatpush.bf16.msra.mxu0 %v1716
      %2619 = vmatpush.bf16.msra.mxu0 %v1708
      %2620 = vmatpush.bf16.msra.mxu0 %v1700
      %2621 = vmatpush.bf16.msra.mxu0 %v1692
      %2622 = vmatmul.bf16.gmra.mxu0 %v590
      %v2623 = vpop.f32.mrf.mxu0
      %v2624 = vadd.f32 %v2611, %v2623
      %v2625 = vpop.f32.mrf.mxu0
      %2626 = vdwg.mxu0
      %2627 = vmatpush.bf16.msra.mxu0 %v1812
      %2628 = vmatpush.bf16.msra.mxu0 %v1804
      %2629 = vmatpush.bf16.msra.mxu0 %v1796
      %2630 = vmatpush.bf16.msra.mxu0 %v1788
      %2631 = vmatpush.bf16.msra.mxu0 %v1780
      %2632 = vmatpush.bf16.msra.mxu0 %v1772
      %2633 = vmatpush.bf16.msra.mxu0 %v1764
      %2634 = vmatpush.bf16.msra.mxu0 %v1756
      %2635 = vmatmul.bf16.gmra.mxu0 %v591
      %v2636 = vpop.f32.mrf.mxu0
      %v2637 = vadd.f32 %v2624, %v2636
      %v2638 = vpop.f32.mrf.mxu0
      %2639 = vdwg.mxu0
      %2640 = vmatpush.bf16.msra.mxu0 %v1876
      %2641 = vmatpush.bf16.msra.mxu0 %v1868
      %2642 = vmatpush.bf16.msra.mxu0 %v1860
      %2643 = vmatpush.bf16.msra.mxu0 %v1852
      %2644 = vmatpush.bf16.msra.mxu0 %v1844
      %2645 = vmatpush.bf16.msra.mxu0 %v1836
      %2646 = vmatpush.bf16.msra.mxu0 %v1828
      %2647 = vmatpush.bf16.msra.mxu0 %v1820
      %2648 = vmatmul.bf16.gmra.mxu0 %v592
      %v2649 = vpop.f32.mrf.mxu0
      %v2650 = vadd.f32 %v2637, %v2649
      %v2651 = vpop.f32.mrf.mxu0
      %2652 = vdwg.mxu0
      %2653 = vmatpush.bf16.msra.mxu0 %v1621
      %2654 = vmatpush.bf16.msra.mxu0 %v1613
      %2655 = vmatpush.bf16.msra.mxu0 %v1605
      %2656 = vmatpush.bf16.msra.mxu0 %v1597
      %2657 = vmatpush.bf16.msra.mxu0 %v1589
      %2658 = vmatpush.bf16.msra.mxu0 %v1581
      %2659 = vmatpush.bf16.msra.mxu0 %v1573
      %2660 = vmatpush.bf16.msra.mxu0 %v1565
      %2661 = vmatmul.bf16.gmra.mxu0 %v588
      %v2662 = vpop.f32.mrf.mxu0
      %v2663 = vadd.f32 0.0, %v2662
      %v2664 = vpop.f32.mrf.mxu0
      %2665 = vdwg.mxu0
      %2666 = vmatpush.bf16.msra.mxu0 %v1685
      %2667 = vmatpush.bf16.msra.mxu0 %v1677
      %2668 = vmatpush.bf16.msra.mxu0 %v1669
      %2669 = vmatpush.bf16.msra.mxu0 %v1661
      %2670 = vmatpush.bf16.msra.mxu0 %v1653
      %2671 = vmatpush.bf16.msra.mxu0 %v1645
      %2672 = vmatpush.bf16.msra.mxu0 %v1637
      %2673 = vmatpush.bf16.msra.mxu0 %v1629
      %2674 = vmatmul.bf16.gmra.mxu0 %v589
      %v2675 = vpop.f32.mrf.mxu0
      %v2676 = vadd.f32 %v2663, %v2675
      %v2677 = vpop.f32.mrf.mxu0
      %2678 = vdwg.mxu0
      %2679 = vmatpush.bf16.msra.mxu0 %v1749
      %2680 = vmatpush.bf16.msra.mxu0 %v1741
      %2681 = vmatpush.bf16.msra.mxu0 %v1733
      %2682 = vmatpush.bf16.msra.mxu0 %v1725
      %2683 = vmatpush.bf16.msra.mxu0 %v1717
      %2684 = vmatpush.bf16.msra.mxu0 %v1709
      %2685 = vmatpush.bf16.msra.mxu0 %v1701
      %2686 = vmatpush.bf16.msra.mxu0 %v1693
      %2687 = vmatmul.bf16.gmra.mxu0 %v590
      %v2688 = vpop.f32.mrf.mxu0
      %v2689 = vadd.f32 %v2676, %v2688
      %v2690 = vpop.f32.mrf.mxu0
      %2691 = vdwg.mxu0
      %2692 = vmatpush.bf16.msra.mxu0 %v1813
      %2693 = vmatpush.bf16.msra.mxu0 %v1805
      %2694 = vmatpush.bf16.msra.mxu0 %v1797
      %2695 = vmatpush.bf16.msra.mxu0 %v1789
      %2696 = vmatpush.bf16.msra.mxu0 %v1781
      %2697 = vmatpush.bf16.msra.mxu0 %v1773
      %2698 = vmatpush.bf16.msra.mxu0 %v1765
      %2699 = vmatpush.bf16.msra.mxu0 %v1757
      %2700 = vmatmul.bf16.gmra.mxu0 %v591
      %v2701 = vpop.f32.mrf.mxu0
      %v2702 = vadd.f32 %v2689, %v2701
      %v2703 = vpop.f32.mrf.mxu0
      %2704 = vdwg.mxu0
      %2705 = vmatpush.bf16.msra.mxu0 %v1877
      %2706 = vmatpush.bf16.msra.mxu0 %v1869
      %2707 = vmatpush.bf16.msra.mxu0 %v1861
      %2708 = vmatpush.bf16.msra.mxu0 %v1853
      %2709 = vmatpush.bf16.msra.mxu0 %v1845
      %2710 = vmatpush.bf16.msra.mxu0 %v1837
      %2711 = vmatpush.bf16.msra.mxu0 %v1829
      %2712 = vmatpush.bf16.msra.mxu0 %v1821
      %2713 = vmatmul.bf16.gmra.mxu0 %v592
      %v2714 = vpop.f32.mrf.mxu0
      %v2715 = vadd.f32 %v2702, %v2714
      %v2716 = vpop.f32.mrf.mxu0
      %2717 = vdwg.mxu0
      %v2718 = vadd.f32 %v249, %v2260
      %v2719 = vadd.f32 %v250, %v2325
      %v2720 = vadd.f32 %v251, %v2390
      %v2721 = vadd.f32 %v252, %v2455
      %v2722 = vadd.f32 %v253, %v2520
      %v2723 = vadd.f32 %v254, %v2585
      %v2724 = vadd.f32 %v255, %v2650
      %v2725 = vadd.f32 %v256, %v2715
      %2726 = vst [vmem:[#allocation2] sm:$0xff] %v2718
      %2727 = vst [vmem:[#allocation2 + $0x8] sm:$0xff] %v2719
      %2728 = vst [vmem:[#allocation2 + $0x10] sm:$0xff] %v2720
      %2729 = vst [vmem:[#allocation2 + $0x18] sm:$0xff] %v2721
      %2730 = vst [vmem:[#allocation2 + $0x20] sm:$0xff] %v2722
      %2731 = vst [vmem:[#allocation2 + $0x28] sm:$0xff] %v2723
      %2732 = vst [vmem:[#allocation2 + $0x30] sm:$0xff] %v2724
      %2733 = vst [vmem:[#allocation2 + $0x38] sm:$0xff] %v2725
      %p2734 = scmp.eq.s32.totalorder %s16, 4
      // Predicated region
      $region45: #{net_forward.7} parent=39 // pred_check
        %p2735 = pneg %p2734
      $region46: #{net_forward.7} parent=39 // pred_check_branch
        %2737 = sbr.rel (%p2735) target = $region48
      $region47: #{net_forward.7} parent=39 // pred_region
        %v2738 = vld [vmem:[#allocation2] sm:$0xff]
        %v2739 = vld [vmem:[#allocation2 + $0x8] sm:$0xff]
        %v2740 = vld [vmem:[#allocation2 + $0x10] sm:$0xff]
        %v2741 = vld [vmem:[#allocation2 + $0x18] sm:$0xff]
        %v2742 = vld [vmem:[#allocation2 + $0x20] sm:$0xff]
        %v2743 = vld [vmem:[#allocation2 + $0x28] sm:$0xff]
        %v2744 = vld [vmem:[#allocation2 + $0x30] sm:$0xff]
        %v2745 = vld [vmem:[#allocation2 + $0x38] sm:$0xff]
        %v2746 = vld [vmem:[%s2] sm:$0xff]
        %v2748 = vperm.slane %v2746, 0
        %v2749 = vperm.slane %v2746, 1
        %v2750 = vperm.slane %v2746, 2
        %v2751 = vperm.slane %v2746, 3
        %v2752 = vperm.slane %v2746, 4
        %v2753 = vperm.slane %v2746, 5
        %v2754 = vperm.slane %v2746, 6
        %v2755 = vperm.slane %v2746, 7
        %v2764 = vadd.f32 %v2738, %v2748
        %v2765 = vadd.f32 %v2739, %v2749
        %v2766 = vadd.f32 %v2740, %v2750
        %v2767 = vadd.f32 %v2741, %v2751
        %v2768 = vadd.f32 %v2742, %v2752
        %v2769 = vadd.f32 %v2743, %v2753
        %v2770 = vadd.f32 %v2744, %v2754
        %v2771 = vadd.f32 %v2745, %v2755
        %v2772 = vmax.f32 %v2764, 0.0
        %v2773 = vmax.f32 %v2765, 0.0
        %v2774 = vmax.f32 %v2766, 0.0
        %v2775 = vmax.f32 %v2767, 0.0
        %v2776 = vmax.f32 %v2768, 0.0
        %v2777 = vmax.f32 %v2769, 0.0
        %v2778 = vmax.f32 %v2770, 0.0
        %v2779 = vmax.f32 %v2771, 0.0
        %v2780 = vpack.c.bf16 %v2772, %v2772
        %v2781 = vpack.c.bf16 %v2773, %v2773
        %v2782 = vpack.c.bf16 %v2774, %v2774
        %v2783 = vpack.c.bf16 %v2775, %v2775
        %v2784 = vpack.c.bf16 %v2776, %v2776
        %v2785 = vpack.c.bf16 %v2777, %v2777
        %v2786 = vpack.c.bf16 %v2778, %v2778
        %v2787 = vpack.c.bf16 %v2779, %v2779
        %v2788 = vld [vmem:[%s3] sm:$0xf]
        %v2789 = vld [vmem:[%s3 + $0x4] sm:$0xf]
        %v2790 = vld [vmem:[%s3 + $0x8] sm:$0xf]
        %v2791 = vld [vmem:[%s3 + $0xc] sm:$0xf]
        %v2792 = vld [vmem:[%s3 + $0x10] sm:$0xf]
        %v2793 = vld [vmem:[%s3 + $0x14] sm:$0xf]
        %v2794 = vld [vmem:[%s3 + $0x18] sm:$0xf]
        %v2795 = vld [vmem:[%s3 + $0x1c] sm:$0xf]
        %v2796 = vld [vmem:[%s3 + $0x20] sm:$0xf]
        %v2797 = vld [vmem:[%s3 + $0x24] sm:$0xf]
        %v2798 = vld [vmem:[%s3 + $0x28] sm:$0xf]
        %v2799 = vld [vmem:[%s3 + $0x2c] sm:$0xf]
        %v2800 = vld [vmem:[%s3 + $0x30] sm:$0xf]
        %v2801 = vld [vmem:[%s3 + $0x34] sm:$0xf]
        %v2802 = vld [vmem:[%s3 + $0x38] sm:$0xf]
        %v2803 = vld [vmem:[%s3 + $0x3c] sm:$0xf]
        %v2804 = vld [vmem:[%s3 + $0x40] sm:$0xf]
        %v2805 = vld [vmem:[%s3 + $0x44] sm:$0xf]
        %v2806 = vld [vmem:[%s3 + $0x48] sm:$0xf]
        %v2807 = vld [vmem:[%s3 + $0x4c] sm:$0xf]
        %v2808 = vld [vmem:[%s3 + $0x50] sm:$0xf]
        %v2809 = vld [vmem:[%s3 + $0x54] sm:$0xf]
        %v2810 = vld [vmem:[%s3 + $0x58] sm:$0xf]
        %v2811 = vld [vmem:[%s3 + $0x5c] sm:$0xf]
        %v2812 = vld [vmem:[%s3 + $0x60] sm:$0xf]
        %v2813 = vld [vmem:[%s3 + $0x64] sm:$0xf]
        %v2814 = vld [vmem:[%s3 + $0x68] sm:$0xf]
        %v2815 = vld [vmem:[%s3 + $0x6c] sm:$0xf]
        %v2816 = vld [vmem:[%s3 + $0x70] sm:$0xf]
        %v2817 = vld [vmem:[%s3 + $0x74] sm:$0xf]
        %v2818 = vld [vmem:[%s3 + $0x78] sm:$0xf]
        %v2819 = vld [vmem:[%s3 + $0x7c] sm:$0xf]
        %v2820 = vld [vmem:[%s3 + $0x80] sm:$0xf]
        %v2821 = vld [vmem:[%s3 + $0x84] sm:$0xf]
        %v2822 = vld [vmem:[%s3 + $0x88] sm:$0xf]
        %v2823 = vld [vmem:[%s3 + $0x8c] sm:$0xf]
        %v2824 = vld [vmem:[%s3 + $0x90] sm:$0xf]
        %v2825 = vld [vmem:[%s3 + $0x94] sm:$0xf]
        %v2826 = vld [vmem:[%s3 + $0x98] sm:$0xf]
        %v2827 = vld [vmem:[%s3 + $0x9c] sm:$0xf]
        %v2828 = vld [vmem:[%s3 + $0xa0] sm:$0xf]
        %v2829 = vld [vmem:[%s3 + $0xa4] sm:$0xf]
        %v2830 = vld [vmem:[%s3 + $0xa8] sm:$0xf]
        %v2831 = vld [vmem:[%s3 + $0xac] sm:$0xf]
        %v2832 = vld [vmem:[%s3 + $0xb0] sm:$0xf]
        %v2833 = vld [vmem:[%s3 + $0xb4] sm:$0xf]
        %v2834 = vld [vmem:[%s3 + $0xb8] sm:$0xf]
        %v2835 = vld [vmem:[%s3 + $0xbc] sm:$0xf]
        %v2836 = vld [vmem:[%s3 + $0xc0] sm:$0xf]
        %v2837 = vld [vmem:[%s3 + $0xc4] sm:$0xf]
        %v2838 = vld [vmem:[%s3 + $0xc8] sm:$0xf]
        %v2839 = vld [vmem:[%s3 + $0xcc] sm:$0xf]
        %v2840 = vld [vmem:[%s3 + $0xd0] sm:$0xf]
        %v2841 = vld [vmem:[%s3 + $0xd4] sm:$0xf]
        %v2842 = vld [vmem:[%s3 + $0xd8] sm:$0xf]
        %v2843 = vld [vmem:[%s3 + $0xdc] sm:$0xf]
        %v2844 = vld [vmem:[%s3 + $0xe0] sm:$0xf]
        %v2845 = vld [vmem:[%s3 + $0xe4] sm:$0xf]
        %v2846 = vld [vmem:[%s3 + $0xe8] sm:$0xf]
        %v2847 = vld [vmem:[%s3 + $0xec] sm:$0xf]
        %v2848 = vld [vmem:[%s3 + $0xf0] sm:$0xf]
        %v2849 = vld [vmem:[%s3 + $0xf4] sm:$0xf]
        %v2850 = vld [vmem:[%s3 + $0xf8] sm:$0xf]
        %v2851 = vld [vmem:[%s3 + $0xfc] sm:$0xf]
        %v2852 = vld [vmem:[%s3 + $0x100] sm:$0xf]
        %v2853 = vld [vmem:[%s3 + $0x104] sm:$0xf]
        %v2854 = vld [vmem:[%s3 + $0x108] sm:$0xf]
        %v2855 = vld [vmem:[%s3 + $0x10c] sm:$0xf]
        %v2856 = vld [vmem:[%s3 + $0x110] sm:$0xf]
        %v2857 = vld [vmem:[%s3 + $0x114] sm:$0xf]
        %v2858 = vld [vmem:[%s3 + $0x118] sm:$0xf]
        %v2859 = vld [vmem:[%s3 + $0x11c] sm:$0xf]
        %v2860 = vld [vmem:[%s3 + $0x120] sm:$0xf]
        %v2861 = vld [vmem:[%s3 + $0x124] sm:$0xf]
        %v2862 = vld [vmem:[%s3 + $0x128] sm:$0xf]
        %v2863 = vld [vmem:[%s3 + $0x12c] sm:$0xf]
        %v2864 = vld [vmem:[%s3 + $0x130] sm:$0xf]
        %v2865 = vld [vmem:[%s3 + $0x134] sm:$0xf]
        %v2866 = vld [vmem:[%s3 + $0x138] sm:$0xf]
        %v2867 = vld [vmem:[%s3 + $0x13c] sm:$0xf]
        %v2868 = vld [vmem:[%s3 + $0x140] sm:$0xf]
        %v2869 = vld [vmem:[%s3 + $0x144] sm:$0xf]
        %v2870 = vld [vmem:[%s3 + $0x148] sm:$0xf]
        %v2871 = vld [vmem:[%s3 + $0x14c] sm:$0xf]
        %v2872 = vld [vmem:[%s3 + $0x150] sm:$0xf]
        %v2873 = vld [vmem:[%s3 + $0x154] sm:$0xf]
        %v2874 = vld [vmem:[%s3 + $0x158] sm:$0xf]
        %v2875 = vld [vmem:[%s3 + $0x15c] sm:$0xf]
        %v2876 = vld [vmem:[%s3 + $0x160] sm:$0xf]
        %v2877 = vld [vmem:[%s3 + $0x164] sm:$0xf]
        %v2878 = vld [vmem:[%s3 + $0x168] sm:$0xf]
        %v2879 = vld [vmem:[%s3 + $0x16c] sm:$0xf]
        %v2880 = vld [vmem:[%s3 + $0x170] sm:$0xf]
        %v2881 = vld [vmem:[%s3 + $0x174] sm:$0xf]
        %v2882 = vld [vmem:[%s3 + $0x178] sm:$0xf]
        %v2883 = vld [vmem:[%s3 + $0x17c] sm:$0xf]
        %v2884 = vld [vmem:[%s3 + $0x180] sm:$0xf]
        %v2885 = vld [vmem:[%s3 + $0x184] sm:$0xf]
        %v2886 = vld [vmem:[%s3 + $0x188] sm:$0xf]
        %v2887 = vld [vmem:[%s3 + $0x18c] sm:$0xf]
        %v2888 = vld [vmem:[%s3 + $0x190] sm:$0xf]
        %v2889 = vld [vmem:[%s3 + $0x194] sm:$0xf]
        %v2890 = vld [vmem:[%s3 + $0x198] sm:$0xf]
        %v2891 = vld [vmem:[%s3 + $0x19c] sm:$0xf]
        %v2892 = vld [vmem:[%s3 + $0x1a0] sm:$0xf]
        %v2893 = vld [vmem:[%s3 + $0x1a4] sm:$0xf]
        %v2894 = vld [vmem:[%s3 + $0x1a8] sm:$0xf]
        %v2895 = vld [vmem:[%s3 + $0x1ac] sm:$0xf]
        %v2896 = vld [vmem:[%s3 + $0x1b0] sm:$0xf]
        %v2897 = vld [vmem:[%s3 + $0x1b4] sm:$0xf]
        %v2898 = vld [vmem:[%s3 + $0x1b8] sm:$0xf]
        %v2899 = vld [vmem:[%s3 + $0x1bc] sm:$0xf]
        %v2900 = vld [vmem:[%s3 + $0x1c0] sm:$0xf]
        %v2901 = vld [vmem:[%s3 + $0x1c4] sm:$0xf]
        %v2902 = vld [vmem:[%s3 + $0x1c8] sm:$0xf]
        %v2903 = vld [vmem:[%s3 + $0x1cc] sm:$0xf]
        %v2904 = vld [vmem:[%s3 + $0x1d0] sm:$0xf]
        %v2905 = vld [vmem:[%s3 + $0x1d4] sm:$0xf]
        %v2906 = vld [vmem:[%s3 + $0x1d8] sm:$0xf]
        %v2907 = vld [vmem:[%s3 + $0x1dc] sm:$0xf]
        %v2908 = vld [vmem:[%s3 + $0x1e0] sm:$0xf]
        %v2909 = vld [vmem:[%s3 + $0x1e4] sm:$0xf]
        %v2910 = vld [vmem:[%s3 + $0x1e8] sm:$0xf]
        %v2911 = vld [vmem:[%s3 + $0x1ec] sm:$0xf]
        %v2912 = vld [vmem:[%s3 + $0x1f0] sm:$0xf]
        %v2913 = vld [vmem:[%s3 + $0x1f4] sm:$0xf]
        %v2914 = vld [vmem:[%s3 + $0x1f8] sm:$0xf]
        %v2915 = vld [vmem:[%s3 + $0x1fc] sm:$0xf]
        %v2916 = vld [vmem:[%s4] sm:$0x1]
        %v2918 = vperm.slane %v2916, 0
        %v3048 = vunpack.c.l.b16 %v2788
        %v3049 = vunpack.c.l.b16 %v2789
        %v3050 = vunpack.c.l.b16 %v2790
        %v3051 = vunpack.c.l.b16 %v2791
        %v3052 = vunpack.c.l.b16 %v2792
        %v3053 = vunpack.c.l.b16 %v2793
        %v3054 = vunpack.c.l.b16 %v2794
        %v3055 = vunpack.c.l.b16 %v2795
        %v3056 = vunpack.c.l.b16 %v2796
        %v3057 = vunpack.c.l.b16 %v2797
        %v3058 = vunpack.c.l.b16 %v2798
        %v3059 = vunpack.c.l.b16 %v2799
        %v3060 = vunpack.c.l.b16 %v2800
        %v3061 = vunpack.c.l.b16 %v2801
        %v3062 = vunpack.c.l.b16 %v2802
        %v3063 = vunpack.c.l.b16 %v2803
        %v3064 = vunpack.c.l.b16 %v2804
        %v3065 = vunpack.c.l.b16 %v2805
        %v3066 = vunpack.c.l.b16 %v2806
        %v3067 = vunpack.c.l.b16 %v2807
        %v3068 = vunpack.c.l.b16 %v2808
        %v3069 = vunpack.c.l.b16 %v2809
        %v3070 = vunpack.c.l.b16 %v2810
        %v3071 = vunpack.c.l.b16 %v2811
        %v3072 = vunpack.c.l.b16 %v2812
        %v3073 = vunpack.c.l.b16 %v2813
        %v3074 = vunpack.c.l.b16 %v2814
        %v3075 = vunpack.c.l.b16 %v2815
        %v3076 = vunpack.c.l.b16 %v2816
        %v3077 = vunpack.c.l.b16 %v2817
        %v3078 = vunpack.c.l.b16 %v2818
        %v3079 = vunpack.c.l.b16 %v2819
        %v3080 = vunpack.c.l.b16 %v2820
        %v3081 = vunpack.c.l.b16 %v2821
        %v3082 = vunpack.c.l.b16 %v2822
        %v3083 = vunpack.c.l.b16 %v2823
        %v3084 = vunpack.c.l.b16 %v2824
        %v3085 = vunpack.c.l.b16 %v2825
        %v3086 = vunpack.c.l.b16 %v2826
        %v3087 = vunpack.c.l.b16 %v2827
        %v3088 = vunpack.c.l.b16 %v2828
        %v3089 = vunpack.c.l.b16 %v2829
        %v3090 = vunpack.c.l.b16 %v2830
        %v3091 = vunpack.c.l.b16 %v2831
        %v3092 = vunpack.c.l.b16 %v2832
        %v3093 = vunpack.c.l.b16 %v2833
        %v3094 = vunpack.c.l.b16 %v2834
        %v3095 = vunpack.c.l.b16 %v2835
        %v3096 = vunpack.c.l.b16 %v2836
        %v3097 = vunpack.c.l.b16 %v2837
        %v3098 = vunpack.c.l.b16 %v2838
        %v3099 = vunpack.c.l.b16 %v2839
        %v3100 = vunpack.c.l.b16 %v2840
        %v3101 = vunpack.c.l.b16 %v2841
        %v3102 = vunpack.c.l.b16 %v2842
        %v3103 = vunpack.c.l.b16 %v2843
        %v3104 = vunpack.c.l.b16 %v2844
        %v3105 = vunpack.c.l.b16 %v2845
        %v3106 = vunpack.c.l.b16 %v2846
        %v3107 = vunpack.c.l.b16 %v2847
        %v3108 = vunpack.c.l.b16 %v2848
        %v3109 = vunpack.c.l.b16 %v2849
        %v3110 = vunpack.c.l.b16 %v2850
        %v3111 = vunpack.c.l.b16 %v2851
        %v3112 = vunpack.c.l.b16 %v2852
        %v3113 = vunpack.c.l.b16 %v2853
        %v3114 = vunpack.c.l.b16 %v2854
        %v3115 = vunpack.c.l.b16 %v2855
        %v3116 = vunpack.c.l.b16 %v2856
        %v3117 = vunpack.c.l.b16 %v2857
        %v3118 = vunpack.c.l.b16 %v2858
        %v3119 = vunpack.c.l.b16 %v2859
        %v3120 = vunpack.c.l.b16 %v2860
        %v3121 = vunpack.c.l.b16 %v2861
        %v3122 = vunpack.c.l.b16 %v2862
        %v3123 = vunpack.c.l.b16 %v2863
        %v3124 = vunpack.c.l.b16 %v2864
        %v3125 = vunpack.c.l.b16 %v2865
        %v3126 = vunpack.c.l.b16 %v2866
        %v3127 = vunpack.c.l.b16 %v2867
        %v3128 = vunpack.c.l.b16 %v2868
        %v3129 = vunpack.c.l.b16 %v2869
        %v3130 = vunpack.c.l.b16 %v2870
        %v3131 = vunpack.c.l.b16 %v2871
        %v3132 = vunpack.c.l.b16 %v2872
        %v3133 = vunpack.c.l.b16 %v2873
        %v3134 = vunpack.c.l.b16 %v2874
        %v3135 = vunpack.c.l.b16 %v2875
        %v3136 = vunpack.c.l.b16 %v2876
        %v3137 = vunpack.c.l.b16 %v2877
        %v3138 = vunpack.c.l.b16 %v2878
        %v3139 = vunpack.c.l.b16 %v2879
        %v3140 = vunpack.c.l.b16 %v2880
        %v3141 = vunpack.c.l.b16 %v2881
        %v3142 = vunpack.c.l.b16 %v2882
        %v3143 = vunpack.c.l.b16 %v2883
        %v3144 = vunpack.c.l.b16 %v2884
        %v3145 = vunpack.c.l.b16 %v2885
        %v3146 = vunpack.c.l.b16 %v2886
        %v3147 = vunpack.c.l.b16 %v2887
        %v3148 = vunpack.c.l.b16 %v2888
        %v3149 = vunpack.c.l.b16 %v2889
        %v3150 = vunpack.c.l.b16 %v2890
        %v3151 = vunpack.c.l.b16 %v2891
        %v3152 = vunpack.c.l.b16 %v2892
        %v3153 = vunpack.c.l.b16 %v2893
        %v3154 = vunpack.c.l.b16 %v2894
        %v3155 = vunpack.c.l.b16 %v2895
        %v3156 = vunpack.c.l.b16 %v2896
        %v3157 = vunpack.c.l.b16 %v2897
        %v3158 = vunpack.c.l.b16 %v2898
        %v3159 = vunpack.c.l.b16 %v2899
        %v3160 = vunpack.c.l.b16 %v2900
        %v3161 = vunpack.c.l.b16 %v2901
        %v3162 = vunpack.c.l.b16 %v2902
        %v3163 = vunpack.c.l.b16 %v2903
        %v3164 = vunpack.c.l.b16 %v2904
        %v3165 = vunpack.c.l.b16 %v2905
        %v3166 = vunpack.c.l.b16 %v2906
        %v3167 = vunpack.c.l.b16 %v2907
        %v3168 = vunpack.c.l.b16 %v2908
        %v3169 = vunpack.c.l.b16 %v2909
        %v3170 = vunpack.c.l.b16 %v2910
        %v3171 = vunpack.c.l.b16 %v2911
        %v3172 = vunpack.c.l.b16 %v2912
        %v3173 = vunpack.c.l.b16 %v2913
        %v3174 = vunpack.c.l.b16 %v2914
        %v3175 = vunpack.c.l.b16 %v2915
        %v3176 = vpack.c.b16 %v3049, %v3048
        %v3177 = vpack.c.b16 %v3051, %v3050
        %v3178 = vpack.c.b16 %v3053, %v3052
        %v3179 = vpack.c.b16 %v3055, %v3054
        %v3180 = vpack.c.b16 %v3057, %v3056
        %v3181 = vpack.c.b16 %v3059, %v3058
        %v3182 = vpack.c.b16 %v3061, %v3060
        %v3183 = vpack.c.b16 %v3063, %v3062
        %v3184 = vpack.c.b16 %v3065, %v3064
        %v3185 = vpack.c.b16 %v3067, %v3066
        %v3186 = vpack.c.b16 %v3069, %v3068
        %v3187 = vpack.c.b16 %v3071, %v3070
        %v3188 = vpack.c.b16 %v3073, %v3072
        %v3189 = vpack.c.b16 %v3075, %v3074
        %v3190 = vpack.c.b16 %v3077, %v3076
        %v3191 = vpack.c.b16 %v3079, %v3078
        %v3192 = vpack.c.b16 %v3081, %v3080
        %v3193 = vpack.c.b16 %v3083, %v3082
        %v3194 = vpack.c.b16 %v3085, %v3084
        %v3195 = vpack.c.b16 %v3087, %v3086
        %v3196 = vpack.c.b16 %v3089, %v3088
        %v3197 = vpack.c.b16 %v3091, %v3090
        %v3198 = vpack.c.b16 %v3093, %v3092
        %v3199 = vpack.c.b16 %v3095, %v3094
        %v3200 = vpack.c.b16 %v3097, %v3096
        %v3201 = vpack.c.b16 %v3099, %v3098
        %v3202 = vpack.c.b16 %v3101, %v3100
        %v3203 = vpack.c.b16 %v3103, %v3102
        %v3204 = vpack.c.b16 %v3105, %v3104
        %v3205 = vpack.c.b16 %v3107, %v3106
        %v3206 = vpack.c.b16 %v3109, %v3108
        %v3207 = vpack.c.b16 %v3111, %v3110
        %v3208 = vpack.c.b16 %v3113, %v3112
        %v3209 = vpack.c.b16 %v3115, %v3114
        %v3210 = vpack.c.b16 %v3117, %v3116
        %v3211 = vpack.c.b16 %v3119, %v3118
        %v3212 = vpack.c.b16 %v3121, %v3120
        %v3213 = vpack.c.b16 %v3123, %v3122
        %v3214 = vpack.c.b16 %v3125, %v3124
        %v3215 = vpack.c.b16 %v3127, %v3126
        %v3216 = vpack.c.b16 %v3129, %v3128
        %v3217 = vpack.c.b16 %v3131, %v3130
        %v3218 = vpack.c.b16 %v3133, %v3132
        %v3219 = vpack.c.b16 %v3135, %v3134
        %v3220 = vpack.c.b16 %v3137, %v3136
        %v3221 = vpack.c.b16 %v3139, %v3138
        %v3222 = vpack.c.b16 %v3141, %v3140
        %v3223 = vpack.c.b16 %v3143, %v3142
        %v3224 = vpack.c.b16 %v3145, %v3144
        %v3225 = vpack.c.b16 %v3147, %v3146
        %v3226 = vpack.c.b16 %v3149, %v3148
        %v3227 = vpack.c.b16 %v3151, %v3150
        %v3228 = vpack.c.b16 %v3153, %v3152
        %v3229 = vpack.c.b16 %v3155, %v3154
        %v3230 = vpack.c.b16 %v3157, %v3156
        %v3231 = vpack.c.b16 %v3159, %v3158
        %v3232 = vpack.c.b16 %v3161, %v3160
        %v3233 = vpack.c.b16 %v3163, %v3162
        %v3234 = vpack.c.b16 %v3165, %v3164
        %v3235 = vpack.c.b16 %v3167, %v3166
        %v3236 = vpack.c.b16 %v3169, %v3168
        %v3237 = vpack.c.b16 %v3171, %v3170
        %v3238 = vpack.c.b16 %v3173, %v3172
        %v3239 = vpack.c.b16 %v3175, %v3174
        %3304 = vmatpush.bf16.msra.mxu0 %v3183
        %3305 = vmatpush.bf16.msra.mxu0 %v3182
        %3306 = vmatpush.bf16.msra.mxu0 %v3181
        %3307 = vmatpush.bf16.msra.mxu0 %v3180
        %3308 = vmatpush.bf16.msra.mxu0 %v3179
        %3309 = vmatpush.bf16.msra.mxu0 %v3178
        %3310 = vmatpush.bf16.msra.mxu0 %v3177
        %3311 = vmatpush.bf16.msra.mxu0 %v3176
        %3312 = vmatmul.bf16.gmra.mxu0 %v2780
        %v3313 = vpop.f32.mrf.mxu0
        %v3314 = vadd.f32 %v2918, %v3313
        %v3315 = vpop.f32.mrf.mxu0
        %3316 = vdwg.mxu0
        %3317 = vmatpush.bf16.msra.mxu0 %v3191
        %3318 = vmatpush.bf16.msra.mxu0 %v3190
        %3319 = vmatpush.bf16.msra.mxu0 %v3189
        %3320 = vmatpush.bf16.msra.mxu0 %v3188
        %3321 = vmatpush.bf16.msra.mxu0 %v3187
        %3322 = vmatpush.bf16.msra.mxu0 %v3186
        %3323 = vmatpush.bf16.msra.mxu0 %v3185
        %3324 = vmatpush.bf16.msra.mxu0 %v3184
        %3325 = vmatmul.bf16.gmra.mxu0 %v2781
        %v3326 = vpop.f32.mrf.mxu0
        %v3327 = vadd.f32 %v3314, %v3326
        %v3328 = vpop.f32.mrf.mxu0
        %3329 = vdwg.mxu0
        %3330 = vmatpush.bf16.msra.mxu0 %v3199
        %3331 = vmatpush.bf16.msra.mxu0 %v3198
        %3332 = vmatpush.bf16.msra.mxu0 %v3197
        %3333 = vmatpush.bf16.msra.mxu0 %v3196
        %3334 = vmatpush.bf16.msra.mxu0 %v3195
        %3335 = vmatpush.bf16.msra.mxu0 %v3194
        %3336 = vmatpush.bf16.msra.mxu0 %v3193
        %3337 = vmatpush.bf16.msra.mxu0 %v3192
        %3338 = vmatmul.bf16.gmra.mxu0 %v2782
        %v3339 = vpop.f32.mrf.mxu0
        %v3340 = vadd.f32 %v3327, %v3339
        %v3341 = vpop.f32.mrf.mxu0
        %3342 = vdwg.mxu0
        %3343 = vmatpush.bf16.msra.mxu0 %v3207
        %3344 = vmatpush.bf16.msra.mxu0 %v3206
        %3345 = vmatpush.bf16.msra.mxu0 %v3205
        %3346 = vmatpush.bf16.msra.mxu0 %v3204
        %3347 = vmatpush.bf16.msra.mxu0 %v3203
        %3348 = vmatpush.bf16.msra.mxu0 %v3202
        %3349 = vmatpush.bf16.msra.mxu0 %v3201
        %3350 = vmatpush.bf16.msra.mxu0 %v3200
        %3351 = vmatmul.bf16.gmra.mxu0 %v2783
        %v3352 = vpop.f32.mrf.mxu0
        %v3353 = vadd.f32 %v3340, %v3352
        %v3354 = vpop.f32.mrf.mxu0
        %3355 = vdwg.mxu0
        %3356 = vmatpush.bf16.msra.mxu0 %v3215
        %3357 = vmatpush.bf16.msra.mxu0 %v3214
        %3358 = vmatpush.bf16.msra.mxu0 %v3213
        %3359 = vmatpush.bf16.msra.mxu0 %v3212
        %3360 = vmatpush.bf16.msra.mxu0 %v3211
        %3361 = vmatpush.bf16.msra.mxu0 %v3210
        %3362 = vmatpush.bf16.msra.mxu0 %v3209
        %3363 = vmatpush.bf16.msra.mxu0 %v3208
        %3364 = vmatmul.bf16.gmra.mxu0 %v2784
        %v3365 = vpop.f32.mrf.mxu0
        %v3366 = vadd.f32 %v3353, %v3365
        %v3367 = vpop.f32.mrf.mxu0
        %3368 = vdwg.mxu0
        %3369 = vmatpush.bf16.msra.mxu0 %v3223
        %3370 = vmatpush.bf16.msra.mxu0 %v3222
        %3371 = vmatpush.bf16.msra.mxu0 %v3221
        %3372 = vmatpush.bf16.msra.mxu0 %v3220
        %3373 = vmatpush.bf16.msra.mxu0 %v3219
        %3374 = vmatpush.bf16.msra.mxu0 %v3218
        %3375 = vmatpush.bf16.msra.mxu0 %v3217
        %3376 = vmatpush.bf16.msra.mxu0 %v3216
        %3377 = vmatmul.bf16.gmra.mxu0 %v2785
        %v3378 = vpop.f32.mrf.mxu0
        %v3379 = vadd.f32 %v3366, %v3378
        %v3380 = vpop.f32.mrf.mxu0
        %3381 = vdwg.mxu0
        %3382 = vmatpush.bf16.msra.mxu0 %v3231
        %3383 = vmatpush.bf16.msra.mxu0 %v3230
        %3384 = vmatpush.bf16.msra.mxu0 %v3229
        %3385 = vmatpush.bf16.msra.mxu0 %v3228
        %3386 = vmatpush.bf16.msra.mxu0 %v3227
        %3387 = vmatpush.bf16.msra.mxu0 %v3226
        %3388 = vmatpush.bf16.msra.mxu0 %v3225
        %3389 = vmatpush.bf16.msra.mxu0 %v3224
        %3390 = vmatmul.bf16.gmra.mxu0 %v2786
        %v3391 = vpop.f32.mrf.mxu0
        %v3392 = vadd.f32 %v3379, %v3391
        %v3393 = vpop.f32.mrf.mxu0
        %3394 = vdwg.mxu0
        %3395 = vmatpush.bf16.msra.mxu0 %v3239
        %3396 = vmatpush.bf16.msra.mxu0 %v3238
        %3397 = vmatpush.bf16.msra.mxu0 %v3237
        %3398 = vmatpush.bf16.msra.mxu0 %v3236
        %3399 = vmatpush.bf16.msra.mxu0 %v3235
        %3400 = vmatpush.bf16.msra.mxu0 %v3234
        %3401 = vmatpush.bf16.msra.mxu0 %v3233
        %3402 = vmatpush.bf16.msra.mxu0 %v3232
        %3403 = vmatmul.bf16.gmra.mxu0 %v2787
        %v3404 = vpop.f32.mrf.mxu0
        %v3405 = vadd.f32 %v3392, %v3404
        %v3406 = vpop.f32.mrf.mxu0
        %3407 = vdwg.mxu0
        %3408 = vst [vmem:[%s5] sm:$0xff] %v3405
      $region48: #{net_forward.7} parent=39 // pred_fallthru
        _
      // Predicated region
      $region49: #{net_forward.7} parent=39 // pred_check
        %p3409 = pneg %p144
      $region50: #{net_forward.7} parent=39 // pred_check_branch
        %3411 = sbr.rel (%p3409) target = $region52
      $region51: #{net_forward.7} parent=39 // pred_region
        _
      $region52: #{net_forward.7} parent=39 // pred_fallthru
        _
      // Predicated region
      $region53: #{net_forward.7} parent=39 // pred_check
        %p3412 = pneg %p144
      $region54: #{net_forward.7} parent=39 // pred_check_branch
        %3414 = sbr.rel (%p3412) target = $region56
      $region55: #{net_forward.7} parent=39 // pred_region
        _
      $region56: #{net_forward.7} parent=39 // pred_fallthru
        _
    $region40: #{net_forward.7} parent=5 // pred_fallthru
      _
    %p3415 = scmp.le.s32.totalorder 2, %s11
    // Predicated region
    $region57: #{net_forward.7} parent=5 // pred_check
      %p3416 = pneg %p3415
    $region58: #{net_forward.7} parent=5 // pred_check_branch
      %3418 = sbr.rel (%p3416) target = $region60
    $region59: #{net_forward.7} parent=5 // pred_region
      %s3419 = ssub.s32 %s11, 2
    $region60: #{net_forward.7} parent=5 // pred_fallthru
      _
  $region6: #{net_forward.7} parent=0 // loop_footer
    %s15 = sadd.s32 1, %s11
  $region7: #{net_forward.7} parent=0 // loop_footer_branch
    %10 = sbr.rel target = $region3
  $region8: #{net_forward.7} parent=0 // loop_exit
    _

</llo_original>
